<compile_context>
chip_gen: v7x
topology: tpu7x:2x2x1
jax: 0.10.0
libtpu: 0.0.40
codegen_flags: <defaults>
</compile_context>

<pallas_src>
import functools

import jax
import jax.numpy as jnp
import numpy as np
from jax.experimental import pallas as pl
from jax.experimental.pallas import tpu as pltpu


def _window_attention_kernel(x_ref, wqkv_ref, bqkv_ref, wproj_ref, bproj_ref,
                             bm_ref, o_ref, *scratch,
                             num_heads, head_dim, nW, lane_concat):
    Bw, N, C = x_ref.shape
    H, d = num_heads, head_dim
    in_dt = x_ref.dtype

    # ---- fused QKV projection: one (Bw*N, C) @ (C, 3C) MXU matmul ----------
    x2d = x_ref[...].reshape(Bw * N, C)
    qkv = jnp.dot(x2d, wqkv_ref[...], preferred_element_type=jnp.float32)
    qkv = (qkv + bqkv_ref[...]).astype(in_dt)              # (Bw*N, 3C)
    qkv = qkv.reshape(Bw, N, 3 * C)

    # ---- merge (window, head) into ONE batch axis ---------------------------
    # Stack order is window-major / head-minor: flat batch index = b*H + h.
    # The stacking is the only per-head work left; the heavy ops below are all
    # single batched ops over Bw*H.
    q = jnp.stack([qkv[:, :, h * d:(h + 1) * d] for h in range(H)], axis=1)
    k = jnp.stack([qkv[:, :, C + h * d:C + (h + 1) * d] for h in range(H)],
                  axis=1)
    v = jnp.stack([qkv[:, :, 2 * C + h * d:2 * C + (h + 1) * d]
                   for h in range(H)], axis=1)
    q = q.reshape(Bw * H, N, d)
    k = k.reshape(Bw * H, N, d)
    v = v.reshape(Bw * H, N, d)

    # ---- attention scores for all windows & heads in one batched matmul ----
    s = jnp.einsum("bnd,bmd->bnm", q, k,
                   preferred_element_type=jnp.float32)     # (Bw*H, N, N)

    # ---- single combined (rel-pos bias + shift mask) add --------------------
    # bm_ref is (nW*H, N, N).  Flat batch index b*H + h splits as
    #   (b // nW) * (nW*H) + (b % nW) * H + h
    # so a leading-dim reshape lines the broadcast up exactly like the
    # reference's view(B_//nW, nW, H, N, N) + mask.
    s = s.reshape(Bw // nW, nW * H, N, N) + bm_ref[...]
    s = s.reshape(Bw * H, N, N)

    # ---- softmax in f32; reciprocal goes to the EUP slot (co-issues free) ---
    s = s - jnp.max(s, axis=-1, keepdims=True)
    p = jnp.exp(s)
    p = p * pl.reciprocal(jnp.sum(p, axis=-1, keepdims=True), approx=True)

    # ---- context for all windows & heads in one batched matmul --------------
    ctx = jnp.einsum("bnm,bmd->bnd", p.astype(in_dt), v,
                     preferred_element_type=jnp.float32)   # (Bw*H, N, d)
    ctx = ctx.astype(in_dt).reshape(Bw, H, N, d)

    if lane_concat:
        # Lane-dense reassembly as a value: one concatenate, no masked partial
        # stores through a VMEM scratch.
        ctx2d = jnp.concatenate([ctx[:, h] for h in range(H)], axis=-1)
        ctx2d = ctx2d.reshape(Bw * N, C)
    else:
        # Compatibility fallback: per-head stores into an input-dtype scratch.
        ctx_sc, = scratch
        for h in range(H):
            ctx_sc[:, :, h * d:(h + 1) * d] = ctx[:, h]
        ctx2d = ctx_sc[...].reshape(Bw * N, C)

    # ---- output projection: one (Bw*N, C) @ (C, C) MXU matmul ---------------
    out = jnp.dot(ctx2d, wproj_ref[...], preferred_element_type=jnp.float32)
    out = out + bproj_ref[...]
    o_ref[...] = out.reshape(Bw, N, C).astype(o_ref.dtype)


def _tpu_vmem_capacity_bytes():
    """Best-effort per-TensorCore VMEM capacity; conservative fallback."""
    try:
        return int(pltpu.get_tpu_info().vmem_capacity_bytes)
    except Exception:
        return 64 << 20   # assume a v7x-class (small-VMEM) part if unknown


def _choose_block_windows(B_, N, C, num_heads, nW, itemsize, vmem_bytes):
    """Pick how many windows each grid step processes (generation-aware).

    Bw must divide B_ and be a multiple of nW so the resident combined
    bias+mask table tiles the block exactly.  We target enough rows (Bw*N) to
    fill the MXU M dimension for the two big projections while keeping the
    per-step working set inside a budget derived from the chip's VMEM, and on
    small-VMEM / 2-TensorCore parts we keep enough grid steps for the
    "parallel" axis to shard across cores.
    """
    cands = [d for d in range(nW, B_ + 1, nW) if B_ % d == 0]
    if not cands:
        return B_

    small_vmem = vmem_bytes <= (96 << 20)        # v7x-class: 64 MiB / TC
    budget = (12 << 20) if small_vmem else (28 << 20)
    row_target = 512 if small_vmem else 1024     # v6e/v5e: fill the MXU M dim
    min_steps = 8 if small_vmem else 1           # v7x: keep both TCs busy

    H, f32 = num_heads, 4

    def per_step_bytes(bw):
        rows = bw * N
        b = 2 * 2 * rows * C * itemsize                    # x + out, 2 buffers
        b += rows * 3 * C * (f32 + itemsize)               # qkv f32 + cast
        b += 3 * rows * C * itemsize                       # stacked q, k, v
        b += bw * H * N * N * (3 * f32 + itemsize)         # scores / exp / p
        b += rows * C * (2 * f32 + 2 * itemsize)           # ctx f32/cast, out
        return b

    resident = 2 * (3 * C * C + C * C + 4 * C) * itemsize  # weights+biases x2
    resident += 2 * H * nW * N * N * f32                   # bias+mask table x2

    feasible = [d for d in cands if per_step_bytes(d) + resident <= budget]
    if not feasible:
        feasible = cands[:1]
    stepped = [d for d in feasible if (B_ // d) >= min_steps]
    if not stepped and min_steps > 1:
        stepped = [d for d in feasible if (B_ // d) >= 2]
    pool = stepped if stepped else feasible
    for d in pool:
        if d * N >= row_target:
            return d
    return pool[-1]


def window_attention_pallas(x, params, rel_pos_bias, mask, *, num_heads,
                            block_windows=None):
    """x: (B_, N, C); mask: (nW, N, N) additive (0 / large-negative) or None."""
    B_, N, C = x.shape
    head_dim = C // num_heads
    scale = float(head_dim) ** -0.5

    # Fold the qk scale into the q rows of W_qkv / b_qkv (exact up to rounding):
    #   scale * (x @ Wq^T + bq) == x @ (scale*Wq)^T + scale*bq
    wqkv = params["wqkv"]                     # (3C, C), torch Linear layout
    bqkv = params["bqkv"]                     # (3C,)
    q_scale = jnp.concatenate([jnp.full((C,), scale, wqkv.dtype),
                               jnp.ones((2 * C,), wqkv.dtype)])
    wqkv_t = (wqkv * q_scale[:, None]).T      # (C, 3C)
    bqkv_s = (bqkv * q_scale).reshape(1, 3 * C)
    wproj_t = params["wproj"].T               # (C, C)
    bproj = params["bproj"].reshape(1, C)     # (1, C)

    nW = mask.shape[0] if mask is not None else 1
    if mask is not None:
        assert B_ % nW == 0, "B_ must be a multiple of num_windows"

    # Combined (relative-position bias + mask) table, (nW*H, N, N) f32,
    # window-major / head-minor -- added to the scores with a single broadcast.
    bias_f32 = rel_pos_bias.astype(jnp.float32)              # (H, N, N)
    if mask is not None:
        bm = mask.astype(jnp.float32)[:, None] + bias_f32[None]   # (nW, H, N, N)
    else:
        bm = bias_f32[None]                                        # (1, H, N, N)
    bm = bm.reshape(nW * num_heads, N, N)

    vmem_bytes = _tpu_vmem_capacity_bytes()
    small_vmem = vmem_bytes <= (96 << 20)
    if block_windows is None:
        Bw = _choose_block_windows(B_, N, C, num_heads, nW, x.dtype.itemsize,
                                   vmem_bytes)
    else:
        Bw = block_windows
    assert B_ % Bw == 0 and Bw % nW == 0
    grid = (B_ // Bw,)
    vmem_limit = (40 << 20) if small_vmem else (64 << 20)

    in_specs = [
        pl.BlockSpec((Bw, N, C), lambda b: (b, 0, 0)),               # x block
        pl.BlockSpec((C, 3 * C), lambda b: (0, 0)),                  # W_qkv^T
        pl.BlockSpec((1, 3 * C), lambda b: (0, 0)),                  # b_qkv
        pl.BlockSpec((C, C), lambda b: (0, 0)),                      # W_proj^T
        pl.BlockSpec((1, C), lambda b: (0, 0)),                      # b_proj
        pl.BlockSpec((nW * num_heads, N, N), lambda b: (0, 0, 0)),   # bias+mask
    ]
    args = (x, wqkv_t, bqkv_s, wproj_t, bproj, bm)

    def build(lane_concat):
        kernel = functools.partial(_window_attention_kernel,
                                   num_heads=num_heads, head_dim=head_dim,
                                   nW=nW, lane_concat=lane_concat)
        scratch = [] if lane_concat else [pltpu.VMEM((Bw, N, C), x.dtype)]
        grid_spec = pltpu.PrefetchScalarGridSpec(
            num_scalar_prefetch=0,
            grid=grid,
            in_specs=in_specs,
            out_specs=pl.BlockSpec((Bw, N, C), lambda b: (b, 0, 0)),
            scratch_shapes=scratch,
        )
        return pl.pallas_call(
            kernel,
            out_shape=jax.ShapeDtypeStruct((B_, N, C), x.dtype),
            grid_spec=grid_spec,
            compiler_params=pltpu.CompilerParams(
                dimension_semantics=("parallel",),
                vmem_limit_bytes=vmem_limit),
        )

    try:
        return build(lane_concat=True)(*args)
    except Exception:
        # Older Mosaic builds may reject unaligned lane-dim concatenation;
        # fall back to the scratch-store reassembly (same numerics).
        return build(lane_concat=False)(*args)


def make_relative_position_index(window_size):
    Wh, Ww = window_size
    coords = np.stack(np.meshgrid(np.arange(Wh), np.arange(Ww), indexing="ij"))
    coords_flatten = coords.reshape(2, -1)                          # (2, N)
    rel = coords_flatten[:, :, None] - coords_flatten[:, None, :]   # (2, N, N)
    rel = rel.transpose(1, 2, 0).astype(np.int64)                   # (N, N, 2)
    rel[:, :, 0] += Wh - 1
    rel[:, :, 1] += Ww - 1
    rel[:, :, 0] *= 2 * Ww - 1
    return rel.sum(-1)                                              # (N, N)


def reference_window_attention(x, params, rel_pos_bias, mask, *, num_heads):
    """Pure-JAX reference mirroring the PyTorch forward (dropout = identity)."""
    B_, N, C = x.shape
    head_dim = C // num_heads
    scale = float(head_dim) ** -0.5
    qkv = x @ params["wqkv"].T + params["bqkv"]
    qkv = qkv.reshape(B_, N, 3, num_heads, head_dim).transpose(2, 0, 3, 1, 4)
    q, k, v = qkv[0], qkv[1], qkv[2]
    q = q * scale
    attn = jnp.einsum("bhnd,bhmd->bhnm", q, k)
    attn = attn + rel_pos_bias[None]
    if mask is not None:
        nW = mask.shape[0]
        attn = attn.reshape(B_ // nW, nW, num_heads, N, N) + mask[None, :, None]
        attn = attn.reshape(B_, num_heads, N, N)
    attn = jax.nn.softmax(attn, axis=-1)
    out = jnp.einsum("bhnm,bhmd->bhnd", attn, v)
    out = out.transpose(0, 2, 1, 3).reshape(B_, N, C)
    return out @ params["wproj"].T + params["bproj"]


if __name__ == "__main__":
    # Small config consistent with the module: dim=32, window 4x4, 4 heads.
    dim = 32
    window_size = (4, 4)
    num_heads = 4
    N = window_size[0] * window_size[1]
    B = 2
    nW = 4
    B_ = B * nW

    key = jax.random.PRNGKey(0)
    ks = jax.random.split(key, 8)

    # Deterministic synthetic parameters (trunc_normal-ish init, std=0.02).
    table = 0.02 * jax.random.truncated_normal(
        ks[0], -2.0, 2.0,
        ((2 * window_size[0] - 1) * (2 * window_size[1] - 1), num_heads),
        dtype=jnp.float32)
    params = {
        "wqkv": 0.05 * jax.random.normal(ks[1], (3 * dim, dim), jnp.float32),
        "bqkv": 0.05 * jax.random.normal(ks[2], (3 * dim,), jnp.float32),
        "wproj": 0.05 * jax.random.normal(ks[3], (dim, dim), jnp.float32),
        "bproj": 0.05 * jax.random.normal(ks[4], (dim,), jnp.float32),
    }

    # Relative position bias gathered once in plain JAX glue (tiny gather).
    rpi = jnp.asarray(make_relative_position_index(window_size))       # (N, N)
    rel_pos_bias = table[rpi.reshape(-1)].reshape(N, N, num_heads)
    rel_pos_bias = jnp.transpose(rel_pos_bias, (2, 0, 1))              # (H, N, N)

    # Inputs: x (B_, N, C); additive 0/-100 shifted-window style mask (nW, N, N).
    # (A true -inf mask that fully masks a row would NaN in both kernel and
    #  reference, exactly like the PyTorch module.)
    x = jax.random.normal(ks[5], (B_, N, dim), jnp.float32)
    mask_bits = jax.random.bernoulli(ks[6], 0.3, (nW, N, N))
    mask = jnp.where(mask_bits, jnp.float32(-100.0), jnp.float32(0.0))

    out = window_attention_pallas(x, params, rel_pos_bias, mask,
                                  num_heads=num_heads)
    out = jax.block_until_ready(out)

    ref = reference_window_attention(x, params, rel_pos_bias, mask,
                                     num_heads=num_heads)
    # Tolerance loosened slightly vs. pure-f32: the kernel folds the qk scale
    # into the weights and uses the EUP approx reciprocal for the softmax.
    np.testing.assert_allclose(np.asarray(out), np.asarray(ref),
                               rtol=2e-3, atol=2e-3)

    # Also exercise the mask=None path (same kernel, bias-only table, nW=1).
    out_nomask = jax.block_until_ready(
        window_attention_pallas(x, params, rel_pos_bias, None,
                                num_heads=num_heads))
    ref_nomask = reference_window_attention(x, params, rel_pos_bias, None,
                                            num_heads=num_heads)
    np.testing.assert_allclose(np.asarray(out_nomask), np.asarray(ref_nomask),
                               rtol=2e-3, atol=2e-3)

    print("KERNEL_OK")
</pallas_src>

<mosaic_0001>
module attributes {stable_mosaic.version = 11 : i64} {
  func.func @_window_attention_kernel(%arg0: i32, %arg1: memref<4x16x32xf32, #tpu.memory_space<vmem>>, %arg2: memref<32x96xf32, #tpu.memory_space<vmem>>, %arg3: memref<1x96xf32, #tpu.memory_space<vmem>>, %arg4: memref<32x32xf32, #tpu.memory_space<vmem>>, %arg5: memref<1x32xf32, #tpu.memory_space<vmem>>, %arg6: memref<16x16x16xf32, #tpu.memory_space<vmem>>, %arg7: memref<4x16x32xf32, #tpu.memory_space<vmem>>) attributes {dimension_semantics = [#tpu.dimension_semantics<parallel>], iteration_bounds = array<i64: 2>, scalar_prefetch = 0 : i64, scratch_operands = 0 : i64, tpu.core_type = #tpu.core_type<tc>, window_params = [{transform_indices = @transform_0, window_bounds = array<i64: 4, 16, 32>}, {pipeline_mode = #tpu.pipeline_mode<synchronous>, transform_indices = @transform_1, window_bounds = array<i64: 32, 96>}, {pipeline_mode = #tpu.pipeline_mode<synchronous>, transform_indices = @transform_2, window_bounds = array<i64: 1, 96>}, {pipeline_mode = #tpu.pipeline_mode<synchronous>, transform_indices = @transform_3, window_bounds = array<i64: 32, 32>}, {pipeline_mode = #tpu.pipeline_mode<synchronous>, transform_indices = @transform_4, window_bounds = array<i64: 1, 32>}, {pipeline_mode = #tpu.pipeline_mode<synchronous>, transform_indices = @transform_5, window_bounds = array<i64: 16, 16, 16>}, {transform_indices = @transform_6, window_bounds = array<i64: 4, 16, 32>}]} {
    %c0 = arith.constant 0 : index
    %c0_0 = arith.constant 0 : index
    %c0_1 = arith.constant 0 : index
    %0 = vector.load %arg1[%c0, %c0_0, %c0_1] : memref<4x16x32xf32, #tpu.memory_space<vmem>>, vector<4x16x32xf32>
    %1 = vector.shape_cast %0 : vector<4x16x32xf32> to vector<64x32xf32>
    %c0_2 = arith.constant 0 : index
    %c0_3 = arith.constant 0 : index
    %2 = vector.load %arg2[%c0_2, %c0_3] : memref<32x96xf32, #tpu.memory_space<vmem>>, vector<32x96xf32>
    %cst = arith.constant dense<0.000000e+00> : vector<64x96xf32>
    %3 = tpu.matmul %1, %2, %cst {dimension_numbers = #tpu.dot_dimension_numbers<[1], [0], [0], [1], [0, 0, 1, 1], [], []>} : vector<64x32xf32>, vector<32x96xf32>, vector<64x96xf32> -> vector<64x96xf32>
    %c0_4 = arith.constant 0 : index
    %c0_5 = arith.constant 0 : index
    %4 = vector.load %arg3[%c0_4, %c0_5] : memref<1x96xf32, #tpu.memory_space<vmem>>, vector<1x96xf32>
    %5 = vector.broadcast %4 : vector<1x96xf32> to vector<64x96xf32>
    %6 = arith.addf %3, %5 : vector<64x96xf32>
    %7 = vector.shape_cast %6 : vector<64x96xf32> to vector<4x16x96xf32>
    %8 = vector.extract_strided_slice %7 {offsets = [0, 0, 0], sizes = [4, 16, 8], strides = [1, 1, 1]} : vector<4x16x96xf32> to vector<4x16x8xf32>
    %9 = vector.extract_strided_slice %7 {offsets = [0, 0, 8], sizes = [4, 16, 8], strides = [1, 1, 1]} : vector<4x16x96xf32> to vector<4x16x8xf32>
    %10 = vector.extract_strided_slice %7 {offsets = [0, 0, 16], sizes = [4, 16, 8], strides = [1, 1, 1]} : vector<4x16x96xf32> to vector<4x16x8xf32>
    %11 = vector.extract_strided_slice %7 {offsets = [0, 0, 24], sizes = [4, 16, 8], strides = [1, 1, 1]} : vector<4x16x96xf32> to vector<4x16x8xf32>
    %12 = vector.shape_cast %8 : vector<4x16x8xf32> to vector<4x1x16x8xf32>
    %13 = vector.shape_cast %9 : vector<4x16x8xf32> to vector<4x1x16x8xf32>
    %14 = vector.shape_cast %10 : vector<4x16x8xf32> to vector<4x1x16x8xf32>
    %15 = vector.shape_cast %11 : vector<4x16x8xf32> to vector<4x1x16x8xf32>
    %16 = tpu.concatenate %12, %13, %14, %15 in 1 : vector<4x1x16x8xf32>, vector<4x1x16x8xf32>, vector<4x1x16x8xf32>, vector<4x1x16x8xf32> -> vector<4x4x16x8xf32>
    %17 = vector.extract_strided_slice %7 {offsets = [0, 0, 32], sizes = [4, 16, 8], strides = [1, 1, 1]} : vector<4x16x96xf32> to vector<4x16x8xf32>
    %18 = vector.extract_strided_slice %7 {offsets = [0, 0, 40], sizes = [4, 16, 8], strides = [1, 1, 1]} : vector<4x16x96xf32> to vector<4x16x8xf32>
    %19 = vector.extract_strided_slice %7 {offsets = [0, 0, 48], sizes = [4, 16, 8], strides = [1, 1, 1]} : vector<4x16x96xf32> to vector<4x16x8xf32>
    %20 = vector.extract_strided_slice %7 {offsets = [0, 0, 56], sizes = [4, 16, 8], strides = [1, 1, 1]} : vector<4x16x96xf32> to vector<4x16x8xf32>
    %21 = vector.shape_cast %17 : vector<4x16x8xf32> to vector<4x1x16x8xf32>
    %22 = vector.shape_cast %18 : vector<4x16x8xf32> to vector<4x1x16x8xf32>
    %23 = vector.shape_cast %19 : vector<4x16x8xf32> to vector<4x1x16x8xf32>
    %24 = vector.shape_cast %20 : vector<4x16x8xf32> to vector<4x1x16x8xf32>
    %25 = tpu.concatenate %21, %22, %23, %24 in 1 : vector<4x1x16x8xf32>, vector<4x1x16x8xf32>, vector<4x1x16x8xf32>, vector<4x1x16x8xf32> -> vector<4x4x16x8xf32>
    %26 = vector.extract_strided_slice %7 {offsets = [0, 0, 64], sizes = [4, 16, 8], strides = [1, 1, 1]} : vector<4x16x96xf32> to vector<4x16x8xf32>
    %27 = vector.extract_strided_slice %7 {offsets = [0, 0, 72], sizes = [4, 16, 8], strides = [1, 1, 1]} : vector<4x16x96xf32> to vector<4x16x8xf32>
    %28 = vector.extract_strided_slice %7 {offsets = [0, 0, 80], sizes = [4, 16, 8], strides = [1, 1, 1]} : vector<4x16x96xf32> to vector<4x16x8xf32>
    %29 = vector.extract_strided_slice %7 {offsets = [0, 0, 88], sizes = [4, 16, 8], strides = [1, 1, 1]} : vector<4x16x96xf32> to vector<4x16x8xf32>
    %30 = vector.shape_cast %26 : vector<4x16x8xf32> to vector<4x1x16x8xf32>
    %31 = vector.shape_cast %27 : vector<4x16x8xf32> to vector<4x1x16x8xf32>
    %32 = vector.shape_cast %28 : vector<4x16x8xf32> to vector<4x1x16x8xf32>
    %33 = vector.shape_cast %29 : vector<4x16x8xf32> to vector<4x1x16x8xf32>
    %34 = tpu.concatenate %30, %31, %32, %33 in 1 : vector<4x1x16x8xf32>, vector<4x1x16x8xf32>, vector<4x1x16x8xf32>, vector<4x1x16x8xf32> -> vector<4x4x16x8xf32>
    %35 = vector.shape_cast %16 : vector<4x4x16x8xf32> to vector<16x16x8xf32>
    %36 = vector.shape_cast %25 : vector<4x4x16x8xf32> to vector<16x16x8xf32>
    %37 = vector.shape_cast %34 : vector<4x4x16x8xf32> to vector<16x16x8xf32>
    "tpu.trace_start"() <{level = 10 : i32, message = "bnd,bmd->bnm"}> : () -> ()
    %cst_6 = arith.constant dense<0.000000e+00> : vector<16x16x16xf32>
    %38 = tpu.matmul %35, %36, %cst_6 {dimension_numbers = #tpu.dot_dimension_numbers<[2], [2], [1], [1], [0, 0, 0, 1, 1, 1], [0], [0]>} : vector<16x16x8xf32>, vector<16x16x8xf32>, vector<16x16x16xf32> -> vector<16x16x16xf32>
    "tpu.trace_stop"() : () -> ()
    %39 = vector.shape_cast %38 : vector<16x16x16xf32> to vector<1x16x16x16xf32>
    %c0_7 = arith.constant 0 : index
    %c0_8 = arith.constant 0 : index
    %c0_9 = arith.constant 0 : index
    %40 = vector.load %arg6[%c0_7, %c0_8, %c0_9] : memref<16x16x16xf32, #tpu.memory_space<vmem>>, vector<16x16x16xf32>
    %41 = vector.shape_cast %40 : vector<16x16x16xf32> to vector<1x16x16x16xf32>
    %42 = arith.addf %39, %41 : vector<1x16x16x16xf32>
    %43 = vector.shape_cast %42 : vector<1x16x16x16xf32> to vector<16x16x16xf32>
    %cst_10 = arith.constant dense<0xFF800000> : vector<16x16xf32>
    %44 = vector.multi_reduction <maximumf>, %43, %cst_10 [2] : vector<16x16x16xf32> to vector<16x16xf32>
    %45 = vector.shape_cast %44 : vector<16x16xf32> to vector<16x16x1xf32>
    %46 = vector.broadcast %45 : vector<16x16x1xf32> to vector<16x16x16xf32>
    %47 = arith.subf %43, %46 : vector<16x16x16xf32>
    %48 = math.exp %47 : vector<16x16x16xf32>
    %cst_11 = arith.constant dense<0.000000e+00> : vector<16x16xf32>
    %49 = vector.multi_reduction <add>, %48, %cst_11 [2] : vector<16x16x16xf32> to vector<16x16xf32>
    %50 = vector.shape_cast %49 : vector<16x16xf32> to vector<16x16x1xf32>
    %51 = tpu.reciprocal %50 {approx = true} : vector<16x16x1xf32> -> vector<16x16x1xf32>
    %52 = vector.broadcast %51 : vector<16x16x1xf32> to vector<16x16x16xf32>
    %53 = arith.mulf %48, %52 : vector<16x16x16xf32>
    "tpu.trace_start"() <{level = 10 : i32, message = "bnm,bmd->bnd"}> : () -> ()
    %cst_12 = arith.constant dense<0.000000e+00> : vector<16x16x8xf32>
    %54 = tpu.matmul %53, %37, %cst_12 {dimension_numbers = #tpu.dot_dimension_numbers<[2], [1], [1], [2], [0, 0, 0, 1, 1, 2], [0], [0]>} : vector<16x16x16xf32>, vector<16x16x8xf32>, vector<16x16x8xf32> -> vector<16x16x8xf32>
    "tpu.trace_stop"() : () -> ()
    %55 = vector.shape_cast %54 : vector<16x16x8xf32> to vector<4x4x16x8xf32>
    %56 = vector.extract_strided_slice %55 {offsets = [0, 0, 0, 0], sizes = [4, 1, 16, 8], strides = [1, 1, 1, 1]} : vector<4x4x16x8xf32> to vector<4x1x16x8xf32>
    %57 = vector.shape_cast %56 : vector<4x1x16x8xf32> to vector<4x16x8xf32>
    %58 = vector.extract_strided_slice %55 {offsets = [0, 1, 0, 0], sizes = [4, 1, 16, 8], strides = [1, 1, 1, 1]} : vector<4x4x16x8xf32> to vector<4x1x16x8xf32>
    %59 = vector.shape_cast %58 : vector<4x1x16x8xf32> to vector<4x16x8xf32>
    %60 = vector.extract_strided_slice %55 {offsets = [0, 2, 0, 0], sizes = [4, 1, 16, 8], strides = [1, 1, 1, 1]} : vector<4x4x16x8xf32> to vector<4x1x16x8xf32>
    %61 = vector.shape_cast %60 : vector<4x1x16x8xf32> to vector<4x16x8xf32>
    %62 = vector.extract_strided_slice %55 {offsets = [0, 3, 0, 0], sizes = [4, 1, 16, 8], strides = [1, 1, 1, 1]} : vector<4x4x16x8xf32> to vector<4x1x16x8xf32>
    %63 = vector.shape_cast %62 : vector<4x1x16x8xf32> to vector<4x16x8xf32>
    %64 = tpu.concatenate %57, %59, %61, %63 in 2 : vector<4x16x8xf32>, vector<4x16x8xf32>, vector<4x16x8xf32>, vector<4x16x8xf32> -> vector<4x16x32xf32>
    %65 = vector.shape_cast %64 : vector<4x16x32xf32> to vector<64x32xf32>
    %c0_13 = arith.constant 0 : index
    %c0_14 = arith.constant 0 : index
    %66 = vector.load %arg4[%c0_13, %c0_14] : memref<32x32xf32, #tpu.memory_space<vmem>>, vector<32x32xf32>
    %cst_15 = arith.constant dense<0.000000e+00> : vector<64x32xf32>
    %67 = tpu.matmul %65, %66, %cst_15 {dimension_numbers = #tpu.dot_dimension_numbers<[1], [0], [0], [1], [0, 0, 1, 1], [], []>} : vector<64x32xf32>, vector<32x32xf32>, vector<64x32xf32> -> vector<64x32xf32>
    %c0_16 = arith.constant 0 : index
    %c0_17 = arith.constant 0 : index
    %68 = vector.load %arg5[%c0_16, %c0_17] : memref<1x32xf32, #tpu.memory_space<vmem>>, vector<1x32xf32>
    %69 = vector.broadcast %68 : vector<1x32xf32> to vector<64x32xf32>
    %70 = arith.addf %67, %69 : vector<64x32xf32>
    %71 = vector.shape_cast %70 : vector<64x32xf32> to vector<4x16x32xf32>
    %c0_18 = arith.constant 0 : index
    %c0_19 = arith.constant 0 : index
    %c0_20 = arith.constant 0 : index
    %72 = vector.load %arg7[%c0_18, %c0_19, %c0_20] : memref<4x16x32xf32, #tpu.memory_space<vmem>>, vector<4x16x32xf32>
    tpu.vector_store %arg7[%c0_18, %c0_19, %c0_20], %71 {strides = array<i32>} : memref<4x16x32xf32, #tpu.memory_space<vmem>>, vector<4x16x32xf32>,
    return
  }
  func.func @transform_0(%arg0: i32) -> (i32, i32, i32) {
    %c0_i32 = arith.constant 0 : i32
    %c0_i32_0 = arith.constant 0 : i32
    %c0_i32_1 = arith.constant 0 : i32
    return %arg0, %c0_i32, %c0_i32_0 : i32, i32, i32
  }
  func.func @transform_1(%arg0: i32) -> (i32, i32) {
    %c0_i32 = arith.constant 0 : i32
    %c0_i32_0 = arith.constant 0 : i32
    %c0_i32_1 = arith.constant 0 : i32
    return %c0_i32, %c0_i32_0 : i32, i32
  }
  func.func @transform_2(%arg0: i32) -> (i32, i32) {
    %c0_i32 = arith.constant 0 : i32
    %c0_i32_0 = arith.constant 0 : i32
    %c0_i32_1 = arith.constant 0 : i32
    return %c0_i32, %c0_i32_0 : i32, i32
  }
  func.func @transform_3(%arg0: i32) -> (i32, i32) {
    %c0_i32 = arith.constant 0 : i32
    %c0_i32_0 = arith.constant 0 : i32
    %c0_i32_1 = arith.constant 0 : i32
    return %c0_i32, %c0_i32_0 : i32, i32
  }
  func.func @transform_4(%arg0: i32) -> (i32, i32) {
    %c0_i32 = arith.constant 0 : i32
    %c0_i32_0 = arith.constant 0 : i32
    %c0_i32_1 = arith.constant 0 : i32
    return %c0_i32, %c0_i32_0 : i32, i32
  }
  func.func @transform_5(%arg0: i32) -> (i32, i32, i32) {
    %c0_i32 = arith.constant 0 : i32
    %c0_i32_0 = arith.constant 0 : i32
    %c0_i32_1 = arith.constant 0 : i32
    %c0_i32_2 = arith.constant 0 : i32
    return %c0_i32, %c0_i32_0, %c0_i32_1 : i32, i32, i32
  }
  func.func @transform_6(%arg0: i32) -> (i32, i32, i32) {
    %c0_i32 = arith.constant 0 : i32
    %c0_i32_0 = arith.constant 0 : i32
    %c0_i32_1 = arith.constant 0 : i32
    return %arg0, %c0_i32, %c0_i32_0 : i32, i32, i32
  }
}

module attributes {stable_mosaic.version = 11 : i64} {
  func.func @_window_attention_kernel(%arg0: i32, %arg1: memref<4x16x32xf32, #tpu.memory_space<vmem>>, %arg2: memref<32x96xf32, #tpu.memory_space<vmem>>, %arg3: memref<1x96xf32, #tpu.memory_space<vmem>>, %arg4: memref<32x32xf32, #tpu.memory_space<vmem>>, %arg5: memref<1x32xf32, #tpu.memory_space<vmem>>, %arg6: memref<16x16x16xf32, #tpu.memory_space<vmem>>, %arg7: memref<4x16x32xf32, #tpu.memory_space<vmem>>, %arg8: memref<4x16x32xf32, #tpu.memory_space<vmem>>) attributes {dimension_semantics = [#tpu.dimension_semantics<parallel>], iteration_bounds = array<i64: 2>, scalar_prefetch = 0 : i64, scratch_operands = 1 : i64, tpu.core_type = #tpu.core_type<tc>, window_params = [{transform_indices = @transform_0, window_bounds = array<i64: 4, 16, 32>}, {pipeline_mode = #tpu.pipeline_mode<synchronous>, transform_indices = @transform_1, window_bounds = array<i64: 32, 96>}, {pipeline_mode = #tpu.pipeline_mode<synchronous>, transform_indices = @transform_2, window_bounds = array<i64: 1, 96>}, {pipeline_mode = #tpu.pipeline_mode<synchronous>, transform_indices = @transform_3, window_bounds = array<i64: 32, 32>}, {pipeline_mode = #tpu.pipeline_mode<synchronous>, transform_indices = @transform_4, window_bounds = array<i64: 1, 32>}, {pipeline_mode = #tpu.pipeline_mode<synchronous>, transform_indices = @transform_5, window_bounds = array<i64: 16, 16, 16>}, {transform_indices = @transform_6, window_bounds = array<i64: 4, 16, 32>}]} {
    %c0 = arith.constant 0 : index
    %c0_0 = arith.constant 0 : index
    %c0_1 = arith.constant 0 : index
    %0 = vector.load %arg1[%c0, %c0_0, %c0_1] : memref<4x16x32xf32, #tpu.memory_space<vmem>>, vector<4x16x32xf32>
    %1 = vector.shape_cast %0 : vector<4x16x32xf32> to vector<64x32xf32>
    %c0_2 = arith.constant 0 : index
    %c0_3 = arith.constant 0 : index
    %2 = vector.load %arg2[%c0_2, %c0_3] : memref<32x96xf32, #tpu.memory_space<vmem>>, vector<32x96xf32>
    %cst = arith.constant dense<0.000000e+00> : vector<64x96xf32>
    %3 = tpu.matmul %1, %2, %cst {dimension_numbers = #tpu.dot_dimension_numbers<[1], [0], [0], [1], [0, 0, 1, 1], [], []>} : vector<64x32xf32>, vector<32x96xf32>, vector<64x96xf32> -> vector<64x96xf32>
    %c0_4 = arith.constant 0 : index
    %c0_5 = arith.constant 0 : index
    %4 = vector.load %arg3[%c0_4, %c0_5] : memref<1x96xf32, #tpu.memory_space<vmem>>, vector<1x96xf32>
    %5 = vector.broadcast %4 : vector<1x96xf32> to vector<64x96xf32>
    %6 = arith.addf %3, %5 : vector<64x96xf32>
    %7 = vector.shape_cast %6 : vector<64x96xf32> to vector<4x16x96xf32>
    %8 = vector.extract_strided_slice %7 {offsets = [0, 0, 0], sizes = [4, 16, 8], strides = [1, 1, 1]} : vector<4x16x96xf32> to vector<4x16x8xf32>
    %9 = vector.extract_strided_slice %7 {offsets = [0, 0, 8], sizes = [4, 16, 8], strides = [1, 1, 1]} : vector<4x16x96xf32> to vector<4x16x8xf32>
    %10 = vector.extract_strided_slice %7 {offsets = [0, 0, 16], sizes = [4, 16, 8], strides = [1, 1, 1]} : vector<4x16x96xf32> to vector<4x16x8xf32>
    %11 = vector.extract_strided_slice %7 {offsets = [0, 0, 24], sizes = [4, 16, 8], strides = [1, 1, 1]} : vector<4x16x96xf32> to vector<4x16x8xf32>
    %12 = vector.shape_cast %8 : vector<4x16x8xf32> to vector<4x1x16x8xf32>
    %13 = vector.shape_cast %9 : vector<4x16x8xf32> to vector<4x1x16x8xf32>
    %14 = vector.shape_cast %10 : vector<4x16x8xf32> to vector<4x1x16x8xf32>
    %15 = vector.shape_cast %11 : vector<4x16x8xf32> to vector<4x1x16x8xf32>
    %16 = tpu.concatenate %12, %13, %14, %15 in 1 : vector<4x1x16x8xf32>, vector<4x1x16x8xf32>, vector<4x1x16x8xf32>, vector<4x1x16x8xf32> -> vector<4x4x16x8xf32>
    %17 = vector.extract_strided_slice %7 {offsets = [0, 0, 32], sizes = [4, 16, 8], strides = [1, 1, 1]} : vector<4x16x96xf32> to vector<4x16x8xf32>
    %18 = vector.extract_strided_slice %7 {offsets = [0, 0, 40], sizes = [4, 16, 8], strides = [1, 1, 1]} : vector<4x16x96xf32> to vector<4x16x8xf32>
    %19 = vector.extract_strided_slice %7 {offsets = [0, 0, 48], sizes = [4, 16, 8], strides = [1, 1, 1]} : vector<4x16x96xf32> to vector<4x16x8xf32>
    %20 = vector.extract_strided_slice %7 {offsets = [0, 0, 56], sizes = [4, 16, 8], strides = [1, 1, 1]} : vector<4x16x96xf32> to vector<4x16x8xf32>
    %21 = vector.shape_cast %17 : vector<4x16x8xf32> to vector<4x1x16x8xf32>
    %22 = vector.shape_cast %18 : vector<4x16x8xf32> to vector<4x1x16x8xf32>
    %23 = vector.shape_cast %19 : vector<4x16x8xf32> to vector<4x1x16x8xf32>
    %24 = vector.shape_cast %20 : vector<4x16x8xf32> to vector<4x1x16x8xf32>
    %25 = tpu.concatenate %21, %22, %23, %24 in 1 : vector<4x1x16x8xf32>, vector<4x1x16x8xf32>, vector<4x1x16x8xf32>, vector<4x1x16x8xf32> -> vector<4x4x16x8xf32>
    %26 = vector.extract_strided_slice %7 {offsets = [0, 0, 64], sizes = [4, 16, 8], strides = [1, 1, 1]} : vector<4x16x96xf32> to vector<4x16x8xf32>
    %27 = vector.extract_strided_slice %7 {offsets = [0, 0, 72], sizes = [4, 16, 8], strides = [1, 1, 1]} : vector<4x16x96xf32> to vector<4x16x8xf32>
    %28 = vector.extract_strided_slice %7 {offsets = [0, 0, 80], sizes = [4, 16, 8], strides = [1, 1, 1]} : vector<4x16x96xf32> to vector<4x16x8xf32>
    %29 = vector.extract_strided_slice %7 {offsets = [0, 0, 88], sizes = [4, 16, 8], strides = [1, 1, 1]} : vector<4x16x96xf32> to vector<4x16x8xf32>
    %30 = vector.shape_cast %26 : vector<4x16x8xf32> to vector<4x1x16x8xf32>
    %31 = vector.shape_cast %27 : vector<4x16x8xf32> to vector<4x1x16x8xf32>
    %32 = vector.shape_cast %28 : vector<4x16x8xf32> to vector<4x1x16x8xf32>
    %33 = vector.shape_cast %29 : vector<4x16x8xf32> to vector<4x1x16x8xf32>
    %34 = tpu.concatenate %30, %31, %32, %33 in 1 : vector<4x1x16x8xf32>, vector<4x1x16x8xf32>, vector<4x1x16x8xf32>, vector<4x1x16x8xf32> -> vector<4x4x16x8xf32>
    %35 = vector.shape_cast %16 : vector<4x4x16x8xf32> to vector<16x16x8xf32>
    %36 = vector.shape_cast %25 : vector<4x4x16x8xf32> to vector<16x16x8xf32>
    %37 = vector.shape_cast %34 : vector<4x4x16x8xf32> to vector<16x16x8xf32>
    "tpu.trace_start"() <{level = 10 : i32, message = "bnd,bmd->bnm"}> : () -> ()
    %cst_6 = arith.constant dense<0.000000e+00> : vector<16x16x16xf32>
    %38 = tpu.matmul %35, %36, %cst_6 {dimension_numbers = #tpu.dot_dimension_numbers<[2], [2], [1], [1], [0, 0, 0, 1, 1, 1], [0], [0]>} : vector<16x16x8xf32>, vector<16x16x8xf32>, vector<16x16x16xf32> -> vector<16x16x16xf32>
    "tpu.trace_stop"() : () -> ()
    %39 = vector.shape_cast %38 : vector<16x16x16xf32> to vector<1x16x16x16xf32>
    %c0_7 = arith.constant 0 : index
    %c0_8 = arith.constant 0 : index
    %c0_9 = arith.constant 0 : index
    %40 = vector.load %arg6[%c0_7, %c0_8, %c0_9] : memref<16x16x16xf32, #tpu.memory_space<vmem>>, vector<16x16x16xf32>
    %41 = vector.shape_cast %40 : vector<16x16x16xf32> to vector<1x16x16x16xf32>
    %42 = arith.addf %39, %41 : vector<1x16x16x16xf32>
    %43 = vector.shape_cast %42 : vector<1x16x16x16xf32> to vector<16x16x16xf32>
    %cst_10 = arith.constant dense<0xFF800000> : vector<16x16xf32>
    %44 = vector.multi_reduction <maximumf>, %43, %cst_10 [2] : vector<16x16x16xf32> to vector<16x16xf32>
    %45 = vector.shape_cast %44 : vector<16x16xf32> to vector<16x16x1xf32>
    %46 = vector.broadcast %45 : vector<16x16x1xf32> to vector<16x16x16xf32>
    %47 = arith.subf %43, %46 : vector<16x16x16xf32>
    %48 = math.exp %47 : vector<16x16x16xf32>
    %cst_11 = arith.constant dense<0.000000e+00> : vector<16x16xf32>
    %49 = vector.multi_reduction <add>, %48, %cst_11 [2] : vector<16x16x16xf32> to vector<16x16xf32>
    %50 = vector.shape_cast %49 : vector<16x16xf32> to vector<16x16x1xf32>
    %51 = tpu.reciprocal %50 {approx = true} : vector<16x16x1xf32> -> vector<16x16x1xf32>
    %52 = vector.broadcast %51 : vector<16x16x1xf32> to vector<16x16x16xf32>
    %53 = arith.mulf %48, %52 : vector<16x16x16xf32>
    "tpu.trace_start"() <{level = 10 : i32, message = "bnm,bmd->bnd"}> : () -> ()
    %cst_12 = arith.constant dense<0.000000e+00> : vector<16x16x8xf32>
    %54 = tpu.matmul %53, %37, %cst_12 {dimension_numbers = #tpu.dot_dimension_numbers<[2], [1], [1], [2], [0, 0, 0, 1, 1, 2], [0], [0]>} : vector<16x16x16xf32>, vector<16x16x8xf32>, vector<16x16x8xf32> -> vector<16x16x8xf32>
    "tpu.trace_stop"() : () -> ()
    %55 = vector.shape_cast %54 : vector<16x16x8xf32> to vector<4x4x16x8xf32>
    %56 = vector.extract_strided_slice %55 {offsets = [0, 0, 0, 0], sizes = [4, 1, 16, 8], strides = [1, 1, 1, 1]} : vector<4x4x16x8xf32> to vector<4x1x16x8xf32>
    %57 = vector.shape_cast %56 : vector<4x1x16x8xf32> to vector<4x16x8xf32>
    %c0_13 = arith.constant 0 : index
    %c0_14 = arith.constant 0 : index
    %c0_15 = arith.constant 0 : index
    %58 = vector.load %arg8[%c0_13, %c0_14, %c0_15] : memref<4x16x32xf32, #tpu.memory_space<vmem>>, vector<4x16x8xf32>
    tpu.vector_store %arg8[%c0_13, %c0_14, %c0_15], %57 {strides = array<i32>} : memref<4x16x32xf32, #tpu.memory_space<vmem>>, vector<4x16x8xf32>,
    %59 = vector.extract_strided_slice %55 {offsets = [0, 1, 0, 0], sizes = [4, 1, 16, 8], strides = [1, 1, 1, 1]} : vector<4x4x16x8xf32> to vector<4x1x16x8xf32>
    %60 = vector.shape_cast %59 : vector<4x1x16x8xf32> to vector<4x16x8xf32>
    %c0_16 = arith.constant 0 : index
    %c0_17 = arith.constant 0 : index
    %c8 = arith.constant 8 : index
    %61 = vector.load %arg8[%c0_16, %c0_17, %c8] : memref<4x16x32xf32, #tpu.memory_space<vmem>>, vector<4x16x8xf32>
    tpu.vector_store %arg8[%c0_16, %c0_17, %c8], %60 {strides = array<i32>} : memref<4x16x32xf32, #tpu.memory_space<vmem>>, vector<4x16x8xf32>,
    %62 = vector.extract_strided_slice %55 {offsets = [0, 2, 0, 0], sizes = [4, 1, 16, 8], strides = [1, 1, 1, 1]} : vector<4x4x16x8xf32> to vector<4x1x16x8xf32>
    %63 = vector.shape_cast %62 : vector<4x1x16x8xf32> to vector<4x16x8xf32>
    %c0_18 = arith.constant 0 : index
    %c0_19 = arith.constant 0 : index
    %c16 = arith.constant 16 : index
    %64 = vector.load %arg8[%c0_18, %c0_19, %c16] : memref<4x16x32xf32, #tpu.memory_space<vmem>>, vector<4x16x8xf32>
    tpu.vector_store %arg8[%c0_18, %c0_19, %c16], %63 {strides = array<i32>} : memref<4x16x32xf32, #tpu.memory_space<vmem>>, vector<4x16x8xf32>,
    %65 = vector.extract_strided_slice %55 {offsets = [0, 3, 0, 0], sizes = [4, 1, 16, 8], strides = [1, 1, 1, 1]} : vector<4x4x16x8xf32> to vector<4x1x16x8xf32>
    %66 = vector.shape_cast %65 : vector<4x1x16x8xf32> to vector<4x16x8xf32>
    %c0_20 = arith.constant 0 : index
    %c0_21 = arith.constant 0 : index
    %c24 = arith.constant 24 : index
    %67 = vector.load %arg8[%c0_20, %c0_21, %c24] : memref<4x16x32xf32, #tpu.memory_space<vmem>>, vector<4x16x8xf32>
    tpu.vector_store %arg8[%c0_20, %c0_21, %c24], %66 {strides = array<i32>} : memref<4x16x32xf32, #tpu.memory_space<vmem>>, vector<4x16x8xf32>,
    %c0_22 = arith.constant 0 : index
    %c0_23 = arith.constant 0 : index
    %c0_24 = arith.constant 0 : index
    %68 = vector.load %arg8[%c0_22, %c0_23, %c0_24] : memref<4x16x32xf32, #tpu.memory_space<vmem>>, vector<4x16x32xf32>
    %69 = vector.shape_cast %68 : vector<4x16x32xf32> to vector<64x32xf32>
    %c0_25 = arith.constant 0 : index
    %c0_26 = arith.constant 0 : index
    %70 = vector.load %arg4[%c0_25, %c0_26] : memref<32x32xf32, #tpu.memory_space<vmem>>, vector<32x32xf32>
    %cst_27 = arith.constant dense<0.000000e+00> : vector<64x32xf32>
    %71 = tpu.matmul %69, %70, %cst_27 {dimension_numbers = #tpu.dot_dimension_numbers<[1], [0], [0], [1], [0, 0, 1, 1], [], []>} : vector<64x32xf32>, vector<32x32xf32>, vector<64x32xf32> -> vector<64x32xf32>
    %c0_28 = arith.constant 0 : index
    %c0_29 = arith.constant 0 : index
    %72 = vector.load %arg5[%c0_28, %c0_29] : memref<1x32xf32, #tpu.memory_space<vmem>>, vector<1x32xf32>
    %73 = vector.broadcast %72 : vector<1x32xf32> to vector<64x32xf32>
    %74 = arith.addf %71, %73 : vector<64x32xf32>
    %75 = vector.shape_cast %74 : vector<64x32xf32> to vector<4x16x32xf32>
    %c0_30 = arith.constant 0 : index
    %c0_31 = arith.constant 0 : index
    %c0_32 = arith.constant 0 : index
    %76 = vector.load %arg7[%c0_30, %c0_31, %c0_32] : memref<4x16x32xf32, #tpu.memory_space<vmem>>, vector<4x16x32xf32>
    tpu.vector_store %arg7[%c0_30, %c0_31, %c0_32], %75 {strides = array<i32>} : memref<4x16x32xf32, #tpu.memory_space<vmem>>, vector<4x16x32xf32>,
    return
  }
  func.func @transform_0(%arg0: i32) -> (i32, i32, i32) {
    %c0_i32 = arith.constant 0 : i32
    %c0_i32_0 = arith.constant 0 : i32
    %c0_i32_1 = arith.constant 0 : i32
    return %arg0, %c0_i32, %c0_i32_0 : i32, i32, i32
  }
  func.func @transform_1(%arg0: i32) -> (i32, i32) {
    %c0_i32 = arith.constant 0 : i32
    %c0_i32_0 = arith.constant 0 : i32
    %c0_i32_1 = arith.constant 0 : i32
    return %c0_i32, %c0_i32_0 : i32, i32
  }
  func.func @transform_2(%arg0: i32) -> (i32, i32) {
    %c0_i32 = arith.constant 0 : i32
    %c0_i32_0 = arith.constant 0 : i32
    %c0_i32_1 = arith.constant 0 : i32
    return %c0_i32, %c0_i32_0 : i32, i32
  }
  func.func @transform_3(%arg0: i32) -> (i32, i32) {
    %c0_i32 = arith.constant 0 : i32
    %c0_i32_0 = arith.constant 0 : i32
    %c0_i32_1 = arith.constant 0 : i32
    return %c0_i32, %c0_i32_0 : i32, i32
  }
  func.func @transform_4(%arg0: i32) -> (i32, i32) {
    %c0_i32 = arith.constant 0 : i32
    %c0_i32_0 = arith.constant 0 : i32
    %c0_i32_1 = arith.constant 0 : i32
    return %c0_i32, %c0_i32_0 : i32, i32
  }
  func.func @transform_5(%arg0: i32) -> (i32, i32, i32) {
    %c0_i32 = arith.constant 0 : i32
    %c0_i32_0 = arith.constant 0 : i32
    %c0_i32_1 = arith.constant 0 : i32
    %c0_i32_2 = arith.constant 0 : i32
    return %c0_i32, %c0_i32_0, %c0_i32_1 : i32, i32, i32
  }
  func.func @transform_6(%arg0: i32) -> (i32, i32, i32) {
    %c0_i32 = arith.constant 0 : i32
    %c0_i32_0 = arith.constant 0 : i32
    %c0_i32_1 = arith.constant 0 : i32
    return %arg0, %c0_i32, %c0_i32_0 : i32, i32, i32
  }
}

</mosaic_0001>

<llo_original>
// kernel: tpu_custom_call.1
$region0: #{tpu_custom_call.1}
  #allocation0 [shape = 'u32[]', space=smem, size = 0x4, offset = 0x4, fixed_abs, tag = 'smem constant byte address 0x4 - core index']
  #allocation1 [shape = 'u32[144,128]{1,0:T(1,128)}', space=vmem, size = 0x12000, scoped, tag = 'internal scratch']
  %s0 = inlined_call_operand.hbm [shape: f32[8,16,32], index: 0, kind: input, shape index: {}]
  %s1 = inlined_call_operand.hbm [shape: f32[32,96], index: 1, kind: input, shape index: {}]
  %s2 = inlined_call_operand.vmem [shape: f32[1,96], index: 2, kind: input, shape index: {}]
  %s3 = inlined_call_operand.hbm [shape: f32[32,32], index: 3, kind: input, shape index: {}]
  %s4 = inlined_call_operand.vmem [shape: f32[1,32], index: 4, kind: input, shape index: {}]
  %s5 = inlined_call_operand.hbm [shape: f32[16,16,16], index: 5, kind: input, shape index: {}]
  %s6 = inlined_call_operand.hbm [shape: f32[8,16,32], index: 6, kind: output, shape index: {}]
  %s7 = sld [smem:[#allocation0]]
  $region73: #{tpu_custom_call.1} parent=0
    _
  %s9 = ssub.s32 1, %s7
  %s10 = scalar_select 0, %s9, %s7
  $region1: #{tpu_custom_call.1} parent=0
    #allocation2 [shape = 'u8[65536]{0}', space=vmem, size = 0x10000, scoped, tag = 'input window, operand 0']
    #allocation3 [shape = 's32[2]{0}', space=sflag, size = 0x8, scoped, tag = 'scoped memory for tpu_custom_call.1']
    #allocation4 [shape = 's32[2]{0}', space=sflag, size = 0x8, scoped, tag = 'scoped memory for tpu_custom_call.1']
    #allocation5 [shape = 'u8[16384]{0}', space=vmem, size = 0x4000, scoped, tag = 'input window, operand 1, single buffered']
    #allocation6 [shape = 's32[1]{0}', space=sflag, size = 0x4, scoped, tag = 'scoped memory for tpu_custom_call.1']
    #allocation7 [shape = 'u8[16384]{0}', space=vmem, size = 0x4000, scoped, tag = 'input window, operand 3, single buffered']
    #allocation8 [shape = 'u8[131072]{0}', space=vmem, size = 0x20000, scoped, tag = 'input window, operand 5, single buffered']
    #allocation9 [shape = 's32[1]{0}', space=sflag, size = 0x4, scoped, tag = 'scoped memory for tpu_custom_call.1']
    #allocation10 [shape = 'u8[65536]{0}', space=vmem, size = 0x10000, scoped, tag = 'output window, operand 0']
    %11 = vsyncpa [#allocation3], 0
    %s12 = scalar_lea.sflag [#allocation3], 1
    %13 = vsyncpa %s12, 0
    %14 = vsyncpa [#allocation6], 0
    %15 = vsyncpa [#allocation9], 0
    %16 = vsyncpa [#allocation4], 0
    %s17 = scalar_lea.sflag [#allocation4], 1
    %18 = vsyncpa %s17, 0
    loop: start=0, step=1, limit=4
    $region2: #{tpu_custom_call.1} parent=1 // loop_pre_header
      _
    $region3: #{tpu_custom_call.1} parent=1 // loop_header
      %s20 = sphi 0, %s24
      %p21 = scmp.ge.s32.totalorder %s20, 4
      %s30 = sphi 0, %s32
      %s33 = sphi 0, %s30
      %s34 = sphi 0, %s33
      %s50 = sphi 0, %s34
      %s54 = sphi 0, %s54
      %s56 = sphi 0, %s54
      %s57 = sphi 0, %s56
      %s71 = sphi 0, %s57
      %s75 = sphi 0, %s75
      %s77 = sphi 0, %s75
      %s78 = sphi 0, %s77
      %s92 = sphi 0, %s78
      %s96 = sphi 0, %s96
      %s98 = sphi 0, %s96
      %s99 = sphi 0, %s98
      %s113 = sphi 0, %s99
      %s117 = sphi 0, %s117
      %s119 = sphi 0, %s117
      %s120 = sphi 0, %s119
      %s134 = sphi 0, %s120
      %s138 = sphi 0, %s138
      %s140 = sphi 0, %s138
      %s141 = sphi 0, %s140
      %s155 = sphi 0, %s141
      %s161 = sphi 0, %s163
      %s164 = sphi 0, %s161
      %s165 = sphi 0, %s164
      %s181 = sphi 0, %s165
    $region4: #{tpu_custom_call.1} parent=1 // loop_header_branch
      %23 = sbr.rel (%p21) target = $region8
    $region5: #{tpu_custom_call.1} parent=1 // loop_body
      %s25 = ssub.s32 %s20, 1
      %s26 = ssub.s32 %s20, 2
      %s27 = sadd.s32 %s20, 1
      %s28 = ssub.s32 %s20, %s27
      %p29 = scmp.eq.s32.totalorder %s28, 0
      %s31 = sadd.s32 %s30, 1
      %s32 = scalar_select %p29, %s30, %s31
      %p35 = pneg %p29
      %p36 = scmp.eq.s32.totalorder %s20, 1
      %p37 = por %p35, %p36
      %p38 = scmp.ne.s32.totalorder %s30, %s33
      %p39 = scmp.eq.s32.totalorder %s20, 0
      %p40 = por %p38, %p39
      %p41 = scmp.ne.s32.totalorder %s30, %s33
      %p42 = scmp.eq.s32.totalorder %s25, 1
      %p43 = por %p41, %p42
      %p44 = scmp.ne.s32.totalorder %s33, %s34
      %p45 = scmp.eq.s32.totalorder %s25, 0
      %p46 = por %p44, %p45
      %p47 = scmp.ne.s32.totalorder %s33, %s34
      %p48 = scmp.eq.s32.totalorder %s26, 1
      %p49 = por %p47, %p48
      %p51 = scmp.ne.s32.totalorder %s34, %s50
      %p52 = scmp.eq.s32.totalorder %s26, 0
      %p53 = por %p51, %p52
      %s55 = sadd.s32 %s54, 1
      %p58 = scmp.eq.s32.totalorder %s20, 1
      %p59 = scmp.ne.s32.totalorder %s54, %s56
      %p60 = scmp.eq.s32.totalorder %s20, 0
      %p61 = por %p59, %p60
      %p62 = scmp.ne.s32.totalorder %s54, %s56
      %p63 = scmp.eq.s32.totalorder %s25, 1
      %p64 = por %p62, %p63
      %p65 = scmp.ne.s32.totalorder %s56, %s57
      %p66 = scmp.eq.s32.totalorder %s25, 0
      %p67 = por %p65, %p66
      %p68 = scmp.ne.s32.totalorder %s56, %s57
      %p69 = scmp.eq.s32.totalorder %s26, 1
      %p70 = por %p68, %p69
      %p72 = scmp.ne.s32.totalorder %s57, %s71
      %p73 = scmp.eq.s32.totalorder %s26, 0
      %p74 = por %p72, %p73
      %s76 = sadd.s32 %s75, 1
      %p79 = scmp.eq.s32.totalorder %s20, 1
      %p80 = scmp.ne.s32.totalorder %s75, %s77
      %p81 = scmp.eq.s32.totalorder %s20, 0
      %p82 = por %p80, %p81
      %p83 = scmp.ne.s32.totalorder %s75, %s77
      %p84 = scmp.eq.s32.totalorder %s25, 1
      %p85 = por %p83, %p84
      %p86 = scmp.ne.s32.totalorder %s77, %s78
      %p87 = scmp.eq.s32.totalorder %s25, 0
      %p88 = por %p86, %p87
      %p89 = scmp.ne.s32.totalorder %s77, %s78
      %p90 = scmp.eq.s32.totalorder %s26, 1
      %p91 = por %p89, %p90
      %p93 = scmp.ne.s32.totalorder %s78, %s92
      %p94 = scmp.eq.s32.totalorder %s26, 0
      %p95 = por %p93, %p94
      %s97 = sadd.s32 %s96, 1
      %p100 = scmp.eq.s32.totalorder %s20, 1
      %p101 = scmp.ne.s32.totalorder %s96, %s98
      %p102 = scmp.eq.s32.totalorder %s20, 0
      %p103 = por %p101, %p102
      %p104 = scmp.ne.s32.totalorder %s96, %s98
      %p105 = scmp.eq.s32.totalorder %s25, 1
      %p106 = por %p104, %p105
      %p107 = scmp.ne.s32.totalorder %s98, %s99
      %p108 = scmp.eq.s32.totalorder %s25, 0
      %p109 = por %p107, %p108
      %p110 = scmp.ne.s32.totalorder %s98, %s99
      %p111 = scmp.eq.s32.totalorder %s26, 1
      %p112 = por %p110, %p111
      %p114 = scmp.ne.s32.totalorder %s99, %s113
      %p115 = scmp.eq.s32.totalorder %s26, 0
      %p116 = por %p114, %p115
      %s118 = sadd.s32 %s117, 1
      %p121 = scmp.eq.s32.totalorder %s20, 1
      %p122 = scmp.ne.s32.totalorder %s117, %s119
      %p123 = scmp.eq.s32.totalorder %s20, 0
      %p124 = por %p122, %p123
      %p125 = scmp.ne.s32.totalorder %s117, %s119
      %p126 = scmp.eq.s32.totalorder %s25, 1
      %p127 = por %p125, %p126
      %p128 = scmp.ne.s32.totalorder %s119, %s120
      %p129 = scmp.eq.s32.totalorder %s25, 0
      %p130 = por %p128, %p129
      %p131 = scmp.ne.s32.totalorder %s119, %s120
      %p132 = scmp.eq.s32.totalorder %s26, 1
      %p133 = por %p131, %p132
      %p135 = scmp.ne.s32.totalorder %s120, %s134
      %p136 = scmp.eq.s32.totalorder %s26, 0
      %p137 = por %p135, %p136
      %s139 = sadd.s32 %s138, 1
      %p142 = scmp.eq.s32.totalorder %s20, 1
      %p143 = scmp.ne.s32.totalorder %s138, %s140
      %p144 = scmp.eq.s32.totalorder %s20, 0
      %p145 = por %p143, %p144
      %p146 = scmp.ne.s32.totalorder %s138, %s140
      %p147 = scmp.eq.s32.totalorder %s25, 1
      %p148 = por %p146, %p147
      %p149 = scmp.ne.s32.totalorder %s140, %s141
      %p150 = scmp.eq.s32.totalorder %s25, 0
      %p151 = por %p149, %p150
      %p152 = scmp.ne.s32.totalorder %s140, %s141
      %p153 = scmp.eq.s32.totalorder %s26, 1
      %p154 = por %p152, %p153
      %p156 = scmp.ne.s32.totalorder %s141, %s155
      %p157 = scmp.eq.s32.totalorder %s26, 0
      %p158 = por %p156, %p157
      %s159 = ssub.s32 %s20, %s27
      %p160 = scmp.eq.s32.totalorder %s159, 0
      %s162 = sadd.s32 %s161, 1
      %s163 = scalar_select %p160, %s161, %s162
      %p166 = pneg %p160
      %p167 = scmp.eq.s32.totalorder %s20, 1
      %p168 = por %p166, %p167
      %p169 = scmp.ne.s32.totalorder %s161, %s164
      %p170 = scmp.eq.s32.totalorder %s20, 0
      %p171 = por %p169, %p170
      %p172 = scmp.ne.s32.totalorder %s161, %s164
      %p173 = scmp.eq.s32.totalorder %s25, 1
      %p174 = por %p172, %p173
      %p175 = scmp.ne.s32.totalorder %s164, %s165
      %p176 = scmp.eq.s32.totalorder %s25, 0
      %p177 = por %p175, %p176
      %p178 = scmp.ne.s32.totalorder %s164, %s165
      %p179 = scmp.eq.s32.totalorder %s26, 1
      %p180 = por %p178, %p179
      %p182 = scmp.ne.s32.totalorder %s165, %s181
      %p183 = scmp.eq.s32.totalorder %s26, 0
      %p184 = por %p182, %p183
      %p185 = scmp.le.s32.totalorder 1, %s20
      %p186 = scmp.lt.s32.totalorder %s20, 3
      %p187 = pnand %p185, %p186
      %p188 = pneg %p187
      // Predicated region
      $region9: #{tpu_custom_call.1} parent=5 // pred_check
        _
      $region10: #{tpu_custom_call.1} parent=5 // pred_check_branch
        %190 = sbr.rel (%p187) target = $region12
      $region11: #{tpu_custom_call.1} parent=5 // pred_region
        %s191 = ssub.s32 %s20, 1
        // Predicated region
        $region13: #{tpu_custom_call.1} parent=11 // pred_check
          %p192 = pneg %p67
        $region14: #{tpu_custom_call.1} parent=11 // pred_check_branch
          %194 = sbr.rel (%p192) target = $region16
        $region15: #{tpu_custom_call.1} parent=11 // pred_region
          %s196 = ssub.s32 512, 512
          %197 = vsyncadd [#allocation6], %s196
          %s198 = sshll.u32 [#allocation5], 4
          %s199 = int_to_ptr.vmem [resolvable:$true] %s198
          %204 = dma.hbm_to_vmem [thread:$0]  %s1, 512, %s199, [#allocation6], 128, 128, 8
        $region16: #{tpu_custom_call.1} parent=11 // pred_fallthru
          _
        // Predicated region
        $region17: #{tpu_custom_call.1} parent=11 // pred_check
          %p205 = pneg %p88
        $region18: #{tpu_custom_call.1} parent=11 // pred_check_branch
          %207 = sbr.rel (%p205) target = $region20
        $region19: #{tpu_custom_call.1} parent=11 // pred_region
          _
        $region20: #{tpu_custom_call.1} parent=11 // pred_fallthru
          _
        // Predicated region
        $region21: #{tpu_custom_call.1} parent=11 // pred_check
          %p208 = pneg %p109
        $region22: #{tpu_custom_call.1} parent=11 // pred_check_branch
          %210 = sbr.rel (%p208) target = $region24
        $region23: #{tpu_custom_call.1} parent=11 // pred_region
          %s212 = ssub.s32 512, 512
          %213 = vsyncadd [#allocation6], %s212
          %s214 = sshll.u32 [#allocation7], 4
          %s215 = int_to_ptr.vmem [resolvable:$true] %s214
          %220 = dma.hbm_to_vmem [thread:$0]  %s3, 512, %s215, [#allocation6], 128, 128, 8
        $region24: #{tpu_custom_call.1} parent=11 // pred_fallthru
          _
        // Predicated region
        $region25: #{tpu_custom_call.1} parent=11 // pred_check
          %p221 = pneg %p130
        $region26: #{tpu_custom_call.1} parent=11 // pred_check_branch
          %223 = sbr.rel (%p221) target = $region28
        $region27: #{tpu_custom_call.1} parent=11 // pred_region
          _
        $region28: #{tpu_custom_call.1} parent=11 // pred_fallthru
          _
        // Predicated region
        $region29: #{tpu_custom_call.1} parent=11 // pred_check
          %p224 = pneg %p151
        $region30: #{tpu_custom_call.1} parent=11 // pred_check_branch
          %226 = sbr.rel (%p224) target = $region32
        $region31: #{tpu_custom_call.1} parent=11 // pred_region
          %s228 = ssub.s32 4096, 4096
          %229 = vsyncadd [#allocation9], %s228
          %s230 = sshll.u32 [#allocation8], 4
          %s231 = int_to_ptr.vmem [resolvable:$true] %s230
          %236 = dma.hbm_to_vmem [thread:$0]  %s5, 4096, %s231, [#allocation9], 128, 128, 8
        $region32: #{tpu_custom_call.1} parent=11 // pred_fallthru
          _
      $region12: #{tpu_custom_call.1} parent=5 // pred_fallthru
        _
      %p237 = scmp.lt.s32.totalorder %s20, 2
      // Predicated region
      $region33: #{tpu_custom_call.1} parent=5 // pred_check
        %p238 = pneg %p237
      $region34: #{tpu_custom_call.1} parent=5 // pred_check_branch
        %240 = sbr.rel (%p238) target = $region36
      $region35: #{tpu_custom_call.1} parent=5 // pred_region
        // Predicated region
        $region37: #{tpu_custom_call.1} parent=35 // pred_check
          %p241 = pneg %p40
        $region38: #{tpu_custom_call.1} parent=35 // pred_check_branch
          %243 = sbr.rel (%p241) target = $region40
        $region39: #{tpu_custom_call.1} parent=35 // pred_region
          %s244 = sand.u32 %s30, 1
          %s245 = scalar_lea.sflag [#allocation3], %s244
          %s246 = sand.u32 %s30, 1
          %s247 = smul.addr %s246, 64
          %s248 = scalar_lea.vmem [#allocation2], %s247
          %s249 = smul.u32 4, %s20
          %s251 = ssub.s32 1024, 1024
          %252 = vsyncadd %s245, %s251
          %s253 = smul.addr %s249, 2
          %s254 = smul.addr %s253, 128
          %s255 = scalar_lea.hbm %s0, %s254
          %s256 = sshll.u32 %s248, 4
          %s257 = int_to_ptr.vmem [resolvable:$true] %s256
          %262 = dma.hbm_to_vmem [thread:$0]  %s255, 1024, %s257, %s245, 128, 128, 8
        $region40: #{tpu_custom_call.1} parent=35 // pred_fallthru
          _
      $region36: #{tpu_custom_call.1} parent=5 // pred_fallthru
        _
      %p263 = scmp.le.s32.totalorder 1, %s20
      %p264 = scmp.lt.s32.totalorder %s20, 3
      %p265 = pnand %p263, %p264
      %p266 = pneg %p265
      // Predicated region
      $region41: #{tpu_custom_call.1} parent=5 // pred_check
        _
      $region42: #{tpu_custom_call.1} parent=5 // pred_check_branch
        %268 = sbr.rel (%p265) target = $region44
      $region43: #{tpu_custom_call.1} parent=5 // pred_region
        %s269 = ssub.s32 %s20, 1
        %s270 = sand.u32 %s33, 1
        %s271 = scalar_lea.sflag [#allocation3], %s270
        %s272 = sand.u32 %s33, 1
        %s273 = smul.addr %s272, 64
        %s274 = scalar_lea.vmem [#allocation2], %s273
        // Predicated region
        $region45: #{tpu_custom_call.1} parent=43 // pred_check
          %p275 = pneg %p46
        $region46: #{tpu_custom_call.1} parent=43 // pred_check_branch
          %277 = sbr.rel (%p275) target = $region48
        $region47: #{tpu_custom_call.1} parent=43 // pred_region
          %278 = dma.done %s271, 1024
        $region48: #{tpu_custom_call.1} parent=43 // pred_fallthru
          _
        // Predicated region
        $region49: #{tpu_custom_call.1} parent=43 // pred_check
          %p279 = pneg %p67
        $region50: #{tpu_custom_call.1} parent=43 // pred_check_branch
          %281 = sbr.rel (%p279) target = $region52
        $region51: #{tpu_custom_call.1} parent=43 // pred_region
          %282 = dma.done [#allocation6], 512
        $region52: #{tpu_custom_call.1} parent=43 // pred_fallthru
          _
        // Predicated region
        $region53: #{tpu_custom_call.1} parent=43 // pred_check
          %p283 = pneg %p109
        $region54: #{tpu_custom_call.1} parent=43 // pred_check_branch
          %285 = sbr.rel (%p283) target = $region56
        $region55: #{tpu_custom_call.1} parent=43 // pred_region
          %286 = dma.done [#allocation6], 512
        $region56: #{tpu_custom_call.1} parent=43 // pred_fallthru
          _
        // Predicated region
        $region57: #{tpu_custom_call.1} parent=43 // pred_check
          %p287 = pneg %p151
        $region58: #{tpu_custom_call.1} parent=43 // pred_check_branch
          %289 = sbr.rel (%p287) target = $region60
        $region59: #{tpu_custom_call.1} parent=43 // pred_region
          %290 = dma.done [#allocation9], 4096
        $region60: #{tpu_custom_call.1} parent=43 // pred_fallthru
          _
        %s291 = sand.u32 %s33, 1
        %s292 = scalar_lea.sflag [#allocation3], %s291
        %s293 = sand.u32 %s33, 1
        %s294 = smul.addr %s293, 64
        %s295 = scalar_lea.vmem [#allocation2], %s294
        %p296 = pneg %p46
        %p297 = pneg %p43
        %p298 = pneg %p67
        %p299 = pneg %p64
        %p300 = pneg %p88
        %p301 = pneg %p85
        %p302 = pneg %p109
        %p303 = pneg %p106
        %p304 = pneg %p130
        %p305 = pneg %p127
        %p306 = pneg %p151
        %p307 = pneg %p148
        %p308 = pneg %p177
        %p309 = pneg %p174
        %s310 = sand.u32 %s164, 1
        %s311 = scalar_lea.sflag [#allocation4], %s310
        %s312 = sand.u32 %s164, 1
        %s313 = smul.addr %s312, 64
        %s314 = scalar_lea.vmem [#allocation10], %s313
        %s315 = smul.u32 4, %s25
        %s316 = smul.u32 4, %s25
        %v317 = vld [vmem:[%s274] sm:$0xff]
        %v318 = vld [vmem:[%s274 + $0x8] sm:$0xff]
        %v319 = vld [vmem:[%s274 + $0x10] sm:$0xff]
        %v320 = vld [vmem:[%s274 + $0x18] sm:$0xff]
        %v321 = vld [vmem:[%s274 + $0x20] sm:$0xff]
        %v322 = vld [vmem:[%s274 + $0x28] sm:$0xff]
        %v323 = vld [vmem:[%s274 + $0x30] sm:$0xff]
        %v324 = vld [vmem:[%s274 + $0x38] sm:$0xff]
        %v325 = vld [vmem:[#allocation5] sm:$0xff]
        %v326 = vld [vmem:[#allocation5 + $0x8] sm:$0xff]
        %v327 = vld [vmem:[#allocation5 + $0x10] sm:$0xff]
        %v328 = vld [vmem:[#allocation5 + $0x18] sm:$0xff]
        %v329 = vld [vmem:[%s2] sm:$0x1]
        %v331 = vlaneseq
        %v332 = vshrl.u32 %v331, 7
        %v333 = vsub.s32 0, %v332
        %v334 = vrot.slane %v329, %v333
        %vm336 = vcmask 261120
        %v338 = vsel %vm336, %v317, 0
        %v341 = vsel %vm336, %v318, 0
        %v344 = vsel %vm336, %v319, 0
        %v347 = vsel %vm336, %v320, 0
        %v350 = vsel %vm336, %v321, 0
        %v353 = vsel %vm336, %v322, 0
        %v356 = vsel %vm336, %v323, 0
        %v359 = vsel %vm336, %v324, 0
        %361 = vmatprep.subr.mxu0 0.0
        %362 = vmatpush1.msra.mxu0 %v325
        %363 = vmatprep.subr.mxu0 0.0
        %364 = vmatpush1.msra.mxu0 %v326
        %365 = vmatprep.subr.mxu0 0.0
        %366 = vmatpush1.msra.mxu0 %v327
        %367 = vmatprep.subr.mxu0 0.0
        %368 = vmatpush1.msra.mxu0 %v328
        %369 = vmatprep.subr.mxu0 0.0
        %370 = vmatpush1.msra.mxu0 0.0
        %371 = vmatprep.subr.mxu0 0.0
        %372 = vmatpush1.msra.mxu0 0.0
        %373 = vmatprep.subr.mxu0 0.0
        %374 = vmatpush1.msra.mxu0 0.0
        %375 = vmatprep.subr.mxu0 0.0
        %376 = vmatpush1.msra.mxu0 0.0
        %377 = vmatprep.subr.mxu0 0.0
        %378 = vmatpush1.msra.mxu0 0.0
        %379 = vmatprep.subr.mxu0 0.0
        %380 = vmatpush1.msra.mxu0 0.0
        %381 = vmatprep.subr.mxu0 0.0
        %382 = vmatpush1.msra.mxu0 0.0
        %383 = vmatprep.subr.mxu0 0.0
        %384 = vmatpush1.msra.mxu0 0.0
        %385 = vmatprep.subr.mxu0 0.0
        %386 = vmatpush1.msra.mxu0 0.0
        %387 = vmatprep.subr.mxu0 0.0
        %388 = vmatpush1.msra.mxu0 0.0
        %389 = vmatprep.subr.mxu0 0.0
        %390 = vmatpush1.msra.mxu0 0.0
        %391 = vmatprep.subr.mxu0 0.0
        %392 = vmatpush1.msra.mxu0 0.0
        %393 = vmatprep.subr.mxu0 0.0
        %394 = vmatpush1.msra.mxu0 0.0
        %395 = vmatprep.subr.mxu0 0.0
        %396 = vmatpush1.msra.mxu0 0.0
        %397 = vmatprep.subr.mxu0 0.0
        %398 = vmatpush1.msra.mxu0 0.0
        %399 = vmatprep.subr.mxu0 0.0
        %400 = vmatpush1.msra.mxu0 0.0
        %401 = vmatprep.subr.mxu0 0.0
        %402 = vmatpush1.msra.mxu0 0.0
        %403 = vmatprep.subr.mxu0 0.0
        %404 = vmatpush1.msra.mxu0 0.0
        %405 = vmatprep.subr.mxu0 0.0
        %406 = vmatpush1.msra.mxu0 0.0
        %407 = vmatprep.subr.mxu0 0.0
        %408 = vmatpush1.msra.mxu0 0.0
        %409 = vmatprep.subr.mxu0 0.0
        %410 = vmatpush1.msra.mxu0 0.0
        %411 = vmatprep.subr.mxu0 0.0
        %412 = vmatpush1.msra.mxu0 0.0
        %413 = vmatprep.subr.mxu0 0.0
        %414 = vmatpush1.msra.mxu0 0.0
        %415 = vmatprep.subr.mxu0 0.0
        %416 = vmatpush1.msra.mxu0 0.0
        %417 = vmatprep.subr.mxu0 0.0
        %418 = vmatpush1.msra.mxu0 0.0
        %419 = vmatprep.subr.mxu0 0.0
        %420 = vmatpush1.msra.mxu0 0.0
        %421 = vmatprep.subr.mxu0 0.0
        %422 = vmatpush1.msra.mxu0 0.0
        %423 = vmatprep.subr.mxu0 0.0
        %424 = vmatpush1.msra.mxu0 0.0
        %425 = vmatprep.mubr.f32.mxu0 0.0
        %426 = vmatmul.mubr.f32.gmra.mrb[0].mxu0 %v338
        %v427 = vpop.f32.mrb[0].mxu0
        %v428 = vadd.f32 %v334, %v427
        %v429 = vpop.f32.mrb[0].mxu0
        %430 = vmatprep.mubr.f32.mxu0 0.0
        %431 = vmatmul.mubr.f32.gmra.mrb[0].mxu0 %v341
        %v432 = vpop.f32.mrb[0].mxu0
        %v433 = vadd.f32 %v334, %v432
        %v434 = vpop.f32.mrb[0].mxu0
        %435 = vmatprep.mubr.f32.mxu0 0.0
        %436 = vmatmul.mubr.f32.gmra.mrb[0].mxu0 %v344
        %v437 = vpop.f32.mrb[0].mxu0
        %v438 = vadd.f32 %v334, %v437
        %v439 = vpop.f32.mrb[0].mxu0
        %440 = vmatprep.mubr.f32.mxu0 0.0
        %441 = vmatmul.mubr.f32.gmra.mrb[0].mxu0 %v347
        %v442 = vpop.f32.mrb[0].mxu0
        %v443 = vadd.f32 %v334, %v442
        %v444 = vpop.f32.mrb[0].mxu0
        %445 = vmatprep.mubr.f32.mxu0 0.0
        %446 = vmatmul.mubr.f32.gmra.mrb[0].mxu0 %v350
        %v447 = vpop.f32.mrb[0].mxu0
        %v448 = vadd.f32 %v334, %v447
        %v449 = vpop.f32.mrb[0].mxu0
        %450 = vmatprep.mubr.f32.mxu0 0.0
        %451 = vmatmul.mubr.f32.gmra.mrb[0].mxu0 %v353
        %v452 = vpop.f32.mrb[0].mxu0
        %v453 = vadd.f32 %v334, %v452
        %v454 = vpop.f32.mrb[0].mxu0
        %455 = vmatprep.mubr.f32.mxu0 0.0
        %456 = vmatmul.mubr.f32.gmra.mrb[0].mxu0 %v356
        %v457 = vpop.f32.mrb[0].mxu0
        %v458 = vadd.f32 %v334, %v457
        %v459 = vpop.f32.mrb[0].mxu0
        %460 = vmatprep.mubr.f32.mxu0 0.0
        %461 = vmatmul.mubr.f32.gmra.mrb[0].mxu0 %v359
        %v462 = vpop.f32.mrb[0].mxu0
        %v463 = vadd.f32 %v334, %v462
        %v464 = vpop.f32.mrb[0].mxu0
        %465 = vdwg.mxu0
        %474 = vrot.lane.b32.xlu0 %v428, 120
        %v475 = vpop.permute.xlu0 %474
        %476 = vrot.lane.b32.xlu0 %v433, 120
        %v477 = vpop.permute.xlu0 %476
        %478 = vrot.lane.b32.xlu0 %v438, 120
        %v479 = vpop.permute.xlu0 %478
        %480 = vrot.lane.b32.xlu0 %v443, 120
        %v481 = vpop.permute.xlu0 %480
        %482 = vrot.lane.b32.xlu0 %v448, 120
        %v483 = vpop.permute.xlu0 %482
        %484 = vrot.lane.b32.xlu0 %v453, 120
        %v485 = vpop.permute.xlu0 %484
        %486 = vrot.lane.b32.xlu0 %v458, 120
        %v487 = vpop.permute.xlu0 %486
        %488 = vrot.lane.b32.xlu0 %v463, 120
        %v489 = vpop.permute.xlu0 %488
        %490 = vrot.lane.b32.xlu0 %v428, 112
        %v491 = vpop.permute.xlu0 %490
        %492 = vrot.lane.b32.xlu0 %v433, 112
        %v493 = vpop.permute.xlu0 %492
        %494 = vrot.lane.b32.xlu0 %v438, 112
        %v495 = vpop.permute.xlu0 %494
        %496 = vrot.lane.b32.xlu0 %v443, 112
        %v497 = vpop.permute.xlu0 %496
        %498 = vrot.lane.b32.xlu0 %v448, 112
        %v499 = vpop.permute.xlu0 %498
        %500 = vrot.lane.b32.xlu0 %v453, 112
        %v501 = vpop.permute.xlu0 %500
        %502 = vrot.lane.b32.xlu0 %v458, 112
        %v503 = vpop.permute.xlu0 %502
        %504 = vrot.lane.b32.xlu0 %v463, 112
        %v505 = vpop.permute.xlu0 %504
        %506 = vrot.lane.b32.xlu0 %v428, 104
        %v507 = vpop.permute.xlu0 %506
        %508 = vrot.lane.b32.xlu0 %v433, 104
        %v509 = vpop.permute.xlu0 %508
        %510 = vrot.lane.b32.xlu0 %v438, 104
        %v511 = vpop.permute.xlu0 %510
        %512 = vrot.lane.b32.xlu0 %v443, 104
        %v513 = vpop.permute.xlu0 %512
        %514 = vrot.lane.b32.xlu0 %v448, 104
        %v515 = vpop.permute.xlu0 %514
        %516 = vrot.lane.b32.xlu0 %v453, 104
        %v517 = vpop.permute.xlu0 %516
        %518 = vrot.lane.b32.xlu0 %v458, 104
        %v519 = vpop.permute.xlu0 %518
        %520 = vrot.lane.b32.xlu0 %v463, 104
        %v521 = vpop.permute.xlu0 %520
        %522 = vrot.lane.b32.xlu0 %v428, 96
        %v523 = vpop.permute.xlu0 %522
        %524 = vrot.lane.b32.xlu0 %v433, 96
        %v525 = vpop.permute.xlu0 %524
        %vm526 = vcmask 64512
        %v527 = vsel %vm526, %v428, 0
        %v529 = vsel %vm526, %v433, 0
        %v531 = vsel %vm526, %v523, 0
        %v533 = vsel %vm526, %v525, 0
        %535 = vmatprep.subr.mxu0 0.0
        %536 = vmatpush1.xpose.msra.mxu0 %v531
        %537 = vmatprep.subr.mxu0 0.0
        %538 = vmatpush1.xpose.msra.mxu0 %v533
        %539 = vmatprep.subr.mxu0 0.0
        %540 = vmatpush1.xpose.msra.mxu0 0.0
        %541 = vmatprep.subr.mxu0 0.0
        %542 = vmatpush1.xpose.msra.mxu0 0.0
        %543 = vmatprep.subr.mxu0 0.0
        %544 = vmatpush1.xpose.msra.mxu0 0.0
        %545 = vmatprep.subr.mxu0 0.0
        %546 = vmatpush1.xpose.msra.mxu0 0.0
        %547 = vmatprep.subr.mxu0 0.0
        %548 = vmatpush1.xpose.msra.mxu0 0.0
        %549 = vmatprep.subr.mxu0 0.0
        %550 = vmatpush1.xpose.msra.mxu0 0.0
        %551 = vmatprep.subr.mxu0 0.0
        %552 = vmatpush1.xpose.msra.mxu0 0.0
        %553 = vmatprep.subr.mxu0 0.0
        %554 = vmatpush1.xpose.msra.mxu0 0.0
        %555 = vmatprep.subr.mxu0 0.0
        %556 = vmatpush1.xpose.msra.mxu0 0.0
        %557 = vmatprep.subr.mxu0 0.0
        %558 = vmatpush1.xpose.msra.mxu0 0.0
        %559 = vmatprep.subr.mxu0 0.0
        %560 = vmatpush1.xpose.msra.mxu0 0.0
        %561 = vmatprep.subr.mxu0 0.0
        %562 = vmatpush1.xpose.msra.mxu0 0.0
        %563 = vmatprep.subr.mxu0 0.0
        %564 = vmatpush1.xpose.msra.mxu0 0.0
        %565 = vmatprep.subr.mxu0 0.0
        %566 = vmatpush1.xpose.msra.mxu0 0.0
        %567 = vmatprep.subr.mxu0 0.0
        %568 = vmatpush1.xpose.msra.mxu0 0.0
        %569 = vmatprep.subr.mxu0 0.0
        %570 = vmatpush1.xpose.msra.mxu0 0.0
        %571 = vmatprep.subr.mxu0 0.0
        %572 = vmatpush1.xpose.msra.mxu0 0.0
        %573 = vmatprep.subr.mxu0 0.0
        %574 = vmatpush1.xpose.msra.mxu0 0.0
        %575 = vmatprep.subr.mxu0 0.0
        %576 = vmatpush1.xpose.msra.mxu0 0.0
        %577 = vmatprep.subr.mxu0 0.0
        %578 = vmatpush1.xpose.msra.mxu0 0.0
        %579 = vmatprep.subr.mxu0 0.0
        %580 = vmatpush1.xpose.msra.mxu0 0.0
        %581 = vmatprep.subr.mxu0 0.0
        %582 = vmatpush1.xpose.msra.mxu0 0.0
        %583 = vmatprep.subr.mxu0 0.0
        %584 = vmatpush1.xpose.msra.mxu0 0.0
        %585 = vmatprep.subr.mxu0 0.0
        %586 = vmatpush1.xpose.msra.mxu0 0.0
        %587 = vmatprep.subr.mxu0 0.0
        %588 = vmatpush1.xpose.msra.mxu0 0.0
        %589 = vmatprep.subr.mxu0 0.0
        %590 = vmatpush1.xpose.msra.mxu0 0.0
        %591 = vmatprep.subr.mxu0 0.0
        %592 = vmatpush1.xpose.msra.mxu0 0.0
        %593 = vmatprep.subr.mxu0 0.0
        %594 = vmatpush1.xpose.msra.mxu0 0.0
        %595 = vmatprep.subr.mxu0 0.0
        %596 = vmatpush1.xpose.msra.mxu0 0.0
        %597 = vmatprep.subr.mxu0 0.0
        %598 = vmatpush1.xpose.msra.mxu0 0.0
        %599 = vmatprep.mubr.f32.mxu0 0.0
        %600 = vmatmul.mubr.f32.gmra.mrb[0].mxu0 %v527
        %v601 = vpop.f32.mrb[0].mxu0
        %v602 = vadd.f32 0.0, %v601
        %v603 = vpop.f32.mrb[0].mxu0
        %604 = vmatprep.mubr.f32.mxu0 0.0
        %605 = vmatmul.mubr.f32.gmra.mrb[0].mxu0 %v529
        %v606 = vpop.f32.mrb[0].mxu0
        %v607 = vadd.f32 0.0, %v606
        %v608 = vpop.f32.mrb[0].mxu0
        %609 = vdwg.mxu0
        %610 = vrot.lane.b32.xlu0 %v475, 96
        %v611 = vpop.permute.xlu0 %610
        %612 = vrot.lane.b32.xlu0 %v477, 96
        %v613 = vpop.permute.xlu0 %612
        %v614 = vsel %vm526, %v475, 0
        %v616 = vsel %vm526, %v477, 0
        %v618 = vsel %vm526, %v611, 0
        %v620 = vsel %vm526, %v613, 0
        %622 = vmatprep.subr.mxu0 0.0
        %623 = vmatpush1.xpose.msra.mxu0 %v618
        %624 = vmatprep.subr.mxu0 0.0
        %625 = vmatpush1.xpose.msra.mxu0 %v620
        %626 = vmatprep.subr.mxu0 0.0
        %627 = vmatpush1.xpose.msra.mxu0 0.0
        %628 = vmatprep.subr.mxu0 0.0
        %629 = vmatpush1.xpose.msra.mxu0 0.0
        %630 = vmatprep.subr.mxu0 0.0
        %631 = vmatpush1.xpose.msra.mxu0 0.0
        %632 = vmatprep.subr.mxu0 0.0
        %633 = vmatpush1.xpose.msra.mxu0 0.0
        %634 = vmatprep.subr.mxu0 0.0
        %635 = vmatpush1.xpose.msra.mxu0 0.0
        %636 = vmatprep.subr.mxu0 0.0
        %637 = vmatpush1.xpose.msra.mxu0 0.0
        %638 = vmatprep.subr.mxu0 0.0
        %639 = vmatpush1.xpose.msra.mxu0 0.0
        %640 = vmatprep.subr.mxu0 0.0
        %641 = vmatpush1.xpose.msra.mxu0 0.0
        %642 = vmatprep.subr.mxu0 0.0
        %643 = vmatpush1.xpose.msra.mxu0 0.0
        %644 = vmatprep.subr.mxu0 0.0
        %645 = vmatpush1.xpose.msra.mxu0 0.0
        %646 = vmatprep.subr.mxu0 0.0
        %647 = vmatpush1.xpose.msra.mxu0 0.0
        %648 = vmatprep.subr.mxu0 0.0
        %649 = vmatpush1.xpose.msra.mxu0 0.0
        %650 = vmatprep.subr.mxu0 0.0
        %651 = vmatpush1.xpose.msra.mxu0 0.0
        %652 = vmatprep.subr.mxu0 0.0
        %653 = vmatpush1.xpose.msra.mxu0 0.0
        %654 = vmatprep.subr.mxu0 0.0
        %655 = vmatpush1.xpose.msra.mxu0 0.0
        %656 = vmatprep.subr.mxu0 0.0
        %657 = vmatpush1.xpose.msra.mxu0 0.0
        %658 = vmatprep.subr.mxu0 0.0
        %659 = vmatpush1.xpose.msra.mxu0 0.0
        %660 = vmatprep.subr.mxu0 0.0
        %661 = vmatpush1.xpose.msra.mxu0 0.0
        %662 = vmatprep.subr.mxu0 0.0
        %663 = vmatpush1.xpose.msra.mxu0 0.0
        %664 = vmatprep.subr.mxu0 0.0
        %665 = vmatpush1.xpose.msra.mxu0 0.0
        %666 = vmatprep.subr.mxu0 0.0
        %667 = vmatpush1.xpose.msra.mxu0 0.0
        %668 = vmatprep.subr.mxu0 0.0
        %669 = vmatpush1.xpose.msra.mxu0 0.0
        %670 = vmatprep.subr.mxu0 0.0
        %671 = vmatpush1.xpose.msra.mxu0 0.0
        %672 = vmatprep.subr.mxu0 0.0
        %673 = vmatpush1.xpose.msra.mxu0 0.0
        %674 = vmatprep.subr.mxu0 0.0
        %675 = vmatpush1.xpose.msra.mxu0 0.0
        %676 = vmatprep.subr.mxu0 0.0
        %677 = vmatpush1.xpose.msra.mxu0 0.0
        %678 = vmatprep.subr.mxu0 0.0
        %679 = vmatpush1.xpose.msra.mxu0 0.0
        %680 = vmatprep.subr.mxu0 0.0
        %681 = vmatpush1.xpose.msra.mxu0 0.0
        %682 = vmatprep.subr.mxu0 0.0
        %683 = vmatpush1.xpose.msra.mxu0 0.0
        %684 = vmatprep.subr.mxu0 0.0
        %685 = vmatpush1.xpose.msra.mxu0 0.0
        %686 = vmatprep.mubr.f32.mxu0 0.0
        %687 = vmatmul.mubr.f32.gmra.mrb[0].mxu0 %v614
        %v688 = vpop.f32.mrb[0].mxu0
        %v689 = vadd.f32 0.0, %v688
        %v690 = vpop.f32.mrb[0].mxu0
        %691 = vmatprep.mubr.f32.mxu0 0.0
        %692 = vmatmul.mubr.f32.gmra.mrb[0].mxu0 %v616
        %v693 = vpop.f32.mrb[0].mxu0
        %v694 = vadd.f32 0.0, %v693
        %v695 = vpop.f32.mrb[0].mxu0
        %696 = vdwg.mxu0
        %697 = vrot.lane.b32.xlu0 %v491, 96
        %v698 = vpop.permute.xlu0 %697
        %699 = vrot.lane.b32.xlu0 %v493, 96
        %v700 = vpop.permute.xlu0 %699
        %v701 = vsel %vm526, %v491, 0
        %v703 = vsel %vm526, %v493, 0
        %v705 = vsel %vm526, %v698, 0
        %v707 = vsel %vm526, %v700, 0
        %709 = vmatprep.subr.mxu0 0.0
        %710 = vmatpush1.xpose.msra.mxu0 %v705
        %711 = vmatprep.subr.mxu0 0.0
        %712 = vmatpush1.xpose.msra.mxu0 %v707
        %713 = vmatprep.subr.mxu0 0.0
        %714 = vmatpush1.xpose.msra.mxu0 0.0
        %715 = vmatprep.subr.mxu0 0.0
        %716 = vmatpush1.xpose.msra.mxu0 0.0
        %717 = vmatprep.subr.mxu0 0.0
        %718 = vmatpush1.xpose.msra.mxu0 0.0
        %719 = vmatprep.subr.mxu0 0.0
        %720 = vmatpush1.xpose.msra.mxu0 0.0
        %721 = vmatprep.subr.mxu0 0.0
        %722 = vmatpush1.xpose.msra.mxu0 0.0
        %723 = vmatprep.subr.mxu0 0.0
        %724 = vmatpush1.xpose.msra.mxu0 0.0
        %725 = vmatprep.subr.mxu0 0.0
        %726 = vmatpush1.xpose.msra.mxu0 0.0
        %727 = vmatprep.subr.mxu0 0.0
        %728 = vmatpush1.xpose.msra.mxu0 0.0
        %729 = vmatprep.subr.mxu0 0.0
        %730 = vmatpush1.xpose.msra.mxu0 0.0
        %731 = vmatprep.subr.mxu0 0.0
        %732 = vmatpush1.xpose.msra.mxu0 0.0
        %733 = vmatprep.subr.mxu0 0.0
        %734 = vmatpush1.xpose.msra.mxu0 0.0
        %735 = vmatprep.subr.mxu0 0.0
        %736 = vmatpush1.xpose.msra.mxu0 0.0
        %737 = vmatprep.subr.mxu0 0.0
        %738 = vmatpush1.xpose.msra.mxu0 0.0
        %739 = vmatprep.subr.mxu0 0.0
        %740 = vmatpush1.xpose.msra.mxu0 0.0
        %741 = vmatprep.subr.mxu0 0.0
        %742 = vmatpush1.xpose.msra.mxu0 0.0
        %743 = vmatprep.subr.mxu0 0.0
        %744 = vmatpush1.xpose.msra.mxu0 0.0
        %745 = vmatprep.subr.mxu0 0.0
        %746 = vmatpush1.xpose.msra.mxu0 0.0
        %747 = vmatprep.subr.mxu0 0.0
        %748 = vmatpush1.xpose.msra.mxu0 0.0
        %749 = vmatprep.subr.mxu0 0.0
        %750 = vmatpush1.xpose.msra.mxu0 0.0
        %751 = vmatprep.subr.mxu0 0.0
        %752 = vmatpush1.xpose.msra.mxu0 0.0
        %753 = vmatprep.subr.mxu0 0.0
        %754 = vmatpush1.xpose.msra.mxu0 0.0
        %755 = vmatprep.subr.mxu0 0.0
        %756 = vmatpush1.xpose.msra.mxu0 0.0
        %757 = vmatprep.subr.mxu0 0.0
        %758 = vmatpush1.xpose.msra.mxu0 0.0
        %759 = vmatprep.subr.mxu0 0.0
        %760 = vmatpush1.xpose.msra.mxu0 0.0
        %761 = vmatprep.subr.mxu0 0.0
        %762 = vmatpush1.xpose.msra.mxu0 0.0
        %763 = vmatprep.subr.mxu0 0.0
        %764 = vmatpush1.xpose.msra.mxu0 0.0
        %765 = vmatprep.subr.mxu0 0.0
        %766 = vmatpush1.xpose.msra.mxu0 0.0
        %767 = vmatprep.subr.mxu0 0.0
        %768 = vmatpush1.xpose.msra.mxu0 0.0
        %769 = vmatprep.subr.mxu0 0.0
        %770 = vmatpush1.xpose.msra.mxu0 0.0
        %771 = vmatprep.subr.mxu0 0.0
        %772 = vmatpush1.xpose.msra.mxu0 0.0
        %773 = vmatprep.mubr.f32.mxu0 0.0
        %774 = vmatmul.mubr.f32.gmra.mrb[0].mxu0 %v701
        %v775 = vpop.f32.mrb[0].mxu0
        %v776 = vadd.f32 0.0, %v775
        %v777 = vpop.f32.mrb[0].mxu0
        %778 = vmatprep.mubr.f32.mxu0 0.0
        %779 = vmatmul.mubr.f32.gmra.mrb[0].mxu0 %v703
        %v780 = vpop.f32.mrb[0].mxu0
        %v781 = vadd.f32 0.0, %v780
        %v782 = vpop.f32.mrb[0].mxu0
        %783 = vdwg.mxu0
        %784 = vrot.lane.b32.xlu0 %v507, 96
        %v785 = vpop.permute.xlu0 %784
        %786 = vrot.lane.b32.xlu0 %v509, 96
        %v787 = vpop.permute.xlu0 %786
        %v788 = vsel %vm526, %v507, 0
        %v790 = vsel %vm526, %v509, 0
        %v792 = vsel %vm526, %v785, 0
        %v794 = vsel %vm526, %v787, 0
        %796 = vmatprep.subr.mxu0 0.0
        %797 = vmatpush1.xpose.msra.mxu0 %v792
        %798 = vmatprep.subr.mxu0 0.0
        %799 = vmatpush1.xpose.msra.mxu0 %v794
        %800 = vmatprep.subr.mxu0 0.0
        %801 = vmatpush1.xpose.msra.mxu0 0.0
        %802 = vmatprep.subr.mxu0 0.0
        %803 = vmatpush1.xpose.msra.mxu0 0.0
        %804 = vmatprep.subr.mxu0 0.0
        %805 = vmatpush1.xpose.msra.mxu0 0.0
        %806 = vmatprep.subr.mxu0 0.0
        %807 = vmatpush1.xpose.msra.mxu0 0.0
        %808 = vmatprep.subr.mxu0 0.0
        %809 = vmatpush1.xpose.msra.mxu0 0.0
        %810 = vmatprep.subr.mxu0 0.0
        %811 = vmatpush1.xpose.msra.mxu0 0.0
        %812 = vmatprep.subr.mxu0 0.0
        %813 = vmatpush1.xpose.msra.mxu0 0.0
        %814 = vmatprep.subr.mxu0 0.0
        %815 = vmatpush1.xpose.msra.mxu0 0.0
        %816 = vmatprep.subr.mxu0 0.0
        %817 = vmatpush1.xpose.msra.mxu0 0.0
        %818 = vmatprep.subr.mxu0 0.0
        %819 = vmatpush1.xpose.msra.mxu0 0.0
        %820 = vmatprep.subr.mxu0 0.0
        %821 = vmatpush1.xpose.msra.mxu0 0.0
        %822 = vmatprep.subr.mxu0 0.0
        %823 = vmatpush1.xpose.msra.mxu0 0.0
        %824 = vmatprep.subr.mxu0 0.0
        %825 = vmatpush1.xpose.msra.mxu0 0.0
        %826 = vmatprep.subr.mxu0 0.0
        %827 = vmatpush1.xpose.msra.mxu0 0.0
        %828 = vmatprep.subr.mxu0 0.0
        %829 = vmatpush1.xpose.msra.mxu0 0.0
        %830 = vmatprep.subr.mxu0 0.0
        %831 = vmatpush1.xpose.msra.mxu0 0.0
        %832 = vmatprep.subr.mxu0 0.0
        %833 = vmatpush1.xpose.msra.mxu0 0.0
        %834 = vmatprep.subr.mxu0 0.0
        %835 = vmatpush1.xpose.msra.mxu0 0.0
        %836 = vmatprep.subr.mxu0 0.0
        %837 = vmatpush1.xpose.msra.mxu0 0.0
        %838 = vmatprep.subr.mxu0 0.0
        %839 = vmatpush1.xpose.msra.mxu0 0.0
        %840 = vmatprep.subr.mxu0 0.0
        %841 = vmatpush1.xpose.msra.mxu0 0.0
        %842 = vmatprep.subr.mxu0 0.0
        %843 = vmatpush1.xpose.msra.mxu0 0.0
        %844 = vmatprep.subr.mxu0 0.0
        %845 = vmatpush1.xpose.msra.mxu0 0.0
        %846 = vmatprep.subr.mxu0 0.0
        %847 = vmatpush1.xpose.msra.mxu0 0.0
        %848 = vmatprep.subr.mxu0 0.0
        %849 = vmatpush1.xpose.msra.mxu0 0.0
        %850 = vmatprep.subr.mxu0 0.0
        %851 = vmatpush1.xpose.msra.mxu0 0.0
        %852 = vmatprep.subr.mxu0 0.0
        %853 = vmatpush1.xpose.msra.mxu0 0.0
        %854 = vmatprep.subr.mxu0 0.0
        %855 = vmatpush1.xpose.msra.mxu0 0.0
        %856 = vmatprep.subr.mxu0 0.0
        %857 = vmatpush1.xpose.msra.mxu0 0.0
        %858 = vmatprep.subr.mxu0 0.0
        %859 = vmatpush1.xpose.msra.mxu0 0.0
        %860 = vmatprep.mubr.f32.mxu0 0.0
        %861 = vmatmul.mubr.f32.gmra.mrb[0].mxu0 %v788
        %v862 = vpop.f32.mrb[0].mxu0
        %v863 = vadd.f32 0.0, %v862
        %v864 = vpop.f32.mrb[0].mxu0
        %865 = vmatprep.mubr.f32.mxu0 0.0
        %866 = vmatmul.mubr.f32.gmra.mrb[0].mxu0 %v790
        %v867 = vpop.f32.mrb[0].mxu0
        %v868 = vadd.f32 0.0, %v867
        %v869 = vpop.f32.mrb[0].mxu0
        %870 = vdwg.mxu0
        %871 = vrot.lane.b32.xlu0 %v438, 96
        %v872 = vpop.permute.xlu0 %871
        %873 = vrot.lane.b32.xlu0 %v443, 96
        %v874 = vpop.permute.xlu0 %873
        %v875 = vsel %vm526, %v438, 0
        %v877 = vsel %vm526, %v443, 0
        %v879 = vsel %vm526, %v872, 0
        %v881 = vsel %vm526, %v874, 0
        %883 = vmatprep.subr.mxu0 0.0
        %884 = vmatpush1.xpose.msra.mxu0 %v879
        %885 = vmatprep.subr.mxu0 0.0
        %886 = vmatpush1.xpose.msra.mxu0 %v881
        %887 = vmatprep.subr.mxu0 0.0
        %888 = vmatpush1.xpose.msra.mxu0 0.0
        %889 = vmatprep.subr.mxu0 0.0
        %890 = vmatpush1.xpose.msra.mxu0 0.0
        %891 = vmatprep.subr.mxu0 0.0
        %892 = vmatpush1.xpose.msra.mxu0 0.0
        %893 = vmatprep.subr.mxu0 0.0
        %894 = vmatpush1.xpose.msra.mxu0 0.0
        %895 = vmatprep.subr.mxu0 0.0
        %896 = vmatpush1.xpose.msra.mxu0 0.0
        %897 = vmatprep.subr.mxu0 0.0
        %898 = vmatpush1.xpose.msra.mxu0 0.0
        %899 = vmatprep.subr.mxu0 0.0
        %900 = vmatpush1.xpose.msra.mxu0 0.0
        %901 = vmatprep.subr.mxu0 0.0
        %902 = vmatpush1.xpose.msra.mxu0 0.0
        %903 = vmatprep.subr.mxu0 0.0
        %904 = vmatpush1.xpose.msra.mxu0 0.0
        %905 = vmatprep.subr.mxu0 0.0
        %906 = vmatpush1.xpose.msra.mxu0 0.0
        %907 = vmatprep.subr.mxu0 0.0
        %908 = vmatpush1.xpose.msra.mxu0 0.0
        %909 = vmatprep.subr.mxu0 0.0
        %910 = vmatpush1.xpose.msra.mxu0 0.0
        %911 = vmatprep.subr.mxu0 0.0
        %912 = vmatpush1.xpose.msra.mxu0 0.0
        %913 = vmatprep.subr.mxu0 0.0
        %914 = vmatpush1.xpose.msra.mxu0 0.0
        %915 = vmatprep.subr.mxu0 0.0
        %916 = vmatpush1.xpose.msra.mxu0 0.0
        %917 = vmatprep.subr.mxu0 0.0
        %918 = vmatpush1.xpose.msra.mxu0 0.0
        %919 = vmatprep.subr.mxu0 0.0
        %920 = vmatpush1.xpose.msra.mxu0 0.0
        %921 = vmatprep.subr.mxu0 0.0
        %922 = vmatpush1.xpose.msra.mxu0 0.0
        %923 = vmatprep.subr.mxu0 0.0
        %924 = vmatpush1.xpose.msra.mxu0 0.0
        %925 = vmatprep.subr.mxu0 0.0
        %926 = vmatpush1.xpose.msra.mxu0 0.0
        %927 = vmatprep.subr.mxu0 0.0
        %928 = vmatpush1.xpose.msra.mxu0 0.0
        %929 = vmatprep.subr.mxu0 0.0
        %930 = vmatpush1.xpose.msra.mxu0 0.0
        %931 = vmatprep.subr.mxu0 0.0
        %932 = vmatpush1.xpose.msra.mxu0 0.0
        %933 = vmatprep.subr.mxu0 0.0
        %934 = vmatpush1.xpose.msra.mxu0 0.0
        %935 = vmatprep.subr.mxu0 0.0
        %936 = vmatpush1.xpose.msra.mxu0 0.0
        %937 = vmatprep.subr.mxu0 0.0
        %938 = vmatpush1.xpose.msra.mxu0 0.0
        %939 = vmatprep.subr.mxu0 0.0
        %940 = vmatpush1.xpose.msra.mxu0 0.0
        %941 = vmatprep.subr.mxu0 0.0
        %942 = vmatpush1.xpose.msra.mxu0 0.0
        %943 = vmatprep.subr.mxu0 0.0
        %944 = vmatpush1.xpose.msra.mxu0 0.0
        %945 = vmatprep.subr.mxu0 0.0
        %946 = vmatpush1.xpose.msra.mxu0 0.0
        %947 = vmatprep.mubr.f32.mxu0 0.0
        %948 = vmatmul.mubr.f32.gmra.mrb[0].mxu0 %v875
        %v949 = vpop.f32.mrb[0].mxu0
        %v950 = vadd.f32 0.0, %v949
        %v951 = vpop.f32.mrb[0].mxu0
        %952 = vmatprep.mubr.f32.mxu0 0.0
        %953 = vmatmul.mubr.f32.gmra.mrb[0].mxu0 %v877
        %v954 = vpop.f32.mrb[0].mxu0
        %v955 = vadd.f32 0.0, %v954
        %v956 = vpop.f32.mrb[0].mxu0
        %957 = vdwg.mxu0
        %958 = vrot.lane.b32.xlu0 %v479, 96
        %v959 = vpop.permute.xlu0 %958
        %960 = vrot.lane.b32.xlu0 %v481, 96
        %v961 = vpop.permute.xlu0 %960
        %v962 = vsel %vm526, %v479, 0
        %v964 = vsel %vm526, %v481, 0
        %v966 = vsel %vm526, %v959, 0
        %v968 = vsel %vm526, %v961, 0
        %970 = vmatprep.subr.mxu0 0.0
        %971 = vmatpush1.xpose.msra.mxu0 %v966
        %972 = vmatprep.subr.mxu0 0.0
        %973 = vmatpush1.xpose.msra.mxu0 %v968
        %974 = vmatprep.subr.mxu0 0.0
        %975 = vmatpush1.xpose.msra.mxu0 0.0
        %976 = vmatprep.subr.mxu0 0.0
        %977 = vmatpush1.xpose.msra.mxu0 0.0
        %978 = vmatprep.subr.mxu0 0.0
        %979 = vmatpush1.xpose.msra.mxu0 0.0
        %980 = vmatprep.subr.mxu0 0.0
        %981 = vmatpush1.xpose.msra.mxu0 0.0
        %982 = vmatprep.subr.mxu0 0.0
        %983 = vmatpush1.xpose.msra.mxu0 0.0
        %984 = vmatprep.subr.mxu0 0.0
        %985 = vmatpush1.xpose.msra.mxu0 0.0
        %986 = vmatprep.subr.mxu0 0.0
        %987 = vmatpush1.xpose.msra.mxu0 0.0
        %988 = vmatprep.subr.mxu0 0.0
        %989 = vmatpush1.xpose.msra.mxu0 0.0
        %990 = vmatprep.subr.mxu0 0.0
        %991 = vmatpush1.xpose.msra.mxu0 0.0
        %992 = vmatprep.subr.mxu0 0.0
        %993 = vmatpush1.xpose.msra.mxu0 0.0
        %994 = vmatprep.subr.mxu0 0.0
        %995 = vmatpush1.xpose.msra.mxu0 0.0
        %996 = vmatprep.subr.mxu0 0.0
        %997 = vmatpush1.xpose.msra.mxu0 0.0
        %998 = vmatprep.subr.mxu0 0.0
        %999 = vmatpush1.xpose.msra.mxu0 0.0
        %1000 = vmatprep.subr.mxu0 0.0
        %1001 = vmatpush1.xpose.msra.mxu0 0.0
        %1002 = vmatprep.subr.mxu0 0.0
        %1003 = vmatpush1.xpose.msra.mxu0 0.0
        %1004 = vmatprep.subr.mxu0 0.0
        %1005 = vmatpush1.xpose.msra.mxu0 0.0
        %1006 = vmatprep.subr.mxu0 0.0
        %1007 = vmatpush1.xpose.msra.mxu0 0.0
        %1008 = vmatprep.subr.mxu0 0.0
        %1009 = vmatpush1.xpose.msra.mxu0 0.0
        %1010 = vmatprep.subr.mxu0 0.0
        %1011 = vmatpush1.xpose.msra.mxu0 0.0
        %1012 = vmatprep.subr.mxu0 0.0
        %1013 = vmatpush1.xpose.msra.mxu0 0.0
        %1014 = vmatprep.subr.mxu0 0.0
        %1015 = vmatpush1.xpose.msra.mxu0 0.0
        %1016 = vmatprep.subr.mxu0 0.0
        %1017 = vmatpush1.xpose.msra.mxu0 0.0
        %1018 = vmatprep.subr.mxu0 0.0
        %1019 = vmatpush1.xpose.msra.mxu0 0.0
        %1020 = vmatprep.subr.mxu0 0.0
        %1021 = vmatpush1.xpose.msra.mxu0 0.0
        %1022 = vmatprep.subr.mxu0 0.0
        %1023 = vmatpush1.xpose.msra.mxu0 0.0
        %1024 = vmatprep.subr.mxu0 0.0
        %1025 = vmatpush1.xpose.msra.mxu0 0.0
        %1026 = vmatprep.subr.mxu0 0.0
        %1027 = vmatpush1.xpose.msra.mxu0 0.0
        %1028 = vmatprep.subr.mxu0 0.0
        %1029 = vmatpush1.xpose.msra.mxu0 0.0
        %1030 = vmatprep.subr.mxu0 0.0
        %1031 = vmatpush1.xpose.msra.mxu0 0.0
        %1032 = vmatprep.subr.mxu0 0.0
        %1033 = vmatpush1.xpose.msra.mxu0 0.0
        %1034 = vmatprep.mubr.f32.mxu0 0.0
        %1035 = vmatmul.mubr.f32.gmra.mrb[0].mxu0 %v962
        %v1036 = vpop.f32.mrb[0].mxu0
        %v1037 = vadd.f32 0.0, %v1036
        %v1038 = vpop.f32.mrb[0].mxu0
        %1039 = vmatprep.mubr.f32.mxu0 0.0
        %1040 = vmatmul.mubr.f32.gmra.mrb[0].mxu0 %v964
        %v1041 = vpop.f32.mrb[0].mxu0
        %v1042 = vadd.f32 0.0, %v1041
        %v1043 = vpop.f32.mrb[0].mxu0
        %1044 = vdwg.mxu0
        %1045 = vrot.lane.b32.xlu0 %v495, 96
        %v1046 = vpop.permute.xlu0 %1045
        %1047 = vrot.lane.b32.xlu0 %v497, 96
        %v1048 = vpop.permute.xlu0 %1047
        %v1049 = vsel %vm526, %v495, 0
        %v1051 = vsel %vm526, %v497, 0
        %v1053 = vsel %vm526, %v1046, 0
        %v1055 = vsel %vm526, %v1048, 0
        %1057 = vmatprep.subr.mxu0 0.0
        %1058 = vmatpush1.xpose.msra.mxu0 %v1053
        %1059 = vmatprep.subr.mxu0 0.0
        %1060 = vmatpush1.xpose.msra.mxu0 %v1055
        %1061 = vmatprep.subr.mxu0 0.0
        %1062 = vmatpush1.xpose.msra.mxu0 0.0
        %1063 = vmatprep.subr.mxu0 0.0
        %1064 = vmatpush1.xpose.msra.mxu0 0.0
        %1065 = vmatprep.subr.mxu0 0.0
        %1066 = vmatpush1.xpose.msra.mxu0 0.0
        %1067 = vmatprep.subr.mxu0 0.0
        %1068 = vmatpush1.xpose.msra.mxu0 0.0
        %1069 = vmatprep.subr.mxu0 0.0
        %1070 = vmatpush1.xpose.msra.mxu0 0.0
        %1071 = vmatprep.subr.mxu0 0.0
        %1072 = vmatpush1.xpose.msra.mxu0 0.0
        %1073 = vmatprep.subr.mxu0 0.0
        %1074 = vmatpush1.xpose.msra.mxu0 0.0
        %1075 = vmatprep.subr.mxu0 0.0
        %1076 = vmatpush1.xpose.msra.mxu0 0.0
        %1077 = vmatprep.subr.mxu0 0.0
        %1078 = vmatpush1.xpose.msra.mxu0 0.0
        %1079 = vmatprep.subr.mxu0 0.0
        %1080 = vmatpush1.xpose.msra.mxu0 0.0
        %1081 = vmatprep.subr.mxu0 0.0
        %1082 = vmatpush1.xpose.msra.mxu0 0.0
        %1083 = vmatprep.subr.mxu0 0.0
        %1084 = vmatpush1.xpose.msra.mxu0 0.0
        %1085 = vmatprep.subr.mxu0 0.0
        %1086 = vmatpush1.xpose.msra.mxu0 0.0
        %1087 = vmatprep.subr.mxu0 0.0
        %1088 = vmatpush1.xpose.msra.mxu0 0.0
        %1089 = vmatprep.subr.mxu0 0.0
        %1090 = vmatpush1.xpose.msra.mxu0 0.0
        %1091 = vmatprep.subr.mxu0 0.0
        %1092 = vmatpush1.xpose.msra.mxu0 0.0
        %1093 = vmatprep.subr.mxu0 0.0
        %1094 = vmatpush1.xpose.msra.mxu0 0.0
        %1095 = vmatprep.subr.mxu0 0.0
        %1096 = vmatpush1.xpose.msra.mxu0 0.0
        %1097 = vmatprep.subr.mxu0 0.0
        %1098 = vmatpush1.xpose.msra.mxu0 0.0
        %1099 = vmatprep.subr.mxu0 0.0
        %1100 = vmatpush1.xpose.msra.mxu0 0.0
        %1101 = vmatprep.subr.mxu0 0.0
        %1102 = vmatpush1.xpose.msra.mxu0 0.0
        %1103 = vmatprep.subr.mxu0 0.0
        %1104 = vmatpush1.xpose.msra.mxu0 0.0
        %1105 = vmatprep.subr.mxu0 0.0
        %1106 = vmatpush1.xpose.msra.mxu0 0.0
        %1107 = vmatprep.subr.mxu0 0.0
        %1108 = vmatpush1.xpose.msra.mxu0 0.0
        %1109 = vmatprep.subr.mxu0 0.0
        %1110 = vmatpush1.xpose.msra.mxu0 0.0
        %1111 = vmatprep.subr.mxu0 0.0
        %1112 = vmatpush1.xpose.msra.mxu0 0.0
        %1113 = vmatprep.subr.mxu0 0.0
        %1114 = vmatpush1.xpose.msra.mxu0 0.0
        %1115 = vmatprep.subr.mxu0 0.0
        %1116 = vmatpush1.xpose.msra.mxu0 0.0
        %1117 = vmatprep.subr.mxu0 0.0
        %1118 = vmatpush1.xpose.msra.mxu0 0.0
        %1119 = vmatprep.subr.mxu0 0.0
        %1120 = vmatpush1.xpose.msra.mxu0 0.0
        %1121 = vmatprep.mubr.f32.mxu0 0.0
        %1122 = vmatmul.mubr.f32.gmra.mrb[0].mxu0 %v1049
        %v1123 = vpop.f32.mrb[0].mxu0
        %v1124 = vadd.f32 0.0, %v1123
        %v1125 = vpop.f32.mrb[0].mxu0
        %1126 = vmatprep.mubr.f32.mxu0 0.0
        %1127 = vmatmul.mubr.f32.gmra.mrb[0].mxu0 %v1051
        %v1128 = vpop.f32.mrb[0].mxu0
        %v1129 = vadd.f32 0.0, %v1128
        %v1130 = vpop.f32.mrb[0].mxu0
        %1131 = vdwg.mxu0
        %1132 = vrot.lane.b32.xlu0 %v511, 96
        %v1133 = vpop.permute.xlu0 %1132
        %1134 = vrot.lane.b32.xlu0 %v513, 96
        %v1135 = vpop.permute.xlu0 %1134
        %v1136 = vsel %vm526, %v511, 0
        %v1138 = vsel %vm526, %v513, 0
        %v1140 = vsel %vm526, %v1133, 0
        %v1142 = vsel %vm526, %v1135, 0
        %1144 = vmatprep.subr.mxu0 0.0
        %1145 = vmatpush1.xpose.msra.mxu0 %v1140
        %1146 = vmatprep.subr.mxu0 0.0
        %1147 = vmatpush1.xpose.msra.mxu0 %v1142
        %1148 = vmatprep.subr.mxu0 0.0
        %1149 = vmatpush1.xpose.msra.mxu0 0.0
        %1150 = vmatprep.subr.mxu0 0.0
        %1151 = vmatpush1.xpose.msra.mxu0 0.0
        %1152 = vmatprep.subr.mxu0 0.0
        %1153 = vmatpush1.xpose.msra.mxu0 0.0
        %1154 = vmatprep.subr.mxu0 0.0
        %1155 = vmatpush1.xpose.msra.mxu0 0.0
        %1156 = vmatprep.subr.mxu0 0.0
        %1157 = vmatpush1.xpose.msra.mxu0 0.0
        %1158 = vmatprep.subr.mxu0 0.0
        %1159 = vmatpush1.xpose.msra.mxu0 0.0
        %1160 = vmatprep.subr.mxu0 0.0
        %1161 = vmatpush1.xpose.msra.mxu0 0.0
        %1162 = vmatprep.subr.mxu0 0.0
        %1163 = vmatpush1.xpose.msra.mxu0 0.0
        %1164 = vmatprep.subr.mxu0 0.0
        %1165 = vmatpush1.xpose.msra.mxu0 0.0
        %1166 = vmatprep.subr.mxu0 0.0
        %1167 = vmatpush1.xpose.msra.mxu0 0.0
        %1168 = vmatprep.subr.mxu0 0.0
        %1169 = vmatpush1.xpose.msra.mxu0 0.0
        %1170 = vmatprep.subr.mxu0 0.0
        %1171 = vmatpush1.xpose.msra.mxu0 0.0
        %1172 = vmatprep.subr.mxu0 0.0
        %1173 = vmatpush1.xpose.msra.mxu0 0.0
        %1174 = vmatprep.subr.mxu0 0.0
        %1175 = vmatpush1.xpose.msra.mxu0 0.0
        %1176 = vmatprep.subr.mxu0 0.0
        %1177 = vmatpush1.xpose.msra.mxu0 0.0
        %1178 = vmatprep.subr.mxu0 0.0
        %1179 = vmatpush1.xpose.msra.mxu0 0.0
        %1180 = vmatprep.subr.mxu0 0.0
        %1181 = vmatpush1.xpose.msra.mxu0 0.0
        %1182 = vmatprep.subr.mxu0 0.0
        %1183 = vmatpush1.xpose.msra.mxu0 0.0
        %1184 = vmatprep.subr.mxu0 0.0
        %1185 = vmatpush1.xpose.msra.mxu0 0.0
        %1186 = vmatprep.subr.mxu0 0.0
        %1187 = vmatpush1.xpose.msra.mxu0 0.0
        %1188 = vmatprep.subr.mxu0 0.0
        %1189 = vmatpush1.xpose.msra.mxu0 0.0
        %1190 = vmatprep.subr.mxu0 0.0
        %1191 = vmatpush1.xpose.msra.mxu0 0.0
        %1192 = vmatprep.subr.mxu0 0.0
        %1193 = vmatpush1.xpose.msra.mxu0 0.0
        %1194 = vmatprep.subr.mxu0 0.0
        %1195 = vmatpush1.xpose.msra.mxu0 0.0
        %1196 = vmatprep.subr.mxu0 0.0
        %1197 = vmatpush1.xpose.msra.mxu0 0.0
        %1198 = vmatprep.subr.mxu0 0.0
        %1199 = vmatpush1.xpose.msra.mxu0 0.0
        %1200 = vmatprep.subr.mxu0 0.0
        %1201 = vmatpush1.xpose.msra.mxu0 0.0
        %1202 = vmatprep.subr.mxu0 0.0
        %1203 = vmatpush1.xpose.msra.mxu0 0.0
        %1204 = vmatprep.subr.mxu0 0.0
        %1205 = vmatpush1.xpose.msra.mxu0 0.0
        %1206 = vmatprep.subr.mxu0 0.0
        %1207 = vmatpush1.xpose.msra.mxu0 0.0
        %1208 = vmatprep.mubr.f32.mxu0 0.0
        %1209 = vmatmul.mubr.f32.gmra.mrb[0].mxu0 %v1136
        %v1210 = vpop.f32.mrb[0].mxu0
        %v1211 = vadd.f32 0.0, %v1210
        %v1212 = vpop.f32.mrb[0].mxu0
        %1213 = vmatprep.mubr.f32.mxu0 0.0
        %1214 = vmatmul.mubr.f32.gmra.mrb[0].mxu0 %v1138
        %v1215 = vpop.f32.mrb[0].mxu0
        %v1216 = vadd.f32 0.0, %v1215
        %v1217 = vpop.f32.mrb[0].mxu0
        %1218 = vdwg.mxu0
        %1219 = vrot.lane.b32.xlu0 %v448, 96
        %v1220 = vpop.permute.xlu0 %1219
        %1221 = vrot.lane.b32.xlu0 %v453, 96
        %v1222 = vpop.permute.xlu0 %1221
        %v1223 = vsel %vm526, %v448, 0
        %v1225 = vsel %vm526, %v453, 0
        %v1227 = vsel %vm526, %v1220, 0
        %v1229 = vsel %vm526, %v1222, 0
        %1231 = vmatprep.subr.mxu0 0.0
        %1232 = vmatpush1.xpose.msra.mxu0 %v1227
        %1233 = vmatprep.subr.mxu0 0.0
        %1234 = vmatpush1.xpose.msra.mxu0 %v1229
        %1235 = vmatprep.subr.mxu0 0.0
        %1236 = vmatpush1.xpose.msra.mxu0 0.0
        %1237 = vmatprep.subr.mxu0 0.0
        %1238 = vmatpush1.xpose.msra.mxu0 0.0
        %1239 = vmatprep.subr.mxu0 0.0
        %1240 = vmatpush1.xpose.msra.mxu0 0.0
        %1241 = vmatprep.subr.mxu0 0.0
        %1242 = vmatpush1.xpose.msra.mxu0 0.0
        %1243 = vmatprep.subr.mxu0 0.0
        %1244 = vmatpush1.xpose.msra.mxu0 0.0
        %1245 = vmatprep.subr.mxu0 0.0
        %1246 = vmatpush1.xpose.msra.mxu0 0.0
        %1247 = vmatprep.subr.mxu0 0.0
        %1248 = vmatpush1.xpose.msra.mxu0 0.0
        %1249 = vmatprep.subr.mxu0 0.0
        %1250 = vmatpush1.xpose.msra.mxu0 0.0
        %1251 = vmatprep.subr.mxu0 0.0
        %1252 = vmatpush1.xpose.msra.mxu0 0.0
        %1253 = vmatprep.subr.mxu0 0.0
        %1254 = vmatpush1.xpose.msra.mxu0 0.0
        %1255 = vmatprep.subr.mxu0 0.0
        %1256 = vmatpush1.xpose.msra.mxu0 0.0
        %1257 = vmatprep.subr.mxu0 0.0
        %1258 = vmatpush1.xpose.msra.mxu0 0.0
        %1259 = vmatprep.subr.mxu0 0.0
        %1260 = vmatpush1.xpose.msra.mxu0 0.0
        %1261 = vmatprep.subr.mxu0 0.0
        %1262 = vmatpush1.xpose.msra.mxu0 0.0
        %1263 = vmatprep.subr.mxu0 0.0
        %1264 = vmatpush1.xpose.msra.mxu0 0.0
        %1265 = vmatprep.subr.mxu0 0.0
        %1266 = vmatpush1.xpose.msra.mxu0 0.0
        %1267 = vmatprep.subr.mxu0 0.0
        %1268 = vmatpush1.xpose.msra.mxu0 0.0
        %1269 = vmatprep.subr.mxu0 0.0
        %1270 = vmatpush1.xpose.msra.mxu0 0.0
        %1271 = vmatprep.subr.mxu0 0.0
        %1272 = vmatpush1.xpose.msra.mxu0 0.0
        %1273 = vmatprep.subr.mxu0 0.0
        %1274 = vmatpush1.xpose.msra.mxu0 0.0
        %1275 = vmatprep.subr.mxu0 0.0
        %1276 = vmatpush1.xpose.msra.mxu0 0.0
        %1277 = vmatprep.subr.mxu0 0.0
        %1278 = vmatpush1.xpose.msra.mxu0 0.0
        %1279 = vmatprep.subr.mxu0 0.0
        %1280 = vmatpush1.xpose.msra.mxu0 0.0
        %1281 = vmatprep.subr.mxu0 0.0
        %1282 = vmatpush1.xpose.msra.mxu0 0.0
        %1283 = vmatprep.subr.mxu0 0.0
        %1284 = vmatpush1.xpose.msra.mxu0 0.0
        %1285 = vmatprep.subr.mxu0 0.0
        %1286 = vmatpush1.xpose.msra.mxu0 0.0
        %1287 = vmatprep.subr.mxu0 0.0
        %1288 = vmatpush1.xpose.msra.mxu0 0.0
        %1289 = vmatprep.subr.mxu0 0.0
        %1290 = vmatpush1.xpose.msra.mxu0 0.0
        %1291 = vmatprep.subr.mxu0 0.0
        %1292 = vmatpush1.xpose.msra.mxu0 0.0
        %1293 = vmatprep.subr.mxu0 0.0
        %1294 = vmatpush1.xpose.msra.mxu0 0.0
        %1295 = vmatprep.mubr.f32.mxu0 0.0
        %1296 = vmatmul.mubr.f32.gmra.mrb[0].mxu0 %v1223
        %v1297 = vpop.f32.mrb[0].mxu0
        %v1298 = vadd.f32 0.0, %v1297
        %v1299 = vpop.f32.mrb[0].mxu0
        %1300 = vmatprep.mubr.f32.mxu0 0.0
        %1301 = vmatmul.mubr.f32.gmra.mrb[0].mxu0 %v1225
        %v1302 = vpop.f32.mrb[0].mxu0
        %v1303 = vadd.f32 0.0, %v1302
        %v1304 = vpop.f32.mrb[0].mxu0
        %1305 = vdwg.mxu0
        %1306 = vrot.lane.b32.xlu0 %v483, 96
        %v1307 = vpop.permute.xlu0 %1306
        %1308 = vrot.lane.b32.xlu0 %v485, 96
        %v1309 = vpop.permute.xlu0 %1308
        %v1310 = vsel %vm526, %v483, 0
        %v1312 = vsel %vm526, %v485, 0
        %v1314 = vsel %vm526, %v1307, 0
        %v1316 = vsel %vm526, %v1309, 0
        %1318 = vmatprep.subr.mxu0 0.0
        %1319 = vmatpush1.xpose.msra.mxu0 %v1314
        %1320 = vmatprep.subr.mxu0 0.0
        %1321 = vmatpush1.xpose.msra.mxu0 %v1316
        %1322 = vmatprep.subr.mxu0 0.0
        %1323 = vmatpush1.xpose.msra.mxu0 0.0
        %1324 = vmatprep.subr.mxu0 0.0
        %1325 = vmatpush1.xpose.msra.mxu0 0.0
        %1326 = vmatprep.subr.mxu0 0.0
        %1327 = vmatpush1.xpose.msra.mxu0 0.0
        %1328 = vmatprep.subr.mxu0 0.0
        %1329 = vmatpush1.xpose.msra.mxu0 0.0
        %1330 = vmatprep.subr.mxu0 0.0
        %1331 = vmatpush1.xpose.msra.mxu0 0.0
        %1332 = vmatprep.subr.mxu0 0.0
        %1333 = vmatpush1.xpose.msra.mxu0 0.0
        %1334 = vmatprep.subr.mxu0 0.0
        %1335 = vmatpush1.xpose.msra.mxu0 0.0
        %1336 = vmatprep.subr.mxu0 0.0
        %1337 = vmatpush1.xpose.msra.mxu0 0.0
        %1338 = vmatprep.subr.mxu0 0.0
        %1339 = vmatpush1.xpose.msra.mxu0 0.0
        %1340 = vmatprep.subr.mxu0 0.0
        %1341 = vmatpush1.xpose.msra.mxu0 0.0
        %1342 = vmatprep.subr.mxu0 0.0
        %1343 = vmatpush1.xpose.msra.mxu0 0.0
        %1344 = vmatprep.subr.mxu0 0.0
        %1345 = vmatpush1.xpose.msra.mxu0 0.0
        %1346 = vmatprep.subr.mxu0 0.0
        %1347 = vmatpush1.xpose.msra.mxu0 0.0
        %1348 = vmatprep.subr.mxu0 0.0
        %1349 = vmatpush1.xpose.msra.mxu0 0.0
        %1350 = vmatprep.subr.mxu0 0.0
        %1351 = vmatpush1.xpose.msra.mxu0 0.0
        %1352 = vmatprep.subr.mxu0 0.0
        %1353 = vmatpush1.xpose.msra.mxu0 0.0
        %1354 = vmatprep.subr.mxu0 0.0
        %1355 = vmatpush1.xpose.msra.mxu0 0.0
        %1356 = vmatprep.subr.mxu0 0.0
        %1357 = vmatpush1.xpose.msra.mxu0 0.0
        %1358 = vmatprep.subr.mxu0 0.0
        %1359 = vmatpush1.xpose.msra.mxu0 0.0
        %1360 = vmatprep.subr.mxu0 0.0
        %1361 = vmatpush1.xpose.msra.mxu0 0.0
        %1362 = vmatprep.subr.mxu0 0.0
        %1363 = vmatpush1.xpose.msra.mxu0 0.0
        %1364 = vmatprep.subr.mxu0 0.0
        %1365 = vmatpush1.xpose.msra.mxu0 0.0
        %1366 = vmatprep.subr.mxu0 0.0
        %1367 = vmatpush1.xpose.msra.mxu0 0.0
        %1368 = vmatprep.subr.mxu0 0.0
        %1369 = vmatpush1.xpose.msra.mxu0 0.0
        %1370 = vmatprep.subr.mxu0 0.0
        %1371 = vmatpush1.xpose.msra.mxu0 0.0
        %1372 = vmatprep.subr.mxu0 0.0
        %1373 = vmatpush1.xpose.msra.mxu0 0.0
        %1374 = vmatprep.subr.mxu0 0.0
        %1375 = vmatpush1.xpose.msra.mxu0 0.0
        %1376 = vmatprep.subr.mxu0 0.0
        %1377 = vmatpush1.xpose.msra.mxu0 0.0
        %1378 = vmatprep.subr.mxu0 0.0
        %1379 = vmatpush1.xpose.msra.mxu0 0.0
        %1380 = vmatprep.subr.mxu0 0.0
        %1381 = vmatpush1.xpose.msra.mxu0 0.0
        %1382 = vmatprep.mubr.f32.mxu0 0.0
        %1383 = vmatmul.mubr.f32.gmra.mrb[0].mxu0 %v1310
        %v1384 = vpop.f32.mrb[0].mxu0
        %v1385 = vadd.f32 0.0, %v1384
        %v1386 = vpop.f32.mrb[0].mxu0
        %1387 = vmatprep.mubr.f32.mxu0 0.0
        %1388 = vmatmul.mubr.f32.gmra.mrb[0].mxu0 %v1312
        %v1389 = vpop.f32.mrb[0].mxu0
        %v1390 = vadd.f32 0.0, %v1389
        %v1391 = vpop.f32.mrb[0].mxu0
        %1392 = vdwg.mxu0
        %1393 = vrot.lane.b32.xlu0 %v499, 96
        %v1394 = vpop.permute.xlu0 %1393
        %1395 = vrot.lane.b32.xlu0 %v501, 96
        %v1396 = vpop.permute.xlu0 %1395
        %v1397 = vsel %vm526, %v499, 0
        %v1399 = vsel %vm526, %v501, 0
        %v1401 = vsel %vm526, %v1394, 0
        %v1403 = vsel %vm526, %v1396, 0
        %1405 = vmatprep.subr.mxu0 0.0
        %1406 = vmatpush1.xpose.msra.mxu0 %v1401
        %1407 = vmatprep.subr.mxu0 0.0
        %1408 = vmatpush1.xpose.msra.mxu0 %v1403
        %1409 = vmatprep.subr.mxu0 0.0
        %1410 = vmatpush1.xpose.msra.mxu0 0.0
        %1411 = vmatprep.subr.mxu0 0.0
        %1412 = vmatpush1.xpose.msra.mxu0 0.0
        %1413 = vmatprep.subr.mxu0 0.0
        %1414 = vmatpush1.xpose.msra.mxu0 0.0
        %1415 = vmatprep.subr.mxu0 0.0
        %1416 = vmatpush1.xpose.msra.mxu0 0.0
        %1417 = vmatprep.subr.mxu0 0.0
        %1418 = vmatpush1.xpose.msra.mxu0 0.0
        %1419 = vmatprep.subr.mxu0 0.0
        %1420 = vmatpush1.xpose.msra.mxu0 0.0
        %1421 = vmatprep.subr.mxu0 0.0
        %1422 = vmatpush1.xpose.msra.mxu0 0.0
        %1423 = vmatprep.subr.mxu0 0.0
        %1424 = vmatpush1.xpose.msra.mxu0 0.0
        %1425 = vmatprep.subr.mxu0 0.0
        %1426 = vmatpush1.xpose.msra.mxu0 0.0
        %1427 = vmatprep.subr.mxu0 0.0
        %1428 = vmatpush1.xpose.msra.mxu0 0.0
        %1429 = vmatprep.subr.mxu0 0.0
        %1430 = vmatpush1.xpose.msra.mxu0 0.0
        %1431 = vmatprep.subr.mxu0 0.0
        %1432 = vmatpush1.xpose.msra.mxu0 0.0
        %1433 = vmatprep.subr.mxu0 0.0
        %1434 = vmatpush1.xpose.msra.mxu0 0.0
        %1435 = vmatprep.subr.mxu0 0.0
        %1436 = vmatpush1.xpose.msra.mxu0 0.0
        %1437 = vmatprep.subr.mxu0 0.0
        %1438 = vmatpush1.xpose.msra.mxu0 0.0
        %1439 = vmatprep.subr.mxu0 0.0
        %1440 = vmatpush1.xpose.msra.mxu0 0.0
        %1441 = vmatprep.subr.mxu0 0.0
        %1442 = vmatpush1.xpose.msra.mxu0 0.0
        %1443 = vmatprep.subr.mxu0 0.0
        %1444 = vmatpush1.xpose.msra.mxu0 0.0
        %1445 = vmatprep.subr.mxu0 0.0
        %1446 = vmatpush1.xpose.msra.mxu0 0.0
        %1447 = vmatprep.subr.mxu0 0.0
        %1448 = vmatpush1.xpose.msra.mxu0 0.0
        %1449 = vmatprep.subr.mxu0 0.0
        %1450 = vmatpush1.xpose.msra.mxu0 0.0
        %1451 = vmatprep.subr.mxu0 0.0
        %1452 = vmatpush1.xpose.msra.mxu0 0.0
        %1453 = vmatprep.subr.mxu0 0.0
        %1454 = vmatpush1.xpose.msra.mxu0 0.0
        %1455 = vmatprep.subr.mxu0 0.0
        %1456 = vmatpush1.xpose.msra.mxu0 0.0
        %1457 = vmatprep.subr.mxu0 0.0
        %1458 = vmatpush1.xpose.msra.mxu0 0.0
        %1459 = vmatprep.subr.mxu0 0.0
        %1460 = vmatpush1.xpose.msra.mxu0 0.0
        %1461 = vmatprep.subr.mxu0 0.0
        %1462 = vmatpush1.xpose.msra.mxu0 0.0
        %1463 = vmatprep.subr.mxu0 0.0
        %1464 = vmatpush1.xpose.msra.mxu0 0.0
        %1465 = vmatprep.subr.mxu0 0.0
        %1466 = vmatpush1.xpose.msra.mxu0 0.0
        %1467 = vmatprep.subr.mxu0 0.0
        %1468 = vmatpush1.xpose.msra.mxu0 0.0
        %1469 = vmatprep.mubr.f32.mxu0 0.0
        %1470 = vmatmul.mubr.f32.gmra.mrb[0].mxu0 %v1397
        %v1471 = vpop.f32.mrb[0].mxu0
        %v1472 = vadd.f32 0.0, %v1471
        %v1473 = vpop.f32.mrb[0].mxu0
        %1474 = vmatprep.mubr.f32.mxu0 0.0
        %1475 = vmatmul.mubr.f32.gmra.mrb[0].mxu0 %v1399
        %v1476 = vpop.f32.mrb[0].mxu0
        %v1477 = vadd.f32 0.0, %v1476
        %v1478 = vpop.f32.mrb[0].mxu0
        %1479 = vdwg.mxu0
        %1480 = vrot.lane.b32.xlu0 %v515, 96
        %v1481 = vpop.permute.xlu0 %1480
        %1482 = vrot.lane.b32.xlu0 %v517, 96
        %v1483 = vpop.permute.xlu0 %1482
        %v1484 = vsel %vm526, %v515, 0
        %v1486 = vsel %vm526, %v517, 0
        %v1488 = vsel %vm526, %v1481, 0
        %v1490 = vsel %vm526, %v1483, 0
        %1492 = vmatprep.subr.mxu0 0.0
        %1493 = vmatpush1.xpose.msra.mxu0 %v1488
        %1494 = vmatprep.subr.mxu0 0.0
        %1495 = vmatpush1.xpose.msra.mxu0 %v1490
        %1496 = vmatprep.subr.mxu0 0.0
        %1497 = vmatpush1.xpose.msra.mxu0 0.0
        %1498 = vmatprep.subr.mxu0 0.0
        %1499 = vmatpush1.xpose.msra.mxu0 0.0
        %1500 = vmatprep.subr.mxu0 0.0
        %1501 = vmatpush1.xpose.msra.mxu0 0.0
        %1502 = vmatprep.subr.mxu0 0.0
        %1503 = vmatpush1.xpose.msra.mxu0 0.0
        %1504 = vmatprep.subr.mxu0 0.0
        %1505 = vmatpush1.xpose.msra.mxu0 0.0
        %1506 = vmatprep.subr.mxu0 0.0
        %1507 = vmatpush1.xpose.msra.mxu0 0.0
        %1508 = vmatprep.subr.mxu0 0.0
        %1509 = vmatpush1.xpose.msra.mxu0 0.0
        %1510 = vmatprep.subr.mxu0 0.0
        %1511 = vmatpush1.xpose.msra.mxu0 0.0
        %1512 = vmatprep.subr.mxu0 0.0
        %1513 = vmatpush1.xpose.msra.mxu0 0.0
        %1514 = vmatprep.subr.mxu0 0.0
        %1515 = vmatpush1.xpose.msra.mxu0 0.0
        %1516 = vmatprep.subr.mxu0 0.0
        %1517 = vmatpush1.xpose.msra.mxu0 0.0
        %1518 = vmatprep.subr.mxu0 0.0
        %1519 = vmatpush1.xpose.msra.mxu0 0.0
        %1520 = vmatprep.subr.mxu0 0.0
        %1521 = vmatpush1.xpose.msra.mxu0 0.0
        %1522 = vmatprep.subr.mxu0 0.0
        %1523 = vmatpush1.xpose.msra.mxu0 0.0
        %1524 = vmatprep.subr.mxu0 0.0
        %1525 = vmatpush1.xpose.msra.mxu0 0.0
        %1526 = vmatprep.subr.mxu0 0.0
        %1527 = vmatpush1.xpose.msra.mxu0 0.0
        %1528 = vmatprep.subr.mxu0 0.0
        %1529 = vmatpush1.xpose.msra.mxu0 0.0
        %1530 = vmatprep.subr.mxu0 0.0
        %1531 = vmatpush1.xpose.msra.mxu0 0.0
        %1532 = vmatprep.subr.mxu0 0.0
        %1533 = vmatpush1.xpose.msra.mxu0 0.0
        %1534 = vmatprep.subr.mxu0 0.0
        %1535 = vmatpush1.xpose.msra.mxu0 0.0
        %1536 = vmatprep.subr.mxu0 0.0
        %1537 = vmatpush1.xpose.msra.mxu0 0.0
        %1538 = vmatprep.subr.mxu0 0.0
        %1539 = vmatpush1.xpose.msra.mxu0 0.0
        %1540 = vmatprep.subr.mxu0 0.0
        %1541 = vmatpush1.xpose.msra.mxu0 0.0
        %1542 = vmatprep.subr.mxu0 0.0
        %1543 = vmatpush1.xpose.msra.mxu0 0.0
        %1544 = vmatprep.subr.mxu0 0.0
        %1545 = vmatpush1.xpose.msra.mxu0 0.0
        %1546 = vmatprep.subr.mxu0 0.0
        %1547 = vmatpush1.xpose.msra.mxu0 0.0
        %1548 = vmatprep.subr.mxu0 0.0
        %1549 = vmatpush1.xpose.msra.mxu0 0.0
        %1550 = vmatprep.subr.mxu0 0.0
        %1551 = vmatpush1.xpose.msra.mxu0 0.0
        %1552 = vmatprep.subr.mxu0 0.0
        %1553 = vmatpush1.xpose.msra.mxu0 0.0
        %1554 = vmatprep.subr.mxu0 0.0
        %1555 = vmatpush1.xpose.msra.mxu0 0.0
        %1556 = vmatprep.mubr.f32.mxu0 0.0
        %1557 = vmatmul.mubr.f32.gmra.mrb[0].mxu0 %v1484
        %v1558 = vpop.f32.mrb[0].mxu0
        %v1559 = vadd.f32 0.0, %v1558
        %v1560 = vpop.f32.mrb[0].mxu0
        %1561 = vmatprep.mubr.f32.mxu0 0.0
        %1562 = vmatmul.mubr.f32.gmra.mrb[0].mxu0 %v1486
        %v1563 = vpop.f32.mrb[0].mxu0
        %v1564 = vadd.f32 0.0, %v1563
        %v1565 = vpop.f32.mrb[0].mxu0
        %1566 = vdwg.mxu0
        %1567 = vrot.lane.b32.xlu0 %v458, 96
        %v1568 = vpop.permute.xlu0 %1567
        %1569 = vrot.lane.b32.xlu0 %v463, 96
        %v1570 = vpop.permute.xlu0 %1569
        %v1571 = vsel %vm526, %v458, 0
        %v1573 = vsel %vm526, %v463, 0
        %v1575 = vsel %vm526, %v1568, 0
        %v1577 = vsel %vm526, %v1570, 0
        %1579 = vmatprep.subr.mxu0 0.0
        %1580 = vmatpush1.xpose.msra.mxu0 %v1575
        %1581 = vmatprep.subr.mxu0 0.0
        %1582 = vmatpush1.xpose.msra.mxu0 %v1577
        %1583 = vmatprep.subr.mxu0 0.0
        %1584 = vmatpush1.xpose.msra.mxu0 0.0
        %1585 = vmatprep.subr.mxu0 0.0
        %1586 = vmatpush1.xpose.msra.mxu0 0.0
        %1587 = vmatprep.subr.mxu0 0.0
        %1588 = vmatpush1.xpose.msra.mxu0 0.0
        %1589 = vmatprep.subr.mxu0 0.0
        %1590 = vmatpush1.xpose.msra.mxu0 0.0
        %1591 = vmatprep.subr.mxu0 0.0
        %1592 = vmatpush1.xpose.msra.mxu0 0.0
        %1593 = vmatprep.subr.mxu0 0.0
        %1594 = vmatpush1.xpose.msra.mxu0 0.0
        %1595 = vmatprep.subr.mxu0 0.0
        %1596 = vmatpush1.xpose.msra.mxu0 0.0
        %1597 = vmatprep.subr.mxu0 0.0
        %1598 = vmatpush1.xpose.msra.mxu0 0.0
        %1599 = vmatprep.subr.mxu0 0.0
        %1600 = vmatpush1.xpose.msra.mxu0 0.0
        %1601 = vmatprep.subr.mxu0 0.0
        %1602 = vmatpush1.xpose.msra.mxu0 0.0
        %1603 = vmatprep.subr.mxu0 0.0
        %1604 = vmatpush1.xpose.msra.mxu0 0.0
        %1605 = vmatprep.subr.mxu0 0.0
        %1606 = vmatpush1.xpose.msra.mxu0 0.0
        %1607 = vmatprep.subr.mxu0 0.0
        %1608 = vmatpush1.xpose.msra.mxu0 0.0
        %1609 = vmatprep.subr.mxu0 0.0
        %1610 = vmatpush1.xpose.msra.mxu0 0.0
        %1611 = vmatprep.subr.mxu0 0.0
        %1612 = vmatpush1.xpose.msra.mxu0 0.0
        %1613 = vmatprep.subr.mxu0 0.0
        %1614 = vmatpush1.xpose.msra.mxu0 0.0
        %1615 = vmatprep.subr.mxu0 0.0
        %1616 = vmatpush1.xpose.msra.mxu0 0.0
        %1617 = vmatprep.subr.mxu0 0.0
        %1618 = vmatpush1.xpose.msra.mxu0 0.0
        %1619 = vmatprep.subr.mxu0 0.0
        %1620 = vmatpush1.xpose.msra.mxu0 0.0
        %1621 = vmatprep.subr.mxu0 0.0
        %1622 = vmatpush1.xpose.msra.mxu0 0.0
        %1623 = vmatprep.subr.mxu0 0.0
        %1624 = vmatpush1.xpose.msra.mxu0 0.0
        %1625 = vmatprep.subr.mxu0 0.0
        %1626 = vmatpush1.xpose.msra.mxu0 0.0
        %1627 = vmatprep.subr.mxu0 0.0
        %1628 = vmatpush1.xpose.msra.mxu0 0.0
        %1629 = vmatprep.subr.mxu0 0.0
        %1630 = vmatpush1.xpose.msra.mxu0 0.0
        %1631 = vmatprep.subr.mxu0 0.0
        %1632 = vmatpush1.xpose.msra.mxu0 0.0
        %1633 = vmatprep.subr.mxu0 0.0
        %1634 = vmatpush1.xpose.msra.mxu0 0.0
        %1635 = vmatprep.subr.mxu0 0.0
        %1636 = vmatpush1.xpose.msra.mxu0 0.0
        %1637 = vmatprep.subr.mxu0 0.0
        %1638 = vmatpush1.xpose.msra.mxu0 0.0
        %1639 = vmatprep.subr.mxu0 0.0
        %1640 = vmatpush1.xpose.msra.mxu0 0.0
        %1641 = vmatprep.subr.mxu0 0.0
        %1642 = vmatpush1.xpose.msra.mxu0 0.0
        %1643 = vmatprep.mubr.f32.mxu0 0.0
        %1644 = vmatmul.mubr.f32.gmra.mrb[0].mxu0 %v1571
        %v1645 = vpop.f32.mrb[0].mxu0
        %v1646 = vadd.f32 0.0, %v1645
        %v1647 = vpop.f32.mrb[0].mxu0
        %1648 = vmatprep.mubr.f32.mxu0 0.0
        %1649 = vmatmul.mubr.f32.gmra.mrb[0].mxu0 %v1573
        %v1650 = vpop.f32.mrb[0].mxu0
        %v1651 = vadd.f32 0.0, %v1650
        %v1652 = vpop.f32.mrb[0].mxu0
        %1653 = vdwg.mxu0
        %1654 = vrot.lane.b32.xlu0 %v487, 96
        %v1655 = vpop.permute.xlu0 %1654
        %1656 = vrot.lane.b32.xlu0 %v489, 96
        %v1657 = vpop.permute.xlu0 %1656
        %v1658 = vsel %vm526, %v487, 0
        %v1660 = vsel %vm526, %v489, 0
        %v1662 = vsel %vm526, %v1655, 0
        %v1664 = vsel %vm526, %v1657, 0
        %1666 = vmatprep.subr.mxu0 0.0
        %1667 = vmatpush1.xpose.msra.mxu0 %v1662
        %1668 = vmatprep.subr.mxu0 0.0
        %1669 = vmatpush1.xpose.msra.mxu0 %v1664
        %1670 = vmatprep.subr.mxu0 0.0
        %1671 = vmatpush1.xpose.msra.mxu0 0.0
        %1672 = vmatprep.subr.mxu0 0.0
        %1673 = vmatpush1.xpose.msra.mxu0 0.0
        %1674 = vmatprep.subr.mxu0 0.0
        %1675 = vmatpush1.xpose.msra.mxu0 0.0
        %1676 = vmatprep.subr.mxu0 0.0
        %1677 = vmatpush1.xpose.msra.mxu0 0.0
        %1678 = vmatprep.subr.mxu0 0.0
        %1679 = vmatpush1.xpose.msra.mxu0 0.0
        %1680 = vmatprep.subr.mxu0 0.0
        %1681 = vmatpush1.xpose.msra.mxu0 0.0
        %1682 = vmatprep.subr.mxu0 0.0
        %1683 = vmatpush1.xpose.msra.mxu0 0.0
        %1684 = vmatprep.subr.mxu0 0.0
        %1685 = vmatpush1.xpose.msra.mxu0 0.0
        %1686 = vmatprep.subr.mxu0 0.0
        %1687 = vmatpush1.xpose.msra.mxu0 0.0
        %1688 = vmatprep.subr.mxu0 0.0
        %1689 = vmatpush1.xpose.msra.mxu0 0.0
        %1690 = vmatprep.subr.mxu0 0.0
        %1691 = vmatpush1.xpose.msra.mxu0 0.0
        %1692 = vmatprep.subr.mxu0 0.0
        %1693 = vmatpush1.xpose.msra.mxu0 0.0
        %1694 = vmatprep.subr.mxu0 0.0
        %1695 = vmatpush1.xpose.msra.mxu0 0.0
        %1696 = vmatprep.subr.mxu0 0.0
        %1697 = vmatpush1.xpose.msra.mxu0 0.0
        %1698 = vmatprep.subr.mxu0 0.0
        %1699 = vmatpush1.xpose.msra.mxu0 0.0
        %1700 = vmatprep.subr.mxu0 0.0
        %1701 = vmatpush1.xpose.msra.mxu0 0.0
        %1702 = vmatprep.subr.mxu0 0.0
        %1703 = vmatpush1.xpose.msra.mxu0 0.0
        %1704 = vmatprep.subr.mxu0 0.0
        %1705 = vmatpush1.xpose.msra.mxu0 0.0
        %1706 = vmatprep.subr.mxu0 0.0
        %1707 = vmatpush1.xpose.msra.mxu0 0.0
        %1708 = vmatprep.subr.mxu0 0.0
        %1709 = vmatpush1.xpose.msra.mxu0 0.0
        %1710 = vmatprep.subr.mxu0 0.0
        %1711 = vmatpush1.xpose.msra.mxu0 0.0
        %1712 = vmatprep.subr.mxu0 0.0
        %1713 = vmatpush1.xpose.msra.mxu0 0.0
        %1714 = vmatprep.subr.mxu0 0.0
        %1715 = vmatpush1.xpose.msra.mxu0 0.0
        %1716 = vmatprep.subr.mxu0 0.0
        %1717 = vmatpush1.xpose.msra.mxu0 0.0
        %1718 = vmatprep.subr.mxu0 0.0
        %1719 = vmatpush1.xpose.msra.mxu0 0.0
        %1720 = vmatprep.subr.mxu0 0.0
        %1721 = vmatpush1.xpose.msra.mxu0 0.0
        %1722 = vmatprep.subr.mxu0 0.0
        %1723 = vmatpush1.xpose.msra.mxu0 0.0
        %1724 = vmatprep.subr.mxu0 0.0
        %1725 = vmatpush1.xpose.msra.mxu0 0.0
        %1726 = vmatprep.subr.mxu0 0.0
        %1727 = vmatpush1.xpose.msra.mxu0 0.0
        %1728 = vmatprep.subr.mxu0 0.0
        %1729 = vmatpush1.xpose.msra.mxu0 0.0
        %1730 = vmatprep.mubr.f32.mxu0 0.0
        %1731 = vmatmul.mubr.f32.gmra.mrb[0].mxu0 %v1658
        %v1732 = vpop.f32.mrb[0].mxu0
        %v1733 = vadd.f32 0.0, %v1732
        %v1734 = vpop.f32.mrb[0].mxu0
        %1735 = vmatprep.mubr.f32.mxu0 0.0
        %1736 = vmatmul.mubr.f32.gmra.mrb[0].mxu0 %v1660
        %v1737 = vpop.f32.mrb[0].mxu0
        %v1738 = vadd.f32 0.0, %v1737
        %v1739 = vpop.f32.mrb[0].mxu0
        %1740 = vdwg.mxu0
        %1741 = vrot.lane.b32.xlu0 %v503, 96
        %v1742 = vpop.permute.xlu0 %1741
        %1743 = vrot.lane.b32.xlu0 %v505, 96
        %v1744 = vpop.permute.xlu0 %1743
        %v1745 = vsel %vm526, %v503, 0
        %v1747 = vsel %vm526, %v505, 0
        %v1749 = vsel %vm526, %v1742, 0
        %v1751 = vsel %vm526, %v1744, 0
        %1753 = vmatprep.subr.mxu0 0.0
        %1754 = vmatpush1.xpose.msra.mxu0 %v1749
        %1755 = vmatprep.subr.mxu0 0.0
        %1756 = vmatpush1.xpose.msra.mxu0 %v1751
        %1757 = vmatprep.subr.mxu0 0.0
        %1758 = vmatpush1.xpose.msra.mxu0 0.0
        %1759 = vmatprep.subr.mxu0 0.0
        %1760 = vmatpush1.xpose.msra.mxu0 0.0
        %1761 = vmatprep.subr.mxu0 0.0
        %1762 = vmatpush1.xpose.msra.mxu0 0.0
        %1763 = vmatprep.subr.mxu0 0.0
        %1764 = vmatpush1.xpose.msra.mxu0 0.0
        %1765 = vmatprep.subr.mxu0 0.0
        %1766 = vmatpush1.xpose.msra.mxu0 0.0
        %1767 = vmatprep.subr.mxu0 0.0
        %1768 = vmatpush1.xpose.msra.mxu0 0.0
        %1769 = vmatprep.subr.mxu0 0.0
        %1770 = vmatpush1.xpose.msra.mxu0 0.0
        %1771 = vmatprep.subr.mxu0 0.0
        %1772 = vmatpush1.xpose.msra.mxu0 0.0
        %1773 = vmatprep.subr.mxu0 0.0
        %1774 = vmatpush1.xpose.msra.mxu0 0.0
        %1775 = vmatprep.subr.mxu0 0.0
        %1776 = vmatpush1.xpose.msra.mxu0 0.0
        %1777 = vmatprep.subr.mxu0 0.0
        %1778 = vmatpush1.xpose.msra.mxu0 0.0
        %1779 = vmatprep.subr.mxu0 0.0
        %1780 = vmatpush1.xpose.msra.mxu0 0.0
        %1781 = vmatprep.subr.mxu0 0.0
        %1782 = vmatpush1.xpose.msra.mxu0 0.0
        %1783 = vmatprep.subr.mxu0 0.0
        %1784 = vmatpush1.xpose.msra.mxu0 0.0
        %1785 = vmatprep.subr.mxu0 0.0
        %1786 = vmatpush1.xpose.msra.mxu0 0.0
        %1787 = vmatprep.subr.mxu0 0.0
        %1788 = vmatpush1.xpose.msra.mxu0 0.0
        %1789 = vmatprep.subr.mxu0 0.0
        %1790 = vmatpush1.xpose.msra.mxu0 0.0
        %1791 = vmatprep.subr.mxu0 0.0
        %1792 = vmatpush1.xpose.msra.mxu0 0.0
        %1793 = vmatprep.subr.mxu0 0.0
        %1794 = vmatpush1.xpose.msra.mxu0 0.0
        %1795 = vmatprep.subr.mxu0 0.0
        %1796 = vmatpush1.xpose.msra.mxu0 0.0
        %1797 = vmatprep.subr.mxu0 0.0
        %1798 = vmatpush1.xpose.msra.mxu0 0.0
        %1799 = vmatprep.subr.mxu0 0.0
        %1800 = vmatpush1.xpose.msra.mxu0 0.0
        %1801 = vmatprep.subr.mxu0 0.0
        %1802 = vmatpush1.xpose.msra.mxu0 0.0
        %1803 = vmatprep.subr.mxu0 0.0
        %1804 = vmatpush1.xpose.msra.mxu0 0.0
        %1805 = vmatprep.subr.mxu0 0.0
        %1806 = vmatpush1.xpose.msra.mxu0 0.0
        %1807 = vmatprep.subr.mxu0 0.0
        %1808 = vmatpush1.xpose.msra.mxu0 0.0
        %1809 = vmatprep.subr.mxu0 0.0
        %1810 = vmatpush1.xpose.msra.mxu0 0.0
        %1811 = vmatprep.subr.mxu0 0.0
        %1812 = vmatpush1.xpose.msra.mxu0 0.0
        %1813 = vmatprep.subr.mxu0 0.0
        %1814 = vmatpush1.xpose.msra.mxu0 0.0
        %1815 = vmatprep.subr.mxu0 0.0
        %1816 = vmatpush1.xpose.msra.mxu0 0.0
        %1817 = vmatprep.mubr.f32.mxu0 0.0
        %1818 = vmatmul.mubr.f32.gmra.mrb[0].mxu0 %v1745
        %v1819 = vpop.f32.mrb[0].mxu0
        %v1820 = vadd.f32 0.0, %v1819
        %v1821 = vpop.f32.mrb[0].mxu0
        %1822 = vmatprep.mubr.f32.mxu0 0.0
        %1823 = vmatmul.mubr.f32.gmra.mrb[0].mxu0 %v1747
        %v1824 = vpop.f32.mrb[0].mxu0
        %v1825 = vadd.f32 0.0, %v1824
        %v1826 = vpop.f32.mrb[0].mxu0
        %1827 = vdwg.mxu0
        %1828 = vrot.lane.b32.xlu0 %v519, 96
        %v1829 = vpop.permute.xlu0 %1828
        %1830 = vrot.lane.b32.xlu0 %v521, 96
        %v1831 = vpop.permute.xlu0 %1830
        %v1832 = vsel %vm526, %v519, 0
        %v1834 = vsel %vm526, %v521, 0
        %v1836 = vsel %vm526, %v1829, 0
        %v1838 = vsel %vm526, %v1831, 0
        %1840 = vmatprep.subr.mxu0 0.0
        %1841 = vmatpush1.xpose.msra.mxu0 %v1836
        %1842 = vmatprep.subr.mxu0 0.0
        %1843 = vmatpush1.xpose.msra.mxu0 %v1838
        %1844 = vmatprep.subr.mxu0 0.0
        %1845 = vmatpush1.xpose.msra.mxu0 0.0
        %1846 = vmatprep.subr.mxu0 0.0
        %1847 = vmatpush1.xpose.msra.mxu0 0.0
        %1848 = vmatprep.subr.mxu0 0.0
        %1849 = vmatpush1.xpose.msra.mxu0 0.0
        %1850 = vmatprep.subr.mxu0 0.0
        %1851 = vmatpush1.xpose.msra.mxu0 0.0
        %1852 = vmatprep.subr.mxu0 0.0
        %1853 = vmatpush1.xpose.msra.mxu0 0.0
        %1854 = vmatprep.subr.mxu0 0.0
        %1855 = vmatpush1.xpose.msra.mxu0 0.0
        %1856 = vmatprep.subr.mxu0 0.0
        %1857 = vmatpush1.xpose.msra.mxu0 0.0
        %1858 = vmatprep.subr.mxu0 0.0
        %1859 = vmatpush1.xpose.msra.mxu0 0.0
        %1860 = vmatprep.subr.mxu0 0.0
        %1861 = vmatpush1.xpose.msra.mxu0 0.0
        %1862 = vmatprep.subr.mxu0 0.0
        %1863 = vmatpush1.xpose.msra.mxu0 0.0
        %1864 = vmatprep.subr.mxu0 0.0
        %1865 = vmatpush1.xpose.msra.mxu0 0.0
        %1866 = vmatprep.subr.mxu0 0.0
        %1867 = vmatpush1.xpose.msra.mxu0 0.0
        %1868 = vmatprep.subr.mxu0 0.0
        %1869 = vmatpush1.xpose.msra.mxu0 0.0
        %1870 = vmatprep.subr.mxu0 0.0
        %1871 = vmatpush1.xpose.msra.mxu0 0.0
        %1872 = vmatprep.subr.mxu0 0.0
        %1873 = vmatpush1.xpose.msra.mxu0 0.0
        %1874 = vmatprep.subr.mxu0 0.0
        %1875 = vmatpush1.xpose.msra.mxu0 0.0
        %1876 = vmatprep.subr.mxu0 0.0
        %1877 = vmatpush1.xpose.msra.mxu0 0.0
        %1878 = vmatprep.subr.mxu0 0.0
        %1879 = vmatpush1.xpose.msra.mxu0 0.0
        %1880 = vmatprep.subr.mxu0 0.0
        %1881 = vmatpush1.xpose.msra.mxu0 0.0
        %1882 = vmatprep.subr.mxu0 0.0
        %1883 = vmatpush1.xpose.msra.mxu0 0.0
        %1884 = vmatprep.subr.mxu0 0.0
        %1885 = vmatpush1.xpose.msra.mxu0 0.0
        %1886 = vmatprep.subr.mxu0 0.0
        %1887 = vmatpush1.xpose.msra.mxu0 0.0
        %1888 = vmatprep.subr.mxu0 0.0
        %1889 = vmatpush1.xpose.msra.mxu0 0.0
        %1890 = vmatprep.subr.mxu0 0.0
        %1891 = vmatpush1.xpose.msra.mxu0 0.0
        %1892 = vmatprep.subr.mxu0 0.0
        %1893 = vmatpush1.xpose.msra.mxu0 0.0
        %1894 = vmatprep.subr.mxu0 0.0
        %1895 = vmatpush1.xpose.msra.mxu0 0.0
        %1896 = vmatprep.subr.mxu0 0.0
        %1897 = vmatpush1.xpose.msra.mxu0 0.0
        %1898 = vmatprep.subr.mxu0 0.0
        %1899 = vmatpush1.xpose.msra.mxu0 0.0
        %1900 = vmatprep.subr.mxu0 0.0
        %1901 = vmatpush1.xpose.msra.mxu0 0.0
        %1902 = vmatprep.subr.mxu0 0.0
        %1903 = vmatpush1.xpose.msra.mxu0 0.0
        %1904 = vmatprep.mubr.f32.mxu0 0.0
        %1905 = vmatmul.mubr.f32.gmra.mrb[0].mxu0 %v1832
        %v1906 = vpop.f32.mrb[0].mxu0
        %v1907 = vadd.f32 0.0, %v1906
        %v1908 = vpop.f32.mrb[0].mxu0
        %1909 = vmatprep.mubr.f32.mxu0 0.0
        %1910 = vmatmul.mubr.f32.gmra.mrb[0].mxu0 %v1834
        %v1911 = vpop.f32.mrb[0].mxu0
        %v1912 = vadd.f32 0.0, %v1911
        %v1913 = vpop.f32.mrb[0].mxu0
        %1914 = vdwg.mxu0
        %v1915 = vld [vmem:[#allocation8] sm:$0xff]
        %v1916 = vld [vmem:[#allocation8 + $0x8] sm:$0xff]
        %v1917 = vld [vmem:[#allocation8 + $0x10] sm:$0xff]
        %v1918 = vld [vmem:[#allocation8 + $0x18] sm:$0xff]
        %v1919 = vld [vmem:[#allocation8 + $0x20] sm:$0xff]
        %v1920 = vld [vmem:[#allocation8 + $0x28] sm:$0xff]
        %v1921 = vld [vmem:[#allocation8 + $0x30] sm:$0xff]
        %v1922 = vld [vmem:[#allocation8 + $0x38] sm:$0xff]
        %v1923 = vld [vmem:[#allocation8 + $0x40] sm:$0xff]
        %v1924 = vld [vmem:[#allocation8 + $0x48] sm:$0xff]
        %v1925 = vld [vmem:[#allocation8 + $0x50] sm:$0xff]
        %v1926 = vld [vmem:[#allocation8 + $0x58] sm:$0xff]
        %v1927 = vld [vmem:[#allocation8 + $0x60] sm:$0xff]
        %v1928 = vld [vmem:[#allocation8 + $0x68] sm:$0xff]
        %v1929 = vld [vmem:[#allocation8 + $0x70] sm:$0xff]
        %v1930 = vld [vmem:[#allocation8 + $0x78] sm:$0xff]
        %v1931 = vld [vmem:[#allocation8 + $0x80] sm:$0xff]
        %v1932 = vld [vmem:[#allocation8 + $0x88] sm:$0xff]
        %v1933 = vld [vmem:[#allocation8 + $0x90] sm:$0xff]
        %v1934 = vld [vmem:[#allocation8 + $0x98] sm:$0xff]
        %v1935 = vld [vmem:[#allocation8 + $0xa0] sm:$0xff]
        %v1936 = vld [vmem:[#allocation8 + $0xa8] sm:$0xff]
        %v1937 = vld [vmem:[#allocation8 + $0xb0] sm:$0xff]
        %v1938 = vld [vmem:[#allocation8 + $0xb8] sm:$0xff]
        %v1939 = vld [vmem:[#allocation8 + $0xc0] sm:$0xff]
        %v1940 = vld [vmem:[#allocation8 + $0xc8] sm:$0xff]
        %v1941 = vld [vmem:[#allocation8 + $0xd0] sm:$0xff]
        %v1942 = vld [vmem:[#allocation8 + $0xd8] sm:$0xff]
        %v1943 = vld [vmem:[#allocation8 + $0xe0] sm:$0xff]
        %v1944 = vld [vmem:[#allocation8 + $0xe8] sm:$0xff]
        %v1945 = vld [vmem:[#allocation8 + $0xf0] sm:$0xff]
        %v1946 = vld [vmem:[#allocation8 + $0xf8] sm:$0xff]
        %v1947 = vadd.f32 %v602, %v1915
        %v1948 = vadd.f32 %v607, %v1916
        %v1949 = vadd.f32 %v689, %v1917
        %v1950 = vadd.f32 %v694, %v1918
        %v1951 = vadd.f32 %v776, %v1919
        %v1952 = vadd.f32 %v781, %v1920
        %v1953 = vadd.f32 %v863, %v1921
        %v1954 = vadd.f32 %v868, %v1922
        %v1955 = vadd.f32 %v950, %v1923
        %v1956 = vadd.f32 %v955, %v1924
        %v1957 = vadd.f32 %v1037, %v1925
        %v1958 = vadd.f32 %v1042, %v1926
        %v1959 = vadd.f32 %v1124, %v1927
        %v1960 = vadd.f32 %v1129, %v1928
        %v1961 = vadd.f32 %v1211, %v1929
        %v1962 = vadd.f32 %v1216, %v1930
        %v1963 = vadd.f32 %v1298, %v1931
        %v1964 = vadd.f32 %v1303, %v1932
        %v1965 = vadd.f32 %v1385, %v1933
        %v1966 = vadd.f32 %v1390, %v1934
        %v1967 = vadd.f32 %v1472, %v1935
        %v1968 = vadd.f32 %v1477, %v1936
        %v1969 = vadd.f32 %v1559, %v1937
        %v1970 = vadd.f32 %v1564, %v1938
        %v1971 = vadd.f32 %v1646, %v1939
        %v1972 = vadd.f32 %v1651, %v1940
        %v1973 = vadd.f32 %v1733, %v1941
        %v1974 = vadd.f32 %v1738, %v1942
        %v1975 = vadd.f32 %v1820, %v1943
        %v1976 = vadd.f32 %v1825, %v1944
        %v1977 = vadd.f32 %v1907, %v1945
        %v1978 = vadd.f32 %v1912, %v1946
        %vm1979 = vcmask 130048
        %v1980 = vsel %vm1979, %v1947, -inf
        %1981 = vmax.xlane.f32.xlu0 %v1980
        %v1982 = vpop.xlane.xlu0 %1981
        %v1983 = vsel %vm1979, %v1948, -inf
        %1984 = vmax.xlane.f32.xlu0 %v1983
        %v1985 = vpop.xlane.xlu0 %1984
        %v1986 = vsel %vm1979, %v1949, -inf
        %1987 = vmax.xlane.f32.xlu0 %v1986
        %v1988 = vpop.xlane.xlu0 %1987
        %v1989 = vsel %vm1979, %v1950, -inf
        %1990 = vmax.xlane.f32.xlu0 %v1989
        %v1991 = vpop.xlane.xlu0 %1990
        %v1992 = vsel %vm1979, %v1951, -inf
        %1993 = vmax.xlane.f32.xlu0 %v1992
        %v1994 = vpop.xlane.xlu0 %1993
        %v1995 = vsel %vm1979, %v1952, -inf
        %1996 = vmax.xlane.f32.xlu0 %v1995
        %v1997 = vpop.xlane.xlu0 %1996
        %v1998 = vsel %vm1979, %v1953, -inf
        %1999 = vmax.xlane.f32.xlu0 %v1998
        %v2000 = vpop.xlane.xlu0 %1999
        %v2001 = vsel %vm1979, %v1954, -inf
        %2002 = vmax.xlane.f32.xlu0 %v2001
        %v2003 = vpop.xlane.xlu0 %2002
        %v2004 = vsel %vm1979, %v1955, -inf
        %2005 = vmax.xlane.f32.xlu0 %v2004
        %v2006 = vpop.xlane.xlu0 %2005
        %v2007 = vsel %vm1979, %v1956, -inf
        %2008 = vmax.xlane.f32.xlu0 %v2007
        %v2009 = vpop.xlane.xlu0 %2008
        %v2010 = vsel %vm1979, %v1957, -inf
        %2011 = vmax.xlane.f32.xlu0 %v2010
        %v2012 = vpop.xlane.xlu0 %2011
        %v2013 = vsel %vm1979, %v1958, -inf
        %2014 = vmax.xlane.f32.xlu0 %v2013
        %v2015 = vpop.xlane.xlu0 %2014
        %v2016 = vsel %vm1979, %v1959, -inf
        %2017 = vmax.xlane.f32.xlu0 %v2016
        %v2018 = vpop.xlane.xlu0 %2017
        %v2019 = vsel %vm1979, %v1960, -inf
        %2020 = vmax.xlane.f32.xlu0 %v2019
        %v2021 = vpop.xlane.xlu0 %2020
        %v2022 = vsel %vm1979, %v1961, -inf
        %2023 = vmax.xlane.f32.xlu0 %v2022
        %v2024 = vpop.xlane.xlu0 %2023
        %v2025 = vsel %vm1979, %v1962, -inf
        %2026 = vmax.xlane.f32.xlu0 %v2025
        %v2027 = vpop.xlane.xlu0 %2026
        %v2028 = vsel %vm1979, %v1963, -inf
        %2029 = vmax.xlane.f32.xlu0 %v2028
        %v2030 = vpop.xlane.xlu0 %2029
        %v2031 = vsel %vm1979, %v1964, -inf
        %2032 = vmax.xlane.f32.xlu0 %v2031
        %v2033 = vpop.xlane.xlu0 %2032
        %v2034 = vsel %vm1979, %v1965, -inf
        %2035 = vmax.xlane.f32.xlu0 %v2034
        %v2036 = vpop.xlane.xlu0 %2035
        %v2037 = vsel %vm1979, %v1966, -inf
        %2038 = vmax.xlane.f32.xlu0 %v2037
        %v2039 = vpop.xlane.xlu0 %2038
        %v2040 = vsel %vm1979, %v1967, -inf
        %2041 = vmax.xlane.f32.xlu0 %v2040
        %v2042 = vpop.xlane.xlu0 %2041
        %v2043 = vsel %vm1979, %v1968, -inf
        %2044 = vmax.xlane.f32.xlu0 %v2043
        %v2045 = vpop.xlane.xlu0 %2044
        %v2046 = vsel %vm1979, %v1969, -inf
        %2047 = vmax.xlane.f32.xlu0 %v2046
        %v2048 = vpop.xlane.xlu0 %2047
        %v2049 = vsel %vm1979, %v1970, -inf
        %2050 = vmax.xlane.f32.xlu0 %v2049
        %v2051 = vpop.xlane.xlu0 %2050
        %v2052 = vsel %vm1979, %v1971, -inf
        %2053 = vmax.xlane.f32.xlu0 %v2052
        %v2054 = vpop.xlane.xlu0 %2053
        %v2055 = vsel %vm1979, %v1972, -inf
        %2056 = vmax.xlane.f32.xlu0 %v2055
        %v2057 = vpop.xlane.xlu0 %2056
        %v2058 = vsel %vm1979, %v1973, -inf
        %2059 = vmax.xlane.f32.xlu0 %v2058
        %v2060 = vpop.xlane.xlu0 %2059
        %v2061 = vsel %vm1979, %v1974, -inf
        %2062 = vmax.xlane.f32.xlu0 %v2061
        %v2063 = vpop.xlane.xlu0 %2062
        %v2064 = vsel %vm1979, %v1975, -inf
        %2065 = vmax.xlane.f32.xlu0 %v2064
        %v2066 = vpop.xlane.xlu0 %2065
        %v2067 = vsel %vm1979, %v1976, -inf
        %2068 = vmax.xlane.f32.xlu0 %v2067
        %v2069 = vpop.xlane.xlu0 %2068
        %v2070 = vsel %vm1979, %v1977, -inf
        %2071 = vmax.xlane.f32.xlu0 %v2070
        %v2072 = vpop.xlane.xlu0 %2071
        %v2073 = vsel %vm1979, %v1978, -inf
        %2074 = vmax.xlane.f32.xlu0 %v2073
        %v2075 = vpop.xlane.xlu0 %2074
        %v2076 = vsub.f32 %v1947, %v1982
        %v2077 = vsub.f32 %v1948, %v1985
        %v2078 = vsub.f32 %v1949, %v1988
        %v2079 = vsub.f32 %v1950, %v1991
        %v2080 = vsub.f32 %v1951, %v1994
        %v2081 = vsub.f32 %v1952, %v1997
        %v2082 = vsub.f32 %v1953, %v2000
        %v2083 = vsub.f32 %v1954, %v2003
        %v2084 = vsub.f32 %v1955, %v2006
        %v2085 = vsub.f32 %v1956, %v2009
        %v2086 = vsub.f32 %v1957, %v2012
        %v2087 = vsub.f32 %v1958, %v2015
        %v2088 = vsub.f32 %v1959, %v2018
        %v2089 = vsub.f32 %v1960, %v2021
        %v2090 = vsub.f32 %v1961, %v2024
        %v2091 = vsub.f32 %v1962, %v2027
        %v2092 = vsub.f32 %v1963, %v2030
        %v2093 = vsub.f32 %v1964, %v2033
        %v2094 = vsub.f32 %v1965, %v2036
        %v2095 = vsub.f32 %v1966, %v2039
        %v2096 = vsub.f32 %v1967, %v2042
        %v2097 = vsub.f32 %v1968, %v2045
        %v2098 = vsub.f32 %v1969, %v2048
        %v2099 = vsub.f32 %v1970, %v2051
        %v2100 = vsub.f32 %v1971, %v2054
        %v2101 = vsub.f32 %v1972, %v2057
        %v2102 = vsub.f32 %v1973, %v2060
        %v2103 = vsub.f32 %v1974, %v2063
        %v2104 = vsub.f32 %v1975, %v2066
        %v2105 = vsub.f32 %v1976, %v2069
        %v2106 = vsub.f32 %v1977, %v2072
        %v2107 = vsub.f32 %v1978, %v2075
        %v2108 = vmul.f32 %v2076, 1.442695
        %v2109 = vpow.pop %v2108
        %v2110 = vmul.f32 %v2077, 1.442695
        %v2111 = vpow.pop %v2110
        %v2112 = vmul.f32 %v2078, 1.442695
        %v2113 = vpow.pop %v2112
        %v2114 = vmul.f32 %v2079, 1.442695
        %v2115 = vpow.pop %v2114
        %v2116 = vmul.f32 %v2080, 1.442695
        %v2117 = vpow.pop %v2116
        %v2118 = vmul.f32 %v2081, 1.442695
        %v2119 = vpow.pop %v2118
        %v2120 = vmul.f32 %v2082, 1.442695
        %v2121 = vpow.pop %v2120
        %v2122 = vmul.f32 %v2083, 1.442695
        %v2123 = vpow.pop %v2122
        %v2124 = vmul.f32 %v2084, 1.442695
        %v2125 = vpow.pop %v2124
        %v2126 = vmul.f32 %v2085, 1.442695
        %v2127 = vpow.pop %v2126
        %v2128 = vmul.f32 %v2086, 1.442695
        %v2129 = vpow.pop %v2128
        %v2130 = vmul.f32 %v2087, 1.442695
        %v2131 = vpow.pop %v2130
        %v2132 = vmul.f32 %v2088, 1.442695
        %v2133 = vpow.pop %v2132
        %v2134 = vmul.f32 %v2089, 1.442695
        %v2135 = vpow.pop %v2134
        %v2136 = vmul.f32 %v2090, 1.442695
        %v2137 = vpow.pop %v2136
        %v2138 = vmul.f32 %v2091, 1.442695
        %v2139 = vpow.pop %v2138
        %v2140 = vmul.f32 %v2092, 1.442695
        %v2141 = vpow.pop %v2140
        %v2142 = vmul.f32 %v2093, 1.442695
        %v2143 = vpow.pop %v2142
        %v2144 = vmul.f32 %v2094, 1.442695
        %v2145 = vpow.pop %v2144
        %v2146 = vmul.f32 %v2095, 1.442695
        %v2147 = vpow.pop %v2146
        %v2148 = vmul.f32 %v2096, 1.442695
        %v2149 = vpow.pop %v2148
        %v2150 = vmul.f32 %v2097, 1.442695
        %v2151 = vpow.pop %v2150
        %v2152 = vmul.f32 %v2098, 1.442695
        %v2153 = vpow.pop %v2152
        %v2154 = vmul.f32 %v2099, 1.442695
        %v2155 = vpow.pop %v2154
        %v2156 = vmul.f32 %v2100, 1.442695
        %v2157 = vpow.pop %v2156
        %v2158 = vmul.f32 %v2101, 1.442695
        %v2159 = vpow.pop %v2158
        %v2160 = vmul.f32 %v2102, 1.442695
        %v2161 = vpow.pop %v2160
        %v2162 = vmul.f32 %v2103, 1.442695
        %v2163 = vpow.pop %v2162
        %v2164 = vmul.f32 %v2104, 1.442695
        %v2165 = vpow.pop %v2164
        %v2166 = vmul.f32 %v2105, 1.442695
        %v2167 = vpow.pop %v2166
        %v2168 = vmul.f32 %v2106, 1.442695
        %v2169 = vpow.pop %v2168
        %v2170 = vmul.f32 %v2107, 1.442695
        %v2171 = vpow.pop %v2170
        %v2172 = vsel %vm1979, %v2109, 0.0
        %2173 = vadd.xlane.f32.xlu0 %v2172
        %v2174 = vpop.xlane.xlu0 %2173
        %v2175 = vsel %vm1979, %v2111, 0.0
        %2176 = vadd.xlane.f32.xlu0 %v2175
        %v2177 = vpop.xlane.xlu0 %2176
        %v2178 = vsel %vm1979, %v2113, 0.0
        %2179 = vadd.xlane.f32.xlu0 %v2178
        %v2180 = vpop.xlane.xlu0 %2179
        %v2181 = vsel %vm1979, %v2115, 0.0
        %2182 = vadd.xlane.f32.xlu0 %v2181
        %v2183 = vpop.xlane.xlu0 %2182
        %v2184 = vsel %vm1979, %v2117, 0.0
        %2185 = vadd.xlane.f32.xlu0 %v2184
        %v2186 = vpop.xlane.xlu0 %2185
        %v2187 = vsel %vm1979, %v2119, 0.0
        %2188 = vadd.xlane.f32.xlu0 %v2187
        %v2189 = vpop.xlane.xlu0 %2188
        %v2190 = vsel %vm1979, %v2121, 0.0
        %2191 = vadd.xlane.f32.xlu0 %v2190
        %v2192 = vpop.xlane.xlu0 %2191
        %v2193 = vsel %vm1979, %v2123, 0.0
        %2194 = vadd.xlane.f32.xlu0 %v2193
        %v2195 = vpop.xlane.xlu0 %2194
        %v2196 = vsel %vm1979, %v2125, 0.0
        %2197 = vadd.xlane.f32.xlu0 %v2196
        %v2198 = vpop.xlane.xlu0 %2197
        %v2199 = vsel %vm1979, %v2127, 0.0
        %2200 = vadd.xlane.f32.xlu0 %v2199
        %v2201 = vpop.xlane.xlu0 %2200
        %v2202 = vsel %vm1979, %v2129, 0.0
        %2203 = vadd.xlane.f32.xlu0 %v2202
        %v2204 = vpop.xlane.xlu0 %2203
        %v2205 = vsel %vm1979, %v2131, 0.0
        %2206 = vadd.xlane.f32.xlu0 %v2205
        %v2207 = vpop.xlane.xlu0 %2206
        %v2208 = vsel %vm1979, %v2133, 0.0
        %2209 = vadd.xlane.f32.xlu0 %v2208
        %v2210 = vpop.xlane.xlu0 %2209
        %v2211 = vsel %vm1979, %v2135, 0.0
        %2212 = vadd.xlane.f32.xlu0 %v2211
        %v2213 = vpop.xlane.xlu0 %2212
        %v2214 = vsel %vm1979, %v2137, 0.0
        %2215 = vadd.xlane.f32.xlu0 %v2214
        %v2216 = vpop.xlane.xlu0 %2215
        %v2217 = vsel %vm1979, %v2139, 0.0
        %2218 = vadd.xlane.f32.xlu0 %v2217
        %v2219 = vpop.xlane.xlu0 %2218
        %v2220 = vsel %vm1979, %v2141, 0.0
        %2221 = vadd.xlane.f32.xlu0 %v2220
        %v2222 = vpop.xlane.xlu0 %2221
        %v2223 = vsel %vm1979, %v2143, 0.0
        %2224 = vadd.xlane.f32.xlu0 %v2223
        %v2225 = vpop.xlane.xlu0 %2224
        %v2226 = vsel %vm1979, %v2145, 0.0
        %2227 = vadd.xlane.f32.xlu0 %v2226
        %v2228 = vpop.xlane.xlu0 %2227
        %v2229 = vsel %vm1979, %v2147, 0.0
        %2230 = vadd.xlane.f32.xlu0 %v2229
        %v2231 = vpop.xlane.xlu0 %2230
        %v2232 = vsel %vm1979, %v2149, 0.0
        %2233 = vadd.xlane.f32.xlu0 %v2232
        %v2234 = vpop.xlane.xlu0 %2233
        %v2235 = vsel %vm1979, %v2151, 0.0
        %2236 = vadd.xlane.f32.xlu0 %v2235
        %v2237 = vpop.xlane.xlu0 %2236
        %v2238 = vsel %vm1979, %v2153, 0.0
        %2239 = vadd.xlane.f32.xlu0 %v2238
        %v2240 = vpop.xlane.xlu0 %2239
        %v2241 = vsel %vm1979, %v2155, 0.0
        %2242 = vadd.xlane.f32.xlu0 %v2241
        %v2243 = vpop.xlane.xlu0 %2242
        %v2244 = vsel %vm1979, %v2157, 0.0
        %2245 = vadd.xlane.f32.xlu0 %v2244
        %v2246 = vpop.xlane.xlu0 %2245
        %v2247 = vsel %vm1979, %v2159, 0.0
        %2248 = vadd.xlane.f32.xlu0 %v2247
        %v2249 = vpop.xlane.xlu0 %2248
        %v2250 = vsel %vm1979, %v2161, 0.0
        %2251 = vadd.xlane.f32.xlu0 %v2250
        %v2252 = vpop.xlane.xlu0 %2251
        %v2253 = vsel %vm1979, %v2163, 0.0
        %2254 = vadd.xlane.f32.xlu0 %v2253
        %v2255 = vpop.xlane.xlu0 %2254
        %v2256 = vsel %vm1979, %v2165, 0.0
        %2257 = vadd.xlane.f32.xlu0 %v2256
        %v2258 = vpop.xlane.xlu0 %2257
        %v2259 = vsel %vm1979, %v2167, 0.0
        %2260 = vadd.xlane.f32.xlu0 %v2259
        %v2261 = vpop.xlane.xlu0 %2260
        %v2262 = vsel %vm1979, %v2169, 0.0
        %2263 = vadd.xlane.f32.xlu0 %v2262
        %v2264 = vpop.xlane.xlu0 %2263
        %v2265 = vsel %vm1979, %v2171, 0.0
        %2266 = vadd.xlane.f32.xlu0 %v2265
        %v2267 = vpop.xlane.xlu0 %2266
        %v2268 = vrcp.pop %v2174
        %v2269 = vrcp.pop %v2177
        %v2270 = vrcp.pop %v2180
        %v2271 = vrcp.pop %v2183
        %v2272 = vrcp.pop %v2186
        %v2273 = vrcp.pop %v2189
        %v2274 = vrcp.pop %v2192
        %v2275 = vrcp.pop %v2195
        %v2276 = vrcp.pop %v2198
        %v2277 = vrcp.pop %v2201
        %v2278 = vrcp.pop %v2204
        %v2279 = vrcp.pop %v2207
        %v2280 = vrcp.pop %v2210
        %v2281 = vrcp.pop %v2213
        %v2282 = vrcp.pop %v2216
        %v2283 = vrcp.pop %v2219
        %v2284 = vrcp.pop %v2222
        %v2285 = vrcp.pop %v2225
        %v2286 = vrcp.pop %v2228
        %v2287 = vrcp.pop %v2231
        %v2288 = vrcp.pop %v2234
        %v2289 = vrcp.pop %v2237
        %v2290 = vrcp.pop %v2240
        %v2291 = vrcp.pop %v2243
        %v2292 = vrcp.pop %v2246
        %v2293 = vrcp.pop %v2249
        %v2294 = vrcp.pop %v2252
        %v2295 = vrcp.pop %v2255
        %v2296 = vrcp.pop %v2258
        %v2297 = vrcp.pop %v2261
        %v2298 = vrcp.pop %v2264
        %v2299 = vrcp.pop %v2267
        %v2300 = vmul.f32 %v2109, %v2268
        %v2301 = vmul.f32 %v2111, %v2269
        %v2302 = vmul.f32 %v2113, %v2270
        %v2303 = vmul.f32 %v2115, %v2271
        %v2304 = vmul.f32 %v2117, %v2272
        %v2305 = vmul.f32 %v2119, %v2273
        %v2306 = vmul.f32 %v2121, %v2274
        %v2307 = vmul.f32 %v2123, %v2275
        %v2308 = vmul.f32 %v2125, %v2276
        %v2309 = vmul.f32 %v2127, %v2277
        %v2310 = vmul.f32 %v2129, %v2278
        %v2311 = vmul.f32 %v2131, %v2279
        %v2312 = vmul.f32 %v2133, %v2280
        %v2313 = vmul.f32 %v2135, %v2281
        %v2314 = vmul.f32 %v2137, %v2282
        %v2315 = vmul.f32 %v2139, %v2283
        %v2316 = vmul.f32 %v2141, %v2284
        %v2317 = vmul.f32 %v2143, %v2285
        %v2318 = vmul.f32 %v2145, %v2286
        %v2319 = vmul.f32 %v2147, %v2287
        %v2320 = vmul.f32 %v2149, %v2288
        %v2321 = vmul.f32 %v2151, %v2289
        %v2322 = vmul.f32 %v2153, %v2290
        %v2323 = vmul.f32 %v2155, %v2291
        %v2324 = vmul.f32 %v2157, %v2292
        %v2325 = vmul.f32 %v2159, %v2293
        %v2326 = vmul.f32 %v2161, %v2294
        %v2327 = vmul.f32 %v2163, %v2295
        %v2328 = vmul.f32 %v2165, %v2296
        %v2329 = vmul.f32 %v2167, %v2297
        %v2330 = vmul.f32 %v2169, %v2298
        %v2331 = vmul.f32 %v2171, %v2299
        %2332 = vrot.lane.b32.xlu0 %v428, 64
        %v2333 = vpop.permute.xlu0 %2332
        %2334 = vrot.lane.b32.xlu0 %v433, 64
        %v2335 = vpop.permute.xlu0 %2334
        %v2339 = vsel %vm1979, %v2300, 0
        %v2342 = vsel %vm1979, %v2301, 0
        %2344 = vmatprep.subr.mxu0 0.0
        %2345 = vmatpush1.msra.mxu0 %v2333
        %2346 = vmatprep.subr.mxu0 0.0
        %2347 = vmatpush1.msra.mxu0 %v2335
        %2348 = vmatprep.subr.mxu0 0.0
        %2349 = vmatpush1.msra.mxu0 0.0
        %2350 = vmatprep.subr.mxu0 0.0
        %2351 = vmatpush1.msra.mxu0 0.0
        %2352 = vmatprep.subr.mxu0 0.0
        %2353 = vmatpush1.msra.mxu0 0.0
        %2354 = vmatprep.subr.mxu0 0.0
        %2355 = vmatpush1.msra.mxu0 0.0
        %2356 = vmatprep.subr.mxu0 0.0
        %2357 = vmatpush1.msra.mxu0 0.0
        %2358 = vmatprep.subr.mxu0 0.0
        %2359 = vmatpush1.msra.mxu0 0.0
        %2360 = vmatprep.subr.mxu0 0.0
        %2361 = vmatpush1.msra.mxu0 0.0
        %2362 = vmatprep.subr.mxu0 0.0
        %2363 = vmatpush1.msra.mxu0 0.0
        %2364 = vmatprep.subr.mxu0 0.0
        %2365 = vmatpush1.msra.mxu0 0.0
        %2366 = vmatprep.subr.mxu0 0.0
        %2367 = vmatpush1.msra.mxu0 0.0
        %2368 = vmatprep.subr.mxu0 0.0
        %2369 = vmatpush1.msra.mxu0 0.0
        %2370 = vmatprep.subr.mxu0 0.0
        %2371 = vmatpush1.msra.mxu0 0.0
        %2372 = vmatprep.subr.mxu0 0.0
        %2373 = vmatpush1.msra.mxu0 0.0
        %2374 = vmatprep.subr.mxu0 0.0
        %2375 = vmatpush1.msra.mxu0 0.0
        %2376 = vmatprep.subr.mxu0 0.0
        %2377 = vmatpush1.msra.mxu0 0.0
        %2378 = vmatprep.subr.mxu0 0.0
        %2379 = vmatpush1.msra.mxu0 0.0
        %2380 = vmatprep.subr.mxu0 0.0
        %2381 = vmatpush1.msra.mxu0 0.0
        %2382 = vmatprep.subr.mxu0 0.0
        %2383 = vmatpush1.msra.mxu0 0.0
        %2384 = vmatprep.subr.mxu0 0.0
        %2385 = vmatpush1.msra.mxu0 0.0
        %2386 = vmatprep.subr.mxu0 0.0
        %2387 = vmatpush1.msra.mxu0 0.0
        %2388 = vmatprep.subr.mxu0 0.0
        %2389 = vmatpush1.msra.mxu0 0.0
        %2390 = vmatprep.subr.mxu0 0.0
        %2391 = vmatpush1.msra.mxu0 0.0
        %2392 = vmatprep.subr.mxu0 0.0
        %2393 = vmatpush1.msra.mxu0 0.0
        %2394 = vmatprep.subr.mxu0 0.0
        %2395 = vmatpush1.msra.mxu0 0.0
        %2396 = vmatprep.subr.mxu0 0.0
        %2397 = vmatpush1.msra.mxu0 0.0
        %2398 = vmatprep.subr.mxu0 0.0
        %2399 = vmatpush1.msra.mxu0 0.0
        %2400 = vmatprep.subr.mxu0 0.0
        %2401 = vmatpush1.msra.mxu0 0.0
        %2402 = vmatprep.subr.mxu0 0.0
        %2403 = vmatpush1.msra.mxu0 0.0
        %2404 = vmatprep.subr.mxu0 0.0
        %2405 = vmatpush1.msra.mxu0 0.0
        %2406 = vmatprep.subr.mxu0 0.0
        %2407 = vmatpush1.msra.mxu0 0.0
        %2408 = vmatprep.mubr.f32.mxu0 0.0
        %2409 = vmatmul.mubr.f32.gmra.mrb[0].mxu0 %v2339
        %v2410 = vpop.f32.mrb[0].mxu0
        %v2411 = vadd.f32 0.0, %v2410
        %v2412 = vpop.f32.mrb[0].mxu0
        %2413 = vmatprep.mubr.f32.mxu0 0.0
        %2414 = vmatmul.mubr.f32.gmra.mrb[0].mxu0 %v2342
        %v2415 = vpop.f32.mrb[0].mxu0
        %v2416 = vadd.f32 0.0, %v2415
        %v2417 = vpop.f32.mrb[0].mxu0
        %2418 = vdwg.mxu0
        %2419 = vrot.lane.b32.xlu0 %v475, 64
        %v2420 = vpop.permute.xlu0 %2419
        %2421 = vrot.lane.b32.xlu0 %v477, 64
        %v2422 = vpop.permute.xlu0 %2421
        %v2426 = vsel %vm1979, %v2302, 0
        %v2429 = vsel %vm1979, %v2303, 0
        %2431 = vmatprep.subr.mxu0 0.0
        %2432 = vmatpush1.msra.mxu0 %v2420
        %2433 = vmatprep.subr.mxu0 0.0
        %2434 = vmatpush1.msra.mxu0 %v2422
        %2435 = vmatprep.subr.mxu0 0.0
        %2436 = vmatpush1.msra.mxu0 0.0
        %2437 = vmatprep.subr.mxu0 0.0
        %2438 = vmatpush1.msra.mxu0 0.0
        %2439 = vmatprep.subr.mxu0 0.0
        %2440 = vmatpush1.msra.mxu0 0.0
        %2441 = vmatprep.subr.mxu0 0.0
        %2442 = vmatpush1.msra.mxu0 0.0
        %2443 = vmatprep.subr.mxu0 0.0
        %2444 = vmatpush1.msra.mxu0 0.0
        %2445 = vmatprep.subr.mxu0 0.0
        %2446 = vmatpush1.msra.mxu0 0.0
        %2447 = vmatprep.subr.mxu0 0.0
        %2448 = vmatpush1.msra.mxu0 0.0
        %2449 = vmatprep.subr.mxu0 0.0
        %2450 = vmatpush1.msra.mxu0 0.0
        %2451 = vmatprep.subr.mxu0 0.0
        %2452 = vmatpush1.msra.mxu0 0.0
        %2453 = vmatprep.subr.mxu0 0.0
        %2454 = vmatpush1.msra.mxu0 0.0
        %2455 = vmatprep.subr.mxu0 0.0
        %2456 = vmatpush1.msra.mxu0 0.0
        %2457 = vmatprep.subr.mxu0 0.0
        %2458 = vmatpush1.msra.mxu0 0.0
        %2459 = vmatprep.subr.mxu0 0.0
        %2460 = vmatpush1.msra.mxu0 0.0
        %2461 = vmatprep.subr.mxu0 0.0
        %2462 = vmatpush1.msra.mxu0 0.0
        %2463 = vmatprep.subr.mxu0 0.0
        %2464 = vmatpush1.msra.mxu0 0.0
        %2465 = vmatprep.subr.mxu0 0.0
        %2466 = vmatpush1.msra.mxu0 0.0
        %2467 = vmatprep.subr.mxu0 0.0
        %2468 = vmatpush1.msra.mxu0 0.0
        %2469 = vmatprep.subr.mxu0 0.0
        %2470 = vmatpush1.msra.mxu0 0.0
        %2471 = vmatprep.subr.mxu0 0.0
        %2472 = vmatpush1.msra.mxu0 0.0
        %2473 = vmatprep.subr.mxu0 0.0
        %2474 = vmatpush1.msra.mxu0 0.0
        %2475 = vmatprep.subr.mxu0 0.0
        %2476 = vmatpush1.msra.mxu0 0.0
        %2477 = vmatprep.subr.mxu0 0.0
        %2478 = vmatpush1.msra.mxu0 0.0
        %2479 = vmatprep.subr.mxu0 0.0
        %2480 = vmatpush1.msra.mxu0 0.0
        %2481 = vmatprep.subr.mxu0 0.0
        %2482 = vmatpush1.msra.mxu0 0.0
        %2483 = vmatprep.subr.mxu0 0.0
        %2484 = vmatpush1.msra.mxu0 0.0
        %2485 = vmatprep.subr.mxu0 0.0
        %2486 = vmatpush1.msra.mxu0 0.0
        %2487 = vmatprep.subr.mxu0 0.0
        %2488 = vmatpush1.msra.mxu0 0.0
        %2489 = vmatprep.subr.mxu0 0.0
        %2490 = vmatpush1.msra.mxu0 0.0
        %2491 = vmatprep.subr.mxu0 0.0
        %2492 = vmatpush1.msra.mxu0 0.0
        %2493 = vmatprep.subr.mxu0 0.0
        %2494 = vmatpush1.msra.mxu0 0.0
        %2495 = vmatprep.mubr.f32.mxu0 0.0
        %2496 = vmatmul.mubr.f32.gmra.mrb[0].mxu0 %v2426
        %v2497 = vpop.f32.mrb[0].mxu0
        %v2498 = vadd.f32 0.0, %v2497
        %v2499 = vpop.f32.mrb[0].mxu0
        %2500 = vmatprep.mubr.f32.mxu0 0.0
        %2501 = vmatmul.mubr.f32.gmra.mrb[0].mxu0 %v2429
        %v2502 = vpop.f32.mrb[0].mxu0
        %v2503 = vadd.f32 0.0, %v2502
        %v2504 = vpop.f32.mrb[0].mxu0
        %2505 = vdwg.mxu0
        %2506 = vrot.lane.b32.xlu0 %v491, 64
        %v2507 = vpop.permute.xlu0 %2506
        %2508 = vrot.lane.b32.xlu0 %v493, 64
        %v2509 = vpop.permute.xlu0 %2508
        %v2513 = vsel %vm1979, %v2304, 0
        %v2516 = vsel %vm1979, %v2305, 0
        %2518 = vmatprep.subr.mxu0 0.0
        %2519 = vmatpush1.msra.mxu0 %v2507
        %2520 = vmatprep.subr.mxu0 0.0
        %2521 = vmatpush1.msra.mxu0 %v2509
        %2522 = vmatprep.subr.mxu0 0.0
        %2523 = vmatpush1.msra.mxu0 0.0
        %2524 = vmatprep.subr.mxu0 0.0
        %2525 = vmatpush1.msra.mxu0 0.0
        %2526 = vmatprep.subr.mxu0 0.0
        %2527 = vmatpush1.msra.mxu0 0.0
        %2528 = vmatprep.subr.mxu0 0.0
        %2529 = vmatpush1.msra.mxu0 0.0
        %2530 = vmatprep.subr.mxu0 0.0
        %2531 = vmatpush1.msra.mxu0 0.0
        %2532 = vmatprep.subr.mxu0 0.0
        %2533 = vmatpush1.msra.mxu0 0.0
        %2534 = vmatprep.subr.mxu0 0.0
        %2535 = vmatpush1.msra.mxu0 0.0
        %2536 = vmatprep.subr.mxu0 0.0
        %2537 = vmatpush1.msra.mxu0 0.0
        %2538 = vmatprep.subr.mxu0 0.0
        %2539 = vmatpush1.msra.mxu0 0.0
        %2540 = vmatprep.subr.mxu0 0.0
        %2541 = vmatpush1.msra.mxu0 0.0
        %2542 = vmatprep.subr.mxu0 0.0
        %2543 = vmatpush1.msra.mxu0 0.0
        %2544 = vmatprep.subr.mxu0 0.0
        %2545 = vmatpush1.msra.mxu0 0.0
        %2546 = vmatprep.subr.mxu0 0.0
        %2547 = vmatpush1.msra.mxu0 0.0
        %2548 = vmatprep.subr.mxu0 0.0
        %2549 = vmatpush1.msra.mxu0 0.0
        %2550 = vmatprep.subr.mxu0 0.0
        %2551 = vmatpush1.msra.mxu0 0.0
        %2552 = vmatprep.subr.mxu0 0.0
        %2553 = vmatpush1.msra.mxu0 0.0
        %2554 = vmatprep.subr.mxu0 0.0
        %2555 = vmatpush1.msra.mxu0 0.0
        %2556 = vmatprep.subr.mxu0 0.0
        %2557 = vmatpush1.msra.mxu0 0.0
        %2558 = vmatprep.subr.mxu0 0.0
        %2559 = vmatpush1.msra.mxu0 0.0
        %2560 = vmatprep.subr.mxu0 0.0
        %2561 = vmatpush1.msra.mxu0 0.0
        %2562 = vmatprep.subr.mxu0 0.0
        %2563 = vmatpush1.msra.mxu0 0.0
        %2564 = vmatprep.subr.mxu0 0.0
        %2565 = vmatpush1.msra.mxu0 0.0
        %2566 = vmatprep.subr.mxu0 0.0
        %2567 = vmatpush1.msra.mxu0 0.0
        %2568 = vmatprep.subr.mxu0 0.0
        %2569 = vmatpush1.msra.mxu0 0.0
        %2570 = vmatprep.subr.mxu0 0.0
        %2571 = vmatpush1.msra.mxu0 0.0
        %2572 = vmatprep.subr.mxu0 0.0
        %2573 = vmatpush1.msra.mxu0 0.0
        %2574 = vmatprep.subr.mxu0 0.0
        %2575 = vmatpush1.msra.mxu0 0.0
        %2576 = vmatprep.subr.mxu0 0.0
        %2577 = vmatpush1.msra.mxu0 0.0
        %2578 = vmatprep.subr.mxu0 0.0
        %2579 = vmatpush1.msra.mxu0 0.0
        %2580 = vmatprep.subr.mxu0 0.0
        %2581 = vmatpush1.msra.mxu0 0.0
        %2582 = vmatprep.mubr.f32.mxu0 0.0
        %2583 = vmatmul.mubr.f32.gmra.mrb[0].mxu0 %v2513
        %v2584 = vpop.f32.mrb[0].mxu0
        %v2585 = vadd.f32 0.0, %v2584
        %v2586 = vpop.f32.mrb[0].mxu0
        %2587 = vmatprep.mubr.f32.mxu0 0.0
        %2588 = vmatmul.mubr.f32.gmra.mrb[0].mxu0 %v2516
        %v2589 = vpop.f32.mrb[0].mxu0
        %v2590 = vadd.f32 0.0, %v2589
        %v2591 = vpop.f32.mrb[0].mxu0
        %2592 = vdwg.mxu0
        %2593 = vrot.lane.b32.xlu0 %v507, 64
        %v2594 = vpop.permute.xlu0 %2593
        %2595 = vrot.lane.b32.xlu0 %v509, 64
        %v2596 = vpop.permute.xlu0 %2595
        %v2600 = vsel %vm1979, %v2306, 0
        %v2603 = vsel %vm1979, %v2307, 0
        %2605 = vmatprep.subr.mxu0 0.0
        %2606 = vmatpush1.msra.mxu0 %v2594
        %2607 = vmatprep.subr.mxu0 0.0
        %2608 = vmatpush1.msra.mxu0 %v2596
        %2609 = vmatprep.subr.mxu0 0.0
        %2610 = vmatpush1.msra.mxu0 0.0
        %2611 = vmatprep.subr.mxu0 0.0
        %2612 = vmatpush1.msra.mxu0 0.0
        %2613 = vmatprep.subr.mxu0 0.0
        %2614 = vmatpush1.msra.mxu0 0.0
        %2615 = vmatprep.subr.mxu0 0.0
        %2616 = vmatpush1.msra.mxu0 0.0
        %2617 = vmatprep.subr.mxu0 0.0
        %2618 = vmatpush1.msra.mxu0 0.0
        %2619 = vmatprep.subr.mxu0 0.0
        %2620 = vmatpush1.msra.mxu0 0.0
        %2621 = vmatprep.subr.mxu0 0.0
        %2622 = vmatpush1.msra.mxu0 0.0
        %2623 = vmatprep.subr.mxu0 0.0
        %2624 = vmatpush1.msra.mxu0 0.0
        %2625 = vmatprep.subr.mxu0 0.0
        %2626 = vmatpush1.msra.mxu0 0.0
        %2627 = vmatprep.subr.mxu0 0.0
        %2628 = vmatpush1.msra.mxu0 0.0
        %2629 = vmatprep.subr.mxu0 0.0
        %2630 = vmatpush1.msra.mxu0 0.0
        %2631 = vmatprep.subr.mxu0 0.0
        %2632 = vmatpush1.msra.mxu0 0.0
        %2633 = vmatprep.subr.mxu0 0.0
        %2634 = vmatpush1.msra.mxu0 0.0
        %2635 = vmatprep.subr.mxu0 0.0
        %2636 = vmatpush1.msra.mxu0 0.0
        %2637 = vmatprep.subr.mxu0 0.0
        %2638 = vmatpush1.msra.mxu0 0.0
        %2639 = vmatprep.subr.mxu0 0.0
        %2640 = vmatpush1.msra.mxu0 0.0
        %2641 = vmatprep.subr.mxu0 0.0
        %2642 = vmatpush1.msra.mxu0 0.0
        %2643 = vmatprep.subr.mxu0 0.0
        %2644 = vmatpush1.msra.mxu0 0.0
        %2645 = vmatprep.subr.mxu0 0.0
        %2646 = vmatpush1.msra.mxu0 0.0
        %2647 = vmatprep.subr.mxu0 0.0
        %2648 = vmatpush1.msra.mxu0 0.0
        %2649 = vmatprep.subr.mxu0 0.0
        %2650 = vmatpush1.msra.mxu0 0.0
        %2651 = vmatprep.subr.mxu0 0.0
        %2652 = vmatpush1.msra.mxu0 0.0
        %2653 = vmatprep.subr.mxu0 0.0
        %2654 = vmatpush1.msra.mxu0 0.0
        %2655 = vmatprep.subr.mxu0 0.0
        %2656 = vmatpush1.msra.mxu0 0.0
        %2657 = vmatprep.subr.mxu0 0.0
        %2658 = vmatpush1.msra.mxu0 0.0
        %2659 = vmatprep.subr.mxu0 0.0
        %2660 = vmatpush1.msra.mxu0 0.0
        %2661 = vmatprep.subr.mxu0 0.0
        %2662 = vmatpush1.msra.mxu0 0.0
        %2663 = vmatprep.subr.mxu0 0.0
        %2664 = vmatpush1.msra.mxu0 0.0
        %2665 = vmatprep.subr.mxu0 0.0
        %2666 = vmatpush1.msra.mxu0 0.0
        %2667 = vmatprep.subr.mxu0 0.0
        %2668 = vmatpush1.msra.mxu0 0.0
        %2669 = vmatprep.mubr.f32.mxu0 0.0
        %2670 = vmatmul.mubr.f32.gmra.mrb[0].mxu0 %v2600
        %v2671 = vpop.f32.mrb[0].mxu0
        %v2672 = vadd.f32 0.0, %v2671
        %v2673 = vpop.f32.mrb[0].mxu0
        %2674 = vmatprep.mubr.f32.mxu0 0.0
        %2675 = vmatmul.mubr.f32.gmra.mrb[0].mxu0 %v2603
        %v2676 = vpop.f32.mrb[0].mxu0
        %v2677 = vadd.f32 0.0, %v2676
        %v2678 = vpop.f32.mrb[0].mxu0
        %2679 = vdwg.mxu0
        %2680 = vrot.lane.b32.xlu0 %v438, 64
        %v2681 = vpop.permute.xlu0 %2680
        %2682 = vrot.lane.b32.xlu0 %v443, 64
        %v2683 = vpop.permute.xlu0 %2682
        %v2687 = vsel %vm1979, %v2308, 0
        %v2690 = vsel %vm1979, %v2309, 0
        %2692 = vmatprep.subr.mxu0 0.0
        %2693 = vmatpush1.msra.mxu0 %v2681
        %2694 = vmatprep.subr.mxu0 0.0
        %2695 = vmatpush1.msra.mxu0 %v2683
        %2696 = vmatprep.subr.mxu0 0.0
        %2697 = vmatpush1.msra.mxu0 0.0
        %2698 = vmatprep.subr.mxu0 0.0
        %2699 = vmatpush1.msra.mxu0 0.0
        %2700 = vmatprep.subr.mxu0 0.0
        %2701 = vmatpush1.msra.mxu0 0.0
        %2702 = vmatprep.subr.mxu0 0.0
        %2703 = vmatpush1.msra.mxu0 0.0
        %2704 = vmatprep.subr.mxu0 0.0
        %2705 = vmatpush1.msra.mxu0 0.0
        %2706 = vmatprep.subr.mxu0 0.0
        %2707 = vmatpush1.msra.mxu0 0.0
        %2708 = vmatprep.subr.mxu0 0.0
        %2709 = vmatpush1.msra.mxu0 0.0
        %2710 = vmatprep.subr.mxu0 0.0
        %2711 = vmatpush1.msra.mxu0 0.0
        %2712 = vmatprep.subr.mxu0 0.0
        %2713 = vmatpush1.msra.mxu0 0.0
        %2714 = vmatprep.subr.mxu0 0.0
        %2715 = vmatpush1.msra.mxu0 0.0
        %2716 = vmatprep.subr.mxu0 0.0
        %2717 = vmatpush1.msra.mxu0 0.0
        %2718 = vmatprep.subr.mxu0 0.0
        %2719 = vmatpush1.msra.mxu0 0.0
        %2720 = vmatprep.subr.mxu0 0.0
        %2721 = vmatpush1.msra.mxu0 0.0
        %2722 = vmatprep.subr.mxu0 0.0
        %2723 = vmatpush1.msra.mxu0 0.0
        %2724 = vmatprep.subr.mxu0 0.0
        %2725 = vmatpush1.msra.mxu0 0.0
        %2726 = vmatprep.subr.mxu0 0.0
        %2727 = vmatpush1.msra.mxu0 0.0
        %2728 = vmatprep.subr.mxu0 0.0
        %2729 = vmatpush1.msra.mxu0 0.0
        %2730 = vmatprep.subr.mxu0 0.0
        %2731 = vmatpush1.msra.mxu0 0.0
        %2732 = vmatprep.subr.mxu0 0.0
        %2733 = vmatpush1.msra.mxu0 0.0
        %2734 = vmatprep.subr.mxu0 0.0
        %2735 = vmatpush1.msra.mxu0 0.0
        %2736 = vmatprep.subr.mxu0 0.0
        %2737 = vmatpush1.msra.mxu0 0.0
        %2738 = vmatprep.subr.mxu0 0.0
        %2739 = vmatpush1.msra.mxu0 0.0
        %2740 = vmatprep.subr.mxu0 0.0
        %2741 = vmatpush1.msra.mxu0 0.0
        %2742 = vmatprep.subr.mxu0 0.0
        %2743 = vmatpush1.msra.mxu0 0.0
        %2744 = vmatprep.subr.mxu0 0.0
        %2745 = vmatpush1.msra.mxu0 0.0
        %2746 = vmatprep.subr.mxu0 0.0
        %2747 = vmatpush1.msra.mxu0 0.0
        %2748 = vmatprep.subr.mxu0 0.0
        %2749 = vmatpush1.msra.mxu0 0.0
        %2750 = vmatprep.subr.mxu0 0.0
        %2751 = vmatpush1.msra.mxu0 0.0
        %2752 = vmatprep.subr.mxu0 0.0
        %2753 = vmatpush1.msra.mxu0 0.0
        %2754 = vmatprep.subr.mxu0 0.0
        %2755 = vmatpush1.msra.mxu0 0.0
        %2756 = vmatprep.mubr.f32.mxu0 0.0
        %2757 = vmatmul.mubr.f32.gmra.mrb[0].mxu0 %v2687
        %v2758 = vpop.f32.mrb[0].mxu0
        %v2759 = vadd.f32 0.0, %v2758
        %v2760 = vpop.f32.mrb[0].mxu0
        %2761 = vmatprep.mubr.f32.mxu0 0.0
        %2762 = vmatmul.mubr.f32.gmra.mrb[0].mxu0 %v2690
        %v2763 = vpop.f32.mrb[0].mxu0
        %v2764 = vadd.f32 0.0, %v2763
        %v2765 = vpop.f32.mrb[0].mxu0
        %2766 = vdwg.mxu0
        %2767 = vrot.lane.b32.xlu0 %v479, 64
        %v2768 = vpop.permute.xlu0 %2767
        %2769 = vrot.lane.b32.xlu0 %v481, 64
        %v2770 = vpop.permute.xlu0 %2769
        %v2774 = vsel %vm1979, %v2310, 0
        %v2777 = vsel %vm1979, %v2311, 0
        %2779 = vmatprep.subr.mxu0 0.0
        %2780 = vmatpush1.msra.mxu0 %v2768
        %2781 = vmatprep.subr.mxu0 0.0
        %2782 = vmatpush1.msra.mxu0 %v2770
        %2783 = vmatprep.subr.mxu0 0.0
        %2784 = vmatpush1.msra.mxu0 0.0
        %2785 = vmatprep.subr.mxu0 0.0
        %2786 = vmatpush1.msra.mxu0 0.0
        %2787 = vmatprep.subr.mxu0 0.0
        %2788 = vmatpush1.msra.mxu0 0.0
        %2789 = vmatprep.subr.mxu0 0.0
        %2790 = vmatpush1.msra.mxu0 0.0
        %2791 = vmatprep.subr.mxu0 0.0
        %2792 = vmatpush1.msra.mxu0 0.0
        %2793 = vmatprep.subr.mxu0 0.0
        %2794 = vmatpush1.msra.mxu0 0.0
        %2795 = vmatprep.subr.mxu0 0.0
        %2796 = vmatpush1.msra.mxu0 0.0
        %2797 = vmatprep.subr.mxu0 0.0
        %2798 = vmatpush1.msra.mxu0 0.0
        %2799 = vmatprep.subr.mxu0 0.0
        %2800 = vmatpush1.msra.mxu0 0.0
        %2801 = vmatprep.subr.mxu0 0.0
        %2802 = vmatpush1.msra.mxu0 0.0
        %2803 = vmatprep.subr.mxu0 0.0
        %2804 = vmatpush1.msra.mxu0 0.0
        %2805 = vmatprep.subr.mxu0 0.0
        %2806 = vmatpush1.msra.mxu0 0.0
        %2807 = vmatprep.subr.mxu0 0.0
        %2808 = vmatpush1.msra.mxu0 0.0
        %2809 = vmatprep.subr.mxu0 0.0
        %2810 = vmatpush1.msra.mxu0 0.0
        %2811 = vmatprep.subr.mxu0 0.0
        %2812 = vmatpush1.msra.mxu0 0.0
        %2813 = vmatprep.subr.mxu0 0.0
        %2814 = vmatpush1.msra.mxu0 0.0
        %2815 = vmatprep.subr.mxu0 0.0
        %2816 = vmatpush1.msra.mxu0 0.0
        %2817 = vmatprep.subr.mxu0 0.0
        %2818 = vmatpush1.msra.mxu0 0.0
        %2819 = vmatprep.subr.mxu0 0.0
        %2820 = vmatpush1.msra.mxu0 0.0
        %2821 = vmatprep.subr.mxu0 0.0
        %2822 = vmatpush1.msra.mxu0 0.0
        %2823 = vmatprep.subr.mxu0 0.0
        %2824 = vmatpush1.msra.mxu0 0.0
        %2825 = vmatprep.subr.mxu0 0.0
        %2826 = vmatpush1.msra.mxu0 0.0
        %2827 = vmatprep.subr.mxu0 0.0
        %2828 = vmatpush1.msra.mxu0 0.0
        %2829 = vmatprep.subr.mxu0 0.0
        %2830 = vmatpush1.msra.mxu0 0.0
        %2831 = vmatprep.subr.mxu0 0.0
        %2832 = vmatpush1.msra.mxu0 0.0
        %2833 = vmatprep.subr.mxu0 0.0
        %2834 = vmatpush1.msra.mxu0 0.0
        %2835 = vmatprep.subr.mxu0 0.0
        %2836 = vmatpush1.msra.mxu0 0.0
        %2837 = vmatprep.subr.mxu0 0.0
        %2838 = vmatpush1.msra.mxu0 0.0
        %2839 = vmatprep.subr.mxu0 0.0
        %2840 = vmatpush1.msra.mxu0 0.0
        %2841 = vmatprep.subr.mxu0 0.0
        %2842 = vmatpush1.msra.mxu0 0.0
        %2843 = vmatprep.mubr.f32.mxu0 0.0
        %2844 = vmatmul.mubr.f32.gmra.mrb[0].mxu0 %v2774
        %v2845 = vpop.f32.mrb[0].mxu0
        %v2846 = vadd.f32 0.0, %v2845
        %v2847 = vpop.f32.mrb[0].mxu0
        %2848 = vmatprep.mubr.f32.mxu0 0.0
        %2849 = vmatmul.mubr.f32.gmra.mrb[0].mxu0 %v2777
        %v2850 = vpop.f32.mrb[0].mxu0
        %v2851 = vadd.f32 0.0, %v2850
        %v2852 = vpop.f32.mrb[0].mxu0
        %2853 = vdwg.mxu0
        %2854 = vrot.lane.b32.xlu0 %v495, 64
        %v2855 = vpop.permute.xlu0 %2854
        %2856 = vrot.lane.b32.xlu0 %v497, 64
        %v2857 = vpop.permute.xlu0 %2856
        %v2861 = vsel %vm1979, %v2312, 0
        %v2864 = vsel %vm1979, %v2313, 0
        %2866 = vmatprep.subr.mxu0 0.0
        %2867 = vmatpush1.msra.mxu0 %v2855
        %2868 = vmatprep.subr.mxu0 0.0
        %2869 = vmatpush1.msra.mxu0 %v2857
        %2870 = vmatprep.subr.mxu0 0.0
        %2871 = vmatpush1.msra.mxu0 0.0
        %2872 = vmatprep.subr.mxu0 0.0
        %2873 = vmatpush1.msra.mxu0 0.0
        %2874 = vmatprep.subr.mxu0 0.0
        %2875 = vmatpush1.msra.mxu0 0.0
        %2876 = vmatprep.subr.mxu0 0.0
        %2877 = vmatpush1.msra.mxu0 0.0
        %2878 = vmatprep.subr.mxu0 0.0
        %2879 = vmatpush1.msra.mxu0 0.0
        %2880 = vmatprep.subr.mxu0 0.0
        %2881 = vmatpush1.msra.mxu0 0.0
        %2882 = vmatprep.subr.mxu0 0.0
        %2883 = vmatpush1.msra.mxu0 0.0
        %2884 = vmatprep.subr.mxu0 0.0
        %2885 = vmatpush1.msra.mxu0 0.0
        %2886 = vmatprep.subr.mxu0 0.0
        %2887 = vmatpush1.msra.mxu0 0.0
        %2888 = vmatprep.subr.mxu0 0.0
        %2889 = vmatpush1.msra.mxu0 0.0
        %2890 = vmatprep.subr.mxu0 0.0
        %2891 = vmatpush1.msra.mxu0 0.0
        %2892 = vmatprep.subr.mxu0 0.0
        %2893 = vmatpush1.msra.mxu0 0.0
        %2894 = vmatprep.subr.mxu0 0.0
        %2895 = vmatpush1.msra.mxu0 0.0
        %2896 = vmatprep.subr.mxu0 0.0
        %2897 = vmatpush1.msra.mxu0 0.0
        %2898 = vmatprep.subr.mxu0 0.0
        %2899 = vmatpush1.msra.mxu0 0.0
        %2900 = vmatprep.subr.mxu0 0.0
        %2901 = vmatpush1.msra.mxu0 0.0
        %2902 = vmatprep.subr.mxu0 0.0
        %2903 = vmatpush1.msra.mxu0 0.0
        %2904 = vmatprep.subr.mxu0 0.0
        %2905 = vmatpush1.msra.mxu0 0.0
        %2906 = vmatprep.subr.mxu0 0.0
        %2907 = vmatpush1.msra.mxu0 0.0
        %2908 = vmatprep.subr.mxu0 0.0
        %2909 = vmatpush1.msra.mxu0 0.0
        %2910 = vmatprep.subr.mxu0 0.0
        %2911 = vmatpush1.msra.mxu0 0.0
        %2912 = vmatprep.subr.mxu0 0.0
        %2913 = vmatpush1.msra.mxu0 0.0
        %2914 = vmatprep.subr.mxu0 0.0
        %2915 = vmatpush1.msra.mxu0 0.0
        %2916 = vmatprep.subr.mxu0 0.0
        %2917 = vmatpush1.msra.mxu0 0.0
        %2918 = vmatprep.subr.mxu0 0.0
        %2919 = vmatpush1.msra.mxu0 0.0
        %2920 = vmatprep.subr.mxu0 0.0
        %2921 = vmatpush1.msra.mxu0 0.0
        %2922 = vmatprep.subr.mxu0 0.0
        %2923 = vmatpush1.msra.mxu0 0.0
        %2924 = vmatprep.subr.mxu0 0.0
        %2925 = vmatpush1.msra.mxu0 0.0
        %2926 = vmatprep.subr.mxu0 0.0
        %2927 = vmatpush1.msra.mxu0 0.0
        %2928 = vmatprep.subr.mxu0 0.0
        %2929 = vmatpush1.msra.mxu0 0.0
        %2930 = vmatprep.mubr.f32.mxu0 0.0
        %2931 = vmatmul.mubr.f32.gmra.mrb[0].mxu0 %v2861
        %v2932 = vpop.f32.mrb[0].mxu0
        %v2933 = vadd.f32 0.0, %v2932
        %v2934 = vpop.f32.mrb[0].mxu0
        %2935 = vmatprep.mubr.f32.mxu0 0.0
        %2936 = vmatmul.mubr.f32.gmra.mrb[0].mxu0 %v2864
        %v2937 = vpop.f32.mrb[0].mxu0
        %v2938 = vadd.f32 0.0, %v2937
        %v2939 = vpop.f32.mrb[0].mxu0
        %2940 = vdwg.mxu0
        %2941 = vrot.lane.b32.xlu0 %v511, 64
        %v2942 = vpop.permute.xlu0 %2941
        %2943 = vrot.lane.b32.xlu0 %v513, 64
        %v2944 = vpop.permute.xlu0 %2943
        %v2948 = vsel %vm1979, %v2314, 0
        %v2951 = vsel %vm1979, %v2315, 0
        %2953 = vmatprep.subr.mxu0 0.0
        %2954 = vmatpush1.msra.mxu0 %v2942
        %2955 = vmatprep.subr.mxu0 0.0
        %2956 = vmatpush1.msra.mxu0 %v2944
        %2957 = vmatprep.subr.mxu0 0.0
        %2958 = vmatpush1.msra.mxu0 0.0
        %2959 = vmatprep.subr.mxu0 0.0
        %2960 = vmatpush1.msra.mxu0 0.0
        %2961 = vmatprep.subr.mxu0 0.0
        %2962 = vmatpush1.msra.mxu0 0.0
        %2963 = vmatprep.subr.mxu0 0.0
        %2964 = vmatpush1.msra.mxu0 0.0
        %2965 = vmatprep.subr.mxu0 0.0
        %2966 = vmatpush1.msra.mxu0 0.0
        %2967 = vmatprep.subr.mxu0 0.0
        %2968 = vmatpush1.msra.mxu0 0.0
        %2969 = vmatprep.subr.mxu0 0.0
        %2970 = vmatpush1.msra.mxu0 0.0
        %2971 = vmatprep.subr.mxu0 0.0
        %2972 = vmatpush1.msra.mxu0 0.0
        %2973 = vmatprep.subr.mxu0 0.0
        %2974 = vmatpush1.msra.mxu0 0.0
        %2975 = vmatprep.subr.mxu0 0.0
        %2976 = vmatpush1.msra.mxu0 0.0
        %2977 = vmatprep.subr.mxu0 0.0
        %2978 = vmatpush1.msra.mxu0 0.0
        %2979 = vmatprep.subr.mxu0 0.0
        %2980 = vmatpush1.msra.mxu0 0.0
        %2981 = vmatprep.subr.mxu0 0.0
        %2982 = vmatpush1.msra.mxu0 0.0
        %2983 = vmatprep.subr.mxu0 0.0
        %2984 = vmatpush1.msra.mxu0 0.0
        %2985 = vmatprep.subr.mxu0 0.0
        %2986 = vmatpush1.msra.mxu0 0.0
        %2987 = vmatprep.subr.mxu0 0.0
        %2988 = vmatpush1.msra.mxu0 0.0
        %2989 = vmatprep.subr.mxu0 0.0
        %2990 = vmatpush1.msra.mxu0 0.0
        %2991 = vmatprep.subr.mxu0 0.0
        %2992 = vmatpush1.msra.mxu0 0.0
        %2993 = vmatprep.subr.mxu0 0.0
        %2994 = vmatpush1.msra.mxu0 0.0
        %2995 = vmatprep.subr.mxu0 0.0
        %2996 = vmatpush1.msra.mxu0 0.0
        %2997 = vmatprep.subr.mxu0 0.0
        %2998 = vmatpush1.msra.mxu0 0.0
        %2999 = vmatprep.subr.mxu0 0.0
        %3000 = vmatpush1.msra.mxu0 0.0
        %3001 = vmatprep.subr.mxu0 0.0
        %3002 = vmatpush1.msra.mxu0 0.0
        %3003 = vmatprep.subr.mxu0 0.0
        %3004 = vmatpush1.msra.mxu0 0.0
        %3005 = vmatprep.subr.mxu0 0.0
        %3006 = vmatpush1.msra.mxu0 0.0
        %3007 = vmatprep.subr.mxu0 0.0
        %3008 = vmatpush1.msra.mxu0 0.0
        %3009 = vmatprep.subr.mxu0 0.0
        %3010 = vmatpush1.msra.mxu0 0.0
        %3011 = vmatprep.subr.mxu0 0.0
        %3012 = vmatpush1.msra.mxu0 0.0
        %3013 = vmatprep.subr.mxu0 0.0
        %3014 = vmatpush1.msra.mxu0 0.0
        %3015 = vmatprep.subr.mxu0 0.0
        %3016 = vmatpush1.msra.mxu0 0.0
        %3017 = vmatprep.mubr.f32.mxu0 0.0
        %3018 = vmatmul.mubr.f32.gmra.mrb[0].mxu0 %v2948
        %v3019 = vpop.f32.mrb[0].mxu0
        %v3020 = vadd.f32 0.0, %v3019
        %v3021 = vpop.f32.mrb[0].mxu0
        %3022 = vmatprep.mubr.f32.mxu0 0.0
        %3023 = vmatmul.mubr.f32.gmra.mrb[0].mxu0 %v2951
        %v3024 = vpop.f32.mrb[0].mxu0
        %v3025 = vadd.f32 0.0, %v3024
        %v3026 = vpop.f32.mrb[0].mxu0
        %3027 = vdwg.mxu0
        %3028 = vrot.lane.b32.xlu0 %v448, 64
        %v3029 = vpop.permute.xlu0 %3028
        %3030 = vrot.lane.b32.xlu0 %v453, 64
        %v3031 = vpop.permute.xlu0 %3030
        %v3035 = vsel %vm1979, %v2316, 0
        %v3038 = vsel %vm1979, %v2317, 0
        %3040 = vmatprep.subr.mxu0 0.0
        %3041 = vmatpush1.msra.mxu0 %v3029
        %3042 = vmatprep.subr.mxu0 0.0
        %3043 = vmatpush1.msra.mxu0 %v3031
        %3044 = vmatprep.subr.mxu0 0.0
        %3045 = vmatpush1.msra.mxu0 0.0
        %3046 = vmatprep.subr.mxu0 0.0
        %3047 = vmatpush1.msra.mxu0 0.0
        %3048 = vmatprep.subr.mxu0 0.0
        %3049 = vmatpush1.msra.mxu0 0.0
        %3050 = vmatprep.subr.mxu0 0.0
        %3051 = vmatpush1.msra.mxu0 0.0
        %3052 = vmatprep.subr.mxu0 0.0
        %3053 = vmatpush1.msra.mxu0 0.0
        %3054 = vmatprep.subr.mxu0 0.0
        %3055 = vmatpush1.msra.mxu0 0.0
        %3056 = vmatprep.subr.mxu0 0.0
        %3057 = vmatpush1.msra.mxu0 0.0
        %3058 = vmatprep.subr.mxu0 0.0
        %3059 = vmatpush1.msra.mxu0 0.0
        %3060 = vmatprep.subr.mxu0 0.0
        %3061 = vmatpush1.msra.mxu0 0.0
        %3062 = vmatprep.subr.mxu0 0.0
        %3063 = vmatpush1.msra.mxu0 0.0
        %3064 = vmatprep.subr.mxu0 0.0
        %3065 = vmatpush1.msra.mxu0 0.0
        %3066 = vmatprep.subr.mxu0 0.0
        %3067 = vmatpush1.msra.mxu0 0.0
        %3068 = vmatprep.subr.mxu0 0.0
        %3069 = vmatpush1.msra.mxu0 0.0
        %3070 = vmatprep.subr.mxu0 0.0
        %3071 = vmatpush1.msra.mxu0 0.0
        %3072 = vmatprep.subr.mxu0 0.0
        %3073 = vmatpush1.msra.mxu0 0.0
        %3074 = vmatprep.subr.mxu0 0.0
        %3075 = vmatpush1.msra.mxu0 0.0
        %3076 = vmatprep.subr.mxu0 0.0
        %3077 = vmatpush1.msra.mxu0 0.0
        %3078 = vmatprep.subr.mxu0 0.0
        %3079 = vmatpush1.msra.mxu0 0.0
        %3080 = vmatprep.subr.mxu0 0.0
        %3081 = vmatpush1.msra.mxu0 0.0
        %3082 = vmatprep.subr.mxu0 0.0
        %3083 = vmatpush1.msra.mxu0 0.0
        %3084 = vmatprep.subr.mxu0 0.0
        %3085 = vmatpush1.msra.mxu0 0.0
        %3086 = vmatprep.subr.mxu0 0.0
        %3087 = vmatpush1.msra.mxu0 0.0
        %3088 = vmatprep.subr.mxu0 0.0
        %3089 = vmatpush1.msra.mxu0 0.0
        %3090 = vmatprep.subr.mxu0 0.0
        %3091 = vmatpush1.msra.mxu0 0.0
        %3092 = vmatprep.subr.mxu0 0.0
        %3093 = vmatpush1.msra.mxu0 0.0
        %3094 = vmatprep.subr.mxu0 0.0
        %3095 = vmatpush1.msra.mxu0 0.0
        %3096 = vmatprep.subr.mxu0 0.0
        %3097 = vmatpush1.msra.mxu0 0.0
        %3098 = vmatprep.subr.mxu0 0.0
        %3099 = vmatpush1.msra.mxu0 0.0
        %3100 = vmatprep.subr.mxu0 0.0
        %3101 = vmatpush1.msra.mxu0 0.0
        %3102 = vmatprep.subr.mxu0 0.0
        %3103 = vmatpush1.msra.mxu0 0.0
        %3104 = vmatprep.mubr.f32.mxu0 0.0
        %3105 = vmatmul.mubr.f32.gmra.mrb[0].mxu0 %v3035
        %v3106 = vpop.f32.mrb[0].mxu0
        %v3107 = vadd.f32 0.0, %v3106
        %v3108 = vpop.f32.mrb[0].mxu0
        %3109 = vmatprep.mubr.f32.mxu0 0.0
        %3110 = vmatmul.mubr.f32.gmra.mrb[0].mxu0 %v3038
        %v3111 = vpop.f32.mrb[0].mxu0
        %v3112 = vadd.f32 0.0, %v3111
        %v3113 = vpop.f32.mrb[0].mxu0
        %3114 = vdwg.mxu0
        %3115 = vrot.lane.b32.xlu0 %v483, 64
        %v3116 = vpop.permute.xlu0 %3115
        %3117 = vrot.lane.b32.xlu0 %v485, 64
        %v3118 = vpop.permute.xlu0 %3117
        %v3122 = vsel %vm1979, %v2318, 0
        %v3125 = vsel %vm1979, %v2319, 0
        %3127 = vmatprep.subr.mxu0 0.0
        %3128 = vmatpush1.msra.mxu0 %v3116
        %3129 = vmatprep.subr.mxu0 0.0
        %3130 = vmatpush1.msra.mxu0 %v3118
        %3131 = vmatprep.subr.mxu0 0.0
        %3132 = vmatpush1.msra.mxu0 0.0
        %3133 = vmatprep.subr.mxu0 0.0
        %3134 = vmatpush1.msra.mxu0 0.0
        %3135 = vmatprep.subr.mxu0 0.0
        %3136 = vmatpush1.msra.mxu0 0.0
        %3137 = vmatprep.subr.mxu0 0.0
        %3138 = vmatpush1.msra.mxu0 0.0
        %3139 = vmatprep.subr.mxu0 0.0
        %3140 = vmatpush1.msra.mxu0 0.0
        %3141 = vmatprep.subr.mxu0 0.0
        %3142 = vmatpush1.msra.mxu0 0.0
        %3143 = vmatprep.subr.mxu0 0.0
        %3144 = vmatpush1.msra.mxu0 0.0
        %3145 = vmatprep.subr.mxu0 0.0
        %3146 = vmatpush1.msra.mxu0 0.0
        %3147 = vmatprep.subr.mxu0 0.0
        %3148 = vmatpush1.msra.mxu0 0.0
        %3149 = vmatprep.subr.mxu0 0.0
        %3150 = vmatpush1.msra.mxu0 0.0
        %3151 = vmatprep.subr.mxu0 0.0
        %3152 = vmatpush1.msra.mxu0 0.0
        %3153 = vmatprep.subr.mxu0 0.0
        %3154 = vmatpush1.msra.mxu0 0.0
        %3155 = vmatprep.subr.mxu0 0.0
        %3156 = vmatpush1.msra.mxu0 0.0
        %3157 = vmatprep.subr.mxu0 0.0
        %3158 = vmatpush1.msra.mxu0 0.0
        %3159 = vmatprep.subr.mxu0 0.0
        %3160 = vmatpush1.msra.mxu0 0.0
        %3161 = vmatprep.subr.mxu0 0.0
        %3162 = vmatpush1.msra.mxu0 0.0
        %3163 = vmatprep.subr.mxu0 0.0
        %3164 = vmatpush1.msra.mxu0 0.0
        %3165 = vmatprep.subr.mxu0 0.0
        %3166 = vmatpush1.msra.mxu0 0.0
        %3167 = vmatprep.subr.mxu0 0.0
        %3168 = vmatpush1.msra.mxu0 0.0
        %3169 = vmatprep.subr.mxu0 0.0
        %3170 = vmatpush1.msra.mxu0 0.0
        %3171 = vmatprep.subr.mxu0 0.0
        %3172 = vmatpush1.msra.mxu0 0.0
        %3173 = vmatprep.subr.mxu0 0.0
        %3174 = vmatpush1.msra.mxu0 0.0
        %3175 = vmatprep.subr.mxu0 0.0
        %3176 = vmatpush1.msra.mxu0 0.0
        %3177 = vmatprep.subr.mxu0 0.0
        %3178 = vmatpush1.msra.mxu0 0.0
        %3179 = vmatprep.subr.mxu0 0.0
        %3180 = vmatpush1.msra.mxu0 0.0
        %3181 = vmatprep.subr.mxu0 0.0
        %3182 = vmatpush1.msra.mxu0 0.0
        %3183 = vmatprep.subr.mxu0 0.0
        %3184 = vmatpush1.msra.mxu0 0.0
        %3185 = vmatprep.subr.mxu0 0.0
        %3186 = vmatpush1.msra.mxu0 0.0
        %3187 = vmatprep.subr.mxu0 0.0
        %3188 = vmatpush1.msra.mxu0 0.0
        %3189 = vmatprep.subr.mxu0 0.0
        %3190 = vmatpush1.msra.mxu0 0.0
        %3191 = vmatprep.mubr.f32.mxu0 0.0
        %3192 = vmatmul.mubr.f32.gmra.mrb[0].mxu0 %v3122
        %v3193 = vpop.f32.mrb[0].mxu0
        %v3194 = vadd.f32 0.0, %v3193
        %v3195 = vpop.f32.mrb[0].mxu0
        %3196 = vmatprep.mubr.f32.mxu0 0.0
        %3197 = vmatmul.mubr.f32.gmra.mrb[0].mxu0 %v3125
        %v3198 = vpop.f32.mrb[0].mxu0
        %v3199 = vadd.f32 0.0, %v3198
        %v3200 = vpop.f32.mrb[0].mxu0
        %3201 = vdwg.mxu0
        %3202 = vrot.lane.b32.xlu0 %v499, 64
        %v3203 = vpop.permute.xlu0 %3202
        %3204 = vrot.lane.b32.xlu0 %v501, 64
        %v3205 = vpop.permute.xlu0 %3204
        %v3209 = vsel %vm1979, %v2320, 0
        %v3212 = vsel %vm1979, %v2321, 0
        %3214 = vmatprep.subr.mxu0 0.0
        %3215 = vmatpush1.msra.mxu0 %v3203
        %3216 = vmatprep.subr.mxu0 0.0
        %3217 = vmatpush1.msra.mxu0 %v3205
        %3218 = vmatprep.subr.mxu0 0.0
        %3219 = vmatpush1.msra.mxu0 0.0
        %3220 = vmatprep.subr.mxu0 0.0
        %3221 = vmatpush1.msra.mxu0 0.0
        %3222 = vmatprep.subr.mxu0 0.0
        %3223 = vmatpush1.msra.mxu0 0.0
        %3224 = vmatprep.subr.mxu0 0.0
        %3225 = vmatpush1.msra.mxu0 0.0
        %3226 = vmatprep.subr.mxu0 0.0
        %3227 = vmatpush1.msra.mxu0 0.0
        %3228 = vmatprep.subr.mxu0 0.0
        %3229 = vmatpush1.msra.mxu0 0.0
        %3230 = vmatprep.subr.mxu0 0.0
        %3231 = vmatpush1.msra.mxu0 0.0
        %3232 = vmatprep.subr.mxu0 0.0
        %3233 = vmatpush1.msra.mxu0 0.0
        %3234 = vmatprep.subr.mxu0 0.0
        %3235 = vmatpush1.msra.mxu0 0.0
        %3236 = vmatprep.subr.mxu0 0.0
        %3237 = vmatpush1.msra.mxu0 0.0
        %3238 = vmatprep.subr.mxu0 0.0
        %3239 = vmatpush1.msra.mxu0 0.0
        %3240 = vmatprep.subr.mxu0 0.0
        %3241 = vmatpush1.msra.mxu0 0.0
        %3242 = vmatprep.subr.mxu0 0.0
        %3243 = vmatpush1.msra.mxu0 0.0
        %3244 = vmatprep.subr.mxu0 0.0
        %3245 = vmatpush1.msra.mxu0 0.0
        %3246 = vmatprep.subr.mxu0 0.0
        %3247 = vmatpush1.msra.mxu0 0.0
        %3248 = vmatprep.subr.mxu0 0.0
        %3249 = vmatpush1.msra.mxu0 0.0
        %3250 = vmatprep.subr.mxu0 0.0
        %3251 = vmatpush1.msra.mxu0 0.0
        %3252 = vmatprep.subr.mxu0 0.0
        %3253 = vmatpush1.msra.mxu0 0.0
        %3254 = vmatprep.subr.mxu0 0.0
        %3255 = vmatpush1.msra.mxu0 0.0
        %3256 = vmatprep.subr.mxu0 0.0
        %3257 = vmatpush1.msra.mxu0 0.0
        %3258 = vmatprep.subr.mxu0 0.0
        %3259 = vmatpush1.msra.mxu0 0.0
        %3260 = vmatprep.subr.mxu0 0.0
        %3261 = vmatpush1.msra.mxu0 0.0
        %3262 = vmatprep.subr.mxu0 0.0
        %3263 = vmatpush1.msra.mxu0 0.0
        %3264 = vmatprep.subr.mxu0 0.0
        %3265 = vmatpush1.msra.mxu0 0.0
        %3266 = vmatprep.subr.mxu0 0.0
        %3267 = vmatpush1.msra.mxu0 0.0
        %3268 = vmatprep.subr.mxu0 0.0
        %3269 = vmatpush1.msra.mxu0 0.0
        %3270 = vmatprep.subr.mxu0 0.0
        %3271 = vmatpush1.msra.mxu0 0.0
        %3272 = vmatprep.subr.mxu0 0.0
        %3273 = vmatpush1.msra.mxu0 0.0
        %3274 = vmatprep.subr.mxu0 0.0
        %3275 = vmatpush1.msra.mxu0 0.0
        %3276 = vmatprep.subr.mxu0 0.0
        %3277 = vmatpush1.msra.mxu0 0.0
        %3278 = vmatprep.mubr.f32.mxu0 0.0
        %3279 = vmatmul.mubr.f32.gmra.mrb[0].mxu0 %v3209
        %v3280 = vpop.f32.mrb[0].mxu0
        %v3281 = vadd.f32 0.0, %v3280
        %v3282 = vpop.f32.mrb[0].mxu0
        %3283 = vmatprep.mubr.f32.mxu0 0.0
        %3284 = vmatmul.mubr.f32.gmra.mrb[0].mxu0 %v3212
        %v3285 = vpop.f32.mrb[0].mxu0
        %v3286 = vadd.f32 0.0, %v3285
        %v3287 = vpop.f32.mrb[0].mxu0
        %3288 = vdwg.mxu0
        %3289 = vrot.lane.b32.xlu0 %v515, 64
        %v3290 = vpop.permute.xlu0 %3289
        %3291 = vrot.lane.b32.xlu0 %v517, 64
        %v3292 = vpop.permute.xlu0 %3291
        %v3296 = vsel %vm1979, %v2322, 0
        %v3299 = vsel %vm1979, %v2323, 0
        %3301 = vmatprep.subr.mxu0 0.0
        %3302 = vmatpush1.msra.mxu0 %v3290
        %3303 = vmatprep.subr.mxu0 0.0
        %3304 = vmatpush1.msra.mxu0 %v3292
        %3305 = vmatprep.subr.mxu0 0.0
        %3306 = vmatpush1.msra.mxu0 0.0
        %3307 = vmatprep.subr.mxu0 0.0
        %3308 = vmatpush1.msra.mxu0 0.0
        %3309 = vmatprep.subr.mxu0 0.0
        %3310 = vmatpush1.msra.mxu0 0.0
        %3311 = vmatprep.subr.mxu0 0.0
        %3312 = vmatpush1.msra.mxu0 0.0
        %3313 = vmatprep.subr.mxu0 0.0
        %3314 = vmatpush1.msra.mxu0 0.0
        %3315 = vmatprep.subr.mxu0 0.0
        %3316 = vmatpush1.msra.mxu0 0.0
        %3317 = vmatprep.subr.mxu0 0.0
        %3318 = vmatpush1.msra.mxu0 0.0
        %3319 = vmatprep.subr.mxu0 0.0
        %3320 = vmatpush1.msra.mxu0 0.0
        %3321 = vmatprep.subr.mxu0 0.0
        %3322 = vmatpush1.msra.mxu0 0.0
        %3323 = vmatprep.subr.mxu0 0.0
        %3324 = vmatpush1.msra.mxu0 0.0
        %3325 = vmatprep.subr.mxu0 0.0
        %3326 = vmatpush1.msra.mxu0 0.0
        %3327 = vmatprep.subr.mxu0 0.0
        %3328 = vmatpush1.msra.mxu0 0.0
        %3329 = vmatprep.subr.mxu0 0.0
        %3330 = vmatpush1.msra.mxu0 0.0
        %3331 = vmatprep.subr.mxu0 0.0
        %3332 = vmatpush1.msra.mxu0 0.0
        %3333 = vmatprep.subr.mxu0 0.0
        %3334 = vmatpush1.msra.mxu0 0.0
        %3335 = vmatprep.subr.mxu0 0.0
        %3336 = vmatpush1.msra.mxu0 0.0
        %3337 = vmatprep.subr.mxu0 0.0
        %3338 = vmatpush1.msra.mxu0 0.0
        %3339 = vmatprep.subr.mxu0 0.0
        %3340 = vmatpush1.msra.mxu0 0.0
        %3341 = vmatprep.subr.mxu0 0.0
        %3342 = vmatpush1.msra.mxu0 0.0
        %3343 = vmatprep.subr.mxu0 0.0
        %3344 = vmatpush1.msra.mxu0 0.0
        %3345 = vmatprep.subr.mxu0 0.0
        %3346 = vmatpush1.msra.mxu0 0.0
        %3347 = vmatprep.subr.mxu0 0.0
        %3348 = vmatpush1.msra.mxu0 0.0
        %3349 = vmatprep.subr.mxu0 0.0
        %3350 = vmatpush1.msra.mxu0 0.0
        %3351 = vmatprep.subr.mxu0 0.0
        %3352 = vmatpush1.msra.mxu0 0.0
        %3353 = vmatprep.subr.mxu0 0.0
        %3354 = vmatpush1.msra.mxu0 0.0
        %3355 = vmatprep.subr.mxu0 0.0
        %3356 = vmatpush1.msra.mxu0 0.0
        %3357 = vmatprep.subr.mxu0 0.0
        %3358 = vmatpush1.msra.mxu0 0.0
        %3359 = vmatprep.subr.mxu0 0.0
        %3360 = vmatpush1.msra.mxu0 0.0
        %3361 = vmatprep.subr.mxu0 0.0
        %3362 = vmatpush1.msra.mxu0 0.0
        %3363 = vmatprep.subr.mxu0 0.0
        %3364 = vmatpush1.msra.mxu0 0.0
        %3365 = vmatprep.mubr.f32.mxu0 0.0
        %3366 = vmatmul.mubr.f32.gmra.mrb[0].mxu0 %v3296
        %v3367 = vpop.f32.mrb[0].mxu0
        %v3368 = vadd.f32 0.0, %v3367
        %v3369 = vpop.f32.mrb[0].mxu0
        %3370 = vmatprep.mubr.f32.mxu0 0.0
        %3371 = vmatmul.mubr.f32.gmra.mrb[0].mxu0 %v3299
        %v3372 = vpop.f32.mrb[0].mxu0
        %v3373 = vadd.f32 0.0, %v3372
        %v3374 = vpop.f32.mrb[0].mxu0
        %3375 = vdwg.mxu0
        %3376 = vrot.lane.b32.xlu0 %v458, 64
        %v3377 = vpop.permute.xlu0 %3376
        %3378 = vrot.lane.b32.xlu0 %v463, 64
        %v3379 = vpop.permute.xlu0 %3378
        %v3383 = vsel %vm1979, %v2324, 0
        %v3386 = vsel %vm1979, %v2325, 0
        %3388 = vmatprep.subr.mxu0 0.0
        %3389 = vmatpush1.msra.mxu0 %v3377
        %3390 = vmatprep.subr.mxu0 0.0
        %3391 = vmatpush1.msra.mxu0 %v3379
        %3392 = vmatprep.subr.mxu0 0.0
        %3393 = vmatpush1.msra.mxu0 0.0
        %3394 = vmatprep.subr.mxu0 0.0
        %3395 = vmatpush1.msra.mxu0 0.0
        %3396 = vmatprep.subr.mxu0 0.0
        %3397 = vmatpush1.msra.mxu0 0.0
        %3398 = vmatprep.subr.mxu0 0.0
        %3399 = vmatpush1.msra.mxu0 0.0
        %3400 = vmatprep.subr.mxu0 0.0
        %3401 = vmatpush1.msra.mxu0 0.0
        %3402 = vmatprep.subr.mxu0 0.0
        %3403 = vmatpush1.msra.mxu0 0.0
        %3404 = vmatprep.subr.mxu0 0.0
        %3405 = vmatpush1.msra.mxu0 0.0
        %3406 = vmatprep.subr.mxu0 0.0
        %3407 = vmatpush1.msra.mxu0 0.0
        %3408 = vmatprep.subr.mxu0 0.0
        %3409 = vmatpush1.msra.mxu0 0.0
        %3410 = vmatprep.subr.mxu0 0.0
        %3411 = vmatpush1.msra.mxu0 0.0
        %3412 = vmatprep.subr.mxu0 0.0
        %3413 = vmatpush1.msra.mxu0 0.0
        %3414 = vmatprep.subr.mxu0 0.0
        %3415 = vmatpush1.msra.mxu0 0.0
        %3416 = vmatprep.subr.mxu0 0.0
        %3417 = vmatpush1.msra.mxu0 0.0
        %3418 = vmatprep.subr.mxu0 0.0
        %3419 = vmatpush1.msra.mxu0 0.0
        %3420 = vmatprep.subr.mxu0 0.0
        %3421 = vmatpush1.msra.mxu0 0.0
        %3422 = vmatprep.subr.mxu0 0.0
        %3423 = vmatpush1.msra.mxu0 0.0
        %3424 = vmatprep.subr.mxu0 0.0
        %3425 = vmatpush1.msra.mxu0 0.0
        %3426 = vmatprep.subr.mxu0 0.0
        %3427 = vmatpush1.msra.mxu0 0.0
        %3428 = vmatprep.subr.mxu0 0.0
        %3429 = vmatpush1.msra.mxu0 0.0
        %3430 = vmatprep.subr.mxu0 0.0
        %3431 = vmatpush1.msra.mxu0 0.0
        %3432 = vmatprep.subr.mxu0 0.0
        %3433 = vmatpush1.msra.mxu0 0.0
        %3434 = vmatprep.subr.mxu0 0.0
        %3435 = vmatpush1.msra.mxu0 0.0
        %3436 = vmatprep.subr.mxu0 0.0
        %3437 = vmatpush1.msra.mxu0 0.0
        %3438 = vmatprep.subr.mxu0 0.0
        %3439 = vmatpush1.msra.mxu0 0.0
        %3440 = vmatprep.subr.mxu0 0.0
        %3441 = vmatpush1.msra.mxu0 0.0
        %3442 = vmatprep.subr.mxu0 0.0
        %3443 = vmatpush1.msra.mxu0 0.0
        %3444 = vmatprep.subr.mxu0 0.0
        %3445 = vmatpush1.msra.mxu0 0.0
        %3446 = vmatprep.subr.mxu0 0.0
        %3447 = vmatpush1.msra.mxu0 0.0
        %3448 = vmatprep.subr.mxu0 0.0
        %3449 = vmatpush1.msra.mxu0 0.0
        %3450 = vmatprep.subr.mxu0 0.0
        %3451 = vmatpush1.msra.mxu0 0.0
        %3452 = vmatprep.mubr.f32.mxu0 0.0
        %3453 = vmatmul.mubr.f32.gmra.mrb[0].mxu0 %v3383
        %v3454 = vpop.f32.mrb[0].mxu0
        %v3455 = vadd.f32 0.0, %v3454
        %v3456 = vpop.f32.mrb[0].mxu0
        %3457 = vmatprep.mubr.f32.mxu0 0.0
        %3458 = vmatmul.mubr.f32.gmra.mrb[0].mxu0 %v3386
        %v3459 = vpop.f32.mrb[0].mxu0
        %v3460 = vadd.f32 0.0, %v3459
        %v3461 = vpop.f32.mrb[0].mxu0
        %3462 = vdwg.mxu0
        %3463 = vrot.lane.b32.xlu0 %v487, 64
        %v3464 = vpop.permute.xlu0 %3463
        %3465 = vrot.lane.b32.xlu0 %v489, 64
        %v3466 = vpop.permute.xlu0 %3465
        %v3470 = vsel %vm1979, %v2326, 0
        %v3473 = vsel %vm1979, %v2327, 0
        %3475 = vmatprep.subr.mxu0 0.0
        %3476 = vmatpush1.msra.mxu0 %v3464
        %3477 = vmatprep.subr.mxu0 0.0
        %3478 = vmatpush1.msra.mxu0 %v3466
        %3479 = vmatprep.subr.mxu0 0.0
        %3480 = vmatpush1.msra.mxu0 0.0
        %3481 = vmatprep.subr.mxu0 0.0
        %3482 = vmatpush1.msra.mxu0 0.0
        %3483 = vmatprep.subr.mxu0 0.0
        %3484 = vmatpush1.msra.mxu0 0.0
        %3485 = vmatprep.subr.mxu0 0.0
        %3486 = vmatpush1.msra.mxu0 0.0
        %3487 = vmatprep.subr.mxu0 0.0
        %3488 = vmatpush1.msra.mxu0 0.0
        %3489 = vmatprep.subr.mxu0 0.0
        %3490 = vmatpush1.msra.mxu0 0.0
        %3491 = vmatprep.subr.mxu0 0.0
        %3492 = vmatpush1.msra.mxu0 0.0
        %3493 = vmatprep.subr.mxu0 0.0
        %3494 = vmatpush1.msra.mxu0 0.0
        %3495 = vmatprep.subr.mxu0 0.0
        %3496 = vmatpush1.msra.mxu0 0.0
        %3497 = vmatprep.subr.mxu0 0.0
        %3498 = vmatpush1.msra.mxu0 0.0
        %3499 = vmatprep.subr.mxu0 0.0
        %3500 = vmatpush1.msra.mxu0 0.0
        %3501 = vmatprep.subr.mxu0 0.0
        %3502 = vmatpush1.msra.mxu0 0.0
        %3503 = vmatprep.subr.mxu0 0.0
        %3504 = vmatpush1.msra.mxu0 0.0
        %3505 = vmatprep.subr.mxu0 0.0
        %3506 = vmatpush1.msra.mxu0 0.0
        %3507 = vmatprep.subr.mxu0 0.0
        %3508 = vmatpush1.msra.mxu0 0.0
        %3509 = vmatprep.subr.mxu0 0.0
        %3510 = vmatpush1.msra.mxu0 0.0
        %3511 = vmatprep.subr.mxu0 0.0
        %3512 = vmatpush1.msra.mxu0 0.0
        %3513 = vmatprep.subr.mxu0 0.0
        %3514 = vmatpush1.msra.mxu0 0.0
        %3515 = vmatprep.subr.mxu0 0.0
        %3516 = vmatpush1.msra.mxu0 0.0
        %3517 = vmatprep.subr.mxu0 0.0
        %3518 = vmatpush1.msra.mxu0 0.0
        %3519 = vmatprep.subr.mxu0 0.0
        %3520 = vmatpush1.msra.mxu0 0.0
        %3521 = vmatprep.subr.mxu0 0.0
        %3522 = vmatpush1.msra.mxu0 0.0
        %3523 = vmatprep.subr.mxu0 0.0
        %3524 = vmatpush1.msra.mxu0 0.0
        %3525 = vmatprep.subr.mxu0 0.0
        %3526 = vmatpush1.msra.mxu0 0.0
        %3527 = vmatprep.subr.mxu0 0.0
        %3528 = vmatpush1.msra.mxu0 0.0
        %3529 = vmatprep.subr.mxu0 0.0
        %3530 = vmatpush1.msra.mxu0 0.0
        %3531 = vmatprep.subr.mxu0 0.0
        %3532 = vmatpush1.msra.mxu0 0.0
        %3533 = vmatprep.subr.mxu0 0.0
        %3534 = vmatpush1.msra.mxu0 0.0
        %3535 = vmatprep.subr.mxu0 0.0
        %3536 = vmatpush1.msra.mxu0 0.0
        %3537 = vmatprep.subr.mxu0 0.0
        %3538 = vmatpush1.msra.mxu0 0.0
        %3539 = vmatprep.mubr.f32.mxu0 0.0
        %3540 = vmatmul.mubr.f32.gmra.mrb[0].mxu0 %v3470
        %v3541 = vpop.f32.mrb[0].mxu0
        %v3542 = vadd.f32 0.0, %v3541
        %v3543 = vpop.f32.mrb[0].mxu0
        %3544 = vmatprep.mubr.f32.mxu0 0.0
        %3545 = vmatmul.mubr.f32.gmra.mrb[0].mxu0 %v3473
        %v3546 = vpop.f32.mrb[0].mxu0
        %v3547 = vadd.f32 0.0, %v3546
        %v3548 = vpop.f32.mrb[0].mxu0
        %3549 = vdwg.mxu0
        %3550 = vrot.lane.b32.xlu0 %v503, 64
        %v3551 = vpop.permute.xlu0 %3550
        %3552 = vrot.lane.b32.xlu0 %v505, 64
        %v3553 = vpop.permute.xlu0 %3552
        %v3557 = vsel %vm1979, %v2328, 0
        %v3560 = vsel %vm1979, %v2329, 0
        %3562 = vmatprep.subr.mxu0 0.0
        %3563 = vmatpush1.msra.mxu0 %v3551
        %3564 = vmatprep.subr.mxu0 0.0
        %3565 = vmatpush1.msra.mxu0 %v3553
        %3566 = vmatprep.subr.mxu0 0.0
        %3567 = vmatpush1.msra.mxu0 0.0
        %3568 = vmatprep.subr.mxu0 0.0
        %3569 = vmatpush1.msra.mxu0 0.0
        %3570 = vmatprep.subr.mxu0 0.0
        %3571 = vmatpush1.msra.mxu0 0.0
        %3572 = vmatprep.subr.mxu0 0.0
        %3573 = vmatpush1.msra.mxu0 0.0
        %3574 = vmatprep.subr.mxu0 0.0
        %3575 = vmatpush1.msra.mxu0 0.0
        %3576 = vmatprep.subr.mxu0 0.0
        %3577 = vmatpush1.msra.mxu0 0.0
        %3578 = vmatprep.subr.mxu0 0.0
        %3579 = vmatpush1.msra.mxu0 0.0
        %3580 = vmatprep.subr.mxu0 0.0
        %3581 = vmatpush1.msra.mxu0 0.0
        %3582 = vmatprep.subr.mxu0 0.0
        %3583 = vmatpush1.msra.mxu0 0.0
        %3584 = vmatprep.subr.mxu0 0.0
        %3585 = vmatpush1.msra.mxu0 0.0
        %3586 = vmatprep.subr.mxu0 0.0
        %3587 = vmatpush1.msra.mxu0 0.0
        %3588 = vmatprep.subr.mxu0 0.0
        %3589 = vmatpush1.msra.mxu0 0.0
        %3590 = vmatprep.subr.mxu0 0.0
        %3591 = vmatpush1.msra.mxu0 0.0
        %3592 = vmatprep.subr.mxu0 0.0
        %3593 = vmatpush1.msra.mxu0 0.0
        %3594 = vmatprep.subr.mxu0 0.0
        %3595 = vmatpush1.msra.mxu0 0.0
        %3596 = vmatprep.subr.mxu0 0.0
        %3597 = vmatpush1.msra.mxu0 0.0
        %3598 = vmatprep.subr.mxu0 0.0
        %3599 = vmatpush1.msra.mxu0 0.0
        %3600 = vmatprep.subr.mxu0 0.0
        %3601 = vmatpush1.msra.mxu0 0.0
        %3602 = vmatprep.subr.mxu0 0.0
        %3603 = vmatpush1.msra.mxu0 0.0
        %3604 = vmatprep.subr.mxu0 0.0
        %3605 = vmatpush1.msra.mxu0 0.0
        %3606 = vmatprep.subr.mxu0 0.0
        %3607 = vmatpush1.msra.mxu0 0.0
        %3608 = vmatprep.subr.mxu0 0.0
        %3609 = vmatpush1.msra.mxu0 0.0
        %3610 = vmatprep.subr.mxu0 0.0
        %3611 = vmatpush1.msra.mxu0 0.0
        %3612 = vmatprep.subr.mxu0 0.0
        %3613 = vmatpush1.msra.mxu0 0.0
        %3614 = vmatprep.subr.mxu0 0.0
        %3615 = vmatpush1.msra.mxu0 0.0
        %3616 = vmatprep.subr.mxu0 0.0
        %3617 = vmatpush1.msra.mxu0 0.0
        %3618 = vmatprep.subr.mxu0 0.0
        %3619 = vmatpush1.msra.mxu0 0.0
        %3620 = vmatprep.subr.mxu0 0.0
        %3621 = vmatpush1.msra.mxu0 0.0
        %3622 = vmatprep.subr.mxu0 0.0
        %3623 = vmatpush1.msra.mxu0 0.0
        %3624 = vmatprep.subr.mxu0 0.0
        %3625 = vmatpush1.msra.mxu0 0.0
        %3626 = vmatprep.mubr.f32.mxu0 0.0
        %3627 = vmatmul.mubr.f32.gmra.mrb[0].mxu0 %v3557
        %v3628 = vpop.f32.mrb[0].mxu0
        %v3629 = vadd.f32 0.0, %v3628
        %v3630 = vpop.f32.mrb[0].mxu0
        %3631 = vmatprep.mubr.f32.mxu0 0.0
        %3632 = vmatmul.mubr.f32.gmra.mrb[0].mxu0 %v3560
        %v3633 = vpop.f32.mrb[0].mxu0
        %v3634 = vadd.f32 0.0, %v3633
        %v3635 = vpop.f32.mrb[0].mxu0
        %3636 = vdwg.mxu0
        %3637 = vrot.lane.b32.xlu0 %v519, 64
        %v3638 = vpop.permute.xlu0 %3637
        %3639 = vrot.lane.b32.xlu0 %v521, 64
        %v3640 = vpop.permute.xlu0 %3639
        %v3644 = vsel %vm1979, %v2330, 0
        %v3647 = vsel %vm1979, %v2331, 0
        %3649 = vmatprep.subr.mxu0 0.0
        %3650 = vmatpush1.msra.mxu0 %v3638
        %3651 = vmatprep.subr.mxu0 0.0
        %3652 = vmatpush1.msra.mxu0 %v3640
        %3653 = vmatprep.subr.mxu0 0.0
        %3654 = vmatpush1.msra.mxu0 0.0
        %3655 = vmatprep.subr.mxu0 0.0
        %3656 = vmatpush1.msra.mxu0 0.0
        %3657 = vmatprep.subr.mxu0 0.0
        %3658 = vmatpush1.msra.mxu0 0.0
        %3659 = vmatprep.subr.mxu0 0.0
        %3660 = vmatpush1.msra.mxu0 0.0
        %3661 = vmatprep.subr.mxu0 0.0
        %3662 = vmatpush1.msra.mxu0 0.0
        %3663 = vmatprep.subr.mxu0 0.0
        %3664 = vmatpush1.msra.mxu0 0.0
        %3665 = vmatprep.subr.mxu0 0.0
        %3666 = vmatpush1.msra.mxu0 0.0
        %3667 = vmatprep.subr.mxu0 0.0
        %3668 = vmatpush1.msra.mxu0 0.0
        %3669 = vmatprep.subr.mxu0 0.0
        %3670 = vmatpush1.msra.mxu0 0.0
        %3671 = vmatprep.subr.mxu0 0.0
        %3672 = vmatpush1.msra.mxu0 0.0
        %3673 = vmatprep.subr.mxu0 0.0
        %3674 = vmatpush1.msra.mxu0 0.0
        %3675 = vmatprep.subr.mxu0 0.0
        %3676 = vmatpush1.msra.mxu0 0.0
        %3677 = vmatprep.subr.mxu0 0.0
        %3678 = vmatpush1.msra.mxu0 0.0
        %3679 = vmatprep.subr.mxu0 0.0
        %3680 = vmatpush1.msra.mxu0 0.0
        %3681 = vmatprep.subr.mxu0 0.0
        %3682 = vmatpush1.msra.mxu0 0.0
        %3683 = vmatprep.subr.mxu0 0.0
        %3684 = vmatpush1.msra.mxu0 0.0
        %3685 = vmatprep.subr.mxu0 0.0
        %3686 = vmatpush1.msra.mxu0 0.0
        %3687 = vmatprep.subr.mxu0 0.0
        %3688 = vmatpush1.msra.mxu0 0.0
        %3689 = vmatprep.subr.mxu0 0.0
        %3690 = vmatpush1.msra.mxu0 0.0
        %3691 = vmatprep.subr.mxu0 0.0
        %3692 = vmatpush1.msra.mxu0 0.0
        %3693 = vmatprep.subr.mxu0 0.0
        %3694 = vmatpush1.msra.mxu0 0.0
        %3695 = vmatprep.subr.mxu0 0.0
        %3696 = vmatpush1.msra.mxu0 0.0
        %3697 = vmatprep.subr.mxu0 0.0
        %3698 = vmatpush1.msra.mxu0 0.0
        %3699 = vmatprep.subr.mxu0 0.0
        %3700 = vmatpush1.msra.mxu0 0.0
        %3701 = vmatprep.subr.mxu0 0.0
        %3702 = vmatpush1.msra.mxu0 0.0
        %3703 = vmatprep.subr.mxu0 0.0
        %3704 = vmatpush1.msra.mxu0 0.0
        %3705 = vmatprep.subr.mxu0 0.0
        %3706 = vmatpush1.msra.mxu0 0.0
        %3707 = vmatprep.subr.mxu0 0.0
        %3708 = vmatpush1.msra.mxu0 0.0
        %3709 = vmatprep.subr.mxu0 0.0
        %3710 = vmatpush1.msra.mxu0 0.0
        %3711 = vmatprep.subr.mxu0 0.0
        %3712 = vmatpush1.msra.mxu0 0.0
        %3713 = vmatprep.mubr.f32.mxu0 0.0
        %3714 = vmatmul.mubr.f32.gmra.mrb[0].mxu0 %v3644
        %v3715 = vpop.f32.mrb[0].mxu0
        %v3716 = vadd.f32 0.0, %v3715
        %v3717 = vpop.f32.mrb[0].mxu0
        %3718 = vmatprep.mubr.f32.mxu0 0.0
        %3719 = vmatmul.mubr.f32.gmra.mrb[0].mxu0 %v3647
        %v3720 = vpop.f32.mrb[0].mxu0
        %v3721 = vadd.f32 0.0, %v3720
        %v3722 = vpop.f32.mrb[0].mxu0
        %3723 = vdwg.mxu0
        %3732 = vrot.lane.b32.xlu0 %v2498, 8
        %v3733 = vpop.permute.xlu0 %3732
        %3734 = vrot.lane.b32.xlu0 %v2503, 8
        %v3735 = vpop.permute.xlu0 %3734
        %3736 = vrot.lane.b32.xlu0 %v2846, 8
        %v3737 = vpop.permute.xlu0 %3736
        %3738 = vrot.lane.b32.xlu0 %v2851, 8
        %v3739 = vpop.permute.xlu0 %3738
        %3740 = vrot.lane.b32.xlu0 %v3194, 8
        %v3741 = vpop.permute.xlu0 %3740
        %3742 = vrot.lane.b32.xlu0 %v3199, 8
        %v3743 = vpop.permute.xlu0 %3742
        %3744 = vrot.lane.b32.xlu0 %v3542, 8
        %v3745 = vpop.permute.xlu0 %3744
        %3746 = vrot.lane.b32.xlu0 %v3547, 8
        %v3747 = vpop.permute.xlu0 %3746
        %3764 = vrot.lane.b32.xlu0 %v2585, 16
        %v3765 = vpop.permute.xlu0 %3764
        %3766 = vrot.lane.b32.xlu0 %v2590, 16
        %v3767 = vpop.permute.xlu0 %3766
        %3768 = vrot.lane.b32.xlu0 %v2933, 16
        %v3769 = vpop.permute.xlu0 %3768
        %3770 = vrot.lane.b32.xlu0 %v2938, 16
        %v3771 = vpop.permute.xlu0 %3770
        %3772 = vrot.lane.b32.xlu0 %v3281, 16
        %v3773 = vpop.permute.xlu0 %3772
        %3774 = vrot.lane.b32.xlu0 %v3286, 16
        %v3775 = vpop.permute.xlu0 %3774
        %3776 = vrot.lane.b32.xlu0 %v3629, 16
        %v3777 = vpop.permute.xlu0 %3776
        %3778 = vrot.lane.b32.xlu0 %v3634, 16
        %v3779 = vpop.permute.xlu0 %3778
        %3796 = vrot.lane.b32.xlu0 %v2672, 24
        %v3797 = vpop.permute.xlu0 %3796
        %3798 = vrot.lane.b32.xlu0 %v2677, 24
        %v3799 = vpop.permute.xlu0 %3798
        %3800 = vrot.lane.b32.xlu0 %v3020, 24
        %v3801 = vpop.permute.xlu0 %3800
        %3802 = vrot.lane.b32.xlu0 %v3025, 24
        %v3803 = vpop.permute.xlu0 %3802
        %3804 = vrot.lane.b32.xlu0 %v3368, 24
        %v3805 = vpop.permute.xlu0 %3804
        %3806 = vrot.lane.b32.xlu0 %v3373, 24
        %v3807 = vpop.permute.xlu0 %3806
        %3808 = vrot.lane.b32.xlu0 %v3716, 24
        %v3809 = vpop.permute.xlu0 %3808
        %3810 = vrot.lane.b32.xlu0 %v3721, 24
        %v3811 = vpop.permute.xlu0 %3810
        %v3820 = vsel %vm526, %v2411, %v3733
        %v3821 = vsel %vm526, %v2416, %v3735
        %v3822 = vsel %vm526, %v2759, %v3737
        %v3823 = vsel %vm526, %v2764, %v3739
        %v3824 = vsel %vm526, %v3107, %v3741
        %v3825 = vsel %vm526, %v3112, %v3743
        %v3826 = vsel %vm526, %v3455, %v3745
        %v3827 = vsel %vm526, %v3460, %v3747
        %v3828 = vsel %vm1979, %v3820, %v3765
        %v3829 = vsel %vm1979, %v3821, %v3767
        %v3830 = vsel %vm1979, %v3822, %v3769
        %v3831 = vsel %vm1979, %v3823, %v3771
        %v3832 = vsel %vm1979, %v3824, %v3773
        %v3833 = vsel %vm1979, %v3825, %v3775
        %v3834 = vsel %vm1979, %v3826, %v3777
        %v3835 = vsel %vm1979, %v3827, %v3779
        %vm3836 = vcmask 195584
        %v3837 = vsel %vm3836, %v3828, %v3797
        %v3838 = vsel %vm3836, %v3829, %v3799
        %v3839 = vsel %vm3836, %v3830, %v3801
        %v3840 = vsel %vm3836, %v3831, %v3803
        %v3841 = vsel %vm3836, %v3832, %v3805
        %v3842 = vsel %vm3836, %v3833, %v3807
        %v3843 = vsel %vm3836, %v3834, %v3809
        %v3844 = vsel %vm3836, %v3835, %v3811
        %v3845 = vld [vmem:[#allocation7] sm:$0xff]
        %v3846 = vld [vmem:[#allocation7 + $0x8] sm:$0xff]
        %v3847 = vld [vmem:[#allocation7 + $0x10] sm:$0xff]
        %v3848 = vld [vmem:[#allocation7 + $0x18] sm:$0xff]
        %v3849 = vld [vmem:[%s4] sm:$0x1]
        %v3851 = vlaneseq
        %v3852 = vshrl.u32 %v3851, 7
        %v3853 = vsub.s32 0, %v3852
        %v3854 = vrot.slane %v3849, %v3853
        %v3857 = vsel %vm336, %v3837, 0
        %v3860 = vsel %vm336, %v3838, 0
        %v3863 = vsel %vm336, %v3839, 0
        %v3866 = vsel %vm336, %v3840, 0
        %v3869 = vsel %vm336, %v3841, 0
        %v3872 = vsel %vm336, %v3842, 0
        %v3875 = vsel %vm336, %v3843, 0
        %v3878 = vsel %vm336, %v3844, 0
        %3880 = vmatprep.subr.mxu0 0.0
        %3881 = vmatpush1.msra.mxu0 %v3845
        %3882 = vmatprep.subr.mxu0 0.0
        %3883 = vmatpush1.msra.mxu0 %v3846
        %3884 = vmatprep.subr.mxu0 0.0
        %3885 = vmatpush1.msra.mxu0 %v3847
        %3886 = vmatprep.subr.mxu0 0.0
        %3887 = vmatpush1.msra.mxu0 %v3848
        %3888 = vmatprep.subr.mxu0 0.0
        %3889 = vmatpush1.msra.mxu0 0.0
        %3890 = vmatprep.subr.mxu0 0.0
        %3891 = vmatpush1.msra.mxu0 0.0
        %3892 = vmatprep.subr.mxu0 0.0
        %3893 = vmatpush1.msra.mxu0 0.0
        %3894 = vmatprep.subr.mxu0 0.0
        %3895 = vmatpush1.msra.mxu0 0.0
        %3896 = vmatprep.subr.mxu0 0.0
        %3897 = vmatpush1.msra.mxu0 0.0
        %3898 = vmatprep.subr.mxu0 0.0
        %3899 = vmatpush1.msra.mxu0 0.0
        %3900 = vmatprep.subr.mxu0 0.0
        %3901 = vmatpush1.msra.mxu0 0.0
        %3902 = vmatprep.subr.mxu0 0.0
        %3903 = vmatpush1.msra.mxu0 0.0
        %3904 = vmatprep.subr.mxu0 0.0
        %3905 = vmatpush1.msra.mxu0 0.0
        %3906 = vmatprep.subr.mxu0 0.0
        %3907 = vmatpush1.msra.mxu0 0.0
        %3908 = vmatprep.subr.mxu0 0.0
        %3909 = vmatpush1.msra.mxu0 0.0
        %3910 = vmatprep.subr.mxu0 0.0
        %3911 = vmatpush1.msra.mxu0 0.0
        %3912 = vmatprep.subr.mxu0 0.0
        %3913 = vmatpush1.msra.mxu0 0.0
        %3914 = vmatprep.subr.mxu0 0.0
        %3915 = vmatpush1.msra.mxu0 0.0
        %3916 = vmatprep.subr.mxu0 0.0
        %3917 = vmatpush1.msra.mxu0 0.0
        %3918 = vmatprep.subr.mxu0 0.0
        %3919 = vmatpush1.msra.mxu0 0.0
        %3920 = vmatprep.subr.mxu0 0.0
        %3921 = vmatpush1.msra.mxu0 0.0
        %3922 = vmatprep.subr.mxu0 0.0
        %3923 = vmatpush1.msra.mxu0 0.0
        %3924 = vmatprep.subr.mxu0 0.0
        %3925 = vmatpush1.msra.mxu0 0.0
        %3926 = vmatprep.subr.mxu0 0.0
        %3927 = vmatpush1.msra.mxu0 0.0
        %3928 = vmatprep.subr.mxu0 0.0
        %3929 = vmatpush1.msra.mxu0 0.0
        %3930 = vmatprep.subr.mxu0 0.0
        %3931 = vmatpush1.msra.mxu0 0.0
        %3932 = vmatprep.subr.mxu0 0.0
        %3933 = vmatpush1.msra.mxu0 0.0
        %3934 = vmatprep.subr.mxu0 0.0
        %3935 = vmatpush1.msra.mxu0 0.0
        %3936 = vmatprep.subr.mxu0 0.0
        %3937 = vmatpush1.msra.mxu0 0.0
        %3938 = vmatprep.subr.mxu0 0.0
        %3939 = vmatpush1.msra.mxu0 0.0
        %3940 = vmatprep.subr.mxu0 0.0
        %3941 = vmatpush1.msra.mxu0 0.0
        %3942 = vmatprep.subr.mxu0 0.0
        %3943 = vmatpush1.msra.mxu0 0.0
        %3944 = vmatprep.mubr.f32.mxu0 0.0
        %3945 = vmatmul.mubr.f32.gmra.mrb[0].mxu0 %v3857
        %v3946 = vpop.f32.mrb[0].mxu0
        %v3947 = vadd.f32 %v3854, %v3946
        %v3948 = vpop.f32.mrb[0].mxu0
        %3949 = vmatprep.mubr.f32.mxu0 0.0
        %3950 = vmatmul.mubr.f32.gmra.mrb[0].mxu0 %v3860
        %v3951 = vpop.f32.mrb[0].mxu0
        %v3952 = vadd.f32 %v3854, %v3951
        %v3953 = vpop.f32.mrb[0].mxu0
        %3954 = vmatprep.mubr.f32.mxu0 0.0
        %3955 = vmatmul.mubr.f32.gmra.mrb[0].mxu0 %v3863
        %v3956 = vpop.f32.mrb[0].mxu0
        %v3957 = vadd.f32 %v3854, %v3956
        %v3958 = vpop.f32.mrb[0].mxu0
        %3959 = vmatprep.mubr.f32.mxu0 0.0
        %3960 = vmatmul.mubr.f32.gmra.mrb[0].mxu0 %v3866
        %v3961 = vpop.f32.mrb[0].mxu0
        %v3962 = vadd.f32 %v3854, %v3961
        %v3963 = vpop.f32.mrb[0].mxu0
        %3964 = vmatprep.mubr.f32.mxu0 0.0
        %3965 = vmatmul.mubr.f32.gmra.mrb[0].mxu0 %v3869
        %v3966 = vpop.f32.mrb[0].mxu0
        %v3967 = vadd.f32 %v3854, %v3966
        %v3968 = vpop.f32.mrb[0].mxu0
        %3969 = vmatprep.mubr.f32.mxu0 0.0
        %3970 = vmatmul.mubr.f32.gmra.mrb[0].mxu0 %v3872
        %v3971 = vpop.f32.mrb[0].mxu0
        %v3972 = vadd.f32 %v3854, %v3971
        %v3973 = vpop.f32.mrb[0].mxu0
        %3974 = vmatprep.mubr.f32.mxu0 0.0
        %3975 = vmatmul.mubr.f32.gmra.mrb[0].mxu0 %v3875
        %v3976 = vpop.f32.mrb[0].mxu0
        %v3977 = vadd.f32 %v3854, %v3976
        %v3978 = vpop.f32.mrb[0].mxu0
        %3979 = vmatprep.mubr.f32.mxu0 0.0
        %3980 = vmatmul.mubr.f32.gmra.mrb[0].mxu0 %v3878
        %v3981 = vpop.f32.mrb[0].mxu0
        %v3982 = vadd.f32 %v3854, %v3981
        %v3983 = vpop.f32.mrb[0].mxu0
        %3984 = vdwg.mxu0
        %3985 = vst.msk [vmem:[%s314] sm:$0xff] %vm336, %v3947
        %3986 = vst.msk [vmem:[%s314 + $0x8] sm:$0xff] %vm336, %v3952
        %3987 = vst.msk [vmem:[%s314 + $0x10] sm:$0xff] %vm336, %v3957
        %3988 = vst.msk [vmem:[%s314 + $0x18] sm:$0xff] %vm336, %v3962
        %3989 = vst.msk [vmem:[%s314 + $0x20] sm:$0xff] %vm336, %v3967
        %3990 = vst.msk [vmem:[%s314 + $0x28] sm:$0xff] %vm336, %v3972
        %3991 = vst.msk [vmem:[%s314 + $0x30] sm:$0xff] %vm336, %v3977
        %3992 = vst.msk [vmem:[%s314 + $0x38] sm:$0xff] %vm336, %v3982
        %s3993 = sand.u32 %s164, 1
        %s3994 = scalar_lea.sflag [#allocation4], %s3993
        %s3995 = sand.u32 %s164, 1
        %s3996 = smul.addr %s3995, 64
        %s3997 = scalar_lea.vmem [#allocation10], %s3996
        // Predicated region
        $region61: #{tpu_custom_call.1} parent=43 // pred_check
          %p3998 = pneg %p174
        $region62: #{tpu_custom_call.1} parent=43 // pred_check_branch
          %4000 = sbr.rel (%p3998) target = $region64
        $region63: #{tpu_custom_call.1} parent=43 // pred_region
          %s4001 = smul.u32 4, %s25
          %s4003 = ssub.s32 1024, 1024
          %4004 = vsyncadd %s3994, %s4003
          %s4005 = smul.addr %s4001, 2
          %s4006 = smul.addr %s4005, 128
          %s4007 = scalar_lea.hbm %s6, %s4006
          %s4008 = sshll.u32 %s3997, 4
          %s4009 = int_to_ptr.vmem [resolvable:$true] %s4008
          %4014 = dma.vmem_to_hbm [thread:$0]  %s4009, 1024, %s4007, %s3994, 128, 128, 8
        $region64: #{tpu_custom_call.1} parent=43 // pred_fallthru
          _
      $region44: #{tpu_custom_call.1} parent=5 // pred_fallthru
        _
      %p4015 = scmp.le.s32.totalorder 2, %s20
      // Predicated region
      $region65: #{tpu_custom_call.1} parent=5 // pred_check
        %p4016 = pneg %p4015
      $region66: #{tpu_custom_call.1} parent=5 // pred_check_branch
        %4018 = sbr.rel (%p4016) target = $region68
      $region67: #{tpu_custom_call.1} parent=5 // pred_region
        %s4019 = ssub.s32 %s20, 2
        // Predicated region
        $region69: #{tpu_custom_call.1} parent=67 // pred_check
          %p4020 = pneg %p180
        $region70: #{tpu_custom_call.1} parent=67 // pred_check_branch
          %4022 = sbr.rel (%p4020) target = $region72
        $region71: #{tpu_custom_call.1} parent=67 // pred_region
          %s4023 = sand.u32 %s165, 1
          %s4024 = scalar_lea.sflag [#allocation4], %s4023
          %s4025 = sand.u32 %s165, 1
          %s4026 = smul.addr %s4025, 64
          %s4027 = scalar_lea.vmem [#allocation10], %s4026
          %4028 = dma.done %s4024, 1024
        $region72: #{tpu_custom_call.1} parent=67 // pred_fallthru
          _
      $region68: #{tpu_custom_call.1} parent=5 // pred_fallthru
        _
    $region6: #{tpu_custom_call.1} parent=1 // loop_footer
      %s24 = sadd.s32 1, %s20
    $region7: #{tpu_custom_call.1} parent=1 // loop_footer_branch
      %19 = sbr.rel target = $region3
    $region8: #{tpu_custom_call.1} parent=1 // loop_exit
      _
    %4029 = vsyncpa [#allocation3], 1
    %s4030 = scalar_lea.sflag [#allocation3], 1
    %4031 = vsyncpa %s4030, 1
    %4032 = vsyncpa [#allocation6], 1
    %4033 = vsyncpa [#allocation9], 1
    %4034 = vsyncpa [#allocation4], 1
    %s4035 = scalar_lea.sflag [#allocation4], 1
    %4036 = vsyncpa %s4035, 1

// kernel: tpu_custom_call.1
$region0: #{tpu_custom_call.1}
  #allocation0 [shape = 'u32[]', space=smem, size = 0x4, offset = 0x4, fixed_abs, tag = 'smem constant byte address 0x4 - core index']
  #allocation1 [shape = 'u32[144,128]{1,0:T(1,128)}', space=vmem, size = 0x12000, scoped, tag = 'internal scratch']
  #allocation2 [shape = 'f32[4,16,32]{2,1,0:T(8,128)}', space=vmem, size = 0x8000, scoped, tag = 'scratch operand']
  %s0 = inlined_call_operand.hbm [shape: f32[8,16,32], index: 0, kind: input, shape index: {}]
  %s1 = inlined_call_operand.hbm [shape: f32[32,96], index: 1, kind: input, shape index: {}]
  %s2 = inlined_call_operand.vmem [shape: f32[1,96], index: 2, kind: input, shape index: {}]
  %s3 = inlined_call_operand.hbm [shape: f32[32,32], index: 3, kind: input, shape index: {}]
  %s4 = inlined_call_operand.vmem [shape: f32[1,32], index: 4, kind: input, shape index: {}]
  %s5 = inlined_call_operand.hbm [shape: f32[16,16,16], index: 5, kind: input, shape index: {}]
  %s6 = inlined_call_operand.hbm [shape: f32[8,16,32], index: 6, kind: output, shape index: {}]
  %s7 = sld [smem:[#allocation0]]
  $region73: #{tpu_custom_call.1} parent=0
    _
  %s9 = ssub.s32 1, %s7
  %s10 = scalar_select 0, %s9, %s7
  $region1: #{tpu_custom_call.1} parent=0
    #allocation3 [shape = 'u8[65536]{0}', space=vmem, size = 0x10000, scoped, tag = 'input window, operand 0']
    #allocation4 [shape = 's32[2]{0}', space=sflag, size = 0x8, scoped, tag = 'scoped memory for tpu_custom_call.1']
    #allocation5 [shape = 's32[2]{0}', space=sflag, size = 0x8, scoped, tag = 'scoped memory for tpu_custom_call.1']
    #allocation6 [shape = 'u8[16384]{0}', space=vmem, size = 0x4000, scoped, tag = 'input window, operand 1, single buffered']
    #allocation7 [shape = 's32[1]{0}', space=sflag, size = 0x4, scoped, tag = 'scoped memory for tpu_custom_call.1']
    #allocation8 [shape = 'u8[16384]{0}', space=vmem, size = 0x4000, scoped, tag = 'input window, operand 3, single buffered']
    #allocation9 [shape = 'u8[131072]{0}', space=vmem, size = 0x20000, scoped, tag = 'input window, operand 5, single buffered']
    #allocation10 [shape = 's32[1]{0}', space=sflag, size = 0x4, scoped, tag = 'scoped memory for tpu_custom_call.1']
    #allocation11 [shape = 'u8[65536]{0}', space=vmem, size = 0x10000, scoped, tag = 'output window, operand 0']
    %11 = vsyncpa [#allocation4], 0
    %s12 = scalar_lea.sflag [#allocation4], 1
    %13 = vsyncpa %s12, 0
    %14 = vsyncpa [#allocation7], 0
    %15 = vsyncpa [#allocation10], 0
    %16 = vsyncpa [#allocation5], 0
    %s17 = scalar_lea.sflag [#allocation5], 1
    %18 = vsyncpa %s17, 0
    loop: start=0, step=1, limit=4
    $region2: #{tpu_custom_call.1} parent=1 // loop_pre_header
      _
    $region3: #{tpu_custom_call.1} parent=1 // loop_header
      %s20 = sphi 0, %s24
      %p21 = scmp.ge.s32.totalorder %s20, 4
      %s30 = sphi 0, %s32
      %s33 = sphi 0, %s30
      %s34 = sphi 0, %s33
      %s50 = sphi 0, %s34
      %s54 = sphi 0, %s54
      %s56 = sphi 0, %s54
      %s57 = sphi 0, %s56
      %s71 = sphi 0, %s57
      %s75 = sphi 0, %s75
      %s77 = sphi 0, %s75
      %s78 = sphi 0, %s77
      %s92 = sphi 0, %s78
      %s96 = sphi 0, %s96
      %s98 = sphi 0, %s96
      %s99 = sphi 0, %s98
      %s113 = sphi 0, %s99
      %s117 = sphi 0, %s117
      %s119 = sphi 0, %s117
      %s120 = sphi 0, %s119
      %s134 = sphi 0, %s120
      %s138 = sphi 0, %s138
      %s140 = sphi 0, %s138
      %s141 = sphi 0, %s140
      %s155 = sphi 0, %s141
      %s161 = sphi 0, %s163
      %s164 = sphi 0, %s161
      %s165 = sphi 0, %s164
      %s181 = sphi 0, %s165
    $region4: #{tpu_custom_call.1} parent=1 // loop_header_branch
      %23 = sbr.rel (%p21) target = $region8
    $region5: #{tpu_custom_call.1} parent=1 // loop_body
      %s25 = ssub.s32 %s20, 1
      %s26 = ssub.s32 %s20, 2
      %s27 = sadd.s32 %s20, 1
      %s28 = ssub.s32 %s20, %s27
      %p29 = scmp.eq.s32.totalorder %s28, 0
      %s31 = sadd.s32 %s30, 1
      %s32 = scalar_select %p29, %s30, %s31
      %p35 = pneg %p29
      %p36 = scmp.eq.s32.totalorder %s20, 1
      %p37 = por %p35, %p36
      %p38 = scmp.ne.s32.totalorder %s30, %s33
      %p39 = scmp.eq.s32.totalorder %s20, 0
      %p40 = por %p38, %p39
      %p41 = scmp.ne.s32.totalorder %s30, %s33
      %p42 = scmp.eq.s32.totalorder %s25, 1
      %p43 = por %p41, %p42
      %p44 = scmp.ne.s32.totalorder %s33, %s34
      %p45 = scmp.eq.s32.totalorder %s25, 0
      %p46 = por %p44, %p45
      %p47 = scmp.ne.s32.totalorder %s33, %s34
      %p48 = scmp.eq.s32.totalorder %s26, 1
      %p49 = por %p47, %p48
      %p51 = scmp.ne.s32.totalorder %s34, %s50
      %p52 = scmp.eq.s32.totalorder %s26, 0
      %p53 = por %p51, %p52
      %s55 = sadd.s32 %s54, 1
      %p58 = scmp.eq.s32.totalorder %s20, 1
      %p59 = scmp.ne.s32.totalorder %s54, %s56
      %p60 = scmp.eq.s32.totalorder %s20, 0
      %p61 = por %p59, %p60
      %p62 = scmp.ne.s32.totalorder %s54, %s56
      %p63 = scmp.eq.s32.totalorder %s25, 1
      %p64 = por %p62, %p63
      %p65 = scmp.ne.s32.totalorder %s56, %s57
      %p66 = scmp.eq.s32.totalorder %s25, 0
      %p67 = por %p65, %p66
      %p68 = scmp.ne.s32.totalorder %s56, %s57
      %p69 = scmp.eq.s32.totalorder %s26, 1
      %p70 = por %p68, %p69
      %p72 = scmp.ne.s32.totalorder %s57, %s71
      %p73 = scmp.eq.s32.totalorder %s26, 0
      %p74 = por %p72, %p73
      %s76 = sadd.s32 %s75, 1
      %p79 = scmp.eq.s32.totalorder %s20, 1
      %p80 = scmp.ne.s32.totalorder %s75, %s77
      %p81 = scmp.eq.s32.totalorder %s20, 0
      %p82 = por %p80, %p81
      %p83 = scmp.ne.s32.totalorder %s75, %s77
      %p84 = scmp.eq.s32.totalorder %s25, 1
      %p85 = por %p83, %p84
      %p86 = scmp.ne.s32.totalorder %s77, %s78
      %p87 = scmp.eq.s32.totalorder %s25, 0
      %p88 = por %p86, %p87
      %p89 = scmp.ne.s32.totalorder %s77, %s78
      %p90 = scmp.eq.s32.totalorder %s26, 1
      %p91 = por %p89, %p90
      %p93 = scmp.ne.s32.totalorder %s78, %s92
      %p94 = scmp.eq.s32.totalorder %s26, 0
      %p95 = por %p93, %p94
      %s97 = sadd.s32 %s96, 1
      %p100 = scmp.eq.s32.totalorder %s20, 1
      %p101 = scmp.ne.s32.totalorder %s96, %s98
      %p102 = scmp.eq.s32.totalorder %s20, 0
      %p103 = por %p101, %p102
      %p104 = scmp.ne.s32.totalorder %s96, %s98
      %p105 = scmp.eq.s32.totalorder %s25, 1
      %p106 = por %p104, %p105
      %p107 = scmp.ne.s32.totalorder %s98, %s99
      %p108 = scmp.eq.s32.totalorder %s25, 0
      %p109 = por %p107, %p108
      %p110 = scmp.ne.s32.totalorder %s98, %s99
      %p111 = scmp.eq.s32.totalorder %s26, 1
      %p112 = por %p110, %p111
      %p114 = scmp.ne.s32.totalorder %s99, %s113
      %p115 = scmp.eq.s32.totalorder %s26, 0
      %p116 = por %p114, %p115
      %s118 = sadd.s32 %s117, 1
      %p121 = scmp.eq.s32.totalorder %s20, 1
      %p122 = scmp.ne.s32.totalorder %s117, %s119
      %p123 = scmp.eq.s32.totalorder %s20, 0
      %p124 = por %p122, %p123
      %p125 = scmp.ne.s32.totalorder %s117, %s119
      %p126 = scmp.eq.s32.totalorder %s25, 1
      %p127 = por %p125, %p126
      %p128 = scmp.ne.s32.totalorder %s119, %s120
      %p129 = scmp.eq.s32.totalorder %s25, 0
      %p130 = por %p128, %p129
      %p131 = scmp.ne.s32.totalorder %s119, %s120
      %p132 = scmp.eq.s32.totalorder %s26, 1
      %p133 = por %p131, %p132
      %p135 = scmp.ne.s32.totalorder %s120, %s134
      %p136 = scmp.eq.s32.totalorder %s26, 0
      %p137 = por %p135, %p136
      %s139 = sadd.s32 %s138, 1
      %p142 = scmp.eq.s32.totalorder %s20, 1
      %p143 = scmp.ne.s32.totalorder %s138, %s140
      %p144 = scmp.eq.s32.totalorder %s20, 0
      %p145 = por %p143, %p144
      %p146 = scmp.ne.s32.totalorder %s138, %s140
      %p147 = scmp.eq.s32.totalorder %s25, 1
      %p148 = por %p146, %p147
      %p149 = scmp.ne.s32.totalorder %s140, %s141
      %p150 = scmp.eq.s32.totalorder %s25, 0
      %p151 = por %p149, %p150
      %p152 = scmp.ne.s32.totalorder %s140, %s141
      %p153 = scmp.eq.s32.totalorder %s26, 1
      %p154 = por %p152, %p153
      %p156 = scmp.ne.s32.totalorder %s141, %s155
      %p157 = scmp.eq.s32.totalorder %s26, 0
      %p158 = por %p156, %p157
      %s159 = ssub.s32 %s20, %s27
      %p160 = scmp.eq.s32.totalorder %s159, 0
      %s162 = sadd.s32 %s161, 1
      %s163 = scalar_select %p160, %s161, %s162
      %p166 = pneg %p160
      %p167 = scmp.eq.s32.totalorder %s20, 1
      %p168 = por %p166, %p167
      %p169 = scmp.ne.s32.totalorder %s161, %s164
      %p170 = scmp.eq.s32.totalorder %s20, 0
      %p171 = por %p169, %p170
      %p172 = scmp.ne.s32.totalorder %s161, %s164
      %p173 = scmp.eq.s32.totalorder %s25, 1
      %p174 = por %p172, %p173
      %p175 = scmp.ne.s32.totalorder %s164, %s165
      %p176 = scmp.eq.s32.totalorder %s25, 0
      %p177 = por %p175, %p176
      %p178 = scmp.ne.s32.totalorder %s164, %s165
      %p179 = scmp.eq.s32.totalorder %s26, 1
      %p180 = por %p178, %p179
      %p182 = scmp.ne.s32.totalorder %s165, %s181
      %p183 = scmp.eq.s32.totalorder %s26, 0
      %p184 = por %p182, %p183
      %p185 = scmp.le.s32.totalorder 1, %s20
      %p186 = scmp.lt.s32.totalorder %s20, 3
      %p187 = pnand %p185, %p186
      %p188 = pneg %p187
      // Predicated region
      $region9: #{tpu_custom_call.1} parent=5 // pred_check
        _
      $region10: #{tpu_custom_call.1} parent=5 // pred_check_branch
        %190 = sbr.rel (%p187) target = $region12
      $region11: #{tpu_custom_call.1} parent=5 // pred_region
        %s191 = ssub.s32 %s20, 1
        // Predicated region
        $region13: #{tpu_custom_call.1} parent=11 // pred_check
          %p192 = pneg %p67
        $region14: #{tpu_custom_call.1} parent=11 // pred_check_branch
          %194 = sbr.rel (%p192) target = $region16
        $region15: #{tpu_custom_call.1} parent=11 // pred_region
          %s196 = ssub.s32 512, 512
          %197 = vsyncadd [#allocation7], %s196
          %s198 = sshll.u32 [#allocation6], 4
          %s199 = int_to_ptr.vmem [resolvable:$true] %s198
          %204 = dma.hbm_to_vmem [thread:$0]  %s1, 512, %s199, [#allocation7], 128, 128, 8
        $region16: #{tpu_custom_call.1} parent=11 // pred_fallthru
          _
        // Predicated region
        $region17: #{tpu_custom_call.1} parent=11 // pred_check
          %p205 = pneg %p88
        $region18: #{tpu_custom_call.1} parent=11 // pred_check_branch
          %207 = sbr.rel (%p205) target = $region20
        $region19: #{tpu_custom_call.1} parent=11 // pred_region
          _
        $region20: #{tpu_custom_call.1} parent=11 // pred_fallthru
          _
        // Predicated region
        $region21: #{tpu_custom_call.1} parent=11 // pred_check
          %p208 = pneg %p109
        $region22: #{tpu_custom_call.1} parent=11 // pred_check_branch
          %210 = sbr.rel (%p208) target = $region24
        $region23: #{tpu_custom_call.1} parent=11 // pred_region
          %s212 = ssub.s32 512, 512
          %213 = vsyncadd [#allocation7], %s212
          %s214 = sshll.u32 [#allocation8], 4
          %s215 = int_to_ptr.vmem [resolvable:$true] %s214
          %220 = dma.hbm_to_vmem [thread:$0]  %s3, 512, %s215, [#allocation7], 128, 128, 8
        $region24: #{tpu_custom_call.1} parent=11 // pred_fallthru
          _
        // Predicated region
        $region25: #{tpu_custom_call.1} parent=11 // pred_check
          %p221 = pneg %p130
        $region26: #{tpu_custom_call.1} parent=11 // pred_check_branch
          %223 = sbr.rel (%p221) target = $region28
        $region27: #{tpu_custom_call.1} parent=11 // pred_region
          _
        $region28: #{tpu_custom_call.1} parent=11 // pred_fallthru
          _
        // Predicated region
        $region29: #{tpu_custom_call.1} parent=11 // pred_check
          %p224 = pneg %p151
        $region30: #{tpu_custom_call.1} parent=11 // pred_check_branch
          %226 = sbr.rel (%p224) target = $region32
        $region31: #{tpu_custom_call.1} parent=11 // pred_region
          %s228 = ssub.s32 4096, 4096
          %229 = vsyncadd [#allocation10], %s228
          %s230 = sshll.u32 [#allocation9], 4
          %s231 = int_to_ptr.vmem [resolvable:$true] %s230
          %236 = dma.hbm_to_vmem [thread:$0]  %s5, 4096, %s231, [#allocation10], 128, 128, 8
        $region32: #{tpu_custom_call.1} parent=11 // pred_fallthru
          _
      $region12: #{tpu_custom_call.1} parent=5 // pred_fallthru
        _
      %p237 = scmp.lt.s32.totalorder %s20, 2
      // Predicated region
      $region33: #{tpu_custom_call.1} parent=5 // pred_check
        %p238 = pneg %p237
      $region34: #{tpu_custom_call.1} parent=5 // pred_check_branch
        %240 = sbr.rel (%p238) target = $region36
      $region35: #{tpu_custom_call.1} parent=5 // pred_region
        // Predicated region
        $region37: #{tpu_custom_call.1} parent=35 // pred_check
          %p241 = pneg %p40
        $region38: #{tpu_custom_call.1} parent=35 // pred_check_branch
          %243 = sbr.rel (%p241) target = $region40
        $region39: #{tpu_custom_call.1} parent=35 // pred_region
          %s244 = sand.u32 %s30, 1
          %s245 = scalar_lea.sflag [#allocation4], %s244
          %s246 = sand.u32 %s30, 1
          %s247 = smul.addr %s246, 64
          %s248 = scalar_lea.vmem [#allocation3], %s247
          %s249 = smul.u32 4, %s20
          %s251 = ssub.s32 1024, 1024
          %252 = vsyncadd %s245, %s251
          %s253 = smul.addr %s249, 2
          %s254 = smul.addr %s253, 128
          %s255 = scalar_lea.hbm %s0, %s254
          %s256 = sshll.u32 %s248, 4
          %s257 = int_to_ptr.vmem [resolvable:$true] %s256
          %262 = dma.hbm_to_vmem [thread:$0]  %s255, 1024, %s257, %s245, 128, 128, 8
        $region40: #{tpu_custom_call.1} parent=35 // pred_fallthru
          _
      $region36: #{tpu_custom_call.1} parent=5 // pred_fallthru
        _
      %p263 = scmp.le.s32.totalorder 1, %s20
      %p264 = scmp.lt.s32.totalorder %s20, 3
      %p265 = pnand %p263, %p264
      %p266 = pneg %p265
      // Predicated region
      $region41: #{tpu_custom_call.1} parent=5 // pred_check
        _
      $region42: #{tpu_custom_call.1} parent=5 // pred_check_branch
        %268 = sbr.rel (%p265) target = $region44
      $region43: #{tpu_custom_call.1} parent=5 // pred_region
        %s269 = ssub.s32 %s20, 1
        %s270 = sand.u32 %s33, 1
        %s271 = scalar_lea.sflag [#allocation4], %s270
        %s272 = sand.u32 %s33, 1
        %s273 = smul.addr %s272, 64
        %s274 = scalar_lea.vmem [#allocation3], %s273
        // Predicated region
        $region45: #{tpu_custom_call.1} parent=43 // pred_check
          %p275 = pneg %p46
        $region46: #{tpu_custom_call.1} parent=43 // pred_check_branch
          %277 = sbr.rel (%p275) target = $region48
        $region47: #{tpu_custom_call.1} parent=43 // pred_region
          %278 = dma.done %s271, 1024
        $region48: #{tpu_custom_call.1} parent=43 // pred_fallthru
          _
        // Predicated region
        $region49: #{tpu_custom_call.1} parent=43 // pred_check
          %p279 = pneg %p67
        $region50: #{tpu_custom_call.1} parent=43 // pred_check_branch
          %281 = sbr.rel (%p279) target = $region52
        $region51: #{tpu_custom_call.1} parent=43 // pred_region
          %282 = dma.done [#allocation7], 512
        $region52: #{tpu_custom_call.1} parent=43 // pred_fallthru
          _
        // Predicated region
        $region53: #{tpu_custom_call.1} parent=43 // pred_check
          %p283 = pneg %p109
        $region54: #{tpu_custom_call.1} parent=43 // pred_check_branch
          %285 = sbr.rel (%p283) target = $region56
        $region55: #{tpu_custom_call.1} parent=43 // pred_region
          %286 = dma.done [#allocation7], 512
        $region56: #{tpu_custom_call.1} parent=43 // pred_fallthru
          _
        // Predicated region
        $region57: #{tpu_custom_call.1} parent=43 // pred_check
          %p287 = pneg %p151
        $region58: #{tpu_custom_call.1} parent=43 // pred_check_branch
          %289 = sbr.rel (%p287) target = $region60
        $region59: #{tpu_custom_call.1} parent=43 // pred_region
          %290 = dma.done [#allocation10], 4096
        $region60: #{tpu_custom_call.1} parent=43 // pred_fallthru
          _
        %s291 = sand.u32 %s33, 1
        %s292 = scalar_lea.sflag [#allocation4], %s291
        %s293 = sand.u32 %s33, 1
        %s294 = smul.addr %s293, 64
        %s295 = scalar_lea.vmem [#allocation3], %s294
        %p296 = pneg %p46
        %p297 = pneg %p43
        %p298 = pneg %p67
        %p299 = pneg %p64
        %p300 = pneg %p88
        %p301 = pneg %p85
        %p302 = pneg %p109
        %p303 = pneg %p106
        %p304 = pneg %p130
        %p305 = pneg %p127
        %p306 = pneg %p151
        %p307 = pneg %p148
        %p308 = pneg %p177
        %p309 = pneg %p174
        %s310 = sand.u32 %s164, 1
        %s311 = scalar_lea.sflag [#allocation5], %s310
        %s312 = sand.u32 %s164, 1
        %s313 = smul.addr %s312, 64
        %s314 = scalar_lea.vmem [#allocation11], %s313
        %s315 = smul.u32 4, %s25
        %s316 = smul.u32 4, %s25
        %v317 = vld [vmem:[%s274] sm:$0xff]
        %v318 = vld [vmem:[%s274 + $0x8] sm:$0xff]
        %v319 = vld [vmem:[%s274 + $0x10] sm:$0xff]
        %v320 = vld [vmem:[%s274 + $0x18] sm:$0xff]
        %v321 = vld [vmem:[%s274 + $0x20] sm:$0xff]
        %v322 = vld [vmem:[%s274 + $0x28] sm:$0xff]
        %v323 = vld [vmem:[%s274 + $0x30] sm:$0xff]
        %v324 = vld [vmem:[%s274 + $0x38] sm:$0xff]
        %v325 = vld [vmem:[#allocation6] sm:$0xff]
        %v326 = vld [vmem:[#allocation6 + $0x8] sm:$0xff]
        %v327 = vld [vmem:[#allocation6 + $0x10] sm:$0xff]
        %v328 = vld [vmem:[#allocation6 + $0x18] sm:$0xff]
        %v329 = vld [vmem:[%s2] sm:$0x1]
        %v331 = vlaneseq
        %v332 = vshrl.u32 %v331, 7
        %v333 = vsub.s32 0, %v332
        %v334 = vrot.slane %v329, %v333
        %vm336 = vcmask 261120
        %v338 = vsel %vm336, %v317, 0
        %v341 = vsel %vm336, %v318, 0
        %v344 = vsel %vm336, %v319, 0
        %v347 = vsel %vm336, %v320, 0
        %v350 = vsel %vm336, %v321, 0
        %v353 = vsel %vm336, %v322, 0
        %v356 = vsel %vm336, %v323, 0
        %v359 = vsel %vm336, %v324, 0
        %361 = vmatprep.subr.mxu0 0.0
        %362 = vmatpush1.msra.mxu0 %v325
        %363 = vmatprep.subr.mxu0 0.0
        %364 = vmatpush1.msra.mxu0 %v326
        %365 = vmatprep.subr.mxu0 0.0
        %366 = vmatpush1.msra.mxu0 %v327
        %367 = vmatprep.subr.mxu0 0.0
        %368 = vmatpush1.msra.mxu0 %v328
        %369 = vmatprep.subr.mxu0 0.0
        %370 = vmatpush1.msra.mxu0 0.0
        %371 = vmatprep.subr.mxu0 0.0
        %372 = vmatpush1.msra.mxu0 0.0
        %373 = vmatprep.subr.mxu0 0.0
        %374 = vmatpush1.msra.mxu0 0.0
        %375 = vmatprep.subr.mxu0 0.0
        %376 = vmatpush1.msra.mxu0 0.0
        %377 = vmatprep.subr.mxu0 0.0
        %378 = vmatpush1.msra.mxu0 0.0
        %379 = vmatprep.subr.mxu0 0.0
        %380 = vmatpush1.msra.mxu0 0.0
        %381 = vmatprep.subr.mxu0 0.0
        %382 = vmatpush1.msra.mxu0 0.0
        %383 = vmatprep.subr.mxu0 0.0
        %384 = vmatpush1.msra.mxu0 0.0
        %385 = vmatprep.subr.mxu0 0.0
        %386 = vmatpush1.msra.mxu0 0.0
        %387 = vmatprep.subr.mxu0 0.0
        %388 = vmatpush1.msra.mxu0 0.0
        %389 = vmatprep.subr.mxu0 0.0
        %390 = vmatpush1.msra.mxu0 0.0
        %391 = vmatprep.subr.mxu0 0.0
        %392 = vmatpush1.msra.mxu0 0.0
        %393 = vmatprep.subr.mxu0 0.0
        %394 = vmatpush1.msra.mxu0 0.0
        %395 = vmatprep.subr.mxu0 0.0
        %396 = vmatpush1.msra.mxu0 0.0
        %397 = vmatprep.subr.mxu0 0.0
        %398 = vmatpush1.msra.mxu0 0.0
        %399 = vmatprep.subr.mxu0 0.0
        %400 = vmatpush1.msra.mxu0 0.0
        %401 = vmatprep.subr.mxu0 0.0
        %402 = vmatpush1.msra.mxu0 0.0
        %403 = vmatprep.subr.mxu0 0.0
        %404 = vmatpush1.msra.mxu0 0.0
        %405 = vmatprep.subr.mxu0 0.0
        %406 = vmatpush1.msra.mxu0 0.0
        %407 = vmatprep.subr.mxu0 0.0
        %408 = vmatpush1.msra.mxu0 0.0
        %409 = vmatprep.subr.mxu0 0.0
        %410 = vmatpush1.msra.mxu0 0.0
        %411 = vmatprep.subr.mxu0 0.0
        %412 = vmatpush1.msra.mxu0 0.0
        %413 = vmatprep.subr.mxu0 0.0
        %414 = vmatpush1.msra.mxu0 0.0
        %415 = vmatprep.subr.mxu0 0.0
        %416 = vmatpush1.msra.mxu0 0.0
        %417 = vmatprep.subr.mxu0 0.0
        %418 = vmatpush1.msra.mxu0 0.0
        %419 = vmatprep.subr.mxu0 0.0
        %420 = vmatpush1.msra.mxu0 0.0
        %421 = vmatprep.subr.mxu0 0.0
        %422 = vmatpush1.msra.mxu0 0.0
        %423 = vmatprep.subr.mxu0 0.0
        %424 = vmatpush1.msra.mxu0 0.0
        %425 = vmatprep.mubr.f32.mxu0 0.0
        %426 = vmatmul.mubr.f32.gmra.mrb[0].mxu0 %v338
        %v427 = vpop.f32.mrb[0].mxu0
        %v428 = vadd.f32 %v334, %v427
        %v429 = vpop.f32.mrb[0].mxu0
        %430 = vmatprep.mubr.f32.mxu0 0.0
        %431 = vmatmul.mubr.f32.gmra.mrb[0].mxu0 %v341
        %v432 = vpop.f32.mrb[0].mxu0
        %v433 = vadd.f32 %v334, %v432
        %v434 = vpop.f32.mrb[0].mxu0
        %435 = vmatprep.mubr.f32.mxu0 0.0
        %436 = vmatmul.mubr.f32.gmra.mrb[0].mxu0 %v344
        %v437 = vpop.f32.mrb[0].mxu0
        %v438 = vadd.f32 %v334, %v437
        %v439 = vpop.f32.mrb[0].mxu0
        %440 = vmatprep.mubr.f32.mxu0 0.0
        %441 = vmatmul.mubr.f32.gmra.mrb[0].mxu0 %v347
        %v442 = vpop.f32.mrb[0].mxu0
        %v443 = vadd.f32 %v334, %v442
        %v444 = vpop.f32.mrb[0].mxu0
        %445 = vmatprep.mubr.f32.mxu0 0.0
        %446 = vmatmul.mubr.f32.gmra.mrb[0].mxu0 %v350
        %v447 = vpop.f32.mrb[0].mxu0
        %v448 = vadd.f32 %v334, %v447
        %v449 = vpop.f32.mrb[0].mxu0
        %450 = vmatprep.mubr.f32.mxu0 0.0
        %451 = vmatmul.mubr.f32.gmra.mrb[0].mxu0 %v353
        %v452 = vpop.f32.mrb[0].mxu0
        %v453 = vadd.f32 %v334, %v452
        %v454 = vpop.f32.mrb[0].mxu0
        %455 = vmatprep.mubr.f32.mxu0 0.0
        %456 = vmatmul.mubr.f32.gmra.mrb[0].mxu0 %v356
        %v457 = vpop.f32.mrb[0].mxu0
        %v458 = vadd.f32 %v334, %v457
        %v459 = vpop.f32.mrb[0].mxu0
        %460 = vmatprep.mubr.f32.mxu0 0.0
        %461 = vmatmul.mubr.f32.gmra.mrb[0].mxu0 %v359
        %v462 = vpop.f32.mrb[0].mxu0
        %v463 = vadd.f32 %v334, %v462
        %v464 = vpop.f32.mrb[0].mxu0
        %465 = vdwg.mxu0
        %474 = vrot.lane.b32.xlu0 %v428, 120
        %v475 = vpop.permute.xlu0 %474
        %476 = vrot.lane.b32.xlu0 %v433, 120
        %v477 = vpop.permute.xlu0 %476
        %478 = vrot.lane.b32.xlu0 %v438, 120
        %v479 = vpop.permute.xlu0 %478
        %480 = vrot.lane.b32.xlu0 %v443, 120
        %v481 = vpop.permute.xlu0 %480
        %482 = vrot.lane.b32.xlu0 %v448, 120
        %v483 = vpop.permute.xlu0 %482
        %484 = vrot.lane.b32.xlu0 %v453, 120
        %v485 = vpop.permute.xlu0 %484
        %486 = vrot.lane.b32.xlu0 %v458, 120
        %v487 = vpop.permute.xlu0 %486
        %488 = vrot.lane.b32.xlu0 %v463, 120
        %v489 = vpop.permute.xlu0 %488
        %490 = vrot.lane.b32.xlu0 %v428, 112
        %v491 = vpop.permute.xlu0 %490
        %492 = vrot.lane.b32.xlu0 %v433, 112
        %v493 = vpop.permute.xlu0 %492
        %494 = vrot.lane.b32.xlu0 %v438, 112
        %v495 = vpop.permute.xlu0 %494
        %496 = vrot.lane.b32.xlu0 %v443, 112
        %v497 = vpop.permute.xlu0 %496
        %498 = vrot.lane.b32.xlu0 %v448, 112
        %v499 = vpop.permute.xlu0 %498
        %500 = vrot.lane.b32.xlu0 %v453, 112
        %v501 = vpop.permute.xlu0 %500
        %502 = vrot.lane.b32.xlu0 %v458, 112
        %v503 = vpop.permute.xlu0 %502
        %504 = vrot.lane.b32.xlu0 %v463, 112
        %v505 = vpop.permute.xlu0 %504
        %506 = vrot.lane.b32.xlu0 %v428, 104
        %v507 = vpop.permute.xlu0 %506
        %508 = vrot.lane.b32.xlu0 %v433, 104
        %v509 = vpop.permute.xlu0 %508
        %510 = vrot.lane.b32.xlu0 %v438, 104
        %v511 = vpop.permute.xlu0 %510
        %512 = vrot.lane.b32.xlu0 %v443, 104
        %v513 = vpop.permute.xlu0 %512
        %514 = vrot.lane.b32.xlu0 %v448, 104
        %v515 = vpop.permute.xlu0 %514
        %516 = vrot.lane.b32.xlu0 %v453, 104
        %v517 = vpop.permute.xlu0 %516
        %518 = vrot.lane.b32.xlu0 %v458, 104
        %v519 = vpop.permute.xlu0 %518
        %520 = vrot.lane.b32.xlu0 %v463, 104
        %v521 = vpop.permute.xlu0 %520
        %522 = vrot.lane.b32.xlu0 %v428, 96
        %v523 = vpop.permute.xlu0 %522
        %524 = vrot.lane.b32.xlu0 %v433, 96
        %v525 = vpop.permute.xlu0 %524
        %vm526 = vcmask 64512
        %v527 = vsel %vm526, %v428, 0
        %v529 = vsel %vm526, %v433, 0
        %v531 = vsel %vm526, %v523, 0
        %v533 = vsel %vm526, %v525, 0
        %535 = vmatprep.subr.mxu0 0.0
        %536 = vmatpush1.xpose.msra.mxu0 %v531
        %537 = vmatprep.subr.mxu0 0.0
        %538 = vmatpush1.xpose.msra.mxu0 %v533
        %539 = vmatprep.subr.mxu0 0.0
        %540 = vmatpush1.xpose.msra.mxu0 0.0
        %541 = vmatprep.subr.mxu0 0.0
        %542 = vmatpush1.xpose.msra.mxu0 0.0
        %543 = vmatprep.subr.mxu0 0.0
        %544 = vmatpush1.xpose.msra.mxu0 0.0
        %545 = vmatprep.subr.mxu0 0.0
        %546 = vmatpush1.xpose.msra.mxu0 0.0
        %547 = vmatprep.subr.mxu0 0.0
        %548 = vmatpush1.xpose.msra.mxu0 0.0
        %549 = vmatprep.subr.mxu0 0.0
        %550 = vmatpush1.xpose.msra.mxu0 0.0
        %551 = vmatprep.subr.mxu0 0.0
        %552 = vmatpush1.xpose.msra.mxu0 0.0
        %553 = vmatprep.subr.mxu0 0.0
        %554 = vmatpush1.xpose.msra.mxu0 0.0
        %555 = vmatprep.subr.mxu0 0.0
        %556 = vmatpush1.xpose.msra.mxu0 0.0
        %557 = vmatprep.subr.mxu0 0.0
        %558 = vmatpush1.xpose.msra.mxu0 0.0
        %559 = vmatprep.subr.mxu0 0.0
        %560 = vmatpush1.xpose.msra.mxu0 0.0
        %561 = vmatprep.subr.mxu0 0.0
        %562 = vmatpush1.xpose.msra.mxu0 0.0
        %563 = vmatprep.subr.mxu0 0.0
        %564 = vmatpush1.xpose.msra.mxu0 0.0
        %565 = vmatprep.subr.mxu0 0.0
        %566 = vmatpush1.xpose.msra.mxu0 0.0
        %567 = vmatprep.subr.mxu0 0.0
        %568 = vmatpush1.xpose.msra.mxu0 0.0
        %569 = vmatprep.subr.mxu0 0.0
        %570 = vmatpush1.xpose.msra.mxu0 0.0
        %571 = vmatprep.subr.mxu0 0.0
        %572 = vmatpush1.xpose.msra.mxu0 0.0
        %573 = vmatprep.subr.mxu0 0.0
        %574 = vmatpush1.xpose.msra.mxu0 0.0
        %575 = vmatprep.subr.mxu0 0.0
        %576 = vmatpush1.xpose.msra.mxu0 0.0
        %577 = vmatprep.subr.mxu0 0.0
        %578 = vmatpush1.xpose.msra.mxu0 0.0
        %579 = vmatprep.subr.mxu0 0.0
        %580 = vmatpush1.xpose.msra.mxu0 0.0
        %581 = vmatprep.subr.mxu0 0.0
        %582 = vmatpush1.xpose.msra.mxu0 0.0
        %583 = vmatprep.subr.mxu0 0.0
        %584 = vmatpush1.xpose.msra.mxu0 0.0
        %585 = vmatprep.subr.mxu0 0.0
        %586 = vmatpush1.xpose.msra.mxu0 0.0
        %587 = vmatprep.subr.mxu0 0.0
        %588 = vmatpush1.xpose.msra.mxu0 0.0
        %589 = vmatprep.subr.mxu0 0.0
        %590 = vmatpush1.xpose.msra.mxu0 0.0
        %591 = vmatprep.subr.mxu0 0.0
        %592 = vmatpush1.xpose.msra.mxu0 0.0
        %593 = vmatprep.subr.mxu0 0.0
        %594 = vmatpush1.xpose.msra.mxu0 0.0
        %595 = vmatprep.subr.mxu0 0.0
        %596 = vmatpush1.xpose.msra.mxu0 0.0
        %597 = vmatprep.subr.mxu0 0.0
        %598 = vmatpush1.xpose.msra.mxu0 0.0
        %599 = vmatprep.mubr.f32.mxu0 0.0
        %600 = vmatmul.mubr.f32.gmra.mrb[0].mxu0 %v527
        %v601 = vpop.f32.mrb[0].mxu0
        %v602 = vadd.f32 0.0, %v601
        %v603 = vpop.f32.mrb[0].mxu0
        %604 = vmatprep.mubr.f32.mxu0 0.0
        %605 = vmatmul.mubr.f32.gmra.mrb[0].mxu0 %v529
        %v606 = vpop.f32.mrb[0].mxu0
        %v607 = vadd.f32 0.0, %v606
        %v608 = vpop.f32.mrb[0].mxu0
        %609 = vdwg.mxu0
        %610 = vrot.lane.b32.xlu0 %v475, 96
        %v611 = vpop.permute.xlu0 %610
        %612 = vrot.lane.b32.xlu0 %v477, 96
        %v613 = vpop.permute.xlu0 %612
        %v614 = vsel %vm526, %v475, 0
        %v616 = vsel %vm526, %v477, 0
        %v618 = vsel %vm526, %v611, 0
        %v620 = vsel %vm526, %v613, 0
        %622 = vmatprep.subr.mxu0 0.0
        %623 = vmatpush1.xpose.msra.mxu0 %v618
        %624 = vmatprep.subr.mxu0 0.0
        %625 = vmatpush1.xpose.msra.mxu0 %v620
        %626 = vmatprep.subr.mxu0 0.0
        %627 = vmatpush1.xpose.msra.mxu0 0.0
        %628 = vmatprep.subr.mxu0 0.0
        %629 = vmatpush1.xpose.msra.mxu0 0.0
        %630 = vmatprep.subr.mxu0 0.0
        %631 = vmatpush1.xpose.msra.mxu0 0.0
        %632 = vmatprep.subr.mxu0 0.0
        %633 = vmatpush1.xpose.msra.mxu0 0.0
        %634 = vmatprep.subr.mxu0 0.0
        %635 = vmatpush1.xpose.msra.mxu0 0.0
        %636 = vmatprep.subr.mxu0 0.0
        %637 = vmatpush1.xpose.msra.mxu0 0.0
        %638 = vmatprep.subr.mxu0 0.0
        %639 = vmatpush1.xpose.msra.mxu0 0.0
        %640 = vmatprep.subr.mxu0 0.0
        %641 = vmatpush1.xpose.msra.mxu0 0.0
        %642 = vmatprep.subr.mxu0 0.0
        %643 = vmatpush1.xpose.msra.mxu0 0.0
        %644 = vmatprep.subr.mxu0 0.0
        %645 = vmatpush1.xpose.msra.mxu0 0.0
        %646 = vmatprep.subr.mxu0 0.0
        %647 = vmatpush1.xpose.msra.mxu0 0.0
        %648 = vmatprep.subr.mxu0 0.0
        %649 = vmatpush1.xpose.msra.mxu0 0.0
        %650 = vmatprep.subr.mxu0 0.0
        %651 = vmatpush1.xpose.msra.mxu0 0.0
        %652 = vmatprep.subr.mxu0 0.0
        %653 = vmatpush1.xpose.msra.mxu0 0.0
        %654 = vmatprep.subr.mxu0 0.0
        %655 = vmatpush1.xpose.msra.mxu0 0.0
        %656 = vmatprep.subr.mxu0 0.0
        %657 = vmatpush1.xpose.msra.mxu0 0.0
        %658 = vmatprep.subr.mxu0 0.0
        %659 = vmatpush1.xpose.msra.mxu0 0.0
        %660 = vmatprep.subr.mxu0 0.0
        %661 = vmatpush1.xpose.msra.mxu0 0.0
        %662 = vmatprep.subr.mxu0 0.0
        %663 = vmatpush1.xpose.msra.mxu0 0.0
        %664 = vmatprep.subr.mxu0 0.0
        %665 = vmatpush1.xpose.msra.mxu0 0.0
        %666 = vmatprep.subr.mxu0 0.0
        %667 = vmatpush1.xpose.msra.mxu0 0.0
        %668 = vmatprep.subr.mxu0 0.0
        %669 = vmatpush1.xpose.msra.mxu0 0.0
        %670 = vmatprep.subr.mxu0 0.0
        %671 = vmatpush1.xpose.msra.mxu0 0.0
        %672 = vmatprep.subr.mxu0 0.0
        %673 = vmatpush1.xpose.msra.mxu0 0.0
        %674 = vmatprep.subr.mxu0 0.0
        %675 = vmatpush1.xpose.msra.mxu0 0.0
        %676 = vmatprep.subr.mxu0 0.0
        %677 = vmatpush1.xpose.msra.mxu0 0.0
        %678 = vmatprep.subr.mxu0 0.0
        %679 = vmatpush1.xpose.msra.mxu0 0.0
        %680 = vmatprep.subr.mxu0 0.0
        %681 = vmatpush1.xpose.msra.mxu0 0.0
        %682 = vmatprep.subr.mxu0 0.0
        %683 = vmatpush1.xpose.msra.mxu0 0.0
        %684 = vmatprep.subr.mxu0 0.0
        %685 = vmatpush1.xpose.msra.mxu0 0.0
        %686 = vmatprep.mubr.f32.mxu0 0.0
        %687 = vmatmul.mubr.f32.gmra.mrb[0].mxu0 %v614
        %v688 = vpop.f32.mrb[0].mxu0
        %v689 = vadd.f32 0.0, %v688
        %v690 = vpop.f32.mrb[0].mxu0
        %691 = vmatprep.mubr.f32.mxu0 0.0
        %692 = vmatmul.mubr.f32.gmra.mrb[0].mxu0 %v616
        %v693 = vpop.f32.mrb[0].mxu0
        %v694 = vadd.f32 0.0, %v693
        %v695 = vpop.f32.mrb[0].mxu0
        %696 = vdwg.mxu0
        %697 = vrot.lane.b32.xlu0 %v491, 96
        %v698 = vpop.permute.xlu0 %697
        %699 = vrot.lane.b32.xlu0 %v493, 96
        %v700 = vpop.permute.xlu0 %699
        %v701 = vsel %vm526, %v491, 0
        %v703 = vsel %vm526, %v493, 0
        %v705 = vsel %vm526, %v698, 0
        %v707 = vsel %vm526, %v700, 0
        %709 = vmatprep.subr.mxu0 0.0
        %710 = vmatpush1.xpose.msra.mxu0 %v705
        %711 = vmatprep.subr.mxu0 0.0
        %712 = vmatpush1.xpose.msra.mxu0 %v707
        %713 = vmatprep.subr.mxu0 0.0
        %714 = vmatpush1.xpose.msra.mxu0 0.0
        %715 = vmatprep.subr.mxu0 0.0
        %716 = vmatpush1.xpose.msra.mxu0 0.0
        %717 = vmatprep.subr.mxu0 0.0
        %718 = vmatpush1.xpose.msra.mxu0 0.0
        %719 = vmatprep.subr.mxu0 0.0
        %720 = vmatpush1.xpose.msra.mxu0 0.0
        %721 = vmatprep.subr.mxu0 0.0
        %722 = vmatpush1.xpose.msra.mxu0 0.0
        %723 = vmatprep.subr.mxu0 0.0
        %724 = vmatpush1.xpose.msra.mxu0 0.0
        %725 = vmatprep.subr.mxu0 0.0
        %726 = vmatpush1.xpose.msra.mxu0 0.0
        %727 = vmatprep.subr.mxu0 0.0
        %728 = vmatpush1.xpose.msra.mxu0 0.0
        %729 = vmatprep.subr.mxu0 0.0
        %730 = vmatpush1.xpose.msra.mxu0 0.0
        %731 = vmatprep.subr.mxu0 0.0
        %732 = vmatpush1.xpose.msra.mxu0 0.0
        %733 = vmatprep.subr.mxu0 0.0
        %734 = vmatpush1.xpose.msra.mxu0 0.0
        %735 = vmatprep.subr.mxu0 0.0
        %736 = vmatpush1.xpose.msra.mxu0 0.0
        %737 = vmatprep.subr.mxu0 0.0
        %738 = vmatpush1.xpose.msra.mxu0 0.0
        %739 = vmatprep.subr.mxu0 0.0
        %740 = vmatpush1.xpose.msra.mxu0 0.0
        %741 = vmatprep.subr.mxu0 0.0
        %742 = vmatpush1.xpose.msra.mxu0 0.0
        %743 = vmatprep.subr.mxu0 0.0
        %744 = vmatpush1.xpose.msra.mxu0 0.0
        %745 = vmatprep.subr.mxu0 0.0
        %746 = vmatpush1.xpose.msra.mxu0 0.0
        %747 = vmatprep.subr.mxu0 0.0
        %748 = vmatpush1.xpose.msra.mxu0 0.0
        %749 = vmatprep.subr.mxu0 0.0
        %750 = vmatpush1.xpose.msra.mxu0 0.0
        %751 = vmatprep.subr.mxu0 0.0
        %752 = vmatpush1.xpose.msra.mxu0 0.0
        %753 = vmatprep.subr.mxu0 0.0
        %754 = vmatpush1.xpose.msra.mxu0 0.0
        %755 = vmatprep.subr.mxu0 0.0
        %756 = vmatpush1.xpose.msra.mxu0 0.0
        %757 = vmatprep.subr.mxu0 0.0
        %758 = vmatpush1.xpose.msra.mxu0 0.0
        %759 = vmatprep.subr.mxu0 0.0
        %760 = vmatpush1.xpose.msra.mxu0 0.0
        %761 = vmatprep.subr.mxu0 0.0
        %762 = vmatpush1.xpose.msra.mxu0 0.0
        %763 = vmatprep.subr.mxu0 0.0
        %764 = vmatpush1.xpose.msra.mxu0 0.0
        %765 = vmatprep.subr.mxu0 0.0
        %766 = vmatpush1.xpose.msra.mxu0 0.0
        %767 = vmatprep.subr.mxu0 0.0
        %768 = vmatpush1.xpose.msra.mxu0 0.0
        %769 = vmatprep.subr.mxu0 0.0
        %770 = vmatpush1.xpose.msra.mxu0 0.0
        %771 = vmatprep.subr.mxu0 0.0
        %772 = vmatpush1.xpose.msra.mxu0 0.0
        %773 = vmatprep.mubr.f32.mxu0 0.0
        %774 = vmatmul.mubr.f32.gmra.mrb[0].mxu0 %v701
        %v775 = vpop.f32.mrb[0].mxu0
        %v776 = vadd.f32 0.0, %v775
        %v777 = vpop.f32.mrb[0].mxu0
        %778 = vmatprep.mubr.f32.mxu0 0.0
        %779 = vmatmul.mubr.f32.gmra.mrb[0].mxu0 %v703
        %v780 = vpop.f32.mrb[0].mxu0
        %v781 = vadd.f32 0.0, %v780
        %v782 = vpop.f32.mrb[0].mxu0
        %783 = vdwg.mxu0
        %784 = vrot.lane.b32.xlu0 %v507, 96
        %v785 = vpop.permute.xlu0 %784
        %786 = vrot.lane.b32.xlu0 %v509, 96
        %v787 = vpop.permute.xlu0 %786
        %v788 = vsel %vm526, %v507, 0
        %v790 = vsel %vm526, %v509, 0
        %v792 = vsel %vm526, %v785, 0
        %v794 = vsel %vm526, %v787, 0
        %796 = vmatprep.subr.mxu0 0.0
        %797 = vmatpush1.xpose.msra.mxu0 %v792
        %798 = vmatprep.subr.mxu0 0.0
        %799 = vmatpush1.xpose.msra.mxu0 %v794
        %800 = vmatprep.subr.mxu0 0.0
        %801 = vmatpush1.xpose.msra.mxu0 0.0
        %802 = vmatprep.subr.mxu0 0.0
        %803 = vmatpush1.xpose.msra.mxu0 0.0
        %804 = vmatprep.subr.mxu0 0.0
        %805 = vmatpush1.xpose.msra.mxu0 0.0
        %806 = vmatprep.subr.mxu0 0.0
        %807 = vmatpush1.xpose.msra.mxu0 0.0
        %808 = vmatprep.subr.mxu0 0.0
        %809 = vmatpush1.xpose.msra.mxu0 0.0
        %810 = vmatprep.subr.mxu0 0.0
        %811 = vmatpush1.xpose.msra.mxu0 0.0
        %812 = vmatprep.subr.mxu0 0.0
        %813 = vmatpush1.xpose.msra.mxu0 0.0
        %814 = vmatprep.subr.mxu0 0.0
        %815 = vmatpush1.xpose.msra.mxu0 0.0
        %816 = vmatprep.subr.mxu0 0.0
        %817 = vmatpush1.xpose.msra.mxu0 0.0
        %818 = vmatprep.subr.mxu0 0.0
        %819 = vmatpush1.xpose.msra.mxu0 0.0
        %820 = vmatprep.subr.mxu0 0.0
        %821 = vmatpush1.xpose.msra.mxu0 0.0
        %822 = vmatprep.subr.mxu0 0.0
        %823 = vmatpush1.xpose.msra.mxu0 0.0
        %824 = vmatprep.subr.mxu0 0.0
        %825 = vmatpush1.xpose.msra.mxu0 0.0
        %826 = vmatprep.subr.mxu0 0.0
        %827 = vmatpush1.xpose.msra.mxu0 0.0
        %828 = vmatprep.subr.mxu0 0.0
        %829 = vmatpush1.xpose.msra.mxu0 0.0
        %830 = vmatprep.subr.mxu0 0.0
        %831 = vmatpush1.xpose.msra.mxu0 0.0
        %832 = vmatprep.subr.mxu0 0.0
        %833 = vmatpush1.xpose.msra.mxu0 0.0
        %834 = vmatprep.subr.mxu0 0.0
        %835 = vmatpush1.xpose.msra.mxu0 0.0
        %836 = vmatprep.subr.mxu0 0.0
        %837 = vmatpush1.xpose.msra.mxu0 0.0
        %838 = vmatprep.subr.mxu0 0.0
        %839 = vmatpush1.xpose.msra.mxu0 0.0
        %840 = vmatprep.subr.mxu0 0.0
        %841 = vmatpush1.xpose.msra.mxu0 0.0
        %842 = vmatprep.subr.mxu0 0.0
        %843 = vmatpush1.xpose.msra.mxu0 0.0
        %844 = vmatprep.subr.mxu0 0.0
        %845 = vmatpush1.xpose.msra.mxu0 0.0
        %846 = vmatprep.subr.mxu0 0.0
        %847 = vmatpush1.xpose.msra.mxu0 0.0
        %848 = vmatprep.subr.mxu0 0.0
        %849 = vmatpush1.xpose.msra.mxu0 0.0
        %850 = vmatprep.subr.mxu0 0.0
        %851 = vmatpush1.xpose.msra.mxu0 0.0
        %852 = vmatprep.subr.mxu0 0.0
        %853 = vmatpush1.xpose.msra.mxu0 0.0
        %854 = vmatprep.subr.mxu0 0.0
        %855 = vmatpush1.xpose.msra.mxu0 0.0
        %856 = vmatprep.subr.mxu0 0.0
        %857 = vmatpush1.xpose.msra.mxu0 0.0
        %858 = vmatprep.subr.mxu0 0.0
        %859 = vmatpush1.xpose.msra.mxu0 0.0
        %860 = vmatprep.mubr.f32.mxu0 0.0
        %861 = vmatmul.mubr.f32.gmra.mrb[0].mxu0 %v788
        %v862 = vpop.f32.mrb[0].mxu0
        %v863 = vadd.f32 0.0, %v862
        %v864 = vpop.f32.mrb[0].mxu0
        %865 = vmatprep.mubr.f32.mxu0 0.0
        %866 = vmatmul.mubr.f32.gmra.mrb[0].mxu0 %v790
        %v867 = vpop.f32.mrb[0].mxu0
        %v868 = vadd.f32 0.0, %v867
        %v869 = vpop.f32.mrb[0].mxu0
        %870 = vdwg.mxu0
        %871 = vrot.lane.b32.xlu0 %v438, 96
        %v872 = vpop.permute.xlu0 %871
        %873 = vrot.lane.b32.xlu0 %v443, 96
        %v874 = vpop.permute.xlu0 %873
        %v875 = vsel %vm526, %v438, 0
        %v877 = vsel %vm526, %v443, 0
        %v879 = vsel %vm526, %v872, 0
        %v881 = vsel %vm526, %v874, 0
        %883 = vmatprep.subr.mxu0 0.0
        %884 = vmatpush1.xpose.msra.mxu0 %v879
        %885 = vmatprep.subr.mxu0 0.0
        %886 = vmatpush1.xpose.msra.mxu0 %v881
        %887 = vmatprep.subr.mxu0 0.0
        %888 = vmatpush1.xpose.msra.mxu0 0.0
        %889 = vmatprep.subr.mxu0 0.0
        %890 = vmatpush1.xpose.msra.mxu0 0.0
        %891 = vmatprep.subr.mxu0 0.0
        %892 = vmatpush1.xpose.msra.mxu0 0.0
        %893 = vmatprep.subr.mxu0 0.0
        %894 = vmatpush1.xpose.msra.mxu0 0.0
        %895 = vmatprep.subr.mxu0 0.0
        %896 = vmatpush1.xpose.msra.mxu0 0.0
        %897 = vmatprep.subr.mxu0 0.0
        %898 = vmatpush1.xpose.msra.mxu0 0.0
        %899 = vmatprep.subr.mxu0 0.0
        %900 = vmatpush1.xpose.msra.mxu0 0.0
        %901 = vmatprep.subr.mxu0 0.0
        %902 = vmatpush1.xpose.msra.mxu0 0.0
        %903 = vmatprep.subr.mxu0 0.0
        %904 = vmatpush1.xpose.msra.mxu0 0.0
        %905 = vmatprep.subr.mxu0 0.0
        %906 = vmatpush1.xpose.msra.mxu0 0.0
        %907 = vmatprep.subr.mxu0 0.0
        %908 = vmatpush1.xpose.msra.mxu0 0.0
        %909 = vmatprep.subr.mxu0 0.0
        %910 = vmatpush1.xpose.msra.mxu0 0.0
        %911 = vmatprep.subr.mxu0 0.0
        %912 = vmatpush1.xpose.msra.mxu0 0.0
        %913 = vmatprep.subr.mxu0 0.0
        %914 = vmatpush1.xpose.msra.mxu0 0.0
        %915 = vmatprep.subr.mxu0 0.0
        %916 = vmatpush1.xpose.msra.mxu0 0.0
        %917 = vmatprep.subr.mxu0 0.0
        %918 = vmatpush1.xpose.msra.mxu0 0.0
        %919 = vmatprep.subr.mxu0 0.0
        %920 = vmatpush1.xpose.msra.mxu0 0.0
        %921 = vmatprep.subr.mxu0 0.0
        %922 = vmatpush1.xpose.msra.mxu0 0.0
        %923 = vmatprep.subr.mxu0 0.0
        %924 = vmatpush1.xpose.msra.mxu0 0.0
        %925 = vmatprep.subr.mxu0 0.0
        %926 = vmatpush1.xpose.msra.mxu0 0.0
        %927 = vmatprep.subr.mxu0 0.0
        %928 = vmatpush1.xpose.msra.mxu0 0.0
        %929 = vmatprep.subr.mxu0 0.0
        %930 = vmatpush1.xpose.msra.mxu0 0.0
        %931 = vmatprep.subr.mxu0 0.0
        %932 = vmatpush1.xpose.msra.mxu0 0.0
        %933 = vmatprep.subr.mxu0 0.0
        %934 = vmatpush1.xpose.msra.mxu0 0.0
        %935 = vmatprep.subr.mxu0 0.0
        %936 = vmatpush1.xpose.msra.mxu0 0.0
        %937 = vmatprep.subr.mxu0 0.0
        %938 = vmatpush1.xpose.msra.mxu0 0.0
        %939 = vmatprep.subr.mxu0 0.0
        %940 = vmatpush1.xpose.msra.mxu0 0.0
        %941 = vmatprep.subr.mxu0 0.0
        %942 = vmatpush1.xpose.msra.mxu0 0.0
        %943 = vmatprep.subr.mxu0 0.0
        %944 = vmatpush1.xpose.msra.mxu0 0.0
        %945 = vmatprep.subr.mxu0 0.0
        %946 = vmatpush1.xpose.msra.mxu0 0.0
        %947 = vmatprep.mubr.f32.mxu0 0.0
        %948 = vmatmul.mubr.f32.gmra.mrb[0].mxu0 %v875
        %v949 = vpop.f32.mrb[0].mxu0
        %v950 = vadd.f32 0.0, %v949
        %v951 = vpop.f32.mrb[0].mxu0
        %952 = vmatprep.mubr.f32.mxu0 0.0
        %953 = vmatmul.mubr.f32.gmra.mrb[0].mxu0 %v877
        %v954 = vpop.f32.mrb[0].mxu0
        %v955 = vadd.f32 0.0, %v954
        %v956 = vpop.f32.mrb[0].mxu0
        %957 = vdwg.mxu0
        %958 = vrot.lane.b32.xlu0 %v479, 96
        %v959 = vpop.permute.xlu0 %958
        %960 = vrot.lane.b32.xlu0 %v481, 96
        %v961 = vpop.permute.xlu0 %960
        %v962 = vsel %vm526, %v479, 0
        %v964 = vsel %vm526, %v481, 0
        %v966 = vsel %vm526, %v959, 0
        %v968 = vsel %vm526, %v961, 0
        %970 = vmatprep.subr.mxu0 0.0
        %971 = vmatpush1.xpose.msra.mxu0 %v966
        %972 = vmatprep.subr.mxu0 0.0
        %973 = vmatpush1.xpose.msra.mxu0 %v968
        %974 = vmatprep.subr.mxu0 0.0
        %975 = vmatpush1.xpose.msra.mxu0 0.0
        %976 = vmatprep.subr.mxu0 0.0
        %977 = vmatpush1.xpose.msra.mxu0 0.0
        %978 = vmatprep.subr.mxu0 0.0
        %979 = vmatpush1.xpose.msra.mxu0 0.0
        %980 = vmatprep.subr.mxu0 0.0
        %981 = vmatpush1.xpose.msra.mxu0 0.0
        %982 = vmatprep.subr.mxu0 0.0
        %983 = vmatpush1.xpose.msra.mxu0 0.0
        %984 = vmatprep.subr.mxu0 0.0
        %985 = vmatpush1.xpose.msra.mxu0 0.0
        %986 = vmatprep.subr.mxu0 0.0
        %987 = vmatpush1.xpose.msra.mxu0 0.0
        %988 = vmatprep.subr.mxu0 0.0
        %989 = vmatpush1.xpose.msra.mxu0 0.0
        %990 = vmatprep.subr.mxu0 0.0
        %991 = vmatpush1.xpose.msra.mxu0 0.0
        %992 = vmatprep.subr.mxu0 0.0
        %993 = vmatpush1.xpose.msra.mxu0 0.0
        %994 = vmatprep.subr.mxu0 0.0
        %995 = vmatpush1.xpose.msra.mxu0 0.0
        %996 = vmatprep.subr.mxu0 0.0
        %997 = vmatpush1.xpose.msra.mxu0 0.0
        %998 = vmatprep.subr.mxu0 0.0
        %999 = vmatpush1.xpose.msra.mxu0 0.0
        %1000 = vmatprep.subr.mxu0 0.0
        %1001 = vmatpush1.xpose.msra.mxu0 0.0
        %1002 = vmatprep.subr.mxu0 0.0
        %1003 = vmatpush1.xpose.msra.mxu0 0.0
        %1004 = vmatprep.subr.mxu0 0.0
        %1005 = vmatpush1.xpose.msra.mxu0 0.0
        %1006 = vmatprep.subr.mxu0 0.0
        %1007 = vmatpush1.xpose.msra.mxu0 0.0
        %1008 = vmatprep.subr.mxu0 0.0
        %1009 = vmatpush1.xpose.msra.mxu0 0.0
        %1010 = vmatprep.subr.mxu0 0.0
        %1011 = vmatpush1.xpose.msra.mxu0 0.0
        %1012 = vmatprep.subr.mxu0 0.0
        %1013 = vmatpush1.xpose.msra.mxu0 0.0
        %1014 = vmatprep.subr.mxu0 0.0
        %1015 = vmatpush1.xpose.msra.mxu0 0.0
        %1016 = vmatprep.subr.mxu0 0.0
        %1017 = vmatpush1.xpose.msra.mxu0 0.0
        %1018 = vmatprep.subr.mxu0 0.0
        %1019 = vmatpush1.xpose.msra.mxu0 0.0
        %1020 = vmatprep.subr.mxu0 0.0
        %1021 = vmatpush1.xpose.msra.mxu0 0.0
        %1022 = vmatprep.subr.mxu0 0.0
        %1023 = vmatpush1.xpose.msra.mxu0 0.0
        %1024 = vmatprep.subr.mxu0 0.0
        %1025 = vmatpush1.xpose.msra.mxu0 0.0
        %1026 = vmatprep.subr.mxu0 0.0
        %1027 = vmatpush1.xpose.msra.mxu0 0.0
        %1028 = vmatprep.subr.mxu0 0.0
        %1029 = vmatpush1.xpose.msra.mxu0 0.0
        %1030 = vmatprep.subr.mxu0 0.0
        %1031 = vmatpush1.xpose.msra.mxu0 0.0
        %1032 = vmatprep.subr.mxu0 0.0
        %1033 = vmatpush1.xpose.msra.mxu0 0.0
        %1034 = vmatprep.mubr.f32.mxu0 0.0
        %1035 = vmatmul.mubr.f32.gmra.mrb[0].mxu0 %v962
        %v1036 = vpop.f32.mrb[0].mxu0
        %v1037 = vadd.f32 0.0, %v1036
        %v1038 = vpop.f32.mrb[0].mxu0
        %1039 = vmatprep.mubr.f32.mxu0 0.0
        %1040 = vmatmul.mubr.f32.gmra.mrb[0].mxu0 %v964
        %v1041 = vpop.f32.mrb[0].mxu0
        %v1042 = vadd.f32 0.0, %v1041
        %v1043 = vpop.f32.mrb[0].mxu0
        %1044 = vdwg.mxu0
        %1045 = vrot.lane.b32.xlu0 %v495, 96
        %v1046 = vpop.permute.xlu0 %1045
        %1047 = vrot.lane.b32.xlu0 %v497, 96
        %v1048 = vpop.permute.xlu0 %1047
        %v1049 = vsel %vm526, %v495, 0
        %v1051 = vsel %vm526, %v497, 0
        %v1053 = vsel %vm526, %v1046, 0
        %v1055 = vsel %vm526, %v1048, 0
        %1057 = vmatprep.subr.mxu0 0.0
        %1058 = vmatpush1.xpose.msra.mxu0 %v1053
        %1059 = vmatprep.subr.mxu0 0.0
        %1060 = vmatpush1.xpose.msra.mxu0 %v1055
        %1061 = vmatprep.subr.mxu0 0.0
        %1062 = vmatpush1.xpose.msra.mxu0 0.0
        %1063 = vmatprep.subr.mxu0 0.0
        %1064 = vmatpush1.xpose.msra.mxu0 0.0
        %1065 = vmatprep.subr.mxu0 0.0
        %1066 = vmatpush1.xpose.msra.mxu0 0.0
        %1067 = vmatprep.subr.mxu0 0.0
        %1068 = vmatpush1.xpose.msra.mxu0 0.0
        %1069 = vmatprep.subr.mxu0 0.0
        %1070 = vmatpush1.xpose.msra.mxu0 0.0
        %1071 = vmatprep.subr.mxu0 0.0
        %1072 = vmatpush1.xpose.msra.mxu0 0.0
        %1073 = vmatprep.subr.mxu0 0.0
        %1074 = vmatpush1.xpose.msra.mxu0 0.0
        %1075 = vmatprep.subr.mxu0 0.0
        %1076 = vmatpush1.xpose.msra.mxu0 0.0
        %1077 = vmatprep.subr.mxu0 0.0
        %1078 = vmatpush1.xpose.msra.mxu0 0.0
        %1079 = vmatprep.subr.mxu0 0.0
        %1080 = vmatpush1.xpose.msra.mxu0 0.0
        %1081 = vmatprep.subr.mxu0 0.0
        %1082 = vmatpush1.xpose.msra.mxu0 0.0
        %1083 = vmatprep.subr.mxu0 0.0
        %1084 = vmatpush1.xpose.msra.mxu0 0.0
        %1085 = vmatprep.subr.mxu0 0.0
        %1086 = vmatpush1.xpose.msra.mxu0 0.0
        %1087 = vmatprep.subr.mxu0 0.0
        %1088 = vmatpush1.xpose.msra.mxu0 0.0
        %1089 = vmatprep.subr.mxu0 0.0
        %1090 = vmatpush1.xpose.msra.mxu0 0.0
        %1091 = vmatprep.subr.mxu0 0.0
        %1092 = vmatpush1.xpose.msra.mxu0 0.0
        %1093 = vmatprep.subr.mxu0 0.0
        %1094 = vmatpush1.xpose.msra.mxu0 0.0
        %1095 = vmatprep.subr.mxu0 0.0
        %1096 = vmatpush1.xpose.msra.mxu0 0.0
        %1097 = vmatprep.subr.mxu0 0.0
        %1098 = vmatpush1.xpose.msra.mxu0 0.0
        %1099 = vmatprep.subr.mxu0 0.0
        %1100 = vmatpush1.xpose.msra.mxu0 0.0
        %1101 = vmatprep.subr.mxu0 0.0
        %1102 = vmatpush1.xpose.msra.mxu0 0.0
        %1103 = vmatprep.subr.mxu0 0.0
        %1104 = vmatpush1.xpose.msra.mxu0 0.0
        %1105 = vmatprep.subr.mxu0 0.0
        %1106 = vmatpush1.xpose.msra.mxu0 0.0
        %1107 = vmatprep.subr.mxu0 0.0
        %1108 = vmatpush1.xpose.msra.mxu0 0.0
        %1109 = vmatprep.subr.mxu0 0.0
        %1110 = vmatpush1.xpose.msra.mxu0 0.0
        %1111 = vmatprep.subr.mxu0 0.0
        %1112 = vmatpush1.xpose.msra.mxu0 0.0
        %1113 = vmatprep.subr.mxu0 0.0
        %1114 = vmatpush1.xpose.msra.mxu0 0.0
        %1115 = vmatprep.subr.mxu0 0.0
        %1116 = vmatpush1.xpose.msra.mxu0 0.0
        %1117 = vmatprep.subr.mxu0 0.0
        %1118 = vmatpush1.xpose.msra.mxu0 0.0
        %1119 = vmatprep.subr.mxu0 0.0
        %1120 = vmatpush1.xpose.msra.mxu0 0.0
        %1121 = vmatprep.mubr.f32.mxu0 0.0
        %1122 = vmatmul.mubr.f32.gmra.mrb[0].mxu0 %v1049
        %v1123 = vpop.f32.mrb[0].mxu0
        %v1124 = vadd.f32 0.0, %v1123
        %v1125 = vpop.f32.mrb[0].mxu0
        %1126 = vmatprep.mubr.f32.mxu0 0.0
        %1127 = vmatmul.mubr.f32.gmra.mrb[0].mxu0 %v1051
        %v1128 = vpop.f32.mrb[0].mxu0
        %v1129 = vadd.f32 0.0, %v1128
        %v1130 = vpop.f32.mrb[0].mxu0
        %1131 = vdwg.mxu0
        %1132 = vrot.lane.b32.xlu0 %v511, 96
        %v1133 = vpop.permute.xlu0 %1132
        %1134 = vrot.lane.b32.xlu0 %v513, 96
        %v1135 = vpop.permute.xlu0 %1134
        %v1136 = vsel %vm526, %v511, 0
        %v1138 = vsel %vm526, %v513, 0
        %v1140 = vsel %vm526, %v1133, 0
        %v1142 = vsel %vm526, %v1135, 0
        %1144 = vmatprep.subr.mxu0 0.0
        %1145 = vmatpush1.xpose.msra.mxu0 %v1140
        %1146 = vmatprep.subr.mxu0 0.0
        %1147 = vmatpush1.xpose.msra.mxu0 %v1142
        %1148 = vmatprep.subr.mxu0 0.0
        %1149 = vmatpush1.xpose.msra.mxu0 0.0
        %1150 = vmatprep.subr.mxu0 0.0
        %1151 = vmatpush1.xpose.msra.mxu0 0.0
        %1152 = vmatprep.subr.mxu0 0.0
        %1153 = vmatpush1.xpose.msra.mxu0 0.0
        %1154 = vmatprep.subr.mxu0 0.0
        %1155 = vmatpush1.xpose.msra.mxu0 0.0
        %1156 = vmatprep.subr.mxu0 0.0
        %1157 = vmatpush1.xpose.msra.mxu0 0.0
        %1158 = vmatprep.subr.mxu0 0.0
        %1159 = vmatpush1.xpose.msra.mxu0 0.0
        %1160 = vmatprep.subr.mxu0 0.0
        %1161 = vmatpush1.xpose.msra.mxu0 0.0
        %1162 = vmatprep.subr.mxu0 0.0
        %1163 = vmatpush1.xpose.msra.mxu0 0.0
        %1164 = vmatprep.subr.mxu0 0.0
        %1165 = vmatpush1.xpose.msra.mxu0 0.0
        %1166 = vmatprep.subr.mxu0 0.0
        %1167 = vmatpush1.xpose.msra.mxu0 0.0
        %1168 = vmatprep.subr.mxu0 0.0
        %1169 = vmatpush1.xpose.msra.mxu0 0.0
        %1170 = vmatprep.subr.mxu0 0.0
        %1171 = vmatpush1.xpose.msra.mxu0 0.0
        %1172 = vmatprep.subr.mxu0 0.0
        %1173 = vmatpush1.xpose.msra.mxu0 0.0
        %1174 = vmatprep.subr.mxu0 0.0
        %1175 = vmatpush1.xpose.msra.mxu0 0.0
        %1176 = vmatprep.subr.mxu0 0.0
        %1177 = vmatpush1.xpose.msra.mxu0 0.0
        %1178 = vmatprep.subr.mxu0 0.0
        %1179 = vmatpush1.xpose.msra.mxu0 0.0
        %1180 = vmatprep.subr.mxu0 0.0
        %1181 = vmatpush1.xpose.msra.mxu0 0.0
        %1182 = vmatprep.subr.mxu0 0.0
        %1183 = vmatpush1.xpose.msra.mxu0 0.0
        %1184 = vmatprep.subr.mxu0 0.0
        %1185 = vmatpush1.xpose.msra.mxu0 0.0
        %1186 = vmatprep.subr.mxu0 0.0
        %1187 = vmatpush1.xpose.msra.mxu0 0.0
        %1188 = vmatprep.subr.mxu0 0.0
        %1189 = vmatpush1.xpose.msra.mxu0 0.0
        %1190 = vmatprep.subr.mxu0 0.0
        %1191 = vmatpush1.xpose.msra.mxu0 0.0
        %1192 = vmatprep.subr.mxu0 0.0
        %1193 = vmatpush1.xpose.msra.mxu0 0.0
        %1194 = vmatprep.subr.mxu0 0.0
        %1195 = vmatpush1.xpose.msra.mxu0 0.0
        %1196 = vmatprep.subr.mxu0 0.0
        %1197 = vmatpush1.xpose.msra.mxu0 0.0
        %1198 = vmatprep.subr.mxu0 0.0
        %1199 = vmatpush1.xpose.msra.mxu0 0.0
        %1200 = vmatprep.subr.mxu0 0.0
        %1201 = vmatpush1.xpose.msra.mxu0 0.0
        %1202 = vmatprep.subr.mxu0 0.0
        %1203 = vmatpush1.xpose.msra.mxu0 0.0
        %1204 = vmatprep.subr.mxu0 0.0
        %1205 = vmatpush1.xpose.msra.mxu0 0.0
        %1206 = vmatprep.subr.mxu0 0.0
        %1207 = vmatpush1.xpose.msra.mxu0 0.0
        %1208 = vmatprep.mubr.f32.mxu0 0.0
        %1209 = vmatmul.mubr.f32.gmra.mrb[0].mxu0 %v1136
        %v1210 = vpop.f32.mrb[0].mxu0
        %v1211 = vadd.f32 0.0, %v1210
        %v1212 = vpop.f32.mrb[0].mxu0
        %1213 = vmatprep.mubr.f32.mxu0 0.0
        %1214 = vmatmul.mubr.f32.gmra.mrb[0].mxu0 %v1138
        %v1215 = vpop.f32.mrb[0].mxu0
        %v1216 = vadd.f32 0.0, %v1215
        %v1217 = vpop.f32.mrb[0].mxu0
        %1218 = vdwg.mxu0
        %1219 = vrot.lane.b32.xlu0 %v448, 96
        %v1220 = vpop.permute.xlu0 %1219
        %1221 = vrot.lane.b32.xlu0 %v453, 96
        %v1222 = vpop.permute.xlu0 %1221
        %v1223 = vsel %vm526, %v448, 0
        %v1225 = vsel %vm526, %v453, 0
        %v1227 = vsel %vm526, %v1220, 0
        %v1229 = vsel %vm526, %v1222, 0
        %1231 = vmatprep.subr.mxu0 0.0
        %1232 = vmatpush1.xpose.msra.mxu0 %v1227
        %1233 = vmatprep.subr.mxu0 0.0
        %1234 = vmatpush1.xpose.msra.mxu0 %v1229
        %1235 = vmatprep.subr.mxu0 0.0
        %1236 = vmatpush1.xpose.msra.mxu0 0.0
        %1237 = vmatprep.subr.mxu0 0.0
        %1238 = vmatpush1.xpose.msra.mxu0 0.0
        %1239 = vmatprep.subr.mxu0 0.0
        %1240 = vmatpush1.xpose.msra.mxu0 0.0
        %1241 = vmatprep.subr.mxu0 0.0
        %1242 = vmatpush1.xpose.msra.mxu0 0.0
        %1243 = vmatprep.subr.mxu0 0.0
        %1244 = vmatpush1.xpose.msra.mxu0 0.0
        %1245 = vmatprep.subr.mxu0 0.0
        %1246 = vmatpush1.xpose.msra.mxu0 0.0
        %1247 = vmatprep.subr.mxu0 0.0
        %1248 = vmatpush1.xpose.msra.mxu0 0.0
        %1249 = vmatprep.subr.mxu0 0.0
        %1250 = vmatpush1.xpose.msra.mxu0 0.0
        %1251 = vmatprep.subr.mxu0 0.0
        %1252 = vmatpush1.xpose.msra.mxu0 0.0
        %1253 = vmatprep.subr.mxu0 0.0
        %1254 = vmatpush1.xpose.msra.mxu0 0.0
        %1255 = vmatprep.subr.mxu0 0.0
        %1256 = vmatpush1.xpose.msra.mxu0 0.0
        %1257 = vmatprep.subr.mxu0 0.0
        %1258 = vmatpush1.xpose.msra.mxu0 0.0
        %1259 = vmatprep.subr.mxu0 0.0
        %1260 = vmatpush1.xpose.msra.mxu0 0.0
        %1261 = vmatprep.subr.mxu0 0.0
        %1262 = vmatpush1.xpose.msra.mxu0 0.0
        %1263 = vmatprep.subr.mxu0 0.0
        %1264 = vmatpush1.xpose.msra.mxu0 0.0
        %1265 = vmatprep.subr.mxu0 0.0
        %1266 = vmatpush1.xpose.msra.mxu0 0.0
        %1267 = vmatprep.subr.mxu0 0.0
        %1268 = vmatpush1.xpose.msra.mxu0 0.0
        %1269 = vmatprep.subr.mxu0 0.0
        %1270 = vmatpush1.xpose.msra.mxu0 0.0
        %1271 = vmatprep.subr.mxu0 0.0
        %1272 = vmatpush1.xpose.msra.mxu0 0.0
        %1273 = vmatprep.subr.mxu0 0.0
        %1274 = vmatpush1.xpose.msra.mxu0 0.0
        %1275 = vmatprep.subr.mxu0 0.0
        %1276 = vmatpush1.xpose.msra.mxu0 0.0
        %1277 = vmatprep.subr.mxu0 0.0
        %1278 = vmatpush1.xpose.msra.mxu0 0.0
        %1279 = vmatprep.subr.mxu0 0.0
        %1280 = vmatpush1.xpose.msra.mxu0 0.0
        %1281 = vmatprep.subr.mxu0 0.0
        %1282 = vmatpush1.xpose.msra.mxu0 0.0
        %1283 = vmatprep.subr.mxu0 0.0
        %1284 = vmatpush1.xpose.msra.mxu0 0.0
        %1285 = vmatprep.subr.mxu0 0.0
        %1286 = vmatpush1.xpose.msra.mxu0 0.0
        %1287 = vmatprep.subr.mxu0 0.0
        %1288 = vmatpush1.xpose.msra.mxu0 0.0
        %1289 = vmatprep.subr.mxu0 0.0
        %1290 = vmatpush1.xpose.msra.mxu0 0.0
        %1291 = vmatprep.subr.mxu0 0.0
        %1292 = vmatpush1.xpose.msra.mxu0 0.0
        %1293 = vmatprep.subr.mxu0 0.0
        %1294 = vmatpush1.xpose.msra.mxu0 0.0
        %1295 = vmatprep.mubr.f32.mxu0 0.0
        %1296 = vmatmul.mubr.f32.gmra.mrb[0].mxu0 %v1223
        %v1297 = vpop.f32.mrb[0].mxu0
        %v1298 = vadd.f32 0.0, %v1297
        %v1299 = vpop.f32.mrb[0].mxu0
        %1300 = vmatprep.mubr.f32.mxu0 0.0
        %1301 = vmatmul.mubr.f32.gmra.mrb[0].mxu0 %v1225
        %v1302 = vpop.f32.mrb[0].mxu0
        %v1303 = vadd.f32 0.0, %v1302
        %v1304 = vpop.f32.mrb[0].mxu0
        %1305 = vdwg.mxu0
        %1306 = vrot.lane.b32.xlu0 %v483, 96
        %v1307 = vpop.permute.xlu0 %1306
        %1308 = vrot.lane.b32.xlu0 %v485, 96
        %v1309 = vpop.permute.xlu0 %1308
        %v1310 = vsel %vm526, %v483, 0
        %v1312 = vsel %vm526, %v485, 0
        %v1314 = vsel %vm526, %v1307, 0
        %v1316 = vsel %vm526, %v1309, 0
        %1318 = vmatprep.subr.mxu0 0.0
        %1319 = vmatpush1.xpose.msra.mxu0 %v1314
        %1320 = vmatprep.subr.mxu0 0.0
        %1321 = vmatpush1.xpose.msra.mxu0 %v1316
        %1322 = vmatprep.subr.mxu0 0.0
        %1323 = vmatpush1.xpose.msra.mxu0 0.0
        %1324 = vmatprep.subr.mxu0 0.0
        %1325 = vmatpush1.xpose.msra.mxu0 0.0
        %1326 = vmatprep.subr.mxu0 0.0
        %1327 = vmatpush1.xpose.msra.mxu0 0.0
        %1328 = vmatprep.subr.mxu0 0.0
        %1329 = vmatpush1.xpose.msra.mxu0 0.0
        %1330 = vmatprep.subr.mxu0 0.0
        %1331 = vmatpush1.xpose.msra.mxu0 0.0
        %1332 = vmatprep.subr.mxu0 0.0
        %1333 = vmatpush1.xpose.msra.mxu0 0.0
        %1334 = vmatprep.subr.mxu0 0.0
        %1335 = vmatpush1.xpose.msra.mxu0 0.0
        %1336 = vmatprep.subr.mxu0 0.0
        %1337 = vmatpush1.xpose.msra.mxu0 0.0
        %1338 = vmatprep.subr.mxu0 0.0
        %1339 = vmatpush1.xpose.msra.mxu0 0.0
        %1340 = vmatprep.subr.mxu0 0.0
        %1341 = vmatpush1.xpose.msra.mxu0 0.0
        %1342 = vmatprep.subr.mxu0 0.0
        %1343 = vmatpush1.xpose.msra.mxu0 0.0
        %1344 = vmatprep.subr.mxu0 0.0
        %1345 = vmatpush1.xpose.msra.mxu0 0.0
        %1346 = vmatprep.subr.mxu0 0.0
        %1347 = vmatpush1.xpose.msra.mxu0 0.0
        %1348 = vmatprep.subr.mxu0 0.0
        %1349 = vmatpush1.xpose.msra.mxu0 0.0
        %1350 = vmatprep.subr.mxu0 0.0
        %1351 = vmatpush1.xpose.msra.mxu0 0.0
        %1352 = vmatprep.subr.mxu0 0.0
        %1353 = vmatpush1.xpose.msra.mxu0 0.0
        %1354 = vmatprep.subr.mxu0 0.0
        %1355 = vmatpush1.xpose.msra.mxu0 0.0
        %1356 = vmatprep.subr.mxu0 0.0
        %1357 = vmatpush1.xpose.msra.mxu0 0.0
        %1358 = vmatprep.subr.mxu0 0.0
        %1359 = vmatpush1.xpose.msra.mxu0 0.0
        %1360 = vmatprep.subr.mxu0 0.0
        %1361 = vmatpush1.xpose.msra.mxu0 0.0
        %1362 = vmatprep.subr.mxu0 0.0
        %1363 = vmatpush1.xpose.msra.mxu0 0.0
        %1364 = vmatprep.subr.mxu0 0.0
        %1365 = vmatpush1.xpose.msra.mxu0 0.0
        %1366 = vmatprep.subr.mxu0 0.0
        %1367 = vmatpush1.xpose.msra.mxu0 0.0
        %1368 = vmatprep.subr.mxu0 0.0
        %1369 = vmatpush1.xpose.msra.mxu0 0.0
        %1370 = vmatprep.subr.mxu0 0.0
        %1371 = vmatpush1.xpose.msra.mxu0 0.0
        %1372 = vmatprep.subr.mxu0 0.0
        %1373 = vmatpush1.xpose.msra.mxu0 0.0
        %1374 = vmatprep.subr.mxu0 0.0
        %1375 = vmatpush1.xpose.msra.mxu0 0.0
        %1376 = vmatprep.subr.mxu0 0.0
        %1377 = vmatpush1.xpose.msra.mxu0 0.0
        %1378 = vmatprep.subr.mxu0 0.0
        %1379 = vmatpush1.xpose.msra.mxu0 0.0
        %1380 = vmatprep.subr.mxu0 0.0
        %1381 = vmatpush1.xpose.msra.mxu0 0.0
        %1382 = vmatprep.mubr.f32.mxu0 0.0
        %1383 = vmatmul.mubr.f32.gmra.mrb[0].mxu0 %v1310
        %v1384 = vpop.f32.mrb[0].mxu0
        %v1385 = vadd.f32 0.0, %v1384
        %v1386 = vpop.f32.mrb[0].mxu0
        %1387 = vmatprep.mubr.f32.mxu0 0.0
        %1388 = vmatmul.mubr.f32.gmra.mrb[0].mxu0 %v1312
        %v1389 = vpop.f32.mrb[0].mxu0
        %v1390 = vadd.f32 0.0, %v1389
        %v1391 = vpop.f32.mrb[0].mxu0
        %1392 = vdwg.mxu0
        %1393 = vrot.lane.b32.xlu0 %v499, 96
        %v1394 = vpop.permute.xlu0 %1393
        %1395 = vrot.lane.b32.xlu0 %v501, 96
        %v1396 = vpop.permute.xlu0 %1395
        %v1397 = vsel %vm526, %v499, 0
        %v1399 = vsel %vm526, %v501, 0
        %v1401 = vsel %vm526, %v1394, 0
        %v1403 = vsel %vm526, %v1396, 0
        %1405 = vmatprep.subr.mxu0 0.0
        %1406 = vmatpush1.xpose.msra.mxu0 %v1401
        %1407 = vmatprep.subr.mxu0 0.0
        %1408 = vmatpush1.xpose.msra.mxu0 %v1403
        %1409 = vmatprep.subr.mxu0 0.0
        %1410 = vmatpush1.xpose.msra.mxu0 0.0
        %1411 = vmatprep.subr.mxu0 0.0
        %1412 = vmatpush1.xpose.msra.mxu0 0.0
        %1413 = vmatprep.subr.mxu0 0.0
        %1414 = vmatpush1.xpose.msra.mxu0 0.0
        %1415 = vmatprep.subr.mxu0 0.0
        %1416 = vmatpush1.xpose.msra.mxu0 0.0
        %1417 = vmatprep.subr.mxu0 0.0
        %1418 = vmatpush1.xpose.msra.mxu0 0.0
        %1419 = vmatprep.subr.mxu0 0.0
        %1420 = vmatpush1.xpose.msra.mxu0 0.0
        %1421 = vmatprep.subr.mxu0 0.0
        %1422 = vmatpush1.xpose.msra.mxu0 0.0
        %1423 = vmatprep.subr.mxu0 0.0
        %1424 = vmatpush1.xpose.msra.mxu0 0.0
        %1425 = vmatprep.subr.mxu0 0.0
        %1426 = vmatpush1.xpose.msra.mxu0 0.0
        %1427 = vmatprep.subr.mxu0 0.0
        %1428 = vmatpush1.xpose.msra.mxu0 0.0
        %1429 = vmatprep.subr.mxu0 0.0
        %1430 = vmatpush1.xpose.msra.mxu0 0.0
        %1431 = vmatprep.subr.mxu0 0.0
        %1432 = vmatpush1.xpose.msra.mxu0 0.0
        %1433 = vmatprep.subr.mxu0 0.0
        %1434 = vmatpush1.xpose.msra.mxu0 0.0
        %1435 = vmatprep.subr.mxu0 0.0
        %1436 = vmatpush1.xpose.msra.mxu0 0.0
        %1437 = vmatprep.subr.mxu0 0.0
        %1438 = vmatpush1.xpose.msra.mxu0 0.0
        %1439 = vmatprep.subr.mxu0 0.0
        %1440 = vmatpush1.xpose.msra.mxu0 0.0
        %1441 = vmatprep.subr.mxu0 0.0
        %1442 = vmatpush1.xpose.msra.mxu0 0.0
        %1443 = vmatprep.subr.mxu0 0.0
        %1444 = vmatpush1.xpose.msra.mxu0 0.0
        %1445 = vmatprep.subr.mxu0 0.0
        %1446 = vmatpush1.xpose.msra.mxu0 0.0
        %1447 = vmatprep.subr.mxu0 0.0
        %1448 = vmatpush1.xpose.msra.mxu0 0.0
        %1449 = vmatprep.subr.mxu0 0.0
        %1450 = vmatpush1.xpose.msra.mxu0 0.0
        %1451 = vmatprep.subr.mxu0 0.0
        %1452 = vmatpush1.xpose.msra.mxu0 0.0
        %1453 = vmatprep.subr.mxu0 0.0
        %1454 = vmatpush1.xpose.msra.mxu0 0.0
        %1455 = vmatprep.subr.mxu0 0.0
        %1456 = vmatpush1.xpose.msra.mxu0 0.0
        %1457 = vmatprep.subr.mxu0 0.0
        %1458 = vmatpush1.xpose.msra.mxu0 0.0
        %1459 = vmatprep.subr.mxu0 0.0
        %1460 = vmatpush1.xpose.msra.mxu0 0.0
        %1461 = vmatprep.subr.mxu0 0.0
        %1462 = vmatpush1.xpose.msra.mxu0 0.0
        %1463 = vmatprep.subr.mxu0 0.0
        %1464 = vmatpush1.xpose.msra.mxu0 0.0
        %1465 = vmatprep.subr.mxu0 0.0
        %1466 = vmatpush1.xpose.msra.mxu0 0.0
        %1467 = vmatprep.subr.mxu0 0.0
        %1468 = vmatpush1.xpose.msra.mxu0 0.0
        %1469 = vmatprep.mubr.f32.mxu0 0.0
        %1470 = vmatmul.mubr.f32.gmra.mrb[0].mxu0 %v1397
        %v1471 = vpop.f32.mrb[0].mxu0
        %v1472 = vadd.f32 0.0, %v1471
        %v1473 = vpop.f32.mrb[0].mxu0
        %1474 = vmatprep.mubr.f32.mxu0 0.0
        %1475 = vmatmul.mubr.f32.gmra.mrb[0].mxu0 %v1399
        %v1476 = vpop.f32.mrb[0].mxu0
        %v1477 = vadd.f32 0.0, %v1476
        %v1478 = vpop.f32.mrb[0].mxu0
        %1479 = vdwg.mxu0
        %1480 = vrot.lane.b32.xlu0 %v515, 96
        %v1481 = vpop.permute.xlu0 %1480
        %1482 = vrot.lane.b32.xlu0 %v517, 96
        %v1483 = vpop.permute.xlu0 %1482
        %v1484 = vsel %vm526, %v515, 0
        %v1486 = vsel %vm526, %v517, 0
        %v1488 = vsel %vm526, %v1481, 0
        %v1490 = vsel %vm526, %v1483, 0
        %1492 = vmatprep.subr.mxu0 0.0
        %1493 = vmatpush1.xpose.msra.mxu0 %v1488
        %1494 = vmatprep.subr.mxu0 0.0
        %1495 = vmatpush1.xpose.msra.mxu0 %v1490
        %1496 = vmatprep.subr.mxu0 0.0
        %1497 = vmatpush1.xpose.msra.mxu0 0.0
        %1498 = vmatprep.subr.mxu0 0.0
        %1499 = vmatpush1.xpose.msra.mxu0 0.0
        %1500 = vmatprep.subr.mxu0 0.0
        %1501 = vmatpush1.xpose.msra.mxu0 0.0
        %1502 = vmatprep.subr.mxu0 0.0
        %1503 = vmatpush1.xpose.msra.mxu0 0.0
        %1504 = vmatprep.subr.mxu0 0.0
        %1505 = vmatpush1.xpose.msra.mxu0 0.0
        %1506 = vmatprep.subr.mxu0 0.0
        %1507 = vmatpush1.xpose.msra.mxu0 0.0
        %1508 = vmatprep.subr.mxu0 0.0
        %1509 = vmatpush1.xpose.msra.mxu0 0.0
        %1510 = vmatprep.subr.mxu0 0.0
        %1511 = vmatpush1.xpose.msra.mxu0 0.0
        %1512 = vmatprep.subr.mxu0 0.0
        %1513 = vmatpush1.xpose.msra.mxu0 0.0
        %1514 = vmatprep.subr.mxu0 0.0
        %1515 = vmatpush1.xpose.msra.mxu0 0.0
        %1516 = vmatprep.subr.mxu0 0.0
        %1517 = vmatpush1.xpose.msra.mxu0 0.0
        %1518 = vmatprep.subr.mxu0 0.0
        %1519 = vmatpush1.xpose.msra.mxu0 0.0
        %1520 = vmatprep.subr.mxu0 0.0
        %1521 = vmatpush1.xpose.msra.mxu0 0.0
        %1522 = vmatprep.subr.mxu0 0.0
        %1523 = vmatpush1.xpose.msra.mxu0 0.0
        %1524 = vmatprep.subr.mxu0 0.0
        %1525 = vmatpush1.xpose.msra.mxu0 0.0
        %1526 = vmatprep.subr.mxu0 0.0
        %1527 = vmatpush1.xpose.msra.mxu0 0.0
        %1528 = vmatprep.subr.mxu0 0.0
        %1529 = vmatpush1.xpose.msra.mxu0 0.0
        %1530 = vmatprep.subr.mxu0 0.0
        %1531 = vmatpush1.xpose.msra.mxu0 0.0
        %1532 = vmatprep.subr.mxu0 0.0
        %1533 = vmatpush1.xpose.msra.mxu0 0.0
        %1534 = vmatprep.subr.mxu0 0.0
        %1535 = vmatpush1.xpose.msra.mxu0 0.0
        %1536 = vmatprep.subr.mxu0 0.0
        %1537 = vmatpush1.xpose.msra.mxu0 0.0
        %1538 = vmatprep.subr.mxu0 0.0
        %1539 = vmatpush1.xpose.msra.mxu0 0.0
        %1540 = vmatprep.subr.mxu0 0.0
        %1541 = vmatpush1.xpose.msra.mxu0 0.0
        %1542 = vmatprep.subr.mxu0 0.0
        %1543 = vmatpush1.xpose.msra.mxu0 0.0
        %1544 = vmatprep.subr.mxu0 0.0
        %1545 = vmatpush1.xpose.msra.mxu0 0.0
        %1546 = vmatprep.subr.mxu0 0.0
        %1547 = vmatpush1.xpose.msra.mxu0 0.0
        %1548 = vmatprep.subr.mxu0 0.0
        %1549 = vmatpush1.xpose.msra.mxu0 0.0
        %1550 = vmatprep.subr.mxu0 0.0
        %1551 = vmatpush1.xpose.msra.mxu0 0.0
        %1552 = vmatprep.subr.mxu0 0.0
        %1553 = vmatpush1.xpose.msra.mxu0 0.0
        %1554 = vmatprep.subr.mxu0 0.0
        %1555 = vmatpush1.xpose.msra.mxu0 0.0
        %1556 = vmatprep.mubr.f32.mxu0 0.0
        %1557 = vmatmul.mubr.f32.gmra.mrb[0].mxu0 %v1484
        %v1558 = vpop.f32.mrb[0].mxu0
        %v1559 = vadd.f32 0.0, %v1558
        %v1560 = vpop.f32.mrb[0].mxu0
        %1561 = vmatprep.mubr.f32.mxu0 0.0
        %1562 = vmatmul.mubr.f32.gmra.mrb[0].mxu0 %v1486
        %v1563 = vpop.f32.mrb[0].mxu0
        %v1564 = vadd.f32 0.0, %v1563
        %v1565 = vpop.f32.mrb[0].mxu0
        %1566 = vdwg.mxu0
        %1567 = vrot.lane.b32.xlu0 %v458, 96
        %v1568 = vpop.permute.xlu0 %1567
        %1569 = vrot.lane.b32.xlu0 %v463, 96
        %v1570 = vpop.permute.xlu0 %1569
        %v1571 = vsel %vm526, %v458, 0
        %v1573 = vsel %vm526, %v463, 0
        %v1575 = vsel %vm526, %v1568, 0
        %v1577 = vsel %vm526, %v1570, 0
        %1579 = vmatprep.subr.mxu0 0.0
        %1580 = vmatpush1.xpose.msra.mxu0 %v1575
        %1581 = vmatprep.subr.mxu0 0.0
        %1582 = vmatpush1.xpose.msra.mxu0 %v1577
        %1583 = vmatprep.subr.mxu0 0.0
        %1584 = vmatpush1.xpose.msra.mxu0 0.0
        %1585 = vmatprep.subr.mxu0 0.0
        %1586 = vmatpush1.xpose.msra.mxu0 0.0
        %1587 = vmatprep.subr.mxu0 0.0
        %1588 = vmatpush1.xpose.msra.mxu0 0.0
        %1589 = vmatprep.subr.mxu0 0.0
        %1590 = vmatpush1.xpose.msra.mxu0 0.0
        %1591 = vmatprep.subr.mxu0 0.0
        %1592 = vmatpush1.xpose.msra.mxu0 0.0
        %1593 = vmatprep.subr.mxu0 0.0
        %1594 = vmatpush1.xpose.msra.mxu0 0.0
        %1595 = vmatprep.subr.mxu0 0.0
        %1596 = vmatpush1.xpose.msra.mxu0 0.0
        %1597 = vmatprep.subr.mxu0 0.0
        %1598 = vmatpush1.xpose.msra.mxu0 0.0
        %1599 = vmatprep.subr.mxu0 0.0
        %1600 = vmatpush1.xpose.msra.mxu0 0.0
        %1601 = vmatprep.subr.mxu0 0.0
        %1602 = vmatpush1.xpose.msra.mxu0 0.0
        %1603 = vmatprep.subr.mxu0 0.0
        %1604 = vmatpush1.xpose.msra.mxu0 0.0
        %1605 = vmatprep.subr.mxu0 0.0
        %1606 = vmatpush1.xpose.msra.mxu0 0.0
        %1607 = vmatprep.subr.mxu0 0.0
        %1608 = vmatpush1.xpose.msra.mxu0 0.0
        %1609 = vmatprep.subr.mxu0 0.0
        %1610 = vmatpush1.xpose.msra.mxu0 0.0
        %1611 = vmatprep.subr.mxu0 0.0
        %1612 = vmatpush1.xpose.msra.mxu0 0.0
        %1613 = vmatprep.subr.mxu0 0.0
        %1614 = vmatpush1.xpose.msra.mxu0 0.0
        %1615 = vmatprep.subr.mxu0 0.0
        %1616 = vmatpush1.xpose.msra.mxu0 0.0
        %1617 = vmatprep.subr.mxu0 0.0
        %1618 = vmatpush1.xpose.msra.mxu0 0.0
        %1619 = vmatprep.subr.mxu0 0.0
        %1620 = vmatpush1.xpose.msra.mxu0 0.0
        %1621 = vmatprep.subr.mxu0 0.0
        %1622 = vmatpush1.xpose.msra.mxu0 0.0
        %1623 = vmatprep.subr.mxu0 0.0
        %1624 = vmatpush1.xpose.msra.mxu0 0.0
        %1625 = vmatprep.subr.mxu0 0.0
        %1626 = vmatpush1.xpose.msra.mxu0 0.0
        %1627 = vmatprep.subr.mxu0 0.0
        %1628 = vmatpush1.xpose.msra.mxu0 0.0
        %1629 = vmatprep.subr.mxu0 0.0
        %1630 = vmatpush1.xpose.msra.mxu0 0.0
        %1631 = vmatprep.subr.mxu0 0.0
        %1632 = vmatpush1.xpose.msra.mxu0 0.0
        %1633 = vmatprep.subr.mxu0 0.0
        %1634 = vmatpush1.xpose.msra.mxu0 0.0
        %1635 = vmatprep.subr.mxu0 0.0
        %1636 = vmatpush1.xpose.msra.mxu0 0.0
        %1637 = vmatprep.subr.mxu0 0.0
        %1638 = vmatpush1.xpose.msra.mxu0 0.0
        %1639 = vmatprep.subr.mxu0 0.0
        %1640 = vmatpush1.xpose.msra.mxu0 0.0
        %1641 = vmatprep.subr.mxu0 0.0
        %1642 = vmatpush1.xpose.msra.mxu0 0.0
        %1643 = vmatprep.mubr.f32.mxu0 0.0
        %1644 = vmatmul.mubr.f32.gmra.mrb[0].mxu0 %v1571
        %v1645 = vpop.f32.mrb[0].mxu0
        %v1646 = vadd.f32 0.0, %v1645
        %v1647 = vpop.f32.mrb[0].mxu0
        %1648 = vmatprep.mubr.f32.mxu0 0.0
        %1649 = vmatmul.mubr.f32.gmra.mrb[0].mxu0 %v1573
        %v1650 = vpop.f32.mrb[0].mxu0
        %v1651 = vadd.f32 0.0, %v1650
        %v1652 = vpop.f32.mrb[0].mxu0
        %1653 = vdwg.mxu0
        %1654 = vrot.lane.b32.xlu0 %v487, 96
        %v1655 = vpop.permute.xlu0 %1654
        %1656 = vrot.lane.b32.xlu0 %v489, 96
        %v1657 = vpop.permute.xlu0 %1656
        %v1658 = vsel %vm526, %v487, 0
        %v1660 = vsel %vm526, %v489, 0
        %v1662 = vsel %vm526, %v1655, 0
        %v1664 = vsel %vm526, %v1657, 0
        %1666 = vmatprep.subr.mxu0 0.0
        %1667 = vmatpush1.xpose.msra.mxu0 %v1662
        %1668 = vmatprep.subr.mxu0 0.0
        %1669 = vmatpush1.xpose.msra.mxu0 %v1664
        %1670 = vmatprep.subr.mxu0 0.0
        %1671 = vmatpush1.xpose.msra.mxu0 0.0
        %1672 = vmatprep.subr.mxu0 0.0
        %1673 = vmatpush1.xpose.msra.mxu0 0.0
        %1674 = vmatprep.subr.mxu0 0.0
        %1675 = vmatpush1.xpose.msra.mxu0 0.0
        %1676 = vmatprep.subr.mxu0 0.0
        %1677 = vmatpush1.xpose.msra.mxu0 0.0
        %1678 = vmatprep.subr.mxu0 0.0
        %1679 = vmatpush1.xpose.msra.mxu0 0.0
        %1680 = vmatprep.subr.mxu0 0.0
        %1681 = vmatpush1.xpose.msra.mxu0 0.0
        %1682 = vmatprep.subr.mxu0 0.0
        %1683 = vmatpush1.xpose.msra.mxu0 0.0
        %1684 = vmatprep.subr.mxu0 0.0
        %1685 = vmatpush1.xpose.msra.mxu0 0.0
        %1686 = vmatprep.subr.mxu0 0.0
        %1687 = vmatpush1.xpose.msra.mxu0 0.0
        %1688 = vmatprep.subr.mxu0 0.0
        %1689 = vmatpush1.xpose.msra.mxu0 0.0
        %1690 = vmatprep.subr.mxu0 0.0
        %1691 = vmatpush1.xpose.msra.mxu0 0.0
        %1692 = vmatprep.subr.mxu0 0.0
        %1693 = vmatpush1.xpose.msra.mxu0 0.0
        %1694 = vmatprep.subr.mxu0 0.0
        %1695 = vmatpush1.xpose.msra.mxu0 0.0
        %1696 = vmatprep.subr.mxu0 0.0
        %1697 = vmatpush1.xpose.msra.mxu0 0.0
        %1698 = vmatprep.subr.mxu0 0.0
        %1699 = vmatpush1.xpose.msra.mxu0 0.0
        %1700 = vmatprep.subr.mxu0 0.0
        %1701 = vmatpush1.xpose.msra.mxu0 0.0
        %1702 = vmatprep.subr.mxu0 0.0
        %1703 = vmatpush1.xpose.msra.mxu0 0.0
        %1704 = vmatprep.subr.mxu0 0.0
        %1705 = vmatpush1.xpose.msra.mxu0 0.0
        %1706 = vmatprep.subr.mxu0 0.0
        %1707 = vmatpush1.xpose.msra.mxu0 0.0
        %1708 = vmatprep.subr.mxu0 0.0
        %1709 = vmatpush1.xpose.msra.mxu0 0.0
        %1710 = vmatprep.subr.mxu0 0.0
        %1711 = vmatpush1.xpose.msra.mxu0 0.0
        %1712 = vmatprep.subr.mxu0 0.0
        %1713 = vmatpush1.xpose.msra.mxu0 0.0
        %1714 = vmatprep.subr.mxu0 0.0
        %1715 = vmatpush1.xpose.msra.mxu0 0.0
        %1716 = vmatprep.subr.mxu0 0.0
        %1717 = vmatpush1.xpose.msra.mxu0 0.0
        %1718 = vmatprep.subr.mxu0 0.0
        %1719 = vmatpush1.xpose.msra.mxu0 0.0
        %1720 = vmatprep.subr.mxu0 0.0
        %1721 = vmatpush1.xpose.msra.mxu0 0.0
        %1722 = vmatprep.subr.mxu0 0.0
        %1723 = vmatpush1.xpose.msra.mxu0 0.0
        %1724 = vmatprep.subr.mxu0 0.0
        %1725 = vmatpush1.xpose.msra.mxu0 0.0
        %1726 = vmatprep.subr.mxu0 0.0
        %1727 = vmatpush1.xpose.msra.mxu0 0.0
        %1728 = vmatprep.subr.mxu0 0.0
        %1729 = vmatpush1.xpose.msra.mxu0 0.0
        %1730 = vmatprep.mubr.f32.mxu0 0.0
        %1731 = vmatmul.mubr.f32.gmra.mrb[0].mxu0 %v1658
        %v1732 = vpop.f32.mrb[0].mxu0
        %v1733 = vadd.f32 0.0, %v1732
        %v1734 = vpop.f32.mrb[0].mxu0
        %1735 = vmatprep.mubr.f32.mxu0 0.0
        %1736 = vmatmul.mubr.f32.gmra.mrb[0].mxu0 %v1660
        %v1737 = vpop.f32.mrb[0].mxu0
        %v1738 = vadd.f32 0.0, %v1737
        %v1739 = vpop.f32.mrb[0].mxu0
        %1740 = vdwg.mxu0
        %1741 = vrot.lane.b32.xlu0 %v503, 96
        %v1742 = vpop.permute.xlu0 %1741
        %1743 = vrot.lane.b32.xlu0 %v505, 96
        %v1744 = vpop.permute.xlu0 %1743
        %v1745 = vsel %vm526, %v503, 0
        %v1747 = vsel %vm526, %v505, 0
        %v1749 = vsel %vm526, %v1742, 0
        %v1751 = vsel %vm526, %v1744, 0
        %1753 = vmatprep.subr.mxu0 0.0
        %1754 = vmatpush1.xpose.msra.mxu0 %v1749
        %1755 = vmatprep.subr.mxu0 0.0
        %1756 = vmatpush1.xpose.msra.mxu0 %v1751
        %1757 = vmatprep.subr.mxu0 0.0
        %1758 = vmatpush1.xpose.msra.mxu0 0.0
        %1759 = vmatprep.subr.mxu0 0.0
        %1760 = vmatpush1.xpose.msra.mxu0 0.0
        %1761 = vmatprep.subr.mxu0 0.0
        %1762 = vmatpush1.xpose.msra.mxu0 0.0
        %1763 = vmatprep.subr.mxu0 0.0
        %1764 = vmatpush1.xpose.msra.mxu0 0.0
        %1765 = vmatprep.subr.mxu0 0.0
        %1766 = vmatpush1.xpose.msra.mxu0 0.0
        %1767 = vmatprep.subr.mxu0 0.0
        %1768 = vmatpush1.xpose.msra.mxu0 0.0
        %1769 = vmatprep.subr.mxu0 0.0
        %1770 = vmatpush1.xpose.msra.mxu0 0.0
        %1771 = vmatprep.subr.mxu0 0.0
        %1772 = vmatpush1.xpose.msra.mxu0 0.0
        %1773 = vmatprep.subr.mxu0 0.0
        %1774 = vmatpush1.xpose.msra.mxu0 0.0
        %1775 = vmatprep.subr.mxu0 0.0
        %1776 = vmatpush1.xpose.msra.mxu0 0.0
        %1777 = vmatprep.subr.mxu0 0.0
        %1778 = vmatpush1.xpose.msra.mxu0 0.0
        %1779 = vmatprep.subr.mxu0 0.0
        %1780 = vmatpush1.xpose.msra.mxu0 0.0
        %1781 = vmatprep.subr.mxu0 0.0
        %1782 = vmatpush1.xpose.msra.mxu0 0.0
        %1783 = vmatprep.subr.mxu0 0.0
        %1784 = vmatpush1.xpose.msra.mxu0 0.0
        %1785 = vmatprep.subr.mxu0 0.0
        %1786 = vmatpush1.xpose.msra.mxu0 0.0
        %1787 = vmatprep.subr.mxu0 0.0
        %1788 = vmatpush1.xpose.msra.mxu0 0.0
        %1789 = vmatprep.subr.mxu0 0.0
        %1790 = vmatpush1.xpose.msra.mxu0 0.0
        %1791 = vmatprep.subr.mxu0 0.0
        %1792 = vmatpush1.xpose.msra.mxu0 0.0
        %1793 = vmatprep.subr.mxu0 0.0
        %1794 = vmatpush1.xpose.msra.mxu0 0.0
        %1795 = vmatprep.subr.mxu0 0.0
        %1796 = vmatpush1.xpose.msra.mxu0 0.0
        %1797 = vmatprep.subr.mxu0 0.0
        %1798 = vmatpush1.xpose.msra.mxu0 0.0
        %1799 = vmatprep.subr.mxu0 0.0
        %1800 = vmatpush1.xpose.msra.mxu0 0.0
        %1801 = vmatprep.subr.mxu0 0.0
        %1802 = vmatpush1.xpose.msra.mxu0 0.0
        %1803 = vmatprep.subr.mxu0 0.0
        %1804 = vmatpush1.xpose.msra.mxu0 0.0
        %1805 = vmatprep.subr.mxu0 0.0
        %1806 = vmatpush1.xpose.msra.mxu0 0.0
        %1807 = vmatprep.subr.mxu0 0.0
        %1808 = vmatpush1.xpose.msra.mxu0 0.0
        %1809 = vmatprep.subr.mxu0 0.0
        %1810 = vmatpush1.xpose.msra.mxu0 0.0
        %1811 = vmatprep.subr.mxu0 0.0
        %1812 = vmatpush1.xpose.msra.mxu0 0.0
        %1813 = vmatprep.subr.mxu0 0.0
        %1814 = vmatpush1.xpose.msra.mxu0 0.0
        %1815 = vmatprep.subr.mxu0 0.0
        %1816 = vmatpush1.xpose.msra.mxu0 0.0
        %1817 = vmatprep.mubr.f32.mxu0 0.0
        %1818 = vmatmul.mubr.f32.gmra.mrb[0].mxu0 %v1745
        %v1819 = vpop.f32.mrb[0].mxu0
        %v1820 = vadd.f32 0.0, %v1819
        %v1821 = vpop.f32.mrb[0].mxu0
        %1822 = vmatprep.mubr.f32.mxu0 0.0
        %1823 = vmatmul.mubr.f32.gmra.mrb[0].mxu0 %v1747
        %v1824 = vpop.f32.mrb[0].mxu0
        %v1825 = vadd.f32 0.0, %v1824
        %v1826 = vpop.f32.mrb[0].mxu0
        %1827 = vdwg.mxu0
        %1828 = vrot.lane.b32.xlu0 %v519, 96
        %v1829 = vpop.permute.xlu0 %1828
        %1830 = vrot.lane.b32.xlu0 %v521, 96
        %v1831 = vpop.permute.xlu0 %1830
        %v1832 = vsel %vm526, %v519, 0
        %v1834 = vsel %vm526, %v521, 0
        %v1836 = vsel %vm526, %v1829, 0
        %v1838 = vsel %vm526, %v1831, 0
        %1840 = vmatprep.subr.mxu0 0.0
        %1841 = vmatpush1.xpose.msra.mxu0 %v1836
        %1842 = vmatprep.subr.mxu0 0.0
        %1843 = vmatpush1.xpose.msra.mxu0 %v1838
        %1844 = vmatprep.subr.mxu0 0.0
        %1845 = vmatpush1.xpose.msra.mxu0 0.0
        %1846 = vmatprep.subr.mxu0 0.0
        %1847 = vmatpush1.xpose.msra.mxu0 0.0
        %1848 = vmatprep.subr.mxu0 0.0
        %1849 = vmatpush1.xpose.msra.mxu0 0.0
        %1850 = vmatprep.subr.mxu0 0.0
        %1851 = vmatpush1.xpose.msra.mxu0 0.0
        %1852 = vmatprep.subr.mxu0 0.0
        %1853 = vmatpush1.xpose.msra.mxu0 0.0
        %1854 = vmatprep.subr.mxu0 0.0
        %1855 = vmatpush1.xpose.msra.mxu0 0.0
        %1856 = vmatprep.subr.mxu0 0.0
        %1857 = vmatpush1.xpose.msra.mxu0 0.0
        %1858 = vmatprep.subr.mxu0 0.0
        %1859 = vmatpush1.xpose.msra.mxu0 0.0
        %1860 = vmatprep.subr.mxu0 0.0
        %1861 = vmatpush1.xpose.msra.mxu0 0.0
        %1862 = vmatprep.subr.mxu0 0.0
        %1863 = vmatpush1.xpose.msra.mxu0 0.0
        %1864 = vmatprep.subr.mxu0 0.0
        %1865 = vmatpush1.xpose.msra.mxu0 0.0
        %1866 = vmatprep.subr.mxu0 0.0
        %1867 = vmatpush1.xpose.msra.mxu0 0.0
        %1868 = vmatprep.subr.mxu0 0.0
        %1869 = vmatpush1.xpose.msra.mxu0 0.0
        %1870 = vmatprep.subr.mxu0 0.0
        %1871 = vmatpush1.xpose.msra.mxu0 0.0
        %1872 = vmatprep.subr.mxu0 0.0
        %1873 = vmatpush1.xpose.msra.mxu0 0.0
        %1874 = vmatprep.subr.mxu0 0.0
        %1875 = vmatpush1.xpose.msra.mxu0 0.0
        %1876 = vmatprep.subr.mxu0 0.0
        %1877 = vmatpush1.xpose.msra.mxu0 0.0
        %1878 = vmatprep.subr.mxu0 0.0
        %1879 = vmatpush1.xpose.msra.mxu0 0.0
        %1880 = vmatprep.subr.mxu0 0.0
        %1881 = vmatpush1.xpose.msra.mxu0 0.0
        %1882 = vmatprep.subr.mxu0 0.0
        %1883 = vmatpush1.xpose.msra.mxu0 0.0
        %1884 = vmatprep.subr.mxu0 0.0
        %1885 = vmatpush1.xpose.msra.mxu0 0.0
        %1886 = vmatprep.subr.mxu0 0.0
        %1887 = vmatpush1.xpose.msra.mxu0 0.0
        %1888 = vmatprep.subr.mxu0 0.0
        %1889 = vmatpush1.xpose.msra.mxu0 0.0
        %1890 = vmatprep.subr.mxu0 0.0
        %1891 = vmatpush1.xpose.msra.mxu0 0.0
        %1892 = vmatprep.subr.mxu0 0.0
        %1893 = vmatpush1.xpose.msra.mxu0 0.0
        %1894 = vmatprep.subr.mxu0 0.0
        %1895 = vmatpush1.xpose.msra.mxu0 0.0
        %1896 = vmatprep.subr.mxu0 0.0
        %1897 = vmatpush1.xpose.msra.mxu0 0.0
        %1898 = vmatprep.subr.mxu0 0.0
        %1899 = vmatpush1.xpose.msra.mxu0 0.0
        %1900 = vmatprep.subr.mxu0 0.0
        %1901 = vmatpush1.xpose.msra.mxu0 0.0
        %1902 = vmatprep.subr.mxu0 0.0
        %1903 = vmatpush1.xpose.msra.mxu0 0.0
        %1904 = vmatprep.mubr.f32.mxu0 0.0
        %1905 = vmatmul.mubr.f32.gmra.mrb[0].mxu0 %v1832
        %v1906 = vpop.f32.mrb[0].mxu0
        %v1907 = vadd.f32 0.0, %v1906
        %v1908 = vpop.f32.mrb[0].mxu0
        %1909 = vmatprep.mubr.f32.mxu0 0.0
        %1910 = vmatmul.mubr.f32.gmra.mrb[0].mxu0 %v1834
        %v1911 = vpop.f32.mrb[0].mxu0
        %v1912 = vadd.f32 0.0, %v1911
        %v1913 = vpop.f32.mrb[0].mxu0
        %1914 = vdwg.mxu0
        %v1915 = vld [vmem:[#allocation9] sm:$0xff]
        %v1916 = vld [vmem:[#allocation9 + $0x8] sm:$0xff]
        %v1917 = vld [vmem:[#allocation9 + $0x10] sm:$0xff]
        %v1918 = vld [vmem:[#allocation9 + $0x18] sm:$0xff]
        %v1919 = vld [vmem:[#allocation9 + $0x20] sm:$0xff]
        %v1920 = vld [vmem:[#allocation9 + $0x28] sm:$0xff]
        %v1921 = vld [vmem:[#allocation9 + $0x30] sm:$0xff]
        %v1922 = vld [vmem:[#allocation9 + $0x38] sm:$0xff]
        %v1923 = vld [vmem:[#allocation9 + $0x40] sm:$0xff]
        %v1924 = vld [vmem:[#allocation9 + $0x48] sm:$0xff]
        %v1925 = vld [vmem:[#allocation9 + $0x50] sm:$0xff]
        %v1926 = vld [vmem:[#allocation9 + $0x58] sm:$0xff]
        %v1927 = vld [vmem:[#allocation9 + $0x60] sm:$0xff]
        %v1928 = vld [vmem:[#allocation9 + $0x68] sm:$0xff]
        %v1929 = vld [vmem:[#allocation9 + $0x70] sm:$0xff]
        %v1930 = vld [vmem:[#allocation9 + $0x78] sm:$0xff]
        %v1931 = vld [vmem:[#allocation9 + $0x80] sm:$0xff]
        %v1932 = vld [vmem:[#allocation9 + $0x88] sm:$0xff]
        %v1933 = vld [vmem:[#allocation9 + $0x90] sm:$0xff]
        %v1934 = vld [vmem:[#allocation9 + $0x98] sm:$0xff]
        %v1935 = vld [vmem:[#allocation9 + $0xa0] sm:$0xff]
        %v1936 = vld [vmem:[#allocation9 + $0xa8] sm:$0xff]
        %v1937 = vld [vmem:[#allocation9 + $0xb0] sm:$0xff]
        %v1938 = vld [vmem:[#allocation9 + $0xb8] sm:$0xff]
        %v1939 = vld [vmem:[#allocation9 + $0xc0] sm:$0xff]
        %v1940 = vld [vmem:[#allocation9 + $0xc8] sm:$0xff]
        %v1941 = vld [vmem:[#allocation9 + $0xd0] sm:$0xff]
        %v1942 = vld [vmem:[#allocation9 + $0xd8] sm:$0xff]
        %v1943 = vld [vmem:[#allocation9 + $0xe0] sm:$0xff]
        %v1944 = vld [vmem:[#allocation9 + $0xe8] sm:$0xff]
        %v1945 = vld [vmem:[#allocation9 + $0xf0] sm:$0xff]
        %v1946 = vld [vmem:[#allocation9 + $0xf8] sm:$0xff]
        %v1947 = vadd.f32 %v602, %v1915
        %v1948 = vadd.f32 %v607, %v1916
        %v1949 = vadd.f32 %v689, %v1917
        %v1950 = vadd.f32 %v694, %v1918
        %v1951 = vadd.f32 %v776, %v1919
        %v1952 = vadd.f32 %v781, %v1920
        %v1953 = vadd.f32 %v863, %v1921
        %v1954 = vadd.f32 %v868, %v1922
        %v1955 = vadd.f32 %v950, %v1923
        %v1956 = vadd.f32 %v955, %v1924
        %v1957 = vadd.f32 %v1037, %v1925
        %v1958 = vadd.f32 %v1042, %v1926
        %v1959 = vadd.f32 %v1124, %v1927
        %v1960 = vadd.f32 %v1129, %v1928
        %v1961 = vadd.f32 %v1211, %v1929
        %v1962 = vadd.f32 %v1216, %v1930
        %v1963 = vadd.f32 %v1298, %v1931
        %v1964 = vadd.f32 %v1303, %v1932
        %v1965 = vadd.f32 %v1385, %v1933
        %v1966 = vadd.f32 %v1390, %v1934
        %v1967 = vadd.f32 %v1472, %v1935
        %v1968 = vadd.f32 %v1477, %v1936
        %v1969 = vadd.f32 %v1559, %v1937
        %v1970 = vadd.f32 %v1564, %v1938
        %v1971 = vadd.f32 %v1646, %v1939
        %v1972 = vadd.f32 %v1651, %v1940
        %v1973 = vadd.f32 %v1733, %v1941
        %v1974 = vadd.f32 %v1738, %v1942
        %v1975 = vadd.f32 %v1820, %v1943
        %v1976 = vadd.f32 %v1825, %v1944
        %v1977 = vadd.f32 %v1907, %v1945
        %v1978 = vadd.f32 %v1912, %v1946
        %vm1979 = vcmask 130048
        %v1980 = vsel %vm1979, %v1947, -inf
        %1981 = vmax.xlane.f32.xlu0 %v1980
        %v1982 = vpop.xlane.xlu0 %1981
        %v1983 = vsel %vm1979, %v1948, -inf
        %1984 = vmax.xlane.f32.xlu0 %v1983
        %v1985 = vpop.xlane.xlu0 %1984
        %v1986 = vsel %vm1979, %v1949, -inf
        %1987 = vmax.xlane.f32.xlu0 %v1986
        %v1988 = vpop.xlane.xlu0 %1987
        %v1989 = vsel %vm1979, %v1950, -inf
        %1990 = vmax.xlane.f32.xlu0 %v1989
        %v1991 = vpop.xlane.xlu0 %1990
        %v1992 = vsel %vm1979, %v1951, -inf
        %1993 = vmax.xlane.f32.xlu0 %v1992
        %v1994 = vpop.xlane.xlu0 %1993
        %v1995 = vsel %vm1979, %v1952, -inf
        %1996 = vmax.xlane.f32.xlu0 %v1995
        %v1997 = vpop.xlane.xlu0 %1996
        %v1998 = vsel %vm1979, %v1953, -inf
        %1999 = vmax.xlane.f32.xlu0 %v1998
        %v2000 = vpop.xlane.xlu0 %1999
        %v2001 = vsel %vm1979, %v1954, -inf
        %2002 = vmax.xlane.f32.xlu0 %v2001
        %v2003 = vpop.xlane.xlu0 %2002
        %v2004 = vsel %vm1979, %v1955, -inf
        %2005 = vmax.xlane.f32.xlu0 %v2004
        %v2006 = vpop.xlane.xlu0 %2005
        %v2007 = vsel %vm1979, %v1956, -inf
        %2008 = vmax.xlane.f32.xlu0 %v2007
        %v2009 = vpop.xlane.xlu0 %2008
        %v2010 = vsel %vm1979, %v1957, -inf
        %2011 = vmax.xlane.f32.xlu0 %v2010
        %v2012 = vpop.xlane.xlu0 %2011
        %v2013 = vsel %vm1979, %v1958, -inf
        %2014 = vmax.xlane.f32.xlu0 %v2013
        %v2015 = vpop.xlane.xlu0 %2014
        %v2016 = vsel %vm1979, %v1959, -inf
        %2017 = vmax.xlane.f32.xlu0 %v2016
        %v2018 = vpop.xlane.xlu0 %2017
        %v2019 = vsel %vm1979, %v1960, -inf
        %2020 = vmax.xlane.f32.xlu0 %v2019
        %v2021 = vpop.xlane.xlu0 %2020
        %v2022 = vsel %vm1979, %v1961, -inf
        %2023 = vmax.xlane.f32.xlu0 %v2022
        %v2024 = vpop.xlane.xlu0 %2023
        %v2025 = vsel %vm1979, %v1962, -inf
        %2026 = vmax.xlane.f32.xlu0 %v2025
        %v2027 = vpop.xlane.xlu0 %2026
        %v2028 = vsel %vm1979, %v1963, -inf
        %2029 = vmax.xlane.f32.xlu0 %v2028
        %v2030 = vpop.xlane.xlu0 %2029
        %v2031 = vsel %vm1979, %v1964, -inf
        %2032 = vmax.xlane.f32.xlu0 %v2031
        %v2033 = vpop.xlane.xlu0 %2032
        %v2034 = vsel %vm1979, %v1965, -inf
        %2035 = vmax.xlane.f32.xlu0 %v2034
        %v2036 = vpop.xlane.xlu0 %2035
        %v2037 = vsel %vm1979, %v1966, -inf
        %2038 = vmax.xlane.f32.xlu0 %v2037
        %v2039 = vpop.xlane.xlu0 %2038
        %v2040 = vsel %vm1979, %v1967, -inf
        %2041 = vmax.xlane.f32.xlu0 %v2040
        %v2042 = vpop.xlane.xlu0 %2041
        %v2043 = vsel %vm1979, %v1968, -inf
        %2044 = vmax.xlane.f32.xlu0 %v2043
        %v2045 = vpop.xlane.xlu0 %2044
        %v2046 = vsel %vm1979, %v1969, -inf
        %2047 = vmax.xlane.f32.xlu0 %v2046
        %v2048 = vpop.xlane.xlu0 %2047
        %v2049 = vsel %vm1979, %v1970, -inf
        %2050 = vmax.xlane.f32.xlu0 %v2049
        %v2051 = vpop.xlane.xlu0 %2050
        %v2052 = vsel %vm1979, %v1971, -inf
        %2053 = vmax.xlane.f32.xlu0 %v2052
        %v2054 = vpop.xlane.xlu0 %2053
        %v2055 = vsel %vm1979, %v1972, -inf
        %2056 = vmax.xlane.f32.xlu0 %v2055
        %v2057 = vpop.xlane.xlu0 %2056
        %v2058 = vsel %vm1979, %v1973, -inf
        %2059 = vmax.xlane.f32.xlu0 %v2058
        %v2060 = vpop.xlane.xlu0 %2059
        %v2061 = vsel %vm1979, %v1974, -inf
        %2062 = vmax.xlane.f32.xlu0 %v2061
        %v2063 = vpop.xlane.xlu0 %2062
        %v2064 = vsel %vm1979, %v1975, -inf
        %2065 = vmax.xlane.f32.xlu0 %v2064
        %v2066 = vpop.xlane.xlu0 %2065
        %v2067 = vsel %vm1979, %v1976, -inf
        %2068 = vmax.xlane.f32.xlu0 %v2067
        %v2069 = vpop.xlane.xlu0 %2068
        %v2070 = vsel %vm1979, %v1977, -inf
        %2071 = vmax.xlane.f32.xlu0 %v2070
        %v2072 = vpop.xlane.xlu0 %2071
        %v2073 = vsel %vm1979, %v1978, -inf
        %2074 = vmax.xlane.f32.xlu0 %v2073
        %v2075 = vpop.xlane.xlu0 %2074
        %v2076 = vsub.f32 %v1947, %v1982
        %v2077 = vsub.f32 %v1948, %v1985
        %v2078 = vsub.f32 %v1949, %v1988
        %v2079 = vsub.f32 %v1950, %v1991
        %v2080 = vsub.f32 %v1951, %v1994
        %v2081 = vsub.f32 %v1952, %v1997
        %v2082 = vsub.f32 %v1953, %v2000
        %v2083 = vsub.f32 %v1954, %v2003
        %v2084 = vsub.f32 %v1955, %v2006
        %v2085 = vsub.f32 %v1956, %v2009
        %v2086 = vsub.f32 %v1957, %v2012
        %v2087 = vsub.f32 %v1958, %v2015
        %v2088 = vsub.f32 %v1959, %v2018
        %v2089 = vsub.f32 %v1960, %v2021
        %v2090 = vsub.f32 %v1961, %v2024
        %v2091 = vsub.f32 %v1962, %v2027
        %v2092 = vsub.f32 %v1963, %v2030
        %v2093 = vsub.f32 %v1964, %v2033
        %v2094 = vsub.f32 %v1965, %v2036
        %v2095 = vsub.f32 %v1966, %v2039
        %v2096 = vsub.f32 %v1967, %v2042
        %v2097 = vsub.f32 %v1968, %v2045
        %v2098 = vsub.f32 %v1969, %v2048
        %v2099 = vsub.f32 %v1970, %v2051
        %v2100 = vsub.f32 %v1971, %v2054
        %v2101 = vsub.f32 %v1972, %v2057
        %v2102 = vsub.f32 %v1973, %v2060
        %v2103 = vsub.f32 %v1974, %v2063
        %v2104 = vsub.f32 %v1975, %v2066
        %v2105 = vsub.f32 %v1976, %v2069
        %v2106 = vsub.f32 %v1977, %v2072
        %v2107 = vsub.f32 %v1978, %v2075
        %v2108 = vmul.f32 %v2076, 1.442695
        %v2109 = vpow.pop %v2108
        %v2110 = vmul.f32 %v2077, 1.442695
        %v2111 = vpow.pop %v2110
        %v2112 = vmul.f32 %v2078, 1.442695
        %v2113 = vpow.pop %v2112
        %v2114 = vmul.f32 %v2079, 1.442695
        %v2115 = vpow.pop %v2114
        %v2116 = vmul.f32 %v2080, 1.442695
        %v2117 = vpow.pop %v2116
        %v2118 = vmul.f32 %v2081, 1.442695
        %v2119 = vpow.pop %v2118
        %v2120 = vmul.f32 %v2082, 1.442695
        %v2121 = vpow.pop %v2120
        %v2122 = vmul.f32 %v2083, 1.442695
        %v2123 = vpow.pop %v2122
        %v2124 = vmul.f32 %v2084, 1.442695
        %v2125 = vpow.pop %v2124
        %v2126 = vmul.f32 %v2085, 1.442695
        %v2127 = vpow.pop %v2126
        %v2128 = vmul.f32 %v2086, 1.442695
        %v2129 = vpow.pop %v2128
        %v2130 = vmul.f32 %v2087, 1.442695
        %v2131 = vpow.pop %v2130
        %v2132 = vmul.f32 %v2088, 1.442695
        %v2133 = vpow.pop %v2132
        %v2134 = vmul.f32 %v2089, 1.442695
        %v2135 = vpow.pop %v2134
        %v2136 = vmul.f32 %v2090, 1.442695
        %v2137 = vpow.pop %v2136
        %v2138 = vmul.f32 %v2091, 1.442695
        %v2139 = vpow.pop %v2138
        %v2140 = vmul.f32 %v2092, 1.442695
        %v2141 = vpow.pop %v2140
        %v2142 = vmul.f32 %v2093, 1.442695
        %v2143 = vpow.pop %v2142
        %v2144 = vmul.f32 %v2094, 1.442695
        %v2145 = vpow.pop %v2144
        %v2146 = vmul.f32 %v2095, 1.442695
        %v2147 = vpow.pop %v2146
        %v2148 = vmul.f32 %v2096, 1.442695
        %v2149 = vpow.pop %v2148
        %v2150 = vmul.f32 %v2097, 1.442695
        %v2151 = vpow.pop %v2150
        %v2152 = vmul.f32 %v2098, 1.442695
        %v2153 = vpow.pop %v2152
        %v2154 = vmul.f32 %v2099, 1.442695
        %v2155 = vpow.pop %v2154
        %v2156 = vmul.f32 %v2100, 1.442695
        %v2157 = vpow.pop %v2156
        %v2158 = vmul.f32 %v2101, 1.442695
        %v2159 = vpow.pop %v2158
        %v2160 = vmul.f32 %v2102, 1.442695
        %v2161 = vpow.pop %v2160
        %v2162 = vmul.f32 %v2103, 1.442695
        %v2163 = vpow.pop %v2162
        %v2164 = vmul.f32 %v2104, 1.442695
        %v2165 = vpow.pop %v2164
        %v2166 = vmul.f32 %v2105, 1.442695
        %v2167 = vpow.pop %v2166
        %v2168 = vmul.f32 %v2106, 1.442695
        %v2169 = vpow.pop %v2168
        %v2170 = vmul.f32 %v2107, 1.442695
        %v2171 = vpow.pop %v2170
        %v2172 = vsel %vm1979, %v2109, 0.0
        %2173 = vadd.xlane.f32.xlu0 %v2172
        %v2174 = vpop.xlane.xlu0 %2173
        %v2175 = vsel %vm1979, %v2111, 0.0
        %2176 = vadd.xlane.f32.xlu0 %v2175
        %v2177 = vpop.xlane.xlu0 %2176
        %v2178 = vsel %vm1979, %v2113, 0.0
        %2179 = vadd.xlane.f32.xlu0 %v2178
        %v2180 = vpop.xlane.xlu0 %2179
        %v2181 = vsel %vm1979, %v2115, 0.0
        %2182 = vadd.xlane.f32.xlu0 %v2181
        %v2183 = vpop.xlane.xlu0 %2182
        %v2184 = vsel %vm1979, %v2117, 0.0
        %2185 = vadd.xlane.f32.xlu0 %v2184
        %v2186 = vpop.xlane.xlu0 %2185
        %v2187 = vsel %vm1979, %v2119, 0.0
        %2188 = vadd.xlane.f32.xlu0 %v2187
        %v2189 = vpop.xlane.xlu0 %2188
        %v2190 = vsel %vm1979, %v2121, 0.0
        %2191 = vadd.xlane.f32.xlu0 %v2190
        %v2192 = vpop.xlane.xlu0 %2191
        %v2193 = vsel %vm1979, %v2123, 0.0
        %2194 = vadd.xlane.f32.xlu0 %v2193
        %v2195 = vpop.xlane.xlu0 %2194
        %v2196 = vsel %vm1979, %v2125, 0.0
        %2197 = vadd.xlane.f32.xlu0 %v2196
        %v2198 = vpop.xlane.xlu0 %2197
        %v2199 = vsel %vm1979, %v2127, 0.0
        %2200 = vadd.xlane.f32.xlu0 %v2199
        %v2201 = vpop.xlane.xlu0 %2200
        %v2202 = vsel %vm1979, %v2129, 0.0
        %2203 = vadd.xlane.f32.xlu0 %v2202
        %v2204 = vpop.xlane.xlu0 %2203
        %v2205 = vsel %vm1979, %v2131, 0.0
        %2206 = vadd.xlane.f32.xlu0 %v2205
        %v2207 = vpop.xlane.xlu0 %2206
        %v2208 = vsel %vm1979, %v2133, 0.0
        %2209 = vadd.xlane.f32.xlu0 %v2208
        %v2210 = vpop.xlane.xlu0 %2209
        %v2211 = vsel %vm1979, %v2135, 0.0
        %2212 = vadd.xlane.f32.xlu0 %v2211
        %v2213 = vpop.xlane.xlu0 %2212
        %v2214 = vsel %vm1979, %v2137, 0.0
        %2215 = vadd.xlane.f32.xlu0 %v2214
        %v2216 = vpop.xlane.xlu0 %2215
        %v2217 = vsel %vm1979, %v2139, 0.0
        %2218 = vadd.xlane.f32.xlu0 %v2217
        %v2219 = vpop.xlane.xlu0 %2218
        %v2220 = vsel %vm1979, %v2141, 0.0
        %2221 = vadd.xlane.f32.xlu0 %v2220
        %v2222 = vpop.xlane.xlu0 %2221
        %v2223 = vsel %vm1979, %v2143, 0.0
        %2224 = vadd.xlane.f32.xlu0 %v2223
        %v2225 = vpop.xlane.xlu0 %2224
        %v2226 = vsel %vm1979, %v2145, 0.0
        %2227 = vadd.xlane.f32.xlu0 %v2226
        %v2228 = vpop.xlane.xlu0 %2227
        %v2229 = vsel %vm1979, %v2147, 0.0
        %2230 = vadd.xlane.f32.xlu0 %v2229
        %v2231 = vpop.xlane.xlu0 %2230
        %v2232 = vsel %vm1979, %v2149, 0.0
        %2233 = vadd.xlane.f32.xlu0 %v2232
        %v2234 = vpop.xlane.xlu0 %2233
        %v2235 = vsel %vm1979, %v2151, 0.0
        %2236 = vadd.xlane.f32.xlu0 %v2235
        %v2237 = vpop.xlane.xlu0 %2236
        %v2238 = vsel %vm1979, %v2153, 0.0
        %2239 = vadd.xlane.f32.xlu0 %v2238
        %v2240 = vpop.xlane.xlu0 %2239
        %v2241 = vsel %vm1979, %v2155, 0.0
        %2242 = vadd.xlane.f32.xlu0 %v2241
        %v2243 = vpop.xlane.xlu0 %2242
        %v2244 = vsel %vm1979, %v2157, 0.0
        %2245 = vadd.xlane.f32.xlu0 %v2244
        %v2246 = vpop.xlane.xlu0 %2245
        %v2247 = vsel %vm1979, %v2159, 0.0
        %2248 = vadd.xlane.f32.xlu0 %v2247
        %v2249 = vpop.xlane.xlu0 %2248
        %v2250 = vsel %vm1979, %v2161, 0.0
        %2251 = vadd.xlane.f32.xlu0 %v2250
        %v2252 = vpop.xlane.xlu0 %2251
        %v2253 = vsel %vm1979, %v2163, 0.0
        %2254 = vadd.xlane.f32.xlu0 %v2253
        %v2255 = vpop.xlane.xlu0 %2254
        %v2256 = vsel %vm1979, %v2165, 0.0
        %2257 = vadd.xlane.f32.xlu0 %v2256
        %v2258 = vpop.xlane.xlu0 %2257
        %v2259 = vsel %vm1979, %v2167, 0.0
        %2260 = vadd.xlane.f32.xlu0 %v2259
        %v2261 = vpop.xlane.xlu0 %2260
        %v2262 = vsel %vm1979, %v2169, 0.0
        %2263 = vadd.xlane.f32.xlu0 %v2262
        %v2264 = vpop.xlane.xlu0 %2263
        %v2265 = vsel %vm1979, %v2171, 0.0
        %2266 = vadd.xlane.f32.xlu0 %v2265
        %v2267 = vpop.xlane.xlu0 %2266
        %v2268 = vrcp.pop %v2174
        %v2269 = vrcp.pop %v2177
        %v2270 = vrcp.pop %v2180
        %v2271 = vrcp.pop %v2183
        %v2272 = vrcp.pop %v2186
        %v2273 = vrcp.pop %v2189
        %v2274 = vrcp.pop %v2192
        %v2275 = vrcp.pop %v2195
        %v2276 = vrcp.pop %v2198
        %v2277 = vrcp.pop %v2201
        %v2278 = vrcp.pop %v2204
        %v2279 = vrcp.pop %v2207
        %v2280 = vrcp.pop %v2210
        %v2281 = vrcp.pop %v2213
        %v2282 = vrcp.pop %v2216
        %v2283 = vrcp.pop %v2219
        %v2284 = vrcp.pop %v2222
        %v2285 = vrcp.pop %v2225
        %v2286 = vrcp.pop %v2228
        %v2287 = vrcp.pop %v2231
        %v2288 = vrcp.pop %v2234
        %v2289 = vrcp.pop %v2237
        %v2290 = vrcp.pop %v2240
        %v2291 = vrcp.pop %v2243
        %v2292 = vrcp.pop %v2246
        %v2293 = vrcp.pop %v2249
        %v2294 = vrcp.pop %v2252
        %v2295 = vrcp.pop %v2255
        %v2296 = vrcp.pop %v2258
        %v2297 = vrcp.pop %v2261
        %v2298 = vrcp.pop %v2264
        %v2299 = vrcp.pop %v2267
        %v2300 = vmul.f32 %v2109, %v2268
        %v2301 = vmul.f32 %v2111, %v2269
        %v2302 = vmul.f32 %v2113, %v2270
        %v2303 = vmul.f32 %v2115, %v2271
        %v2304 = vmul.f32 %v2117, %v2272
        %v2305 = vmul.f32 %v2119, %v2273
        %v2306 = vmul.f32 %v2121, %v2274
        %v2307 = vmul.f32 %v2123, %v2275
        %v2308 = vmul.f32 %v2125, %v2276
        %v2309 = vmul.f32 %v2127, %v2277
        %v2310 = vmul.f32 %v2129, %v2278
        %v2311 = vmul.f32 %v2131, %v2279
        %v2312 = vmul.f32 %v2133, %v2280
        %v2313 = vmul.f32 %v2135, %v2281
        %v2314 = vmul.f32 %v2137, %v2282
        %v2315 = vmul.f32 %v2139, %v2283
        %v2316 = vmul.f32 %v2141, %v2284
        %v2317 = vmul.f32 %v2143, %v2285
        %v2318 = vmul.f32 %v2145, %v2286
        %v2319 = vmul.f32 %v2147, %v2287
        %v2320 = vmul.f32 %v2149, %v2288
        %v2321 = vmul.f32 %v2151, %v2289
        %v2322 = vmul.f32 %v2153, %v2290
        %v2323 = vmul.f32 %v2155, %v2291
        %v2324 = vmul.f32 %v2157, %v2292
        %v2325 = vmul.f32 %v2159, %v2293
        %v2326 = vmul.f32 %v2161, %v2294
        %v2327 = vmul.f32 %v2163, %v2295
        %v2328 = vmul.f32 %v2165, %v2296
        %v2329 = vmul.f32 %v2167, %v2297
        %v2330 = vmul.f32 %v2169, %v2298
        %v2331 = vmul.f32 %v2171, %v2299
        %2332 = vrot.lane.b32.xlu0 %v428, 64
        %v2333 = vpop.permute.xlu0 %2332
        %2334 = vrot.lane.b32.xlu0 %v433, 64
        %v2335 = vpop.permute.xlu0 %2334
        %v2339 = vsel %vm1979, %v2300, 0
        %v2342 = vsel %vm1979, %v2301, 0
        %2344 = vmatprep.subr.mxu0 0.0
        %2345 = vmatpush1.msra.mxu0 %v2333
        %2346 = vmatprep.subr.mxu0 0.0
        %2347 = vmatpush1.msra.mxu0 %v2335
        %2348 = vmatprep.subr.mxu0 0.0
        %2349 = vmatpush1.msra.mxu0 0.0
        %2350 = vmatprep.subr.mxu0 0.0
        %2351 = vmatpush1.msra.mxu0 0.0
        %2352 = vmatprep.subr.mxu0 0.0
        %2353 = vmatpush1.msra.mxu0 0.0
        %2354 = vmatprep.subr.mxu0 0.0
        %2355 = vmatpush1.msra.mxu0 0.0
        %2356 = vmatprep.subr.mxu0 0.0
        %2357 = vmatpush1.msra.mxu0 0.0
        %2358 = vmatprep.subr.mxu0 0.0
        %2359 = vmatpush1.msra.mxu0 0.0
        %2360 = vmatprep.subr.mxu0 0.0
        %2361 = vmatpush1.msra.mxu0 0.0
        %2362 = vmatprep.subr.mxu0 0.0
        %2363 = vmatpush1.msra.mxu0 0.0
        %2364 = vmatprep.subr.mxu0 0.0
        %2365 = vmatpush1.msra.mxu0 0.0
        %2366 = vmatprep.subr.mxu0 0.0
        %2367 = vmatpush1.msra.mxu0 0.0
        %2368 = vmatprep.subr.mxu0 0.0
        %2369 = vmatpush1.msra.mxu0 0.0
        %2370 = vmatprep.subr.mxu0 0.0
        %2371 = vmatpush1.msra.mxu0 0.0
        %2372 = vmatprep.subr.mxu0 0.0
        %2373 = vmatpush1.msra.mxu0 0.0
        %2374 = vmatprep.subr.mxu0 0.0
        %2375 = vmatpush1.msra.mxu0 0.0
        %2376 = vmatprep.subr.mxu0 0.0
        %2377 = vmatpush1.msra.mxu0 0.0
        %2378 = vmatprep.subr.mxu0 0.0
        %2379 = vmatpush1.msra.mxu0 0.0
        %2380 = vmatprep.subr.mxu0 0.0
        %2381 = vmatpush1.msra.mxu0 0.0
        %2382 = vmatprep.subr.mxu0 0.0
        %2383 = vmatpush1.msra.mxu0 0.0
        %2384 = vmatprep.subr.mxu0 0.0
        %2385 = vmatpush1.msra.mxu0 0.0
        %2386 = vmatprep.subr.mxu0 0.0
        %2387 = vmatpush1.msra.mxu0 0.0
        %2388 = vmatprep.subr.mxu0 0.0
        %2389 = vmatpush1.msra.mxu0 0.0
        %2390 = vmatprep.subr.mxu0 0.0
        %2391 = vmatpush1.msra.mxu0 0.0
        %2392 = vmatprep.subr.mxu0 0.0
        %2393 = vmatpush1.msra.mxu0 0.0
        %2394 = vmatprep.subr.mxu0 0.0
        %2395 = vmatpush1.msra.mxu0 0.0
        %2396 = vmatprep.subr.mxu0 0.0
        %2397 = vmatpush1.msra.mxu0 0.0
        %2398 = vmatprep.subr.mxu0 0.0
        %2399 = vmatpush1.msra.mxu0 0.0
        %2400 = vmatprep.subr.mxu0 0.0
        %2401 = vmatpush1.msra.mxu0 0.0
        %2402 = vmatprep.subr.mxu0 0.0
        %2403 = vmatpush1.msra.mxu0 0.0
        %2404 = vmatprep.subr.mxu0 0.0
        %2405 = vmatpush1.msra.mxu0 0.0
        %2406 = vmatprep.subr.mxu0 0.0
        %2407 = vmatpush1.msra.mxu0 0.0
        %2408 = vmatprep.mubr.f32.mxu0 0.0
        %2409 = vmatmul.mubr.f32.gmra.mrb[0].mxu0 %v2339
        %v2410 = vpop.f32.mrb[0].mxu0
        %v2411 = vadd.f32 0.0, %v2410
        %v2412 = vpop.f32.mrb[0].mxu0
        %2413 = vmatprep.mubr.f32.mxu0 0.0
        %2414 = vmatmul.mubr.f32.gmra.mrb[0].mxu0 %v2342
        %v2415 = vpop.f32.mrb[0].mxu0
        %v2416 = vadd.f32 0.0, %v2415
        %v2417 = vpop.f32.mrb[0].mxu0
        %2418 = vdwg.mxu0
        %2419 = vrot.lane.b32.xlu0 %v475, 64
        %v2420 = vpop.permute.xlu0 %2419
        %2421 = vrot.lane.b32.xlu0 %v477, 64
        %v2422 = vpop.permute.xlu0 %2421
        %v2426 = vsel %vm1979, %v2302, 0
        %v2429 = vsel %vm1979, %v2303, 0
        %2431 = vmatprep.subr.mxu0 0.0
        %2432 = vmatpush1.msra.mxu0 %v2420
        %2433 = vmatprep.subr.mxu0 0.0
        %2434 = vmatpush1.msra.mxu0 %v2422
        %2435 = vmatprep.subr.mxu0 0.0
        %2436 = vmatpush1.msra.mxu0 0.0
        %2437 = vmatprep.subr.mxu0 0.0
        %2438 = vmatpush1.msra.mxu0 0.0
        %2439 = vmatprep.subr.mxu0 0.0
        %2440 = vmatpush1.msra.mxu0 0.0
        %2441 = vmatprep.subr.mxu0 0.0
        %2442 = vmatpush1.msra.mxu0 0.0
        %2443 = vmatprep.subr.mxu0 0.0
        %2444 = vmatpush1.msra.mxu0 0.0
        %2445 = vmatprep.subr.mxu0 0.0
        %2446 = vmatpush1.msra.mxu0 0.0
        %2447 = vmatprep.subr.mxu0 0.0
        %2448 = vmatpush1.msra.mxu0 0.0
        %2449 = vmatprep.subr.mxu0 0.0
        %2450 = vmatpush1.msra.mxu0 0.0
        %2451 = vmatprep.subr.mxu0 0.0
        %2452 = vmatpush1.msra.mxu0 0.0
        %2453 = vmatprep.subr.mxu0 0.0
        %2454 = vmatpush1.msra.mxu0 0.0
        %2455 = vmatprep.subr.mxu0 0.0
        %2456 = vmatpush1.msra.mxu0 0.0
        %2457 = vmatprep.subr.mxu0 0.0
        %2458 = vmatpush1.msra.mxu0 0.0
        %2459 = vmatprep.subr.mxu0 0.0
        %2460 = vmatpush1.msra.mxu0 0.0
        %2461 = vmatprep.subr.mxu0 0.0
        %2462 = vmatpush1.msra.mxu0 0.0
        %2463 = vmatprep.subr.mxu0 0.0
        %2464 = vmatpush1.msra.mxu0 0.0
        %2465 = vmatprep.subr.mxu0 0.0
        %2466 = vmatpush1.msra.mxu0 0.0
        %2467 = vmatprep.subr.mxu0 0.0
        %2468 = vmatpush1.msra.mxu0 0.0
        %2469 = vmatprep.subr.mxu0 0.0
        %2470 = vmatpush1.msra.mxu0 0.0
        %2471 = vmatprep.subr.mxu0 0.0
        %2472 = vmatpush1.msra.mxu0 0.0
        %2473 = vmatprep.subr.mxu0 0.0
        %2474 = vmatpush1.msra.mxu0 0.0
        %2475 = vmatprep.subr.mxu0 0.0
        %2476 = vmatpush1.msra.mxu0 0.0
        %2477 = vmatprep.subr.mxu0 0.0
        %2478 = vmatpush1.msra.mxu0 0.0
        %2479 = vmatprep.subr.mxu0 0.0
        %2480 = vmatpush1.msra.mxu0 0.0
        %2481 = vmatprep.subr.mxu0 0.0
        %2482 = vmatpush1.msra.mxu0 0.0
        %2483 = vmatprep.subr.mxu0 0.0
        %2484 = vmatpush1.msra.mxu0 0.0
        %2485 = vmatprep.subr.mxu0 0.0
        %2486 = vmatpush1.msra.mxu0 0.0
        %2487 = vmatprep.subr.mxu0 0.0
        %2488 = vmatpush1.msra.mxu0 0.0
        %2489 = vmatprep.subr.mxu0 0.0
        %2490 = vmatpush1.msra.mxu0 0.0
        %2491 = vmatprep.subr.mxu0 0.0
        %2492 = vmatpush1.msra.mxu0 0.0
        %2493 = vmatprep.subr.mxu0 0.0
        %2494 = vmatpush1.msra.mxu0 0.0
        %2495 = vmatprep.mubr.f32.mxu0 0.0
        %2496 = vmatmul.mubr.f32.gmra.mrb[0].mxu0 %v2426
        %v2497 = vpop.f32.mrb[0].mxu0
        %v2498 = vadd.f32 0.0, %v2497
        %v2499 = vpop.f32.mrb[0].mxu0
        %2500 = vmatprep.mubr.f32.mxu0 0.0
        %2501 = vmatmul.mubr.f32.gmra.mrb[0].mxu0 %v2429
        %v2502 = vpop.f32.mrb[0].mxu0
        %v2503 = vadd.f32 0.0, %v2502
        %v2504 = vpop.f32.mrb[0].mxu0
        %2505 = vdwg.mxu0
        %2506 = vrot.lane.b32.xlu0 %v491, 64
        %v2507 = vpop.permute.xlu0 %2506
        %2508 = vrot.lane.b32.xlu0 %v493, 64
        %v2509 = vpop.permute.xlu0 %2508
        %v2513 = vsel %vm1979, %v2304, 0
        %v2516 = vsel %vm1979, %v2305, 0
        %2518 = vmatprep.subr.mxu0 0.0
        %2519 = vmatpush1.msra.mxu0 %v2507
        %2520 = vmatprep.subr.mxu0 0.0
        %2521 = vmatpush1.msra.mxu0 %v2509
        %2522 = vmatprep.subr.mxu0 0.0
        %2523 = vmatpush1.msra.mxu0 0.0
        %2524 = vmatprep.subr.mxu0 0.0
        %2525 = vmatpush1.msra.mxu0 0.0
        %2526 = vmatprep.subr.mxu0 0.0
        %2527 = vmatpush1.msra.mxu0 0.0
        %2528 = vmatprep.subr.mxu0 0.0
        %2529 = vmatpush1.msra.mxu0 0.0
        %2530 = vmatprep.subr.mxu0 0.0
        %2531 = vmatpush1.msra.mxu0 0.0
        %2532 = vmatprep.subr.mxu0 0.0
        %2533 = vmatpush1.msra.mxu0 0.0
        %2534 = vmatprep.subr.mxu0 0.0
        %2535 = vmatpush1.msra.mxu0 0.0
        %2536 = vmatprep.subr.mxu0 0.0
        %2537 = vmatpush1.msra.mxu0 0.0
        %2538 = vmatprep.subr.mxu0 0.0
        %2539 = vmatpush1.msra.mxu0 0.0
        %2540 = vmatprep.subr.mxu0 0.0
        %2541 = vmatpush1.msra.mxu0 0.0
        %2542 = vmatprep.subr.mxu0 0.0
        %2543 = vmatpush1.msra.mxu0 0.0
        %2544 = vmatprep.subr.mxu0 0.0
        %2545 = vmatpush1.msra.mxu0 0.0
        %2546 = vmatprep.subr.mxu0 0.0
        %2547 = vmatpush1.msra.mxu0 0.0
        %2548 = vmatprep.subr.mxu0 0.0
        %2549 = vmatpush1.msra.mxu0 0.0
        %2550 = vmatprep.subr.mxu0 0.0
        %2551 = vmatpush1.msra.mxu0 0.0
        %2552 = vmatprep.subr.mxu0 0.0
        %2553 = vmatpush1.msra.mxu0 0.0
        %2554 = vmatprep.subr.mxu0 0.0
        %2555 = vmatpush1.msra.mxu0 0.0
        %2556 = vmatprep.subr.mxu0 0.0
        %2557 = vmatpush1.msra.mxu0 0.0
        %2558 = vmatprep.subr.mxu0 0.0
        %2559 = vmatpush1.msra.mxu0 0.0
        %2560 = vmatprep.subr.mxu0 0.0
        %2561 = vmatpush1.msra.mxu0 0.0
        %2562 = vmatprep.subr.mxu0 0.0
        %2563 = vmatpush1.msra.mxu0 0.0
        %2564 = vmatprep.subr.mxu0 0.0
        %2565 = vmatpush1.msra.mxu0 0.0
        %2566 = vmatprep.subr.mxu0 0.0
        %2567 = vmatpush1.msra.mxu0 0.0
        %2568 = vmatprep.subr.mxu0 0.0
        %2569 = vmatpush1.msra.mxu0 0.0
        %2570 = vmatprep.subr.mxu0 0.0
        %2571 = vmatpush1.msra.mxu0 0.0
        %2572 = vmatprep.subr.mxu0 0.0
        %2573 = vmatpush1.msra.mxu0 0.0
        %2574 = vmatprep.subr.mxu0 0.0
        %2575 = vmatpush1.msra.mxu0 0.0
        %2576 = vmatprep.subr.mxu0 0.0
        %2577 = vmatpush1.msra.mxu0 0.0
        %2578 = vmatprep.subr.mxu0 0.0
        %2579 = vmatpush1.msra.mxu0 0.0
        %2580 = vmatprep.subr.mxu0 0.0
        %2581 = vmatpush1.msra.mxu0 0.0
        %2582 = vmatprep.mubr.f32.mxu0 0.0
        %2583 = vmatmul.mubr.f32.gmra.mrb[0].mxu0 %v2513
        %v2584 = vpop.f32.mrb[0].mxu0
        %v2585 = vadd.f32 0.0, %v2584
        %v2586 = vpop.f32.mrb[0].mxu0
        %2587 = vmatprep.mubr.f32.mxu0 0.0
        %2588 = vmatmul.mubr.f32.gmra.mrb[0].mxu0 %v2516
        %v2589 = vpop.f32.mrb[0].mxu0
        %v2590 = vadd.f32 0.0, %v2589
        %v2591 = vpop.f32.mrb[0].mxu0
        %2592 = vdwg.mxu0
        %2593 = vrot.lane.b32.xlu0 %v507, 64
        %v2594 = vpop.permute.xlu0 %2593
        %2595 = vrot.lane.b32.xlu0 %v509, 64
        %v2596 = vpop.permute.xlu0 %2595
        %v2600 = vsel %vm1979, %v2306, 0
        %v2603 = vsel %vm1979, %v2307, 0
        %2605 = vmatprep.subr.mxu0 0.0
        %2606 = vmatpush1.msra.mxu0 %v2594
        %2607 = vmatprep.subr.mxu0 0.0
        %2608 = vmatpush1.msra.mxu0 %v2596
        %2609 = vmatprep.subr.mxu0 0.0
        %2610 = vmatpush1.msra.mxu0 0.0
        %2611 = vmatprep.subr.mxu0 0.0
        %2612 = vmatpush1.msra.mxu0 0.0
        %2613 = vmatprep.subr.mxu0 0.0
        %2614 = vmatpush1.msra.mxu0 0.0
        %2615 = vmatprep.subr.mxu0 0.0
        %2616 = vmatpush1.msra.mxu0 0.0
        %2617 = vmatprep.subr.mxu0 0.0
        %2618 = vmatpush1.msra.mxu0 0.0
        %2619 = vmatprep.subr.mxu0 0.0
        %2620 = vmatpush1.msra.mxu0 0.0
        %2621 = vmatprep.subr.mxu0 0.0
        %2622 = vmatpush1.msra.mxu0 0.0
        %2623 = vmatprep.subr.mxu0 0.0
        %2624 = vmatpush1.msra.mxu0 0.0
        %2625 = vmatprep.subr.mxu0 0.0
        %2626 = vmatpush1.msra.mxu0 0.0
        %2627 = vmatprep.subr.mxu0 0.0
        %2628 = vmatpush1.msra.mxu0 0.0
        %2629 = vmatprep.subr.mxu0 0.0
        %2630 = vmatpush1.msra.mxu0 0.0
        %2631 = vmatprep.subr.mxu0 0.0
        %2632 = vmatpush1.msra.mxu0 0.0
        %2633 = vmatprep.subr.mxu0 0.0
        %2634 = vmatpush1.msra.mxu0 0.0
        %2635 = vmatprep.subr.mxu0 0.0
        %2636 = vmatpush1.msra.mxu0 0.0
        %2637 = vmatprep.subr.mxu0 0.0
        %2638 = vmatpush1.msra.mxu0 0.0
        %2639 = vmatprep.subr.mxu0 0.0
        %2640 = vmatpush1.msra.mxu0 0.0
        %2641 = vmatprep.subr.mxu0 0.0
        %2642 = vmatpush1.msra.mxu0 0.0
        %2643 = vmatprep.subr.mxu0 0.0
        %2644 = vmatpush1.msra.mxu0 0.0
        %2645 = vmatprep.subr.mxu0 0.0
        %2646 = vmatpush1.msra.mxu0 0.0
        %2647 = vmatprep.subr.mxu0 0.0
        %2648 = vmatpush1.msra.mxu0 0.0
        %2649 = vmatprep.subr.mxu0 0.0
        %2650 = vmatpush1.msra.mxu0 0.0
        %2651 = vmatprep.subr.mxu0 0.0
        %2652 = vmatpush1.msra.mxu0 0.0
        %2653 = vmatprep.subr.mxu0 0.0
        %2654 = vmatpush1.msra.mxu0 0.0
        %2655 = vmatprep.subr.mxu0 0.0
        %2656 = vmatpush1.msra.mxu0 0.0
        %2657 = vmatprep.subr.mxu0 0.0
        %2658 = vmatpush1.msra.mxu0 0.0
        %2659 = vmatprep.subr.mxu0 0.0
        %2660 = vmatpush1.msra.mxu0 0.0
        %2661 = vmatprep.subr.mxu0 0.0
        %2662 = vmatpush1.msra.mxu0 0.0
        %2663 = vmatprep.subr.mxu0 0.0
        %2664 = vmatpush1.msra.mxu0 0.0
        %2665 = vmatprep.subr.mxu0 0.0
        %2666 = vmatpush1.msra.mxu0 0.0
        %2667 = vmatprep.subr.mxu0 0.0
        %2668 = vmatpush1.msra.mxu0 0.0
        %2669 = vmatprep.mubr.f32.mxu0 0.0
        %2670 = vmatmul.mubr.f32.gmra.mrb[0].mxu0 %v2600
        %v2671 = vpop.f32.mrb[0].mxu0
        %v2672 = vadd.f32 0.0, %v2671
        %v2673 = vpop.f32.mrb[0].mxu0
        %2674 = vmatprep.mubr.f32.mxu0 0.0
        %2675 = vmatmul.mubr.f32.gmra.mrb[0].mxu0 %v2603
        %v2676 = vpop.f32.mrb[0].mxu0
        %v2677 = vadd.f32 0.0, %v2676
        %v2678 = vpop.f32.mrb[0].mxu0
        %2679 = vdwg.mxu0
        %2680 = vrot.lane.b32.xlu0 %v438, 64
        %v2681 = vpop.permute.xlu0 %2680
        %2682 = vrot.lane.b32.xlu0 %v443, 64
        %v2683 = vpop.permute.xlu0 %2682
        %v2687 = vsel %vm1979, %v2308, 0
        %v2690 = vsel %vm1979, %v2309, 0
        %2692 = vmatprep.subr.mxu0 0.0
        %2693 = vmatpush1.msra.mxu0 %v2681
        %2694 = vmatprep.subr.mxu0 0.0
        %2695 = vmatpush1.msra.mxu0 %v2683
        %2696 = vmatprep.subr.mxu0 0.0
        %2697 = vmatpush1.msra.mxu0 0.0
        %2698 = vmatprep.subr.mxu0 0.0
        %2699 = vmatpush1.msra.mxu0 0.0
        %2700 = vmatprep.subr.mxu0 0.0
        %2701 = vmatpush1.msra.mxu0 0.0
        %2702 = vmatprep.subr.mxu0 0.0
        %2703 = vmatpush1.msra.mxu0 0.0
        %2704 = vmatprep.subr.mxu0 0.0
        %2705 = vmatpush1.msra.mxu0 0.0
        %2706 = vmatprep.subr.mxu0 0.0
        %2707 = vmatpush1.msra.mxu0 0.0
        %2708 = vmatprep.subr.mxu0 0.0
        %2709 = vmatpush1.msra.mxu0 0.0
        %2710 = vmatprep.subr.mxu0 0.0
        %2711 = vmatpush1.msra.mxu0 0.0
        %2712 = vmatprep.subr.mxu0 0.0
        %2713 = vmatpush1.msra.mxu0 0.0
        %2714 = vmatprep.subr.mxu0 0.0
        %2715 = vmatpush1.msra.mxu0 0.0
        %2716 = vmatprep.subr.mxu0 0.0
        %2717 = vmatpush1.msra.mxu0 0.0
        %2718 = vmatprep.subr.mxu0 0.0
        %2719 = vmatpush1.msra.mxu0 0.0
        %2720 = vmatprep.subr.mxu0 0.0
        %2721 = vmatpush1.msra.mxu0 0.0
        %2722 = vmatprep.subr.mxu0 0.0
        %2723 = vmatpush1.msra.mxu0 0.0
        %2724 = vmatprep.subr.mxu0 0.0
        %2725 = vmatpush1.msra.mxu0 0.0
        %2726 = vmatprep.subr.mxu0 0.0
        %2727 = vmatpush1.msra.mxu0 0.0
        %2728 = vmatprep.subr.mxu0 0.0
        %2729 = vmatpush1.msra.mxu0 0.0
        %2730 = vmatprep.subr.mxu0 0.0
        %2731 = vmatpush1.msra.mxu0 0.0
        %2732 = vmatprep.subr.mxu0 0.0
        %2733 = vmatpush1.msra.mxu0 0.0
        %2734 = vmatprep.subr.mxu0 0.0
        %2735 = vmatpush1.msra.mxu0 0.0
        %2736 = vmatprep.subr.mxu0 0.0
        %2737 = vmatpush1.msra.mxu0 0.0
        %2738 = vmatprep.subr.mxu0 0.0
        %2739 = vmatpush1.msra.mxu0 0.0
        %2740 = vmatprep.subr.mxu0 0.0
        %2741 = vmatpush1.msra.mxu0 0.0
        %2742 = vmatprep.subr.mxu0 0.0
        %2743 = vmatpush1.msra.mxu0 0.0
        %2744 = vmatprep.subr.mxu0 0.0
        %2745 = vmatpush1.msra.mxu0 0.0
        %2746 = vmatprep.subr.mxu0 0.0
        %2747 = vmatpush1.msra.mxu0 0.0
        %2748 = vmatprep.subr.mxu0 0.0
        %2749 = vmatpush1.msra.mxu0 0.0
        %2750 = vmatprep.subr.mxu0 0.0
        %2751 = vmatpush1.msra.mxu0 0.0
        %2752 = vmatprep.subr.mxu0 0.0
        %2753 = vmatpush1.msra.mxu0 0.0
        %2754 = vmatprep.subr.mxu0 0.0
        %2755 = vmatpush1.msra.mxu0 0.0
        %2756 = vmatprep.mubr.f32.mxu0 0.0
        %2757 = vmatmul.mubr.f32.gmra.mrb[0].mxu0 %v2687
        %v2758 = vpop.f32.mrb[0].mxu0
        %v2759 = vadd.f32 0.0, %v2758
        %v2760 = vpop.f32.mrb[0].mxu0
        %2761 = vmatprep.mubr.f32.mxu0 0.0
        %2762 = vmatmul.mubr.f32.gmra.mrb[0].mxu0 %v2690
        %v2763 = vpop.f32.mrb[0].mxu0
        %v2764 = vadd.f32 0.0, %v2763
        %v2765 = vpop.f32.mrb[0].mxu0
        %2766 = vdwg.mxu0
        %2767 = vrot.lane.b32.xlu0 %v479, 64
        %v2768 = vpop.permute.xlu0 %2767
        %2769 = vrot.lane.b32.xlu0 %v481, 64
        %v2770 = vpop.permute.xlu0 %2769
        %v2774 = vsel %vm1979, %v2310, 0
        %v2777 = vsel %vm1979, %v2311, 0
        %2779 = vmatprep.subr.mxu0 0.0
        %2780 = vmatpush1.msra.mxu0 %v2768
        %2781 = vmatprep.subr.mxu0 0.0
        %2782 = vmatpush1.msra.mxu0 %v2770
        %2783 = vmatprep.subr.mxu0 0.0
        %2784 = vmatpush1.msra.mxu0 0.0
        %2785 = vmatprep.subr.mxu0 0.0
        %2786 = vmatpush1.msra.mxu0 0.0
        %2787 = vmatprep.subr.mxu0 0.0
        %2788 = vmatpush1.msra.mxu0 0.0
        %2789 = vmatprep.subr.mxu0 0.0
        %2790 = vmatpush1.msra.mxu0 0.0
        %2791 = vmatprep.subr.mxu0 0.0
        %2792 = vmatpush1.msra.mxu0 0.0
        %2793 = vmatprep.subr.mxu0 0.0
        %2794 = vmatpush1.msra.mxu0 0.0
        %2795 = vmatprep.subr.mxu0 0.0
        %2796 = vmatpush1.msra.mxu0 0.0
        %2797 = vmatprep.subr.mxu0 0.0
        %2798 = vmatpush1.msra.mxu0 0.0
        %2799 = vmatprep.subr.mxu0 0.0
        %2800 = vmatpush1.msra.mxu0 0.0
        %2801 = vmatprep.subr.mxu0 0.0
        %2802 = vmatpush1.msra.mxu0 0.0
        %2803 = vmatprep.subr.mxu0 0.0
        %2804 = vmatpush1.msra.mxu0 0.0
        %2805 = vmatprep.subr.mxu0 0.0
        %2806 = vmatpush1.msra.mxu0 0.0
        %2807 = vmatprep.subr.mxu0 0.0
        %2808 = vmatpush1.msra.mxu0 0.0
        %2809 = vmatprep.subr.mxu0 0.0
        %2810 = vmatpush1.msra.mxu0 0.0
        %2811 = vmatprep.subr.mxu0 0.0
        %2812 = vmatpush1.msra.mxu0 0.0
        %2813 = vmatprep.subr.mxu0 0.0
        %2814 = vmatpush1.msra.mxu0 0.0
        %2815 = vmatprep.subr.mxu0 0.0
        %2816 = vmatpush1.msra.mxu0 0.0
        %2817 = vmatprep.subr.mxu0 0.0
        %2818 = vmatpush1.msra.mxu0 0.0
        %2819 = vmatprep.subr.mxu0 0.0
        %2820 = vmatpush1.msra.mxu0 0.0
        %2821 = vmatprep.subr.mxu0 0.0
        %2822 = vmatpush1.msra.mxu0 0.0
        %2823 = vmatprep.subr.mxu0 0.0
        %2824 = vmatpush1.msra.mxu0 0.0
        %2825 = vmatprep.subr.mxu0 0.0
        %2826 = vmatpush1.msra.mxu0 0.0
        %2827 = vmatprep.subr.mxu0 0.0
        %2828 = vmatpush1.msra.mxu0 0.0
        %2829 = vmatprep.subr.mxu0 0.0
        %2830 = vmatpush1.msra.mxu0 0.0
        %2831 = vmatprep.subr.mxu0 0.0
        %2832 = vmatpush1.msra.mxu0 0.0
        %2833 = vmatprep.subr.mxu0 0.0
        %2834 = vmatpush1.msra.mxu0 0.0
        %2835 = vmatprep.subr.mxu0 0.0
        %2836 = vmatpush1.msra.mxu0 0.0
        %2837 = vmatprep.subr.mxu0 0.0
        %2838 = vmatpush1.msra.mxu0 0.0
        %2839 = vmatprep.subr.mxu0 0.0
        %2840 = vmatpush1.msra.mxu0 0.0
        %2841 = vmatprep.subr.mxu0 0.0
        %2842 = vmatpush1.msra.mxu0 0.0
        %2843 = vmatprep.mubr.f32.mxu0 0.0
        %2844 = vmatmul.mubr.f32.gmra.mrb[0].mxu0 %v2774
        %v2845 = vpop.f32.mrb[0].mxu0
        %v2846 = vadd.f32 0.0, %v2845
        %v2847 = vpop.f32.mrb[0].mxu0
        %2848 = vmatprep.mubr.f32.mxu0 0.0
        %2849 = vmatmul.mubr.f32.gmra.mrb[0].mxu0 %v2777
        %v2850 = vpop.f32.mrb[0].mxu0
        %v2851 = vadd.f32 0.0, %v2850
        %v2852 = vpop.f32.mrb[0].mxu0
        %2853 = vdwg.mxu0
        %2854 = vrot.lane.b32.xlu0 %v495, 64
        %v2855 = vpop.permute.xlu0 %2854
        %2856 = vrot.lane.b32.xlu0 %v497, 64
        %v2857 = vpop.permute.xlu0 %2856
        %v2861 = vsel %vm1979, %v2312, 0
        %v2864 = vsel %vm1979, %v2313, 0
        %2866 = vmatprep.subr.mxu0 0.0
        %2867 = vmatpush1.msra.mxu0 %v2855
        %2868 = vmatprep.subr.mxu0 0.0
        %2869 = vmatpush1.msra.mxu0 %v2857
        %2870 = vmatprep.subr.mxu0 0.0
        %2871 = vmatpush1.msra.mxu0 0.0
        %2872 = vmatprep.subr.mxu0 0.0
        %2873 = vmatpush1.msra.mxu0 0.0
        %2874 = vmatprep.subr.mxu0 0.0
        %2875 = vmatpush1.msra.mxu0 0.0
        %2876 = vmatprep.subr.mxu0 0.0
        %2877 = vmatpush1.msra.mxu0 0.0
        %2878 = vmatprep.subr.mxu0 0.0
        %2879 = vmatpush1.msra.mxu0 0.0
        %2880 = vmatprep.subr.mxu0 0.0
        %2881 = vmatpush1.msra.mxu0 0.0
        %2882 = vmatprep.subr.mxu0 0.0
        %2883 = vmatpush1.msra.mxu0 0.0
        %2884 = vmatprep.subr.mxu0 0.0
        %2885 = vmatpush1.msra.mxu0 0.0
        %2886 = vmatprep.subr.mxu0 0.0
        %2887 = vmatpush1.msra.mxu0 0.0
        %2888 = vmatprep.subr.mxu0 0.0
        %2889 = vmatpush1.msra.mxu0 0.0
        %2890 = vmatprep.subr.mxu0 0.0
        %2891 = vmatpush1.msra.mxu0 0.0
        %2892 = vmatprep.subr.mxu0 0.0
        %2893 = vmatpush1.msra.mxu0 0.0
        %2894 = vmatprep.subr.mxu0 0.0
        %2895 = vmatpush1.msra.mxu0 0.0
        %2896 = vmatprep.subr.mxu0 0.0
        %2897 = vmatpush1.msra.mxu0 0.0
        %2898 = vmatprep.subr.mxu0 0.0
        %2899 = vmatpush1.msra.mxu0 0.0
        %2900 = vmatprep.subr.mxu0 0.0
        %2901 = vmatpush1.msra.mxu0 0.0
        %2902 = vmatprep.subr.mxu0 0.0
        %2903 = vmatpush1.msra.mxu0 0.0
        %2904 = vmatprep.subr.mxu0 0.0
        %2905 = vmatpush1.msra.mxu0 0.0
        %2906 = vmatprep.subr.mxu0 0.0
        %2907 = vmatpush1.msra.mxu0 0.0
        %2908 = vmatprep.subr.mxu0 0.0
        %2909 = vmatpush1.msra.mxu0 0.0
        %2910 = vmatprep.subr.mxu0 0.0
        %2911 = vmatpush1.msra.mxu0 0.0
        %2912 = vmatprep.subr.mxu0 0.0
        %2913 = vmatpush1.msra.mxu0 0.0
        %2914 = vmatprep.subr.mxu0 0.0
        %2915 = vmatpush1.msra.mxu0 0.0
        %2916 = vmatprep.subr.mxu0 0.0
        %2917 = vmatpush1.msra.mxu0 0.0
        %2918 = vmatprep.subr.mxu0 0.0
        %2919 = vmatpush1.msra.mxu0 0.0
        %2920 = vmatprep.subr.mxu0 0.0
        %2921 = vmatpush1.msra.mxu0 0.0
        %2922 = vmatprep.subr.mxu0 0.0
        %2923 = vmatpush1.msra.mxu0 0.0
        %2924 = vmatprep.subr.mxu0 0.0
        %2925 = vmatpush1.msra.mxu0 0.0
        %2926 = vmatprep.subr.mxu0 0.0
        %2927 = vmatpush1.msra.mxu0 0.0
        %2928 = vmatprep.subr.mxu0 0.0
        %2929 = vmatpush1.msra.mxu0 0.0
        %2930 = vmatprep.mubr.f32.mxu0 0.0
        %2931 = vmatmul.mubr.f32.gmra.mrb[0].mxu0 %v2861
        %v2932 = vpop.f32.mrb[0].mxu0
        %v2933 = vadd.f32 0.0, %v2932
        %v2934 = vpop.f32.mrb[0].mxu0
        %2935 = vmatprep.mubr.f32.mxu0 0.0
        %2936 = vmatmul.mubr.f32.gmra.mrb[0].mxu0 %v2864
        %v2937 = vpop.f32.mrb[0].mxu0
        %v2938 = vadd.f32 0.0, %v2937
        %v2939 = vpop.f32.mrb[0].mxu0
        %2940 = vdwg.mxu0
        %2941 = vrot.lane.b32.xlu0 %v511, 64
        %v2942 = vpop.permute.xlu0 %2941
        %2943 = vrot.lane.b32.xlu0 %v513, 64
        %v2944 = vpop.permute.xlu0 %2943
        %v2948 = vsel %vm1979, %v2314, 0
        %v2951 = vsel %vm1979, %v2315, 0
        %2953 = vmatprep.subr.mxu0 0.0
        %2954 = vmatpush1.msra.mxu0 %v2942
        %2955 = vmatprep.subr.mxu0 0.0
        %2956 = vmatpush1.msra.mxu0 %v2944
        %2957 = vmatprep.subr.mxu0 0.0
        %2958 = vmatpush1.msra.mxu0 0.0
        %2959 = vmatprep.subr.mxu0 0.0
        %2960 = vmatpush1.msra.mxu0 0.0
        %2961 = vmatprep.subr.mxu0 0.0
        %2962 = vmatpush1.msra.mxu0 0.0
        %2963 = vmatprep.subr.mxu0 0.0
        %2964 = vmatpush1.msra.mxu0 0.0
        %2965 = vmatprep.subr.mxu0 0.0
        %2966 = vmatpush1.msra.mxu0 0.0
        %2967 = vmatprep.subr.mxu0 0.0
        %2968 = vmatpush1.msra.mxu0 0.0
        %2969 = vmatprep.subr.mxu0 0.0
        %2970 = vmatpush1.msra.mxu0 0.0
        %2971 = vmatprep.subr.mxu0 0.0
        %2972 = vmatpush1.msra.mxu0 0.0
        %2973 = vmatprep.subr.mxu0 0.0
        %2974 = vmatpush1.msra.mxu0 0.0
        %2975 = vmatprep.subr.mxu0 0.0
        %2976 = vmatpush1.msra.mxu0 0.0
        %2977 = vmatprep.subr.mxu0 0.0
        %2978 = vmatpush1.msra.mxu0 0.0
        %2979 = vmatprep.subr.mxu0 0.0
        %2980 = vmatpush1.msra.mxu0 0.0
        %2981 = vmatprep.subr.mxu0 0.0
        %2982 = vmatpush1.msra.mxu0 0.0
        %2983 = vmatprep.subr.mxu0 0.0
        %2984 = vmatpush1.msra.mxu0 0.0
        %2985 = vmatprep.subr.mxu0 0.0
        %2986 = vmatpush1.msra.mxu0 0.0
        %2987 = vmatprep.subr.mxu0 0.0
        %2988 = vmatpush1.msra.mxu0 0.0
        %2989 = vmatprep.subr.mxu0 0.0
        %2990 = vmatpush1.msra.mxu0 0.0
        %2991 = vmatprep.subr.mxu0 0.0
        %2992 = vmatpush1.msra.mxu0 0.0
        %2993 = vmatprep.subr.mxu0 0.0
        %2994 = vmatpush1.msra.mxu0 0.0
        %2995 = vmatprep.subr.mxu0 0.0
        %2996 = vmatpush1.msra.mxu0 0.0
        %2997 = vmatprep.subr.mxu0 0.0
        %2998 = vmatpush1.msra.mxu0 0.0
        %2999 = vmatprep.subr.mxu0 0.0
        %3000 = vmatpush1.msra.mxu0 0.0
        %3001 = vmatprep.subr.mxu0 0.0
        %3002 = vmatpush1.msra.mxu0 0.0
        %3003 = vmatprep.subr.mxu0 0.0
        %3004 = vmatpush1.msra.mxu0 0.0
        %3005 = vmatprep.subr.mxu0 0.0
        %3006 = vmatpush1.msra.mxu0 0.0
        %3007 = vmatprep.subr.mxu0 0.0
        %3008 = vmatpush1.msra.mxu0 0.0
        %3009 = vmatprep.subr.mxu0 0.0
        %3010 = vmatpush1.msra.mxu0 0.0
        %3011 = vmatprep.subr.mxu0 0.0
        %3012 = vmatpush1.msra.mxu0 0.0
        %3013 = vmatprep.subr.mxu0 0.0
        %3014 = vmatpush1.msra.mxu0 0.0
        %3015 = vmatprep.subr.mxu0 0.0
        %3016 = vmatpush1.msra.mxu0 0.0
        %3017 = vmatprep.mubr.f32.mxu0 0.0
        %3018 = vmatmul.mubr.f32.gmra.mrb[0].mxu0 %v2948
        %v3019 = vpop.f32.mrb[0].mxu0
        %v3020 = vadd.f32 0.0, %v3019
        %v3021 = vpop.f32.mrb[0].mxu0
        %3022 = vmatprep.mubr.f32.mxu0 0.0
        %3023 = vmatmul.mubr.f32.gmra.mrb[0].mxu0 %v2951
        %v3024 = vpop.f32.mrb[0].mxu0
        %v3025 = vadd.f32 0.0, %v3024
        %v3026 = vpop.f32.mrb[0].mxu0
        %3027 = vdwg.mxu0
        %3028 = vrot.lane.b32.xlu0 %v448, 64
        %v3029 = vpop.permute.xlu0 %3028
        %3030 = vrot.lane.b32.xlu0 %v453, 64
        %v3031 = vpop.permute.xlu0 %3030
        %v3035 = vsel %vm1979, %v2316, 0
        %v3038 = vsel %vm1979, %v2317, 0
        %3040 = vmatprep.subr.mxu0 0.0
        %3041 = vmatpush1.msra.mxu0 %v3029
        %3042 = vmatprep.subr.mxu0 0.0
        %3043 = vmatpush1.msra.mxu0 %v3031
        %3044 = vmatprep.subr.mxu0 0.0
        %3045 = vmatpush1.msra.mxu0 0.0
        %3046 = vmatprep.subr.mxu0 0.0
        %3047 = vmatpush1.msra.mxu0 0.0
        %3048 = vmatprep.subr.mxu0 0.0
        %3049 = vmatpush1.msra.mxu0 0.0
        %3050 = vmatprep.subr.mxu0 0.0
        %3051 = vmatpush1.msra.mxu0 0.0
        %3052 = vmatprep.subr.mxu0 0.0
        %3053 = vmatpush1.msra.mxu0 0.0
        %3054 = vmatprep.subr.mxu0 0.0
        %3055 = vmatpush1.msra.mxu0 0.0
        %3056 = vmatprep.subr.mxu0 0.0
        %3057 = vmatpush1.msra.mxu0 0.0
        %3058 = vmatprep.subr.mxu0 0.0
        %3059 = vmatpush1.msra.mxu0 0.0
        %3060 = vmatprep.subr.mxu0 0.0
        %3061 = vmatpush1.msra.mxu0 0.0
        %3062 = vmatprep.subr.mxu0 0.0
        %3063 = vmatpush1.msra.mxu0 0.0
        %3064 = vmatprep.subr.mxu0 0.0
        %3065 = vmatpush1.msra.mxu0 0.0
        %3066 = vmatprep.subr.mxu0 0.0
        %3067 = vmatpush1.msra.mxu0 0.0
        %3068 = vmatprep.subr.mxu0 0.0
        %3069 = vmatpush1.msra.mxu0 0.0
        %3070 = vmatprep.subr.mxu0 0.0
        %3071 = vmatpush1.msra.mxu0 0.0
        %3072 = vmatprep.subr.mxu0 0.0
        %3073 = vmatpush1.msra.mxu0 0.0
        %3074 = vmatprep.subr.mxu0 0.0
        %3075 = vmatpush1.msra.mxu0 0.0
        %3076 = vmatprep.subr.mxu0 0.0
        %3077 = vmatpush1.msra.mxu0 0.0
        %3078 = vmatprep.subr.mxu0 0.0
        %3079 = vmatpush1.msra.mxu0 0.0
        %3080 = vmatprep.subr.mxu0 0.0
        %3081 = vmatpush1.msra.mxu0 0.0
        %3082 = vmatprep.subr.mxu0 0.0
        %3083 = vmatpush1.msra.mxu0 0.0
        %3084 = vmatprep.subr.mxu0 0.0
        %3085 = vmatpush1.msra.mxu0 0.0
        %3086 = vmatprep.subr.mxu0 0.0
        %3087 = vmatpush1.msra.mxu0 0.0
        %3088 = vmatprep.subr.mxu0 0.0
        %3089 = vmatpush1.msra.mxu0 0.0
        %3090 = vmatprep.subr.mxu0 0.0
        %3091 = vmatpush1.msra.mxu0 0.0
        %3092 = vmatprep.subr.mxu0 0.0
        %3093 = vmatpush1.msra.mxu0 0.0
        %3094 = vmatprep.subr.mxu0 0.0
        %3095 = vmatpush1.msra.mxu0 0.0
        %3096 = vmatprep.subr.mxu0 0.0
        %3097 = vmatpush1.msra.mxu0 0.0
        %3098 = vmatprep.subr.mxu0 0.0
        %3099 = vmatpush1.msra.mxu0 0.0
        %3100 = vmatprep.subr.mxu0 0.0
        %3101 = vmatpush1.msra.mxu0 0.0
        %3102 = vmatprep.subr.mxu0 0.0
        %3103 = vmatpush1.msra.mxu0 0.0
        %3104 = vmatprep.mubr.f32.mxu0 0.0
        %3105 = vmatmul.mubr.f32.gmra.mrb[0].mxu0 %v3035
        %v3106 = vpop.f32.mrb[0].mxu0
        %v3107 = vadd.f32 0.0, %v3106
        %v3108 = vpop.f32.mrb[0].mxu0
        %3109 = vmatprep.mubr.f32.mxu0 0.0
        %3110 = vmatmul.mubr.f32.gmra.mrb[0].mxu0 %v3038
        %v3111 = vpop.f32.mrb[0].mxu0
        %v3112 = vadd.f32 0.0, %v3111
        %v3113 = vpop.f32.mrb[0].mxu0
        %3114 = vdwg.mxu0
        %3115 = vrot.lane.b32.xlu0 %v483, 64
        %v3116 = vpop.permute.xlu0 %3115
        %3117 = vrot.lane.b32.xlu0 %v485, 64
        %v3118 = vpop.permute.xlu0 %3117
        %v3122 = vsel %vm1979, %v2318, 0
        %v3125 = vsel %vm1979, %v2319, 0
        %3127 = vmatprep.subr.mxu0 0.0
        %3128 = vmatpush1.msra.mxu0 %v3116
        %3129 = vmatprep.subr.mxu0 0.0
        %3130 = vmatpush1.msra.mxu0 %v3118
        %3131 = vmatprep.subr.mxu0 0.0
        %3132 = vmatpush1.msra.mxu0 0.0
        %3133 = vmatprep.subr.mxu0 0.0
        %3134 = vmatpush1.msra.mxu0 0.0
        %3135 = vmatprep.subr.mxu0 0.0
        %3136 = vmatpush1.msra.mxu0 0.0
        %3137 = vmatprep.subr.mxu0 0.0
        %3138 = vmatpush1.msra.mxu0 0.0
        %3139 = vmatprep.subr.mxu0 0.0
        %3140 = vmatpush1.msra.mxu0 0.0
        %3141 = vmatprep.subr.mxu0 0.0
        %3142 = vmatpush1.msra.mxu0 0.0
        %3143 = vmatprep.subr.mxu0 0.0
        %3144 = vmatpush1.msra.mxu0 0.0
        %3145 = vmatprep.subr.mxu0 0.0
        %3146 = vmatpush1.msra.mxu0 0.0
        %3147 = vmatprep.subr.mxu0 0.0
        %3148 = vmatpush1.msra.mxu0 0.0
        %3149 = vmatprep.subr.mxu0 0.0
        %3150 = vmatpush1.msra.mxu0 0.0
        %3151 = vmatprep.subr.mxu0 0.0
        %3152 = vmatpush1.msra.mxu0 0.0
        %3153 = vmatprep.subr.mxu0 0.0
        %3154 = vmatpush1.msra.mxu0 0.0
        %3155 = vmatprep.subr.mxu0 0.0
        %3156 = vmatpush1.msra.mxu0 0.0
        %3157 = vmatprep.subr.mxu0 0.0
        %3158 = vmatpush1.msra.mxu0 0.0
        %3159 = vmatprep.subr.mxu0 0.0
        %3160 = vmatpush1.msra.mxu0 0.0
        %3161 = vmatprep.subr.mxu0 0.0
        %3162 = vmatpush1.msra.mxu0 0.0
        %3163 = vmatprep.subr.mxu0 0.0
        %3164 = vmatpush1.msra.mxu0 0.0
        %3165 = vmatprep.subr.mxu0 0.0
        %3166 = vmatpush1.msra.mxu0 0.0
        %3167 = vmatprep.subr.mxu0 0.0
        %3168 = vmatpush1.msra.mxu0 0.0
        %3169 = vmatprep.subr.mxu0 0.0
        %3170 = vmatpush1.msra.mxu0 0.0
        %3171 = vmatprep.subr.mxu0 0.0
        %3172 = vmatpush1.msra.mxu0 0.0
        %3173 = vmatprep.subr.mxu0 0.0
        %3174 = vmatpush1.msra.mxu0 0.0
        %3175 = vmatprep.subr.mxu0 0.0
        %3176 = vmatpush1.msra.mxu0 0.0
        %3177 = vmatprep.subr.mxu0 0.0
        %3178 = vmatpush1.msra.mxu0 0.0
        %3179 = vmatprep.subr.mxu0 0.0
        %3180 = vmatpush1.msra.mxu0 0.0
        %3181 = vmatprep.subr.mxu0 0.0
        %3182 = vmatpush1.msra.mxu0 0.0
        %3183 = vmatprep.subr.mxu0 0.0
        %3184 = vmatpush1.msra.mxu0 0.0
        %3185 = vmatprep.subr.mxu0 0.0
        %3186 = vmatpush1.msra.mxu0 0.0
        %3187 = vmatprep.subr.mxu0 0.0
        %3188 = vmatpush1.msra.mxu0 0.0
        %3189 = vmatprep.subr.mxu0 0.0
        %3190 = vmatpush1.msra.mxu0 0.0
        %3191 = vmatprep.mubr.f32.mxu0 0.0
        %3192 = vmatmul.mubr.f32.gmra.mrb[0].mxu0 %v3122
        %v3193 = vpop.f32.mrb[0].mxu0
        %v3194 = vadd.f32 0.0, %v3193
        %v3195 = vpop.f32.mrb[0].mxu0
        %3196 = vmatprep.mubr.f32.mxu0 0.0
        %3197 = vmatmul.mubr.f32.gmra.mrb[0].mxu0 %v3125
        %v3198 = vpop.f32.mrb[0].mxu0
        %v3199 = vadd.f32 0.0, %v3198
        %v3200 = vpop.f32.mrb[0].mxu0
        %3201 = vdwg.mxu0
        %3202 = vrot.lane.b32.xlu0 %v499, 64
        %v3203 = vpop.permute.xlu0 %3202
        %3204 = vrot.lane.b32.xlu0 %v501, 64
        %v3205 = vpop.permute.xlu0 %3204
        %v3209 = vsel %vm1979, %v2320, 0
        %v3212 = vsel %vm1979, %v2321, 0
        %3214 = vmatprep.subr.mxu0 0.0
        %3215 = vmatpush1.msra.mxu0 %v3203
        %3216 = vmatprep.subr.mxu0 0.0
        %3217 = vmatpush1.msra.mxu0 %v3205
        %3218 = vmatprep.subr.mxu0 0.0
        %3219 = vmatpush1.msra.mxu0 0.0
        %3220 = vmatprep.subr.mxu0 0.0
        %3221 = vmatpush1.msra.mxu0 0.0
        %3222 = vmatprep.subr.mxu0 0.0
        %3223 = vmatpush1.msra.mxu0 0.0
        %3224 = vmatprep.subr.mxu0 0.0
        %3225 = vmatpush1.msra.mxu0 0.0
        %3226 = vmatprep.subr.mxu0 0.0
        %3227 = vmatpush1.msra.mxu0 0.0
        %3228 = vmatprep.subr.mxu0 0.0
        %3229 = vmatpush1.msra.mxu0 0.0
        %3230 = vmatprep.subr.mxu0 0.0
        %3231 = vmatpush1.msra.mxu0 0.0
        %3232 = vmatprep.subr.mxu0 0.0
        %3233 = vmatpush1.msra.mxu0 0.0
        %3234 = vmatprep.subr.mxu0 0.0
        %3235 = vmatpush1.msra.mxu0 0.0
        %3236 = vmatprep.subr.mxu0 0.0
        %3237 = vmatpush1.msra.mxu0 0.0
        %3238 = vmatprep.subr.mxu0 0.0
        %3239 = vmatpush1.msra.mxu0 0.0
        %3240 = vmatprep.subr.mxu0 0.0
        %3241 = vmatpush1.msra.mxu0 0.0
        %3242 = vmatprep.subr.mxu0 0.0
        %3243 = vmatpush1.msra.mxu0 0.0
        %3244 = vmatprep.subr.mxu0 0.0
        %3245 = vmatpush1.msra.mxu0 0.0
        %3246 = vmatprep.subr.mxu0 0.0
        %3247 = vmatpush1.msra.mxu0 0.0
        %3248 = vmatprep.subr.mxu0 0.0
        %3249 = vmatpush1.msra.mxu0 0.0
        %3250 = vmatprep.subr.mxu0 0.0
        %3251 = vmatpush1.msra.mxu0 0.0
        %3252 = vmatprep.subr.mxu0 0.0
        %3253 = vmatpush1.msra.mxu0 0.0
        %3254 = vmatprep.subr.mxu0 0.0
        %3255 = vmatpush1.msra.mxu0 0.0
        %3256 = vmatprep.subr.mxu0 0.0
        %3257 = vmatpush1.msra.mxu0 0.0
        %3258 = vmatprep.subr.mxu0 0.0
        %3259 = vmatpush1.msra.mxu0 0.0
        %3260 = vmatprep.subr.mxu0 0.0
        %3261 = vmatpush1.msra.mxu0 0.0
        %3262 = vmatprep.subr.mxu0 0.0
        %3263 = vmatpush1.msra.mxu0 0.0
        %3264 = vmatprep.subr.mxu0 0.0
        %3265 = vmatpush1.msra.mxu0 0.0
        %3266 = vmatprep.subr.mxu0 0.0
        %3267 = vmatpush1.msra.mxu0 0.0
        %3268 = vmatprep.subr.mxu0 0.0
        %3269 = vmatpush1.msra.mxu0 0.0
        %3270 = vmatprep.subr.mxu0 0.0
        %3271 = vmatpush1.msra.mxu0 0.0
        %3272 = vmatprep.subr.mxu0 0.0
        %3273 = vmatpush1.msra.mxu0 0.0
        %3274 = vmatprep.subr.mxu0 0.0
        %3275 = vmatpush1.msra.mxu0 0.0
        %3276 = vmatprep.subr.mxu0 0.0
        %3277 = vmatpush1.msra.mxu0 0.0
        %3278 = vmatprep.mubr.f32.mxu0 0.0
        %3279 = vmatmul.mubr.f32.gmra.mrb[0].mxu0 %v3209
        %v3280 = vpop.f32.mrb[0].mxu0
        %v3281 = vadd.f32 0.0, %v3280
        %v3282 = vpop.f32.mrb[0].mxu0
        %3283 = vmatprep.mubr.f32.mxu0 0.0
        %3284 = vmatmul.mubr.f32.gmra.mrb[0].mxu0 %v3212
        %v3285 = vpop.f32.mrb[0].mxu0
        %v3286 = vadd.f32 0.0, %v3285
        %v3287 = vpop.f32.mrb[0].mxu0
        %3288 = vdwg.mxu0
        %3289 = vrot.lane.b32.xlu0 %v515, 64
        %v3290 = vpop.permute.xlu0 %3289
        %3291 = vrot.lane.b32.xlu0 %v517, 64
        %v3292 = vpop.permute.xlu0 %3291
        %v3296 = vsel %vm1979, %v2322, 0
        %v3299 = vsel %vm1979, %v2323, 0
        %3301 = vmatprep.subr.mxu0 0.0
        %3302 = vmatpush1.msra.mxu0 %v3290
        %3303 = vmatprep.subr.mxu0 0.0
        %3304 = vmatpush1.msra.mxu0 %v3292
        %3305 = vmatprep.subr.mxu0 0.0
        %3306 = vmatpush1.msra.mxu0 0.0
        %3307 = vmatprep.subr.mxu0 0.0
        %3308 = vmatpush1.msra.mxu0 0.0
        %3309 = vmatprep.subr.mxu0 0.0
        %3310 = vmatpush1.msra.mxu0 0.0
        %3311 = vmatprep.subr.mxu0 0.0
        %3312 = vmatpush1.msra.mxu0 0.0
        %3313 = vmatprep.subr.mxu0 0.0
        %3314 = vmatpush1.msra.mxu0 0.0
        %3315 = vmatprep.subr.mxu0 0.0
        %3316 = vmatpush1.msra.mxu0 0.0
        %3317 = vmatprep.subr.mxu0 0.0
        %3318 = vmatpush1.msra.mxu0 0.0
        %3319 = vmatprep.subr.mxu0 0.0
        %3320 = vmatpush1.msra.mxu0 0.0
        %3321 = vmatprep.subr.mxu0 0.0
        %3322 = vmatpush1.msra.mxu0 0.0
        %3323 = vmatprep.subr.mxu0 0.0
        %3324 = vmatpush1.msra.mxu0 0.0
        %3325 = vmatprep.subr.mxu0 0.0
        %3326 = vmatpush1.msra.mxu0 0.0
        %3327 = vmatprep.subr.mxu0 0.0
        %3328 = vmatpush1.msra.mxu0 0.0
        %3329 = vmatprep.subr.mxu0 0.0
        %3330 = vmatpush1.msra.mxu0 0.0
        %3331 = vmatprep.subr.mxu0 0.0
        %3332 = vmatpush1.msra.mxu0 0.0
        %3333 = vmatprep.subr.mxu0 0.0
        %3334 = vmatpush1.msra.mxu0 0.0
        %3335 = vmatprep.subr.mxu0 0.0
        %3336 = vmatpush1.msra.mxu0 0.0
        %3337 = vmatprep.subr.mxu0 0.0
        %3338 = vmatpush1.msra.mxu0 0.0
        %3339 = vmatprep.subr.mxu0 0.0
        %3340 = vmatpush1.msra.mxu0 0.0
        %3341 = vmatprep.subr.mxu0 0.0
        %3342 = vmatpush1.msra.mxu0 0.0
        %3343 = vmatprep.subr.mxu0 0.0
        %3344 = vmatpush1.msra.mxu0 0.0
        %3345 = vmatprep.subr.mxu0 0.0
        %3346 = vmatpush1.msra.mxu0 0.0
        %3347 = vmatprep.subr.mxu0 0.0
        %3348 = vmatpush1.msra.mxu0 0.0
        %3349 = vmatprep.subr.mxu0 0.0
        %3350 = vmatpush1.msra.mxu0 0.0
        %3351 = vmatprep.subr.mxu0 0.0
        %3352 = vmatpush1.msra.mxu0 0.0
        %3353 = vmatprep.subr.mxu0 0.0
        %3354 = vmatpush1.msra.mxu0 0.0
        %3355 = vmatprep.subr.mxu0 0.0
        %3356 = vmatpush1.msra.mxu0 0.0
        %3357 = vmatprep.subr.mxu0 0.0
        %3358 = vmatpush1.msra.mxu0 0.0
        %3359 = vmatprep.subr.mxu0 0.0
        %3360 = vmatpush1.msra.mxu0 0.0
        %3361 = vmatprep.subr.mxu0 0.0
        %3362 = vmatpush1.msra.mxu0 0.0
        %3363 = vmatprep.subr.mxu0 0.0
        %3364 = vmatpush1.msra.mxu0 0.0
        %3365 = vmatprep.mubr.f32.mxu0 0.0
        %3366 = vmatmul.mubr.f32.gmra.mrb[0].mxu0 %v3296
        %v3367 = vpop.f32.mrb[0].mxu0
        %v3368 = vadd.f32 0.0, %v3367
        %v3369 = vpop.f32.mrb[0].mxu0
        %3370 = vmatprep.mubr.f32.mxu0 0.0
        %3371 = vmatmul.mubr.f32.gmra.mrb[0].mxu0 %v3299
        %v3372 = vpop.f32.mrb[0].mxu0
        %v3373 = vadd.f32 0.0, %v3372
        %v3374 = vpop.f32.mrb[0].mxu0
        %3375 = vdwg.mxu0
        %3376 = vrot.lane.b32.xlu0 %v458, 64
        %v3377 = vpop.permute.xlu0 %3376
        %3378 = vrot.lane.b32.xlu0 %v463, 64
        %v3379 = vpop.permute.xlu0 %3378
        %v3383 = vsel %vm1979, %v2324, 0
        %v3386 = vsel %vm1979, %v2325, 0
        %3388 = vmatprep.subr.mxu0 0.0
        %3389 = vmatpush1.msra.mxu0 %v3377
        %3390 = vmatprep.subr.mxu0 0.0
        %3391 = vmatpush1.msra.mxu0 %v3379
        %3392 = vmatprep.subr.mxu0 0.0
        %3393 = vmatpush1.msra.mxu0 0.0
        %3394 = vmatprep.subr.mxu0 0.0
        %3395 = vmatpush1.msra.mxu0 0.0
        %3396 = vmatprep.subr.mxu0 0.0
        %3397 = vmatpush1.msra.mxu0 0.0
        %3398 = vmatprep.subr.mxu0 0.0
        %3399 = vmatpush1.msra.mxu0 0.0
        %3400 = vmatprep.subr.mxu0 0.0
        %3401 = vmatpush1.msra.mxu0 0.0
        %3402 = vmatprep.subr.mxu0 0.0
        %3403 = vmatpush1.msra.mxu0 0.0
        %3404 = vmatprep.subr.mxu0 0.0
        %3405 = vmatpush1.msra.mxu0 0.0
        %3406 = vmatprep.subr.mxu0 0.0
        %3407 = vmatpush1.msra.mxu0 0.0
        %3408 = vmatprep.subr.mxu0 0.0
        %3409 = vmatpush1.msra.mxu0 0.0
        %3410 = vmatprep.subr.mxu0 0.0
        %3411 = vmatpush1.msra.mxu0 0.0
        %3412 = vmatprep.subr.mxu0 0.0
        %3413 = vmatpush1.msra.mxu0 0.0
        %3414 = vmatprep.subr.mxu0 0.0
        %3415 = vmatpush1.msra.mxu0 0.0
        %3416 = vmatprep.subr.mxu0 0.0
        %3417 = vmatpush1.msra.mxu0 0.0
        %3418 = vmatprep.subr.mxu0 0.0
        %3419 = vmatpush1.msra.mxu0 0.0
        %3420 = vmatprep.subr.mxu0 0.0
        %3421 = vmatpush1.msra.mxu0 0.0
        %3422 = vmatprep.subr.mxu0 0.0
        %3423 = vmatpush1.msra.mxu0 0.0
        %3424 = vmatprep.subr.mxu0 0.0
        %3425 = vmatpush1.msra.mxu0 0.0
        %3426 = vmatprep.subr.mxu0 0.0
        %3427 = vmatpush1.msra.mxu0 0.0
        %3428 = vmatprep.subr.mxu0 0.0
        %3429 = vmatpush1.msra.mxu0 0.0
        %3430 = vmatprep.subr.mxu0 0.0
        %3431 = vmatpush1.msra.mxu0 0.0
        %3432 = vmatprep.subr.mxu0 0.0
        %3433 = vmatpush1.msra.mxu0 0.0
        %3434 = vmatprep.subr.mxu0 0.0
        %3435 = vmatpush1.msra.mxu0 0.0
        %3436 = vmatprep.subr.mxu0 0.0
        %3437 = vmatpush1.msra.mxu0 0.0
        %3438 = vmatprep.subr.mxu0 0.0
        %3439 = vmatpush1.msra.mxu0 0.0
        %3440 = vmatprep.subr.mxu0 0.0
        %3441 = vmatpush1.msra.mxu0 0.0
        %3442 = vmatprep.subr.mxu0 0.0
        %3443 = vmatpush1.msra.mxu0 0.0
        %3444 = vmatprep.subr.mxu0 0.0
        %3445 = vmatpush1.msra.mxu0 0.0
        %3446 = vmatprep.subr.mxu0 0.0
        %3447 = vmatpush1.msra.mxu0 0.0
        %3448 = vmatprep.subr.mxu0 0.0
        %3449 = vmatpush1.msra.mxu0 0.0
        %3450 = vmatprep.subr.mxu0 0.0
        %3451 = vmatpush1.msra.mxu0 0.0
        %3452 = vmatprep.mubr.f32.mxu0 0.0
        %3453 = vmatmul.mubr.f32.gmra.mrb[0].mxu0 %v3383
        %v3454 = vpop.f32.mrb[0].mxu0
        %v3455 = vadd.f32 0.0, %v3454
        %v3456 = vpop.f32.mrb[0].mxu0
        %3457 = vmatprep.mubr.f32.mxu0 0.0
        %3458 = vmatmul.mubr.f32.gmra.mrb[0].mxu0 %v3386
        %v3459 = vpop.f32.mrb[0].mxu0
        %v3460 = vadd.f32 0.0, %v3459
        %v3461 = vpop.f32.mrb[0].mxu0
        %3462 = vdwg.mxu0
        %3463 = vrot.lane.b32.xlu0 %v487, 64
        %v3464 = vpop.permute.xlu0 %3463
        %3465 = vrot.lane.b32.xlu0 %v489, 64
        %v3466 = vpop.permute.xlu0 %3465
        %v3470 = vsel %vm1979, %v2326, 0
        %v3473 = vsel %vm1979, %v2327, 0
        %3475 = vmatprep.subr.mxu0 0.0
        %3476 = vmatpush1.msra.mxu0 %v3464
        %3477 = vmatprep.subr.mxu0 0.0
        %3478 = vmatpush1.msra.mxu0 %v3466
        %3479 = vmatprep.subr.mxu0 0.0
        %3480 = vmatpush1.msra.mxu0 0.0
        %3481 = vmatprep.subr.mxu0 0.0
        %3482 = vmatpush1.msra.mxu0 0.0
        %3483 = vmatprep.subr.mxu0 0.0
        %3484 = vmatpush1.msra.mxu0 0.0
        %3485 = vmatprep.subr.mxu0 0.0
        %3486 = vmatpush1.msra.mxu0 0.0
        %3487 = vmatprep.subr.mxu0 0.0
        %3488 = vmatpush1.msra.mxu0 0.0
        %3489 = vmatprep.subr.mxu0 0.0
        %3490 = vmatpush1.msra.mxu0 0.0
        %3491 = vmatprep.subr.mxu0 0.0
        %3492 = vmatpush1.msra.mxu0 0.0
        %3493 = vmatprep.subr.mxu0 0.0
        %3494 = vmatpush1.msra.mxu0 0.0
        %3495 = vmatprep.subr.mxu0 0.0
        %3496 = vmatpush1.msra.mxu0 0.0
        %3497 = vmatprep.subr.mxu0 0.0
        %3498 = vmatpush1.msra.mxu0 0.0
        %3499 = vmatprep.subr.mxu0 0.0
        %3500 = vmatpush1.msra.mxu0 0.0
        %3501 = vmatprep.subr.mxu0 0.0
        %3502 = vmatpush1.msra.mxu0 0.0
        %3503 = vmatprep.subr.mxu0 0.0
        %3504 = vmatpush1.msra.mxu0 0.0
        %3505 = vmatprep.subr.mxu0 0.0
        %3506 = vmatpush1.msra.mxu0 0.0
        %3507 = vmatprep.subr.mxu0 0.0
        %3508 = vmatpush1.msra.mxu0 0.0
        %3509 = vmatprep.subr.mxu0 0.0
        %3510 = vmatpush1.msra.mxu0 0.0
        %3511 = vmatprep.subr.mxu0 0.0
        %3512 = vmatpush1.msra.mxu0 0.0
        %3513 = vmatprep.subr.mxu0 0.0
        %3514 = vmatpush1.msra.mxu0 0.0
        %3515 = vmatprep.subr.mxu0 0.0
        %3516 = vmatpush1.msra.mxu0 0.0
        %3517 = vmatprep.subr.mxu0 0.0
        %3518 = vmatpush1.msra.mxu0 0.0
        %3519 = vmatprep.subr.mxu0 0.0
        %3520 = vmatpush1.msra.mxu0 0.0
        %3521 = vmatprep.subr.mxu0 0.0
        %3522 = vmatpush1.msra.mxu0 0.0
        %3523 = vmatprep.subr.mxu0 0.0
        %3524 = vmatpush1.msra.mxu0 0.0
        %3525 = vmatprep.subr.mxu0 0.0
        %3526 = vmatpush1.msra.mxu0 0.0
        %3527 = vmatprep.subr.mxu0 0.0
        %3528 = vmatpush1.msra.mxu0 0.0
        %3529 = vmatprep.subr.mxu0 0.0
        %3530 = vmatpush1.msra.mxu0 0.0
        %3531 = vmatprep.subr.mxu0 0.0
        %3532 = vmatpush1.msra.mxu0 0.0
        %3533 = vmatprep.subr.mxu0 0.0
        %3534 = vmatpush1.msra.mxu0 0.0
        %3535 = vmatprep.subr.mxu0 0.0
        %3536 = vmatpush1.msra.mxu0 0.0
        %3537 = vmatprep.subr.mxu0 0.0
        %3538 = vmatpush1.msra.mxu0 0.0
        %3539 = vmatprep.mubr.f32.mxu0 0.0
        %3540 = vmatmul.mubr.f32.gmra.mrb[0].mxu0 %v3470
        %v3541 = vpop.f32.mrb[0].mxu0
        %v3542 = vadd.f32 0.0, %v3541
        %v3543 = vpop.f32.mrb[0].mxu0
        %3544 = vmatprep.mubr.f32.mxu0 0.0
        %3545 = vmatmul.mubr.f32.gmra.mrb[0].mxu0 %v3473
        %v3546 = vpop.f32.mrb[0].mxu0
        %v3547 = vadd.f32 0.0, %v3546
        %v3548 = vpop.f32.mrb[0].mxu0
        %3549 = vdwg.mxu0
        %3550 = vrot.lane.b32.xlu0 %v503, 64
        %v3551 = vpop.permute.xlu0 %3550
        %3552 = vrot.lane.b32.xlu0 %v505, 64
        %v3553 = vpop.permute.xlu0 %3552
        %v3557 = vsel %vm1979, %v2328, 0
        %v3560 = vsel %vm1979, %v2329, 0
        %3562 = vmatprep.subr.mxu0 0.0
        %3563 = vmatpush1.msra.mxu0 %v3551
        %3564 = vmatprep.subr.mxu0 0.0
        %3565 = vmatpush1.msra.mxu0 %v3553
        %3566 = vmatprep.subr.mxu0 0.0
        %3567 = vmatpush1.msra.mxu0 0.0
        %3568 = vmatprep.subr.mxu0 0.0
        %3569 = vmatpush1.msra.mxu0 0.0
        %3570 = vmatprep.subr.mxu0 0.0
        %3571 = vmatpush1.msra.mxu0 0.0
        %3572 = vmatprep.subr.mxu0 0.0
        %3573 = vmatpush1.msra.mxu0 0.0
        %3574 = vmatprep.subr.mxu0 0.0
        %3575 = vmatpush1.msra.mxu0 0.0
        %3576 = vmatprep.subr.mxu0 0.0
        %3577 = vmatpush1.msra.mxu0 0.0
        %3578 = vmatprep.subr.mxu0 0.0
        %3579 = vmatpush1.msra.mxu0 0.0
        %3580 = vmatprep.subr.mxu0 0.0
        %3581 = vmatpush1.msra.mxu0 0.0
        %3582 = vmatprep.subr.mxu0 0.0
        %3583 = vmatpush1.msra.mxu0 0.0
        %3584 = vmatprep.subr.mxu0 0.0
        %3585 = vmatpush1.msra.mxu0 0.0
        %3586 = vmatprep.subr.mxu0 0.0
        %3587 = vmatpush1.msra.mxu0 0.0
        %3588 = vmatprep.subr.mxu0 0.0
        %3589 = vmatpush1.msra.mxu0 0.0
        %3590 = vmatprep.subr.mxu0 0.0
        %3591 = vmatpush1.msra.mxu0 0.0
        %3592 = vmatprep.subr.mxu0 0.0
        %3593 = vmatpush1.msra.mxu0 0.0
        %3594 = vmatprep.subr.mxu0 0.0
        %3595 = vmatpush1.msra.mxu0 0.0
        %3596 = vmatprep.subr.mxu0 0.0
        %3597 = vmatpush1.msra.mxu0 0.0
        %3598 = vmatprep.subr.mxu0 0.0
        %3599 = vmatpush1.msra.mxu0 0.0
        %3600 = vmatprep.subr.mxu0 0.0
        %3601 = vmatpush1.msra.mxu0 0.0
        %3602 = vmatprep.subr.mxu0 0.0
        %3603 = vmatpush1.msra.mxu0 0.0
        %3604 = vmatprep.subr.mxu0 0.0
        %3605 = vmatpush1.msra.mxu0 0.0
        %3606 = vmatprep.subr.mxu0 0.0
        %3607 = vmatpush1.msra.mxu0 0.0
        %3608 = vmatprep.subr.mxu0 0.0
        %3609 = vmatpush1.msra.mxu0 0.0
        %3610 = vmatprep.subr.mxu0 0.0
        %3611 = vmatpush1.msra.mxu0 0.0
        %3612 = vmatprep.subr.mxu0 0.0
        %3613 = vmatpush1.msra.mxu0 0.0
        %3614 = vmatprep.subr.mxu0 0.0
        %3615 = vmatpush1.msra.mxu0 0.0
        %3616 = vmatprep.subr.mxu0 0.0
        %3617 = vmatpush1.msra.mxu0 0.0
        %3618 = vmatprep.subr.mxu0 0.0
        %3619 = vmatpush1.msra.mxu0 0.0
        %3620 = vmatprep.subr.mxu0 0.0
        %3621 = vmatpush1.msra.mxu0 0.0
        %3622 = vmatprep.subr.mxu0 0.0
        %3623 = vmatpush1.msra.mxu0 0.0
        %3624 = vmatprep.subr.mxu0 0.0
        %3625 = vmatpush1.msra.mxu0 0.0
        %3626 = vmatprep.mubr.f32.mxu0 0.0
        %3627 = vmatmul.mubr.f32.gmra.mrb[0].mxu0 %v3557
        %v3628 = vpop.f32.mrb[0].mxu0
        %v3629 = vadd.f32 0.0, %v3628
        %v3630 = vpop.f32.mrb[0].mxu0
        %3631 = vmatprep.mubr.f32.mxu0 0.0
        %3632 = vmatmul.mubr.f32.gmra.mrb[0].mxu0 %v3560
        %v3633 = vpop.f32.mrb[0].mxu0
        %v3634 = vadd.f32 0.0, %v3633
        %v3635 = vpop.f32.mrb[0].mxu0
        %3636 = vdwg.mxu0
        %3637 = vrot.lane.b32.xlu0 %v519, 64
        %v3638 = vpop.permute.xlu0 %3637
        %3639 = vrot.lane.b32.xlu0 %v521, 64
        %v3640 = vpop.permute.xlu0 %3639
        %v3644 = vsel %vm1979, %v2330, 0
        %v3647 = vsel %vm1979, %v2331, 0
        %3649 = vmatprep.subr.mxu0 0.0
        %3650 = vmatpush1.msra.mxu0 %v3638
        %3651 = vmatprep.subr.mxu0 0.0
        %3652 = vmatpush1.msra.mxu0 %v3640
        %3653 = vmatprep.subr.mxu0 0.0
        %3654 = vmatpush1.msra.mxu0 0.0
        %3655 = vmatprep.subr.mxu0 0.0
        %3656 = vmatpush1.msra.mxu0 0.0
        %3657 = vmatprep.subr.mxu0 0.0
        %3658 = vmatpush1.msra.mxu0 0.0
        %3659 = vmatprep.subr.mxu0 0.0
        %3660 = vmatpush1.msra.mxu0 0.0
        %3661 = vmatprep.subr.mxu0 0.0
        %3662 = vmatpush1.msra.mxu0 0.0
        %3663 = vmatprep.subr.mxu0 0.0
        %3664 = vmatpush1.msra.mxu0 0.0
        %3665 = vmatprep.subr.mxu0 0.0
        %3666 = vmatpush1.msra.mxu0 0.0
        %3667 = vmatprep.subr.mxu0 0.0
        %3668 = vmatpush1.msra.mxu0 0.0
        %3669 = vmatprep.subr.mxu0 0.0
        %3670 = vmatpush1.msra.mxu0 0.0
        %3671 = vmatprep.subr.mxu0 0.0
        %3672 = vmatpush1.msra.mxu0 0.0
        %3673 = vmatprep.subr.mxu0 0.0
        %3674 = vmatpush1.msra.mxu0 0.0
        %3675 = vmatprep.subr.mxu0 0.0
        %3676 = vmatpush1.msra.mxu0 0.0
        %3677 = vmatprep.subr.mxu0 0.0
        %3678 = vmatpush1.msra.mxu0 0.0
        %3679 = vmatprep.subr.mxu0 0.0
        %3680 = vmatpush1.msra.mxu0 0.0
        %3681 = vmatprep.subr.mxu0 0.0
        %3682 = vmatpush1.msra.mxu0 0.0
        %3683 = vmatprep.subr.mxu0 0.0
        %3684 = vmatpush1.msra.mxu0 0.0
        %3685 = vmatprep.subr.mxu0 0.0
        %3686 = vmatpush1.msra.mxu0 0.0
        %3687 = vmatprep.subr.mxu0 0.0
        %3688 = vmatpush1.msra.mxu0 0.0
        %3689 = vmatprep.subr.mxu0 0.0
        %3690 = vmatpush1.msra.mxu0 0.0
        %3691 = vmatprep.subr.mxu0 0.0
        %3692 = vmatpush1.msra.mxu0 0.0
        %3693 = vmatprep.subr.mxu0 0.0
        %3694 = vmatpush1.msra.mxu0 0.0
        %3695 = vmatprep.subr.mxu0 0.0
        %3696 = vmatpush1.msra.mxu0 0.0
        %3697 = vmatprep.subr.mxu0 0.0
        %3698 = vmatpush1.msra.mxu0 0.0
        %3699 = vmatprep.subr.mxu0 0.0
        %3700 = vmatpush1.msra.mxu0 0.0
        %3701 = vmatprep.subr.mxu0 0.0
        %3702 = vmatpush1.msra.mxu0 0.0
        %3703 = vmatprep.subr.mxu0 0.0
        %3704 = vmatpush1.msra.mxu0 0.0
        %3705 = vmatprep.subr.mxu0 0.0
        %3706 = vmatpush1.msra.mxu0 0.0
        %3707 = vmatprep.subr.mxu0 0.0
        %3708 = vmatpush1.msra.mxu0 0.0
        %3709 = vmatprep.subr.mxu0 0.0
        %3710 = vmatpush1.msra.mxu0 0.0
        %3711 = vmatprep.subr.mxu0 0.0
        %3712 = vmatpush1.msra.mxu0 0.0
        %3713 = vmatprep.mubr.f32.mxu0 0.0
        %3714 = vmatmul.mubr.f32.gmra.mrb[0].mxu0 %v3644
        %v3715 = vpop.f32.mrb[0].mxu0
        %v3716 = vadd.f32 0.0, %v3715
        %v3717 = vpop.f32.mrb[0].mxu0
        %3718 = vmatprep.mubr.f32.mxu0 0.0
        %3719 = vmatmul.mubr.f32.gmra.mrb[0].mxu0 %v3647
        %v3720 = vpop.f32.mrb[0].mxu0
        %v3721 = vadd.f32 0.0, %v3720
        %v3722 = vpop.f32.mrb[0].mxu0
        %3723 = vdwg.mxu0
        %3724 = vst.msk [vmem:[#allocation2] sm:$0xff] %vm526, %v2411
        %3725 = vst.msk [vmem:[#allocation2 + $0x8] sm:$0xff] %vm526, %v2416
        %3726 = vst.msk [vmem:[#allocation2 + $0x10] sm:$0xff] %vm526, %v2759
        %3727 = vst.msk [vmem:[#allocation2 + $0x18] sm:$0xff] %vm526, %v2764
        %3728 = vst.msk [vmem:[#allocation2 + $0x20] sm:$0xff] %vm526, %v3107
        %3729 = vst.msk [vmem:[#allocation2 + $0x28] sm:$0xff] %vm526, %v3112
        %3730 = vst.msk [vmem:[#allocation2 + $0x30] sm:$0xff] %vm526, %v3455
        %3731 = vst.msk [vmem:[#allocation2 + $0x38] sm:$0xff] %vm526, %v3460
        %3740 = vrot.lane.b32.xlu0 %v2498, 8
        %v3741 = vpop.permute.xlu0 %3740
        %3742 = vrot.lane.b32.xlu0 %v2503, 8
        %v3743 = vpop.permute.xlu0 %3742
        %3744 = vrot.lane.b32.xlu0 %v2846, 8
        %v3745 = vpop.permute.xlu0 %3744
        %3746 = vrot.lane.b32.xlu0 %v2851, 8
        %v3747 = vpop.permute.xlu0 %3746
        %3748 = vrot.lane.b32.xlu0 %v3194, 8
        %v3749 = vpop.permute.xlu0 %3748
        %3750 = vrot.lane.b32.xlu0 %v3199, 8
        %v3751 = vpop.permute.xlu0 %3750
        %3752 = vrot.lane.b32.xlu0 %v3542, 8
        %v3753 = vpop.permute.xlu0 %3752
        %3754 = vrot.lane.b32.xlu0 %v3547, 8
        %v3755 = vpop.permute.xlu0 %3754
        %vm3764 = vcmask 130112
        %3765 = vst.msk [vmem:[#allocation2] sm:$0xff] %vm3764, %v3741
        %3766 = vst.msk [vmem:[#allocation2 + $0x8] sm:$0xff] %vm3764, %v3743
        %3767 = vst.msk [vmem:[#allocation2 + $0x10] sm:$0xff] %vm3764, %v3745
        %3768 = vst.msk [vmem:[#allocation2 + $0x18] sm:$0xff] %vm3764, %v3747
        %3769 = vst.msk [vmem:[#allocation2 + $0x20] sm:$0xff] %vm3764, %v3749
        %3770 = vst.msk [vmem:[#allocation2 + $0x28] sm:$0xff] %vm3764, %v3751
        %3771 = vst.msk [vmem:[#allocation2 + $0x30] sm:$0xff] %vm3764, %v3753
        %3772 = vst.msk [vmem:[#allocation2 + $0x38] sm:$0xff] %vm3764, %v3755
        %3781 = vrot.lane.b32.xlu0 %v2585, 16
        %v3782 = vpop.permute.xlu0 %3781
        %3783 = vrot.lane.b32.xlu0 %v2590, 16
        %v3784 = vpop.permute.xlu0 %3783
        %3785 = vrot.lane.b32.xlu0 %v2933, 16
        %v3786 = vpop.permute.xlu0 %3785
        %3787 = vrot.lane.b32.xlu0 %v2938, 16
        %v3788 = vpop.permute.xlu0 %3787
        %3789 = vrot.lane.b32.xlu0 %v3281, 16
        %v3790 = vpop.permute.xlu0 %3789
        %3791 = vrot.lane.b32.xlu0 %v3286, 16
        %v3792 = vpop.permute.xlu0 %3791
        %3793 = vrot.lane.b32.xlu0 %v3629, 16
        %v3794 = vpop.permute.xlu0 %3793
        %3795 = vrot.lane.b32.xlu0 %v3634, 16
        %v3796 = vpop.permute.xlu0 %3795
        %vm3805 = vcmask 195712
        %3806 = vst.msk [vmem:[#allocation2] sm:$0xff] %vm3805, %v3782
        %3807 = vst.msk [vmem:[#allocation2 + $0x8] sm:$0xff] %vm3805, %v3784
        %3808 = vst.msk [vmem:[#allocation2 + $0x10] sm:$0xff] %vm3805, %v3786
        %3809 = vst.msk [vmem:[#allocation2 + $0x18] sm:$0xff] %vm3805, %v3788
        %3810 = vst.msk [vmem:[#allocation2 + $0x20] sm:$0xff] %vm3805, %v3790
        %3811 = vst.msk [vmem:[#allocation2 + $0x28] sm:$0xff] %vm3805, %v3792
        %3812 = vst.msk [vmem:[#allocation2 + $0x30] sm:$0xff] %vm3805, %v3794
        %3813 = vst.msk [vmem:[#allocation2 + $0x38] sm:$0xff] %vm3805, %v3796
        %3822 = vrot.lane.b32.xlu0 %v2672, 24
        %v3823 = vpop.permute.xlu0 %3822
        %3824 = vrot.lane.b32.xlu0 %v2677, 24
        %v3825 = vpop.permute.xlu0 %3824
        %3826 = vrot.lane.b32.xlu0 %v3020, 24
        %v3827 = vpop.permute.xlu0 %3826
        %3828 = vrot.lane.b32.xlu0 %v3025, 24
        %v3829 = vpop.permute.xlu0 %3828
        %3830 = vrot.lane.b32.xlu0 %v3368, 24
        %v3831 = vpop.permute.xlu0 %3830
        %3832 = vrot.lane.b32.xlu0 %v3373, 24
        %v3833 = vpop.permute.xlu0 %3832
        %3834 = vrot.lane.b32.xlu0 %v3716, 24
        %v3835 = vpop.permute.xlu0 %3834
        %3836 = vrot.lane.b32.xlu0 %v3721, 24
        %v3837 = vpop.permute.xlu0 %3836
        %vm3846 = vcmask 261312
        %3847 = vst.msk [vmem:[#allocation2] sm:$0xff] %vm3846, %v3823
        %3848 = vst.msk [vmem:[#allocation2 + $0x8] sm:$0xff] %vm3846, %v3825
        %3849 = vst.msk [vmem:[#allocation2 + $0x10] sm:$0xff] %vm3846, %v3827
        %3850 = vst.msk [vmem:[#allocation2 + $0x18] sm:$0xff] %vm3846, %v3829
        %3851 = vst.msk [vmem:[#allocation2 + $0x20] sm:$0xff] %vm3846, %v3831
        %3852 = vst.msk [vmem:[#allocation2 + $0x28] sm:$0xff] %vm3846, %v3833
        %3853 = vst.msk [vmem:[#allocation2 + $0x30] sm:$0xff] %vm3846, %v3835
        %3854 = vst.msk [vmem:[#allocation2 + $0x38] sm:$0xff] %vm3846, %v3837
        %v3855 = vld [vmem:[#allocation2] sm:$0xff]
        %v3856 = vld [vmem:[#allocation2 + $0x8] sm:$0xff]
        %v3857 = vld [vmem:[#allocation2 + $0x10] sm:$0xff]
        %v3858 = vld [vmem:[#allocation2 + $0x18] sm:$0xff]
        %v3859 = vld [vmem:[#allocation2 + $0x20] sm:$0xff]
        %v3860 = vld [vmem:[#allocation2 + $0x28] sm:$0xff]
        %v3861 = vld [vmem:[#allocation2 + $0x30] sm:$0xff]
        %v3862 = vld [vmem:[#allocation2 + $0x38] sm:$0xff]
        %v3863 = vld [vmem:[#allocation8] sm:$0xff]
        %v3864 = vld [vmem:[#allocation8 + $0x8] sm:$0xff]
        %v3865 = vld [vmem:[#allocation8 + $0x10] sm:$0xff]
        %v3866 = vld [vmem:[#allocation8 + $0x18] sm:$0xff]
        %v3867 = vld [vmem:[%s4] sm:$0x1]
        %v3869 = vlaneseq
        %v3870 = vshrl.u32 %v3869, 7
        %v3871 = vsub.s32 0, %v3870
        %v3872 = vrot.slane %v3867, %v3871
        %v3875 = vsel %vm336, %v3855, 0
        %v3878 = vsel %vm336, %v3856, 0
        %v3881 = vsel %vm336, %v3857, 0
        %v3884 = vsel %vm336, %v3858, 0
        %v3887 = vsel %vm336, %v3859, 0
        %v3890 = vsel %vm336, %v3860, 0
        %v3893 = vsel %vm336, %v3861, 0
        %v3896 = vsel %vm336, %v3862, 0
        %3898 = vmatprep.subr.mxu0 0.0
        %3899 = vmatpush1.msra.mxu0 %v3863
        %3900 = vmatprep.subr.mxu0 0.0
        %3901 = vmatpush1.msra.mxu0 %v3864
        %3902 = vmatprep.subr.mxu0 0.0
        %3903 = vmatpush1.msra.mxu0 %v3865
        %3904 = vmatprep.subr.mxu0 0.0
        %3905 = vmatpush1.msra.mxu0 %v3866
        %3906 = vmatprep.subr.mxu0 0.0
        %3907 = vmatpush1.msra.mxu0 0.0
        %3908 = vmatprep.subr.mxu0 0.0
        %3909 = vmatpush1.msra.mxu0 0.0
        %3910 = vmatprep.subr.mxu0 0.0
        %3911 = vmatpush1.msra.mxu0 0.0
        %3912 = vmatprep.subr.mxu0 0.0
        %3913 = vmatpush1.msra.mxu0 0.0
        %3914 = vmatprep.subr.mxu0 0.0
        %3915 = vmatpush1.msra.mxu0 0.0
        %3916 = vmatprep.subr.mxu0 0.0
        %3917 = vmatpush1.msra.mxu0 0.0
        %3918 = vmatprep.subr.mxu0 0.0
        %3919 = vmatpush1.msra.mxu0 0.0
        %3920 = vmatprep.subr.mxu0 0.0
        %3921 = vmatpush1.msra.mxu0 0.0
        %3922 = vmatprep.subr.mxu0 0.0
        %3923 = vmatpush1.msra.mxu0 0.0
        %3924 = vmatprep.subr.mxu0 0.0
        %3925 = vmatpush1.msra.mxu0 0.0
        %3926 = vmatprep.subr.mxu0 0.0
        %3927 = vmatpush1.msra.mxu0 0.0
        %3928 = vmatprep.subr.mxu0 0.0
        %3929 = vmatpush1.msra.mxu0 0.0
        %3930 = vmatprep.subr.mxu0 0.0
        %3931 = vmatpush1.msra.mxu0 0.0
        %3932 = vmatprep.subr.mxu0 0.0
        %3933 = vmatpush1.msra.mxu0 0.0
        %3934 = vmatprep.subr.mxu0 0.0
        %3935 = vmatpush1.msra.mxu0 0.0
        %3936 = vmatprep.subr.mxu0 0.0
        %3937 = vmatpush1.msra.mxu0 0.0
        %3938 = vmatprep.subr.mxu0 0.0
        %3939 = vmatpush1.msra.mxu0 0.0
        %3940 = vmatprep.subr.mxu0 0.0
        %3941 = vmatpush1.msra.mxu0 0.0
        %3942 = vmatprep.subr.mxu0 0.0
        %3943 = vmatpush1.msra.mxu0 0.0
        %3944 = vmatprep.subr.mxu0 0.0
        %3945 = vmatpush1.msra.mxu0 0.0
        %3946 = vmatprep.subr.mxu0 0.0
        %3947 = vmatpush1.msra.mxu0 0.0
        %3948 = vmatprep.subr.mxu0 0.0
        %3949 = vmatpush1.msra.mxu0 0.0
        %3950 = vmatprep.subr.mxu0 0.0
        %3951 = vmatpush1.msra.mxu0 0.0
        %3952 = vmatprep.subr.mxu0 0.0
        %3953 = vmatpush1.msra.mxu0 0.0
        %3954 = vmatprep.subr.mxu0 0.0
        %3955 = vmatpush1.msra.mxu0 0.0
        %3956 = vmatprep.subr.mxu0 0.0
        %3957 = vmatpush1.msra.mxu0 0.0
        %3958 = vmatprep.subr.mxu0 0.0
        %3959 = vmatpush1.msra.mxu0 0.0
        %3960 = vmatprep.subr.mxu0 0.0
        %3961 = vmatpush1.msra.mxu0 0.0
        %3962 = vmatprep.mubr.f32.mxu0 0.0
        %3963 = vmatmul.mubr.f32.gmra.mrb[0].mxu0 %v3875
        %v3964 = vpop.f32.mrb[0].mxu0
        %v3965 = vadd.f32 %v3872, %v3964
        %v3966 = vpop.f32.mrb[0].mxu0
        %3967 = vmatprep.mubr.f32.mxu0 0.0
        %3968 = vmatmul.mubr.f32.gmra.mrb[0].mxu0 %v3878
        %v3969 = vpop.f32.mrb[0].mxu0
        %v3970 = vadd.f32 %v3872, %v3969
        %v3971 = vpop.f32.mrb[0].mxu0
        %3972 = vmatprep.mubr.f32.mxu0 0.0
        %3973 = vmatmul.mubr.f32.gmra.mrb[0].mxu0 %v3881
        %v3974 = vpop.f32.mrb[0].mxu0
        %v3975 = vadd.f32 %v3872, %v3974
        %v3976 = vpop.f32.mrb[0].mxu0
        %3977 = vmatprep.mubr.f32.mxu0 0.0
        %3978 = vmatmul.mubr.f32.gmra.mrb[0].mxu0 %v3884
        %v3979 = vpop.f32.mrb[0].mxu0
        %v3980 = vadd.f32 %v3872, %v3979
        %v3981 = vpop.f32.mrb[0].mxu0
        %3982 = vmatprep.mubr.f32.mxu0 0.0
        %3983 = vmatmul.mubr.f32.gmra.mrb[0].mxu0 %v3887
        %v3984 = vpop.f32.mrb[0].mxu0
        %v3985 = vadd.f32 %v3872, %v3984
        %v3986 = vpop.f32.mrb[0].mxu0
        %3987 = vmatprep.mubr.f32.mxu0 0.0
        %3988 = vmatmul.mubr.f32.gmra.mrb[0].mxu0 %v3890
        %v3989 = vpop.f32.mrb[0].mxu0
        %v3990 = vadd.f32 %v3872, %v3989
        %v3991 = vpop.f32.mrb[0].mxu0
        %3992 = vmatprep.mubr.f32.mxu0 0.0
        %3993 = vmatmul.mubr.f32.gmra.mrb[0].mxu0 %v3893
        %v3994 = vpop.f32.mrb[0].mxu0
        %v3995 = vadd.f32 %v3872, %v3994
        %v3996 = vpop.f32.mrb[0].mxu0
        %3997 = vmatprep.mubr.f32.mxu0 0.0
        %3998 = vmatmul.mubr.f32.gmra.mrb[0].mxu0 %v3896
        %v3999 = vpop.f32.mrb[0].mxu0
        %v4000 = vadd.f32 %v3872, %v3999
        %v4001 = vpop.f32.mrb[0].mxu0
        %4002 = vdwg.mxu0
        %4003 = vst.msk [vmem:[%s314] sm:$0xff] %vm336, %v3965
        %4004 = vst.msk [vmem:[%s314 + $0x8] sm:$0xff] %vm336, %v3970
        %4005 = vst.msk [vmem:[%s314 + $0x10] sm:$0xff] %vm336, %v3975
        %4006 = vst.msk [vmem:[%s314 + $0x18] sm:$0xff] %vm336, %v3980
        %4007 = vst.msk [vmem:[%s314 + $0x20] sm:$0xff] %vm336, %v3985
        %4008 = vst.msk [vmem:[%s314 + $0x28] sm:$0xff] %vm336, %v3990
        %4009 = vst.msk [vmem:[%s314 + $0x30] sm:$0xff] %vm336, %v3995
        %4010 = vst.msk [vmem:[%s314 + $0x38] sm:$0xff] %vm336, %v4000
        %s4011 = sand.u32 %s164, 1
        %s4012 = scalar_lea.sflag [#allocation5], %s4011
        %s4013 = sand.u32 %s164, 1
        %s4014 = smul.addr %s4013, 64
        %s4015 = scalar_lea.vmem [#allocation11], %s4014
        // Predicated region
        $region61: #{tpu_custom_call.1} parent=43 // pred_check
          %p4016 = pneg %p174
        $region62: #{tpu_custom_call.1} parent=43 // pred_check_branch
          %4018 = sbr.rel (%p4016) target = $region64
        $region63: #{tpu_custom_call.1} parent=43 // pred_region
          %s4019 = smul.u32 4, %s25
          %s4021 = ssub.s32 1024, 1024
          %4022 = vsyncadd %s4012, %s4021
          %s4023 = smul.addr %s4019, 2
          %s4024 = smul.addr %s4023, 128
          %s4025 = scalar_lea.hbm %s6, %s4024
          %s4026 = sshll.u32 %s4015, 4
          %s4027 = int_to_ptr.vmem [resolvable:$true] %s4026
          %4032 = dma.vmem_to_hbm [thread:$0]  %s4027, 1024, %s4025, %s4012, 128, 128, 8
        $region64: #{tpu_custom_call.1} parent=43 // pred_fallthru
          _
      $region44: #{tpu_custom_call.1} parent=5 // pred_fallthru
        _
      %p4033 = scmp.le.s32.totalorder 2, %s20
      // Predicated region
      $region65: #{tpu_custom_call.1} parent=5 // pred_check
        %p4034 = pneg %p4033
      $region66: #{tpu_custom_call.1} parent=5 // pred_check_branch
        %4036 = sbr.rel (%p4034) target = $region68
      $region67: #{tpu_custom_call.1} parent=5 // pred_region
        %s4037 = ssub.s32 %s20, 2
        // Predicated region
        $region69: #{tpu_custom_call.1} parent=67 // pred_check
          %p4038 = pneg %p180
        $region70: #{tpu_custom_call.1} parent=67 // pred_check_branch
          %4040 = sbr.rel (%p4038) target = $region72
        $region71: #{tpu_custom_call.1} parent=67 // pred_region
          %s4041 = sand.u32 %s165, 1
          %s4042 = scalar_lea.sflag [#allocation5], %s4041
          %s4043 = sand.u32 %s165, 1
          %s4044 = smul.addr %s4043, 64
          %s4045 = scalar_lea.vmem [#allocation11], %s4044
          %4046 = dma.done %s4042, 1024
        $region72: #{tpu_custom_call.1} parent=67 // pred_fallthru
          _
      $region68: #{tpu_custom_call.1} parent=5 // pred_fallthru
        _
    $region6: #{tpu_custom_call.1} parent=1 // loop_footer
      %s24 = sadd.s32 1, %s20
    $region7: #{tpu_custom_call.1} parent=1 // loop_footer_branch
      %19 = sbr.rel target = $region3
    $region8: #{tpu_custom_call.1} parent=1 // loop_exit
      _
    %4047 = vsyncpa [#allocation4], 1
    %s4048 = scalar_lea.sflag [#allocation4], 1
    %4049 = vsyncpa %s4048, 1
    %4050 = vsyncpa [#allocation7], 1
    %4051 = vsyncpa [#allocation10], 1
    %4052 = vsyncpa [#allocation5], 1
    %s4053 = scalar_lea.sflag [#allocation5], 1
    %4054 = vsyncpa %s4053, 1

</llo_original>
